<compile_context>
chip_gen: v7x
topology: tpu7x:2x2x1
jax: 0.10.0
libtpu: 0.0.40
codegen_flags: <defaults>
</compile_context>

<pallas_src>
import functools

import jax
import jax.numpy as jnp
from jax.experimental import pallas as pl
from jax.experimental.pallas import tpu as pltpu


# -----------------------------------------------------------------------------
# Fused kernel
# -----------------------------------------------------------------------------
def _first_block_kernel(
    x_ref,      # (NB, Cin, L)      padded-flat input images (zero pad ring)
    w_ref,      # (54, Cout, Cmax)  tap weights: conv c, tap t at row c*9 + t
    b_ref,      # (6, Cout, 1)      conv biases (base, r1c1, r1c2, r2c1, r2c2, cstride)
    bnsc_ref,   # (4, Cout, 1)      folded BN scales (res1.bn1, res1.bn2, res2.bn1, res2.bn2)
    bnsh_ref,   # (4, Cout, 1)      folded BN shifts
    pm_ref,     # (1, NB*L)         1.0 on interior lanes, 0.0 on the pad ring
    link_ref,   # (NB, Cout, L)     output: c1 + r2 (padded-flat)
    pool_ref,   # (NB, Cout, L)     output: stride-1 cstride conv (padded-flat)
    apad_ref,   # VMEM (Cmax, PAD_L + NB*L + Wp + 1) staged padded-flat activation
    *,
    Cin, Cout, Cmax, H, W, NB, PAD_L,
):
    f32 = jnp.float32
    Hp, Wp = H + 2, W + 2
    L = Hp * Wp
    LT = NB * L
    S = Wp + 1                       # max |flat lane shift| of a 3x3 tap

    # Only the slack lane columns actually read outside the staged interior need
    # to be zero; zero just those, every step (tiny, and megacore-safe).
    zcol = jnp.zeros((Cmax, S), f32)
    apad_ref[:, PAD_L - S:PAD_L] = zcol
    apad_ref[:, PAD_L + LT:PAD_L + LT + S] = zcol

    pad_mask = pm_ref[...]                                    # (1, LT)

    def set_act(a):
        # Stage a (Cout, LT) padded-flat activation; pad-ring lanes forced to 0.
        apad_ref[0:Cout, PAD_L:PAD_L + LT] = a * pad_mask
        if Cout < Cmax:
            apad_ref[Cout:Cmax, PAD_L:PAD_L + LT] = jnp.zeros((Cmax - Cout, LT), f32)

    def conv3x3(c):
        # 3x3 / stride-1 / pad-1 conv of the staged activation: 9 per-tap
        # accumulating MXU matmuls read directly from shifted apad views (a
        # spatial (dh, dw) shift is a flat lane offset dh*Wp + dw; the zero pad
        # ring / slack absorb row wrap and cross-image bleed).
        acc = None
        t = 0
        for dh in (-1, 0, 1):
            for dw in (-1, 0, 1):
                off = PAD_L + dh * Wp + dw
                p = jnp.dot(w_ref[c * 9 + t], apad_ref[:, off:off + LT],
                            preferred_element_type=f32)
                acc = p if acc is None else acc + p
                t += 1
        return acc + b_ref[c]                                 # (Cout, LT)

    def bn_relu(a, i):
        return jnp.maximum(a * bnsc_ref[i] + bnsh_ref[i], 0.0)

    # ---- baseconv ------------------------------------------------------------
    for b in range(NB):
        apad_ref[0:Cin, PAD_L + b * L:PAD_L + (b + 1) * L] = x_ref[b].astype(f32)
    if Cin < Cmax:
        apad_ref[Cin:Cmax, PAD_L:PAD_L + LT] = jnp.zeros((Cmax - Cin, LT), f32)
    c1 = conv3x3(0)

    # ---- residual block 1 ----------------------------------------------------
    set_act(bn_relu(c1, 0))
    h = conv3x3(1)
    set_act(bn_relu(h, 1))
    r1 = c1 + conv3x3(2)

    # ---- residual block 2 ----------------------------------------------------
    set_act(bn_relu(r1, 2))
    h = conv3x3(3)
    set_act(bn_relu(h, 3))
    r2 = r1 + conv3x3(4)

    # ---- link = c1 + r2 ;  pool = 3x3 / stride-2 conv of link -----------------
    link = c1 + r2                                            # (Cout, LT)
    set_act(link)
    pfull = conv3x3(5)                                        # stride-1; wrapper subsamples

    for b in range(NB):
        link_ref[b] = link[:, b * L:(b + 1) * L].astype(link_ref.dtype)
        pool_ref[b] = pfull[:, b * L:(b + 1) * L].astype(pool_ref.dtype)


# -----------------------------------------------------------------------------
# Wrapper (parameter plumbing + two tiny output slices)
# -----------------------------------------------------------------------------
def _fold_bn(gamma, beta, mean, var, eps=1e-5):
    scale = gamma / jnp.sqrt(var + eps)
    return scale, beta - mean * scale


def _pick_block_batch(n, cap=8):
    # Largest divisor of n that is <= cap while keeping >= 2 grid steps, so the
    # "parallel" grid axis still has work for both TensorCores on v7x.
    best = 1
    for nb in range(1, min(cap, n) + 1):
        if n % nb == 0 and n // nb >= 2:
            best = nb
    return best


@functools.partial(jax.jit, static_argnames=("pool", "block_batch"))
def first_block_forward(x, params, pool="stride", block_batch=None):
    """Fused FirstBlock forward.  Returns (pool, link), like the PyTorch module."""
    if pool != "stride":
        # TODO(synk): pool='max' (MaxPool2d) branch is not implemented in the fused kernel.
        raise NotImplementedError("only the default pool='stride' path is implemented")

    N, Cin, H, W = x.shape
    Cout = params["conv0_w"].shape[0]
    Hp, Wp = H + 2, W + 2
    L = Hp * Wp
    Ho, Wo = (H - 1) // 2 + 1, (W - 1) // 2 + 1
    Cmax = max(Cin, Cout)
    f32 = jnp.float32

    NB = block_batch if block_batch is not None else _pick_block_batch(N)
    if N % NB != 0:
        raise ValueError(f"block_batch={NB} must divide batch size {N}")
    LT = NB * L
    pad_l = max(128, ((Wp + 1 + 127) // 128) * 128)   # vreg-aligned left slack

    # Input: spatial zero-pad, flatten (Hp, Wp) -> L (small one-off XLA pad).
    # TODO(synk): scatter the raw (N, Cin, H*W) input into apad inside the kernel
    # to remove this wrapper-side pad pass entirely.
    x_pf = jnp.pad(x.astype(f32), ((0, 0), (0, 0), (1, 1), (1, 1))).reshape(N, Cin, L)

    # Conv weights as per-tap (Cout, Cmax) matrices, all 6 convs stacked.
    def conv_taps(w):
        cout, cin, kh, kw = w.shape
        wt = jnp.transpose(w.astype(f32), (2, 3, 0, 1)).reshape(kh * kw, cout, cin)
        if cin < Cmax:
            wt = jnp.pad(wt, ((0, 0), (0, 0), (0, Cmax - cin)))
        return wt

    w_all = jnp.concatenate(
        [conv_taps(params[k]) for k in
         ("conv0_w", "res1_conv1_w", "res1_conv2_w",
          "res2_conv1_w", "res2_conv2_w", "cstride_w")], axis=0)     # (54, Cout, Cmax)
    b_all = jnp.stack(
        [params[k].astype(f32).reshape(Cout, 1) for k in
         ("conv0_b", "res1_conv1_b", "res1_conv2_b",
          "res2_conv1_b", "res2_conv2_b", "cstride_b")])             # (6, Cout, 1)

    # BatchNorm folded to inference-mode per-channel scale/shift.
    scs, shs = [], []
    for k in ("res1_bn1", "res1_bn2", "res2_bn1", "res2_bn2"):
        sc, sh = _fold_bn(params[k + "_gamma"].astype(f32), params[k + "_beta"].astype(f32),
                          params[k + "_mean"].astype(f32), params[k + "_var"].astype(f32))
        scs.append(sc.reshape(Cout, 1))
        shs.append(sh.reshape(Cout, 1))
    bn_sc = jnp.stack(scs)                                           # (4, Cout, 1)
    bn_sh = jnp.stack(shs)                                           # (4, Cout, 1)

    # Interior / pad-ring lane mask, tiled per image slab.
    qh = jnp.arange(Hp)[:, None]
    qw = jnp.arange(Wp)[None, :]
    mask1 = (((qh >= 1) & (qh <= H) & (qw >= 1) & (qw <= W)).astype(f32).reshape(1, L))
    pad_mask = jnp.tile(mask1, (1, NB))                              # (1, LT)

    kernel = functools.partial(_first_block_kernel, Cin=Cin, Cout=Cout, Cmax=Cmax,
                               H=H, W=W, NB=NB, PAD_L=pad_l)

    flops = N * 6 * 2 * Cout * 9 * Cmax * L
    bytes_accessed = 4 * (x_pf.size + w_all.size + b_all.size + bn_sc.size + bn_sh.size
                          + pad_mask.size + 2 * N * Cout * L)

    link_pf, pool_pf = pl.pallas_call(
        kernel,
        out_shape=(
            jax.ShapeDtypeStruct((N, Cout, L), x.dtype),
            jax.ShapeDtypeStruct((N, Cout, L), x.dtype),
        ),
        grid_spec=pltpu.PrefetchScalarGridSpec(
            num_scalar_prefetch=0,
            grid=(N // NB,),
            in_specs=[
                pl.BlockSpec((NB, Cin, L), lambda n: (n, 0, 0)),
                pl.BlockSpec((54, Cout, Cmax), lambda n: (0, 0, 0)),
                pl.BlockSpec((6, Cout, 1), lambda n: (0, 0, 0)),
                pl.BlockSpec((4, Cout, 1), lambda n: (0, 0, 0)),
                pl.BlockSpec((4, Cout, 1), lambda n: (0, 0, 0)),
                pl.BlockSpec((1, LT), lambda n: (0, 0)),
            ],
            out_specs=[
                pl.BlockSpec((NB, Cout, L), lambda n: (n, 0, 0)),
                pl.BlockSpec((NB, Cout, L), lambda n: (n, 0, 0)),
            ],
            scratch_shapes=[
                pltpu.VMEM((Cmax, pad_l + LT + Wp + 1), jnp.float32),
            ],
        ),
        compiler_params=pltpu.CompilerParams(
            dimension_semantics=("parallel",),
            vmem_limit_bytes=32 * 1024 * 1024,
        ),
        cost_estimate=pl.CostEstimate(flops=flops, transcendentals=0,
                                      bytes_accessed=bytes_accessed),
    )(x_pf, w_all, b_all, bn_sc, bn_sh, pad_mask)

    # Tiny strided slices replace the old dense 0/1 selector matmuls.
    link = link_pf.reshape(N, Cout, Hp, Wp)[:, :, 1:H + 1, 1:W + 1]
    pool = pool_pf.reshape(N, Cout, Hp, Wp)[:, :, 1:1 + 2 * Ho:2, 1:1 + 2 * Wo:2]
    return pool, link


# -----------------------------------------------------------------------------
# Pure-JAX reference (same math, via lax.conv) and self-check
# -----------------------------------------------------------------------------
def _reference_first_block(x, params):
    hi = jax.lax.Precision.HIGHEST

    def conv(a, w, b, stride=1):
        out = jax.lax.conv_general_dilated(
            a, w, window_strides=(stride, stride), padding=((1, 1), (1, 1)),
            dimension_numbers=("NCHW", "OIHW", "NCHW"), precision=hi)
        return out + b.reshape(1, -1, 1, 1)

    def bn_relu(a, p):
        sc, sh = _fold_bn(params[p + "_gamma"], params[p + "_beta"],
                          params[p + "_mean"], params[p + "_var"])
        return jnp.maximum(a * sc.reshape(1, -1, 1, 1) + sh.reshape(1, -1, 1, 1), 0.0)

    c1 = conv(x, params["conv0_w"], params["conv0_b"])
    h = conv(bn_relu(c1, "res1_bn1"), params["res1_conv1_w"], params["res1_conv1_b"])
    r1 = c1 + conv(bn_relu(h, "res1_bn2"), params["res1_conv2_w"], params["res1_conv2_b"])
    h = conv(bn_relu(r1, "res2_bn1"), params["res2_conv1_w"], params["res2_conv1_b"])
    r2 = r1 + conv(bn_relu(h, "res2_bn2"), params["res2_conv2_w"], params["res2_conv2_b"])
    link = c1 + r2
    pool = conv(link, params["cstride_w"], params["cstride_b"], stride=2)
    return pool, link


if __name__ == "__main__":
    key = jax.random.PRNGKey(0)
    Cin, Cout, H, W = 4, 8, 16, 16

    def conv_init(k, cout, cin, ks=3):
        kw_, kb_ = jax.random.split(k)
        bound = 1.0 / (cin * ks * ks) ** 0.5
        w = jax.random.uniform(kw_, (cout, cin, ks, ks), jnp.float32, -bound, bound)
        b = jax.random.uniform(kb_, (cout,), jnp.float32, -bound, bound)
        return w, b

    def bn_init(k, c):
        k1, k2, k3, k4 = jax.random.split(k, 4)
        return (jax.random.uniform(k1, (c,), jnp.float32, 0.5, 1.5),
                0.1 * jax.random.normal(k2, (c,), jnp.float32),
                0.2 * jax.random.normal(k3, (c,), jnp.float32),
                jax.random.uniform(k4, (c,), jnp.float32, 0.5, 1.5))

    keys = jax.random.split(key, 12)
    params = {}
    params["conv0_w"], params["conv0_b"] = conv_init(keys[1], Cout, Cin)
    params["res1_conv1_w"], params["res1_conv1_b"] = conv_init(keys[2], Cout, Cout)
    params["res1_conv2_w"], params["res1_conv2_b"] = conv_init(keys[3], Cout, Cout)
    params["res2_conv1_w"], params["res2_conv1_b"] = conv_init(keys[4], Cout, Cout)
    params["res2_conv2_w"], params["res2_conv2_b"] = conv_init(keys[5], Cout, Cout)
    params["cstride_w"], params["cstride_b"] = conv_init(keys[6], Cout, Cout)
    for name, k in (("res1_bn1", keys[7]), ("res1_bn2", keys[8]),
                    ("res2_bn1", keys[9]), ("res2_bn2", keys[10])):
        g, b, m, v = bn_init(k, Cout)
        params[name + "_gamma"], params[name + "_beta"] = g, b
        params[name + "_mean"], params[name + "_var"] = m, v

    def check(x, block_batch=None):
        pool, link = first_block_forward(x, params, pool="stride", block_batch=block_batch)
        pool, link = jax.block_until_ready((pool, link))
        n = x.shape[0]
        assert link.shape == (n, Cout, H, W)
        assert pool.shape == (n, Cout, H // 2, W // 2)
        pool_want, link_want = _reference_first_block(x, params)
        assert jnp.allclose(link, link_want, atol=2e-3, rtol=2e-3), \
            float(jnp.max(jnp.abs(link - link_want)))
        assert jnp.allclose(pool, pool_want, atol=2e-3, rtol=2e-3), \
            float(jnp.max(jnp.abs(pool - pool_want)))

    # Default path: N=2 -> 1 image per step, grid=(2,) (keeps both v7x cores busy).
    x = jax.random.normal(keys[0], (2, Cin, H, W), jnp.float32)
    check(x)

    # Lane-axis batch-tiling path: 2 images per grid step, grid=(2,).
    x4 = jax.random.normal(keys[11], (4, Cin, H, W), jnp.float32)
    check(x4, block_batch=2)

    print("KERNEL_OK")
</pallas_src>

<mosaic_0001>
module attributes {stable_mosaic.version = 11 : i64} {
  func.func @_first_block_kernel(%arg0: i32, %arg1: memref<1x4x324xf32, #tpu.memory_space<vmem>>, %arg2: memref<54x8x8xf32, #tpu.memory_space<vmem>>, %arg3: memref<6x8x1xf32, #tpu.memory_space<vmem>>, %arg4: memref<4x8x1xf32, #tpu.memory_space<vmem>>, %arg5: memref<4x8x1xf32, #tpu.memory_space<vmem>>, %arg6: memref<1x324xf32, #tpu.memory_space<vmem>>, %arg7: memref<1x8x324xf32, #tpu.memory_space<vmem>>, %arg8: memref<1x8x324xf32, #tpu.memory_space<vmem>>, %arg9: memref<8x471xf32, #tpu.memory_space<vmem>>) attributes {dimension_semantics = [#tpu.dimension_semantics<parallel>], iteration_bounds = array<i64: 2>, scalar_prefetch = 0 : i64, scratch_operands = 1 : i64, tpu.core_type = #tpu.core_type<tc>, window_params = [{transform_indices = @transform_0, window_bounds = array<i64: 1, 4, 324>}, {pipeline_mode = #tpu.pipeline_mode<synchronous>, transform_indices = @transform_1, window_bounds = array<i64: 54, 8, 8>}, {pipeline_mode = #tpu.pipeline_mode<synchronous>, transform_indices = @transform_2, window_bounds = array<i64: 6, 8, 1>}, {pipeline_mode = #tpu.pipeline_mode<synchronous>, transform_indices = @transform_3, window_bounds = array<i64: 4, 8, 1>}, {pipeline_mode = #tpu.pipeline_mode<synchronous>, transform_indices = @transform_4, window_bounds = array<i64: 4, 8, 1>}, {pipeline_mode = #tpu.pipeline_mode<synchronous>, transform_indices = @transform_5, window_bounds = array<i64: 1, 324>}, {transform_indices = @transform_6, window_bounds = array<i64: 1, 8, 324>}, {transform_indices = @transform_7, window_bounds = array<i64: 1, 8, 324>}]} {
    %cst = arith.constant 0.000000e+00 : f32
    %0 = vector.broadcast %cst : f32 to vector<8x19xf32>
    %c0 = arith.constant 0 : index
    %c109 = arith.constant 109 : index
    %1 = vector.load %arg9[%c0, %c109] : memref<8x471xf32, #tpu.memory_space<vmem>>, vector<8x19xf32>
    tpu.vector_store %arg9[%c0, %c109], %0 {strides = array<i32>} : memref<8x471xf32, #tpu.memory_space<vmem>>, vector<8x19xf32>,
    %c0_0 = arith.constant 0 : index
    %c452 = arith.constant 452 : index
    %2 = vector.load %arg9[%c0_0, %c452] : memref<8x471xf32, #tpu.memory_space<vmem>>, vector<8x19xf32>
    tpu.vector_store %arg9[%c0_0, %c452], %0 {strides = array<i32>} : memref<8x471xf32, #tpu.memory_space<vmem>>, vector<8x19xf32>,
    %c0_1 = arith.constant 0 : index
    %c0_2 = arith.constant 0 : index
    %3 = vector.load %arg6[%c0_1, %c0_2] : memref<1x324xf32, #tpu.memory_space<vmem>>, vector<1x324xf32>
    %c0_3 = arith.constant 0 : index
    %c0_4 = arith.constant 0 : index
    %c0_5 = arith.constant 0 : index
    %4 = vector.load %arg1[%c0_3, %c0_4, %c0_5] : memref<1x4x324xf32, #tpu.memory_space<vmem>>, vector<1x4x324xf32>
    %5 = vector.shape_cast %4 : vector<1x4x324xf32> to vector<4x324xf32>
    %c0_6 = arith.constant 0 : index
    %c128 = arith.constant 128 : index
    %6 = vector.load %arg9[%c0_6, %c128] : memref<8x471xf32, #tpu.memory_space<vmem>>, vector<4x324xf32>
    tpu.vector_store %arg9[%c0_6, %c128], %5 {strides = array<i32>} : memref<8x471xf32, #tpu.memory_space<vmem>>, vector<4x324xf32>,
    %cst_7 = arith.constant 0.000000e+00 : f32
    %7 = vector.broadcast %cst_7 : f32 to vector<4x324xf32>
    %c4 = arith.constant 4 : index
    %c128_8 = arith.constant 128 : index
    %8 = vector.load %arg9[%c4, %c128_8] : memref<8x471xf32, #tpu.memory_space<vmem>>, vector<4x324xf32>
    tpu.vector_store %arg9[%c4, %c128_8], %7 {strides = array<i32>} : memref<8x471xf32, #tpu.memory_space<vmem>>, vector<4x324xf32>,
    %c0_9 = arith.constant 0 : index
    %c0_10 = arith.constant 0 : index
    %c0_11 = arith.constant 0 : index
    %9 = vector.load %arg2[%c0_9, %c0_10, %c0_11] : memref<54x8x8xf32, #tpu.memory_space<vmem>>, vector<1x8x8xf32>
    %10 = vector.shape_cast %9 : vector<1x8x8xf32> to vector<8x8xf32>
    %c0_12 = arith.constant 0 : index
    %c109_13 = arith.constant 109 : index
    %11 = vector.load %arg9[%c0_12, %c109_13] : memref<8x471xf32, #tpu.memory_space<vmem>>, vector<8x324xf32>
    %cst_14 = arith.constant dense<0.000000e+00> : vector<8x324xf32>
    %12 = tpu.matmul %10, %11, %cst_14 {dimension_numbers = #tpu.dot_dimension_numbers<[1], [0], [0], [1], [0, 0, 1, 1], [], []>} : vector<8x8xf32>, vector<8x324xf32>, vector<8x324xf32> -> vector<8x324xf32>
    %c1 = arith.constant 1 : index
    %c0_15 = arith.constant 0 : index
    %c0_16 = arith.constant 0 : index
    %13 = vector.load %arg2[%c1, %c0_15, %c0_16] : memref<54x8x8xf32, #tpu.memory_space<vmem>>, vector<1x8x8xf32>
    %14 = vector.shape_cast %13 : vector<1x8x8xf32> to vector<8x8xf32>
    %c0_17 = arith.constant 0 : index
    %c110 = arith.constant 110 : index
    %15 = vector.load %arg9[%c0_17, %c110] : memref<8x471xf32, #tpu.memory_space<vmem>>, vector<8x324xf32>
    %cst_18 = arith.constant dense<0.000000e+00> : vector<8x324xf32>
    %16 = tpu.matmul %14, %15, %cst_18 {dimension_numbers = #tpu.dot_dimension_numbers<[1], [0], [0], [1], [0, 0, 1, 1], [], []>} : vector<8x8xf32>, vector<8x324xf32>, vector<8x324xf32> -> vector<8x324xf32>
    %17 = arith.addf %12, %16 : vector<8x324xf32>
    %c2 = arith.constant 2 : index
    %c0_19 = arith.constant 0 : index
    %c0_20 = arith.constant 0 : index
    %18 = vector.load %arg2[%c2, %c0_19, %c0_20] : memref<54x8x8xf32, #tpu.memory_space<vmem>>, vector<1x8x8xf32>
    %19 = vector.shape_cast %18 : vector<1x8x8xf32> to vector<8x8xf32>
    %c0_21 = arith.constant 0 : index
    %c111 = arith.constant 111 : index
    %20 = vector.load %arg9[%c0_21, %c111] : memref<8x471xf32, #tpu.memory_space<vmem>>, vector<8x324xf32>
    %cst_22 = arith.constant dense<0.000000e+00> : vector<8x324xf32>
    %21 = tpu.matmul %19, %20, %cst_22 {dimension_numbers = #tpu.dot_dimension_numbers<[1], [0], [0], [1], [0, 0, 1, 1], [], []>} : vector<8x8xf32>, vector<8x324xf32>, vector<8x324xf32> -> vector<8x324xf32>
    %22 = arith.addf %17, %21 : vector<8x324xf32>
    %c3 = arith.constant 3 : index
    %c0_23 = arith.constant 0 : index
    %c0_24 = arith.constant 0 : index
    %23 = vector.load %arg2[%c3, %c0_23, %c0_24] : memref<54x8x8xf32, #tpu.memory_space<vmem>>, vector<1x8x8xf32>
    %24 = vector.shape_cast %23 : vector<1x8x8xf32> to vector<8x8xf32>
    %c0_25 = arith.constant 0 : index
    %c127 = arith.constant 127 : index
    %25 = vector.load %arg9[%c0_25, %c127] : memref<8x471xf32, #tpu.memory_space<vmem>>, vector<8x324xf32>
    %cst_26 = arith.constant dense<0.000000e+00> : vector<8x324xf32>
    %26 = tpu.matmul %24, %25, %cst_26 {dimension_numbers = #tpu.dot_dimension_numbers<[1], [0], [0], [1], [0, 0, 1, 1], [], []>} : vector<8x8xf32>, vector<8x324xf32>, vector<8x324xf32> -> vector<8x324xf32>
    %27 = arith.addf %22, %26 : vector<8x324xf32>
    %c4_27 = arith.constant 4 : index
    %c0_28 = arith.constant 0 : index
    %c0_29 = arith.constant 0 : index
    %28 = vector.load %arg2[%c4_27, %c0_28, %c0_29] : memref<54x8x8xf32, #tpu.memory_space<vmem>>, vector<1x8x8xf32>
    %29 = vector.shape_cast %28 : vector<1x8x8xf32> to vector<8x8xf32>
    %c0_30 = arith.constant 0 : index
    %c128_31 = arith.constant 128 : index
    %30 = vector.load %arg9[%c0_30, %c128_31] : memref<8x471xf32, #tpu.memory_space<vmem>>, vector<8x324xf32>
    %cst_32 = arith.constant dense<0.000000e+00> : vector<8x324xf32>
    %31 = tpu.matmul %29, %30, %cst_32 {dimension_numbers = #tpu.dot_dimension_numbers<[1], [0], [0], [1], [0, 0, 1, 1], [], []>} : vector<8x8xf32>, vector<8x324xf32>, vector<8x324xf32> -> vector<8x324xf32>
    %32 = arith.addf %27, %31 : vector<8x324xf32>
    %c5 = arith.constant 5 : index
    %c0_33 = arith.constant 0 : index
    %c0_34 = arith.constant 0 : index
    %33 = vector.load %arg2[%c5, %c0_33, %c0_34] : memref<54x8x8xf32, #tpu.memory_space<vmem>>, vector<1x8x8xf32>
    %34 = vector.shape_cast %33 : vector<1x8x8xf32> to vector<8x8xf32>
    %c0_35 = arith.constant 0 : index
    %c129 = arith.constant 129 : index
    %35 = vector.load %arg9[%c0_35, %c129] : memref<8x471xf32, #tpu.memory_space<vmem>>, vector<8x324xf32>
    %cst_36 = arith.constant dense<0.000000e+00> : vector<8x324xf32>
    %36 = tpu.matmul %34, %35, %cst_36 {dimension_numbers = #tpu.dot_dimension_numbers<[1], [0], [0], [1], [0, 0, 1, 1], [], []>} : vector<8x8xf32>, vector<8x324xf32>, vector<8x324xf32> -> vector<8x324xf32>
    %37 = arith.addf %32, %36 : vector<8x324xf32>
    %c6 = arith.constant 6 : index
    %c0_37 = arith.constant 0 : index
    %c0_38 = arith.constant 0 : index
    %38 = vector.load %arg2[%c6, %c0_37, %c0_38] : memref<54x8x8xf32, #tpu.memory_space<vmem>>, vector<1x8x8xf32>
    %39 = vector.shape_cast %38 : vector<1x8x8xf32> to vector<8x8xf32>
    %c0_39 = arith.constant 0 : index
    %c145 = arith.constant 145 : index
    %40 = vector.load %arg9[%c0_39, %c145] : memref<8x471xf32, #tpu.memory_space<vmem>>, vector<8x324xf32>
    %cst_40 = arith.constant dense<0.000000e+00> : vector<8x324xf32>
    %41 = tpu.matmul %39, %40, %cst_40 {dimension_numbers = #tpu.dot_dimension_numbers<[1], [0], [0], [1], [0, 0, 1, 1], [], []>} : vector<8x8xf32>, vector<8x324xf32>, vector<8x324xf32> -> vector<8x324xf32>
    %42 = arith.addf %37, %41 : vector<8x324xf32>
    %c7 = arith.constant 7 : index
    %c0_41 = arith.constant 0 : index
    %c0_42 = arith.constant 0 : index
    %43 = vector.load %arg2[%c7, %c0_41, %c0_42] : memref<54x8x8xf32, #tpu.memory_space<vmem>>, vector<1x8x8xf32>
    %44 = vector.shape_cast %43 : vector<1x8x8xf32> to vector<8x8xf32>
    %c0_43 = arith.constant 0 : index
    %c146 = arith.constant 146 : index
    %45 = vector.load %arg9[%c0_43, %c146] : memref<8x471xf32, #tpu.memory_space<vmem>>, vector<8x324xf32>
    %cst_44 = arith.constant dense<0.000000e+00> : vector<8x324xf32>
    %46 = tpu.matmul %44, %45, %cst_44 {dimension_numbers = #tpu.dot_dimension_numbers<[1], [0], [0], [1], [0, 0, 1, 1], [], []>} : vector<8x8xf32>, vector<8x324xf32>, vector<8x324xf32> -> vector<8x324xf32>
    %47 = arith.addf %42, %46 : vector<8x324xf32>
    %c8 = arith.constant 8 : index
    %c0_45 = arith.constant 0 : index
    %c0_46 = arith.constant 0 : index
    %48 = vector.load %arg2[%c8, %c0_45, %c0_46] : memref<54x8x8xf32, #tpu.memory_space<vmem>>, vector<1x8x8xf32>
    %49 = vector.shape_cast %48 : vector<1x8x8xf32> to vector<8x8xf32>
    %c0_47 = arith.constant 0 : index
    %c147 = arith.constant 147 : index
    %50 = vector.load %arg9[%c0_47, %c147] : memref<8x471xf32, #tpu.memory_space<vmem>>, vector<8x324xf32>
    %cst_48 = arith.constant dense<0.000000e+00> : vector<8x324xf32>
    %51 = tpu.matmul %49, %50, %cst_48 {dimension_numbers = #tpu.dot_dimension_numbers<[1], [0], [0], [1], [0, 0, 1, 1], [], []>} : vector<8x8xf32>, vector<8x324xf32>, vector<8x324xf32> -> vector<8x324xf32>
    %52 = arith.addf %47, %51 : vector<8x324xf32>
    %c0_49 = arith.constant 0 : index
    %c0_50 = arith.constant 0 : index
    %c0_51 = arith.constant 0 : index
    %53 = vector.load %arg3[%c0_49, %c0_50, %c0_51] : memref<6x8x1xf32, #tpu.memory_space<vmem>>, vector<1x8x1xf32>
    %54 = vector.shape_cast %53 : vector<1x8x1xf32> to vector<8x1xf32>
    %55 = vector.broadcast %54 : vector<8x1xf32> to vector<8x324xf32>
    %56 = arith.addf %52, %55 : vector<8x324xf32>
    %c0_52 = arith.constant 0 : index
    %c0_53 = arith.constant 0 : index
    %c0_54 = arith.constant 0 : index
    %57 = vector.load %arg4[%c0_52, %c0_53, %c0_54] : memref<4x8x1xf32, #tpu.memory_space<vmem>>, vector<1x8x1xf32>
    %58 = vector.shape_cast %57 : vector<1x8x1xf32> to vector<8x1xf32>
    %59 = vector.broadcast %58 : vector<8x1xf32> to vector<8x324xf32>
    %60 = arith.mulf %56, %59 : vector<8x324xf32>
    %c0_55 = arith.constant 0 : index
    %c0_56 = arith.constant 0 : index
    %c0_57 = arith.constant 0 : index
    %61 = vector.load %arg5[%c0_55, %c0_56, %c0_57] : memref<4x8x1xf32, #tpu.memory_space<vmem>>, vector<1x8x1xf32>
    %62 = vector.shape_cast %61 : vector<1x8x1xf32> to vector<8x1xf32>
    %63 = vector.broadcast %62 : vector<8x1xf32> to vector<8x324xf32>
    %64 = arith.addf %60, %63 : vector<8x324xf32>
    %cst_58 = arith.constant 0.000000e+00 : f32
    %65 = vector.broadcast %cst_58 : f32 to vector<8x324xf32>
    %66 = arith.maximumf %64, %65 : vector<8x324xf32>
    %67 = vector.broadcast %3 : vector<1x324xf32> to vector<8x324xf32>
    %68 = arith.mulf %66, %67 : vector<8x324xf32>
    %c0_59 = arith.constant 0 : index
    %c128_60 = arith.constant 128 : index
    %69 = vector.load %arg9[%c0_59, %c128_60] : memref<8x471xf32, #tpu.memory_space<vmem>>, vector<8x324xf32>
    tpu.vector_store %arg9[%c0_59, %c128_60], %68 {strides = array<i32>} : memref<8x471xf32, #tpu.memory_space<vmem>>, vector<8x324xf32>,
    %c9 = arith.constant 9 : index
    %c0_61 = arith.constant 0 : index
    %c0_62 = arith.constant 0 : index
    %70 = vector.load %arg2[%c9, %c0_61, %c0_62] : memref<54x8x8xf32, #tpu.memory_space<vmem>>, vector<1x8x8xf32>
    %71 = vector.shape_cast %70 : vector<1x8x8xf32> to vector<8x8xf32>
    %c0_63 = arith.constant 0 : index
    %c109_64 = arith.constant 109 : index
    %72 = vector.load %arg9[%c0_63, %c109_64] : memref<8x471xf32, #tpu.memory_space<vmem>>, vector<8x324xf32>
    %cst_65 = arith.constant dense<0.000000e+00> : vector<8x324xf32>
    %73 = tpu.matmul %71, %72, %cst_65 {dimension_numbers = #tpu.dot_dimension_numbers<[1], [0], [0], [1], [0, 0, 1, 1], [], []>} : vector<8x8xf32>, vector<8x324xf32>, vector<8x324xf32> -> vector<8x324xf32>
    %c10 = arith.constant 10 : index
    %c0_66 = arith.constant 0 : index
    %c0_67 = arith.constant 0 : index
    %74 = vector.load %arg2[%c10, %c0_66, %c0_67] : memref<54x8x8xf32, #tpu.memory_space<vmem>>, vector<1x8x8xf32>
    %75 = vector.shape_cast %74 : vector<1x8x8xf32> to vector<8x8xf32>
    %c0_68 = arith.constant 0 : index
    %c110_69 = arith.constant 110 : index
    %76 = vector.load %arg9[%c0_68, %c110_69] : memref<8x471xf32, #tpu.memory_space<vmem>>, vector<8x324xf32>
    %cst_70 = arith.constant dense<0.000000e+00> : vector<8x324xf32>
    %77 = tpu.matmul %75, %76, %cst_70 {dimension_numbers = #tpu.dot_dimension_numbers<[1], [0], [0], [1], [0, 0, 1, 1], [], []>} : vector<8x8xf32>, vector<8x324xf32>, vector<8x324xf32> -> vector<8x324xf32>
    %78 = arith.addf %73, %77 : vector<8x324xf32>
    %c11 = arith.constant 11 : index
    %c0_71 = arith.constant 0 : index
    %c0_72 = arith.constant 0 : index
    %79 = vector.load %arg2[%c11, %c0_71, %c0_72] : memref<54x8x8xf32, #tpu.memory_space<vmem>>, vector<1x8x8xf32>
    %80 = vector.shape_cast %79 : vector<1x8x8xf32> to vector<8x8xf32>
    %c0_73 = arith.constant 0 : index
    %c111_74 = arith.constant 111 : index
    %81 = vector.load %arg9[%c0_73, %c111_74] : memref<8x471xf32, #tpu.memory_space<vmem>>, vector<8x324xf32>
    %cst_75 = arith.constant dense<0.000000e+00> : vector<8x324xf32>
    %82 = tpu.matmul %80, %81, %cst_75 {dimension_numbers = #tpu.dot_dimension_numbers<[1], [0], [0], [1], [0, 0, 1, 1], [], []>} : vector<8x8xf32>, vector<8x324xf32>, vector<8x324xf32> -> vector<8x324xf32>
    %83 = arith.addf %78, %82 : vector<8x324xf32>
    %c12 = arith.constant 12 : index
    %c0_76 = arith.constant 0 : index
    %c0_77 = arith.constant 0 : index
    %84 = vector.load %arg2[%c12, %c0_76, %c0_77] : memref<54x8x8xf32, #tpu.memory_space<vmem>>, vector<1x8x8xf32>
    %85 = vector.shape_cast %84 : vector<1x8x8xf32> to vector<8x8xf32>
    %c0_78 = arith.constant 0 : index
    %c127_79 = arith.constant 127 : index
    %86 = vector.load %arg9[%c0_78, %c127_79] : memref<8x471xf32, #tpu.memory_space<vmem>>, vector<8x324xf32>
    %cst_80 = arith.constant dense<0.000000e+00> : vector<8x324xf32>
    %87 = tpu.matmul %85, %86, %cst_80 {dimension_numbers = #tpu.dot_dimension_numbers<[1], [0], [0], [1], [0, 0, 1, 1], [], []>} : vector<8x8xf32>, vector<8x324xf32>, vector<8x324xf32> -> vector<8x324xf32>
    %88 = arith.addf %83, %87 : vector<8x324xf32>
    %c13 = arith.constant 13 : index
    %c0_81 = arith.constant 0 : index
    %c0_82 = arith.constant 0 : index
    %89 = vector.load %arg2[%c13, %c0_81, %c0_82] : memref<54x8x8xf32, #tpu.memory_space<vmem>>, vector<1x8x8xf32>
    %90 = vector.shape_cast %89 : vector<1x8x8xf32> to vector<8x8xf32>
    %c0_83 = arith.constant 0 : index
    %c128_84 = arith.constant 128 : index
    %91 = vector.load %arg9[%c0_83, %c128_84] : memref<8x471xf32, #tpu.memory_space<vmem>>, vector<8x324xf32>
    %cst_85 = arith.constant dense<0.000000e+00> : vector<8x324xf32>
    %92 = tpu.matmul %90, %91, %cst_85 {dimension_numbers = #tpu.dot_dimension_numbers<[1], [0], [0], [1], [0, 0, 1, 1], [], []>} : vector<8x8xf32>, vector<8x324xf32>, vector<8x324xf32> -> vector<8x324xf32>
    %93 = arith.addf %88, %92 : vector<8x324xf32>
    %c14 = arith.constant 14 : index
    %c0_86 = arith.constant 0 : index
    %c0_87 = arith.constant 0 : index
    %94 = vector.load %arg2[%c14, %c0_86, %c0_87] : memref<54x8x8xf32, #tpu.memory_space<vmem>>, vector<1x8x8xf32>
    %95 = vector.shape_cast %94 : vector<1x8x8xf32> to vector<8x8xf32>
    %c0_88 = arith.constant 0 : index
    %c129_89 = arith.constant 129 : index
    %96 = vector.load %arg9[%c0_88, %c129_89] : memref<8x471xf32, #tpu.memory_space<vmem>>, vector<8x324xf32>
    %cst_90 = arith.constant dense<0.000000e+00> : vector<8x324xf32>
    %97 = tpu.matmul %95, %96, %cst_90 {dimension_numbers = #tpu.dot_dimension_numbers<[1], [0], [0], [1], [0, 0, 1, 1], [], []>} : vector<8x8xf32>, vector<8x324xf32>, vector<8x324xf32> -> vector<8x324xf32>
    %98 = arith.addf %93, %97 : vector<8x324xf32>
    %c15 = arith.constant 15 : index
    %c0_91 = arith.constant 0 : index
    %c0_92 = arith.constant 0 : index
    %99 = vector.load %arg2[%c15, %c0_91, %c0_92] : memref<54x8x8xf32, #tpu.memory_space<vmem>>, vector<1x8x8xf32>
    %100 = vector.shape_cast %99 : vector<1x8x8xf32> to vector<8x8xf32>
    %c0_93 = arith.constant 0 : index
    %c145_94 = arith.constant 145 : index
    %101 = vector.load %arg9[%c0_93, %c145_94] : memref<8x471xf32, #tpu.memory_space<vmem>>, vector<8x324xf32>
    %cst_95 = arith.constant dense<0.000000e+00> : vector<8x324xf32>
    %102 = tpu.matmul %100, %101, %cst_95 {dimension_numbers = #tpu.dot_dimension_numbers<[1], [0], [0], [1], [0, 0, 1, 1], [], []>} : vector<8x8xf32>, vector<8x324xf32>, vector<8x324xf32> -> vector<8x324xf32>
    %103 = arith.addf %98, %102 : vector<8x324xf32>
    %c16 = arith.constant 16 : index
    %c0_96 = arith.constant 0 : index
    %c0_97 = arith.constant 0 : index
    %104 = vector.load %arg2[%c16, %c0_96, %c0_97] : memref<54x8x8xf32, #tpu.memory_space<vmem>>, vector<1x8x8xf32>
    %105 = vector.shape_cast %104 : vector<1x8x8xf32> to vector<8x8xf32>
    %c0_98 = arith.constant 0 : index
    %c146_99 = arith.constant 146 : index
    %106 = vector.load %arg9[%c0_98, %c146_99] : memref<8x471xf32, #tpu.memory_space<vmem>>, vector<8x324xf32>
    %cst_100 = arith.constant dense<0.000000e+00> : vector<8x324xf32>
    %107 = tpu.matmul %105, %106, %cst_100 {dimension_numbers = #tpu.dot_dimension_numbers<[1], [0], [0], [1], [0, 0, 1, 1], [], []>} : vector<8x8xf32>, vector<8x324xf32>, vector<8x324xf32> -> vector<8x324xf32>
    %108 = arith.addf %103, %107 : vector<8x324xf32>
    %c17 = arith.constant 17 : index
    %c0_101 = arith.constant 0 : index
    %c0_102 = arith.constant 0 : index
    %109 = vector.load %arg2[%c17, %c0_101, %c0_102] : memref<54x8x8xf32, #tpu.memory_space<vmem>>, vector<1x8x8xf32>
    %110 = vector.shape_cast %109 : vector<1x8x8xf32> to vector<8x8xf32>
    %c0_103 = arith.constant 0 : index
    %c147_104 = arith.constant 147 : index
    %111 = vector.load %arg9[%c0_103, %c147_104] : memref<8x471xf32, #tpu.memory_space<vmem>>, vector<8x324xf32>
    %cst_105 = arith.constant dense<0.000000e+00> : vector<8x324xf32>
    %112 = tpu.matmul %110, %111, %cst_105 {dimension_numbers = #tpu.dot_dimension_numbers<[1], [0], [0], [1], [0, 0, 1, 1], [], []>} : vector<8x8xf32>, vector<8x324xf32>, vector<8x324xf32> -> vector<8x324xf32>
    %113 = arith.addf %108, %112 : vector<8x324xf32>
    %c1_106 = arith.constant 1 : index
    %c0_107 = arith.constant 0 : index
    %c0_108 = arith.constant 0 : index
    %114 = vector.load %arg3[%c1_106, %c0_107, %c0_108] : memref<6x8x1xf32, #tpu.memory_space<vmem>>, vector<1x8x1xf32>
    %115 = vector.shape_cast %114 : vector<1x8x1xf32> to vector<8x1xf32>
    %116 = vector.broadcast %115 : vector<8x1xf32> to vector<8x324xf32>
    %117 = arith.addf %113, %116 : vector<8x324xf32>
    %c1_109 = arith.constant 1 : index
    %c0_110 = arith.constant 0 : index
    %c0_111 = arith.constant 0 : index
    %118 = vector.load %arg4[%c1_109, %c0_110, %c0_111] : memref<4x8x1xf32, #tpu.memory_space<vmem>>, vector<1x8x1xf32>
    %119 = vector.shape_cast %118 : vector<1x8x1xf32> to vector<8x1xf32>
    %120 = vector.broadcast %119 : vector<8x1xf32> to vector<8x324xf32>
    %121 = arith.mulf %117, %120 : vector<8x324xf32>
    %c1_112 = arith.constant 1 : index
    %c0_113 = arith.constant 0 : index
    %c0_114 = arith.constant 0 : index
    %122 = vector.load %arg5[%c1_112, %c0_113, %c0_114] : memref<4x8x1xf32, #tpu.memory_space<vmem>>, vector<1x8x1xf32>
    %123 = vector.shape_cast %122 : vector<1x8x1xf32> to vector<8x1xf32>
    %124 = vector.broadcast %123 : vector<8x1xf32> to vector<8x324xf32>
    %125 = arith.addf %121, %124 : vector<8x324xf32>
    %cst_115 = arith.constant 0.000000e+00 : f32
    %126 = vector.broadcast %cst_115 : f32 to vector<8x324xf32>
    %127 = arith.maximumf %125, %126 : vector<8x324xf32>
    %128 = vector.broadcast %3 : vector<1x324xf32> to vector<8x324xf32>
    %129 = arith.mulf %127, %128 : vector<8x324xf32>
    %c0_116 = arith.constant 0 : index
    %c128_117 = arith.constant 128 : index
    %130 = vector.load %arg9[%c0_116, %c128_117] : memref<8x471xf32, #tpu.memory_space<vmem>>, vector<8x324xf32>
    tpu.vector_store %arg9[%c0_116, %c128_117], %129 {strides = array<i32>} : memref<8x471xf32, #tpu.memory_space<vmem>>, vector<8x324xf32>,
    %c18 = arith.constant 18 : index
    %c0_118 = arith.constant 0 : index
    %c0_119 = arith.constant 0 : index
    %131 = vector.load %arg2[%c18, %c0_118, %c0_119] : memref<54x8x8xf32, #tpu.memory_space<vmem>>, vector<1x8x8xf32>
    %132 = vector.shape_cast %131 : vector<1x8x8xf32> to vector<8x8xf32>
    %c0_120 = arith.constant 0 : index
    %c109_121 = arith.constant 109 : index
    %133 = vector.load %arg9[%c0_120, %c109_121] : memref<8x471xf32, #tpu.memory_space<vmem>>, vector<8x324xf32>
    %cst_122 = arith.constant dense<0.000000e+00> : vector<8x324xf32>
    %134 = tpu.matmul %132, %133, %cst_122 {dimension_numbers = #tpu.dot_dimension_numbers<[1], [0], [0], [1], [0, 0, 1, 1], [], []>} : vector<8x8xf32>, vector<8x324xf32>, vector<8x324xf32> -> vector<8x324xf32>
    %c19 = arith.constant 19 : index
    %c0_123 = arith.constant 0 : index
    %c0_124 = arith.constant 0 : index
    %135 = vector.load %arg2[%c19, %c0_123, %c0_124] : memref<54x8x8xf32, #tpu.memory_space<vmem>>, vector<1x8x8xf32>
    %136 = vector.shape_cast %135 : vector<1x8x8xf32> to vector<8x8xf32>
    %c0_125 = arith.constant 0 : index
    %c110_126 = arith.constant 110 : index
    %137 = vector.load %arg9[%c0_125, %c110_126] : memref<8x471xf32, #tpu.memory_space<vmem>>, vector<8x324xf32>
    %cst_127 = arith.constant dense<0.000000e+00> : vector<8x324xf32>
    %138 = tpu.matmul %136, %137, %cst_127 {dimension_numbers = #tpu.dot_dimension_numbers<[1], [0], [0], [1], [0, 0, 1, 1], [], []>} : vector<8x8xf32>, vector<8x324xf32>, vector<8x324xf32> -> vector<8x324xf32>
    %139 = arith.addf %134, %138 : vector<8x324xf32>
    %c20 = arith.constant 20 : index
    %c0_128 = arith.constant 0 : index
    %c0_129 = arith.constant 0 : index
    %140 = vector.load %arg2[%c20, %c0_128, %c0_129] : memref<54x8x8xf32, #tpu.memory_space<vmem>>, vector<1x8x8xf32>
    %141 = vector.shape_cast %140 : vector<1x8x8xf32> to vector<8x8xf32>
    %c0_130 = arith.constant 0 : index
    %c111_131 = arith.constant 111 : index
    %142 = vector.load %arg9[%c0_130, %c111_131] : memref<8x471xf32, #tpu.memory_space<vmem>>, vector<8x324xf32>
    %cst_132 = arith.constant dense<0.000000e+00> : vector<8x324xf32>
    %143 = tpu.matmul %141, %142, %cst_132 {dimension_numbers = #tpu.dot_dimension_numbers<[1], [0], [0], [1], [0, 0, 1, 1], [], []>} : vector<8x8xf32>, vector<8x324xf32>, vector<8x324xf32> -> vector<8x324xf32>
    %144 = arith.addf %139, %143 : vector<8x324xf32>
    %c21 = arith.constant 21 : index
    %c0_133 = arith.constant 0 : index
    %c0_134 = arith.constant 0 : index
    %145 = vector.load %arg2[%c21, %c0_133, %c0_134] : memref<54x8x8xf32, #tpu.memory_space<vmem>>, vector<1x8x8xf32>
    %146 = vector.shape_cast %145 : vector<1x8x8xf32> to vector<8x8xf32>
    %c0_135 = arith.constant 0 : index
    %c127_136 = arith.constant 127 : index
    %147 = vector.load %arg9[%c0_135, %c127_136] : memref<8x471xf32, #tpu.memory_space<vmem>>, vector<8x324xf32>
    %cst_137 = arith.constant dense<0.000000e+00> : vector<8x324xf32>
    %148 = tpu.matmul %146, %147, %cst_137 {dimension_numbers = #tpu.dot_dimension_numbers<[1], [0], [0], [1], [0, 0, 1, 1], [], []>} : vector<8x8xf32>, vector<8x324xf32>, vector<8x324xf32> -> vector<8x324xf32>
    %149 = arith.addf %144, %148 : vector<8x324xf32>
    %c22 = arith.constant 22 : index
    %c0_138 = arith.constant 0 : index
    %c0_139 = arith.constant 0 : index
    %150 = vector.load %arg2[%c22, %c0_138, %c0_139] : memref<54x8x8xf32, #tpu.memory_space<vmem>>, vector<1x8x8xf32>
    %151 = vector.shape_cast %150 : vector<1x8x8xf32> to vector<8x8xf32>
    %c0_140 = arith.constant 0 : index
    %c128_141 = arith.constant 128 : index
    %152 = vector.load %arg9[%c0_140, %c128_141] : memref<8x471xf32, #tpu.memory_space<vmem>>, vector<8x324xf32>
    %cst_142 = arith.constant dense<0.000000e+00> : vector<8x324xf32>
    %153 = tpu.matmul %151, %152, %cst_142 {dimension_numbers = #tpu.dot_dimension_numbers<[1], [0], [0], [1], [0, 0, 1, 1], [], []>} : vector<8x8xf32>, vector<8x324xf32>, vector<8x324xf32> -> vector<8x324xf32>
    %154 = arith.addf %149, %153 : vector<8x324xf32>
    %c23 = arith.constant 23 : index
    %c0_143 = arith.constant 0 : index
    %c0_144 = arith.constant 0 : index
    %155 = vector.load %arg2[%c23, %c0_143, %c0_144] : memref<54x8x8xf32, #tpu.memory_space<vmem>>, vector<1x8x8xf32>
    %156 = vector.shape_cast %155 : vector<1x8x8xf32> to vector<8x8xf32>
    %c0_145 = arith.constant 0 : index
    %c129_146 = arith.constant 129 : index
    %157 = vector.load %arg9[%c0_145, %c129_146] : memref<8x471xf32, #tpu.memory_space<vmem>>, vector<8x324xf32>
    %cst_147 = arith.constant dense<0.000000e+00> : vector<8x324xf32>
    %158 = tpu.matmul %156, %157, %cst_147 {dimension_numbers = #tpu.dot_dimension_numbers<[1], [0], [0], [1], [0, 0, 1, 1], [], []>} : vector<8x8xf32>, vector<8x324xf32>, vector<8x324xf32> -> vector<8x324xf32>
    %159 = arith.addf %154, %158 : vector<8x324xf32>
    %c24 = arith.constant 24 : index
    %c0_148 = arith.constant 0 : index
    %c0_149 = arith.constant 0 : index
    %160 = vector.load %arg2[%c24, %c0_148, %c0_149] : memref<54x8x8xf32, #tpu.memory_space<vmem>>, vector<1x8x8xf32>
    %161 = vector.shape_cast %160 : vector<1x8x8xf32> to vector<8x8xf32>
    %c0_150 = arith.constant 0 : index
    %c145_151 = arith.constant 145 : index
    %162 = vector.load %arg9[%c0_150, %c145_151] : memref<8x471xf32, #tpu.memory_space<vmem>>, vector<8x324xf32>
    %cst_152 = arith.constant dense<0.000000e+00> : vector<8x324xf32>
    %163 = tpu.matmul %161, %162, %cst_152 {dimension_numbers = #tpu.dot_dimension_numbers<[1], [0], [0], [1], [0, 0, 1, 1], [], []>} : vector<8x8xf32>, vector<8x324xf32>, vector<8x324xf32> -> vector<8x324xf32>
    %164 = arith.addf %159, %163 : vector<8x324xf32>
    %c25 = arith.constant 25 : index
    %c0_153 = arith.constant 0 : index
    %c0_154 = arith.constant 0 : index
    %165 = vector.load %arg2[%c25, %c0_153, %c0_154] : memref<54x8x8xf32, #tpu.memory_space<vmem>>, vector<1x8x8xf32>
    %166 = vector.shape_cast %165 : vector<1x8x8xf32> to vector<8x8xf32>
    %c0_155 = arith.constant 0 : index
    %c146_156 = arith.constant 146 : index
    %167 = vector.load %arg9[%c0_155, %c146_156] : memref<8x471xf32, #tpu.memory_space<vmem>>, vector<8x324xf32>
    %cst_157 = arith.constant dense<0.000000e+00> : vector<8x324xf32>
    %168 = tpu.matmul %166, %167, %cst_157 {dimension_numbers = #tpu.dot_dimension_numbers<[1], [0], [0], [1], [0, 0, 1, 1], [], []>} : vector<8x8xf32>, vector<8x324xf32>, vector<8x324xf32> -> vector<8x324xf32>
    %169 = arith.addf %164, %168 : vector<8x324xf32>
    %c26 = arith.constant 26 : index
    %c0_158 = arith.constant 0 : index
    %c0_159 = arith.constant 0 : index
    %170 = vector.load %arg2[%c26, %c0_158, %c0_159] : memref<54x8x8xf32, #tpu.memory_space<vmem>>, vector<1x8x8xf32>
    %171 = vector.shape_cast %170 : vector<1x8x8xf32> to vector<8x8xf32>
    %c0_160 = arith.constant 0 : index
    %c147_161 = arith.constant 147 : index
    %172 = vector.load %arg9[%c0_160, %c147_161] : memref<8x471xf32, #tpu.memory_space<vmem>>, vector<8x324xf32>
    %cst_162 = arith.constant dense<0.000000e+00> : vector<8x324xf32>
    %173 = tpu.matmul %171, %172, %cst_162 {dimension_numbers = #tpu.dot_dimension_numbers<[1], [0], [0], [1], [0, 0, 1, 1], [], []>} : vector<8x8xf32>, vector<8x324xf32>, vector<8x324xf32> -> vector<8x324xf32>
    %174 = arith.addf %169, %173 : vector<8x324xf32>
    %c2_163 = arith.constant 2 : index
    %c0_164 = arith.constant 0 : index
    %c0_165 = arith.constant 0 : index
    %175 = vector.load %arg3[%c2_163, %c0_164, %c0_165] : memref<6x8x1xf32, #tpu.memory_space<vmem>>, vector<1x8x1xf32>
    %176 = vector.shape_cast %175 : vector<1x8x1xf32> to vector<8x1xf32>
    %177 = vector.broadcast %176 : vector<8x1xf32> to vector<8x324xf32>
    %178 = arith.addf %174, %177 : vector<8x324xf32>
    %179 = arith.addf %56, %178 : vector<8x324xf32>
    %c2_166 = arith.constant 2 : index
    %c0_167 = arith.constant 0 : index
    %c0_168 = arith.constant 0 : index
    %180 = vector.load %arg4[%c2_166, %c0_167, %c0_168] : memref<4x8x1xf32, #tpu.memory_space<vmem>>, vector<1x8x1xf32>
    %181 = vector.shape_cast %180 : vector<1x8x1xf32> to vector<8x1xf32>
    %182 = vector.broadcast %181 : vector<8x1xf32> to vector<8x324xf32>
    %183 = arith.mulf %179, %182 : vector<8x324xf32>
    %c2_169 = arith.constant 2 : index
    %c0_170 = arith.constant 0 : index
    %c0_171 = arith.constant 0 : index
    %184 = vector.load %arg5[%c2_169, %c0_170, %c0_171] : memref<4x8x1xf32, #tpu.memory_space<vmem>>, vector<1x8x1xf32>
    %185 = vector.shape_cast %184 : vector<1x8x1xf32> to vector<8x1xf32>
    %186 = vector.broadcast %185 : vector<8x1xf32> to vector<8x324xf32>
    %187 = arith.addf %183, %186 : vector<8x324xf32>
    %cst_172 = arith.constant 0.000000e+00 : f32
    %188 = vector.broadcast %cst_172 : f32 to vector<8x324xf32>
    %189 = arith.maximumf %187, %188 : vector<8x324xf32>
    %190 = vector.broadcast %3 : vector<1x324xf32> to vector<8x324xf32>
    %191 = arith.mulf %189, %190 : vector<8x324xf32>
    %c0_173 = arith.constant 0 : index
    %c128_174 = arith.constant 128 : index
    %192 = vector.load %arg9[%c0_173, %c128_174] : memref<8x471xf32, #tpu.memory_space<vmem>>, vector<8x324xf32>
    tpu.vector_store %arg9[%c0_173, %c128_174], %191 {strides = array<i32>} : memref<8x471xf32, #tpu.memory_space<vmem>>, vector<8x324xf32>,
    %c27 = arith.constant 27 : index
    %c0_175 = arith.constant 0 : index
    %c0_176 = arith.constant 0 : index
    %193 = vector.load %arg2[%c27, %c0_175, %c0_176] : memref<54x8x8xf32, #tpu.memory_space<vmem>>, vector<1x8x8xf32>
    %194 = vector.shape_cast %193 : vector<1x8x8xf32> to vector<8x8xf32>
    %c0_177 = arith.constant 0 : index
    %c109_178 = arith.constant 109 : index
    %195 = vector.load %arg9[%c0_177, %c109_178] : memref<8x471xf32, #tpu.memory_space<vmem>>, vector<8x324xf32>
    %cst_179 = arith.constant dense<0.000000e+00> : vector<8x324xf32>
    %196 = tpu.matmul %194, %195, %cst_179 {dimension_numbers = #tpu.dot_dimension_numbers<[1], [0], [0], [1], [0, 0, 1, 1], [], []>} : vector<8x8xf32>, vector<8x324xf32>, vector<8x324xf32> -> vector<8x324xf32>
    %c28 = arith.constant 28 : index
    %c0_180 = arith.constant 0 : index
    %c0_181 = arith.constant 0 : index
    %197 = vector.load %arg2[%c28, %c0_180, %c0_181] : memref<54x8x8xf32, #tpu.memory_space<vmem>>, vector<1x8x8xf32>
    %198 = vector.shape_cast %197 : vector<1x8x8xf32> to vector<8x8xf32>
    %c0_182 = arith.constant 0 : index
    %c110_183 = arith.constant 110 : index
    %199 = vector.load %arg9[%c0_182, %c110_183] : memref<8x471xf32, #tpu.memory_space<vmem>>, vector<8x324xf32>
    %cst_184 = arith.constant dense<0.000000e+00> : vector<8x324xf32>
    %200 = tpu.matmul %198, %199, %cst_184 {dimension_numbers = #tpu.dot_dimension_numbers<[1], [0], [0], [1], [0, 0, 1, 1], [], []>} : vector<8x8xf32>, vector<8x324xf32>, vector<8x324xf32> -> vector<8x324xf32>
    %201 = arith.addf %196, %200 : vector<8x324xf32>
    %c29 = arith.constant 29 : index
    %c0_185 = arith.constant 0 : index
    %c0_186 = arith.constant 0 : index
    %202 = vector.load %arg2[%c29, %c0_185, %c0_186] : memref<54x8x8xf32, #tpu.memory_space<vmem>>, vector<1x8x8xf32>
    %203 = vector.shape_cast %202 : vector<1x8x8xf32> to vector<8x8xf32>
    %c0_187 = arith.constant 0 : index
    %c111_188 = arith.constant 111 : index
    %204 = vector.load %arg9[%c0_187, %c111_188] : memref<8x471xf32, #tpu.memory_space<vmem>>, vector<8x324xf32>
    %cst_189 = arith.constant dense<0.000000e+00> : vector<8x324xf32>
    %205 = tpu.matmul %203, %204, %cst_189 {dimension_numbers = #tpu.dot_dimension_numbers<[1], [0], [0], [1], [0, 0, 1, 1], [], []>} : vector<8x8xf32>, vector<8x324xf32>, vector<8x324xf32> -> vector<8x324xf32>
    %206 = arith.addf %201, %205 : vector<8x324xf32>
    %c30 = arith.constant 30 : index
    %c0_190 = arith.constant 0 : index
    %c0_191 = arith.constant 0 : index
    %207 = vector.load %arg2[%c30, %c0_190, %c0_191] : memref<54x8x8xf32, #tpu.memory_space<vmem>>, vector<1x8x8xf32>
    %208 = vector.shape_cast %207 : vector<1x8x8xf32> to vector<8x8xf32>
    %c0_192 = arith.constant 0 : index
    %c127_193 = arith.constant 127 : index
    %209 = vector.load %arg9[%c0_192, %c127_193] : memref<8x471xf32, #tpu.memory_space<vmem>>, vector<8x324xf32>
    %cst_194 = arith.constant dense<0.000000e+00> : vector<8x324xf32>
    %210 = tpu.matmul %208, %209, %cst_194 {dimension_numbers = #tpu.dot_dimension_numbers<[1], [0], [0], [1], [0, 0, 1, 1], [], []>} : vector<8x8xf32>, vector<8x324xf32>, vector<8x324xf32> -> vector<8x324xf32>
    %211 = arith.addf %206, %210 : vector<8x324xf32>
    %c31 = arith.constant 31 : index
    %c0_195 = arith.constant 0 : index
    %c0_196 = arith.constant 0 : index
    %212 = vector.load %arg2[%c31, %c0_195, %c0_196] : memref<54x8x8xf32, #tpu.memory_space<vmem>>, vector<1x8x8xf32>
    %213 = vector.shape_cast %212 : vector<1x8x8xf32> to vector<8x8xf32>
    %c0_197 = arith.constant 0 : index
    %c128_198 = arith.constant 128 : index
    %214 = vector.load %arg9[%c0_197, %c128_198] : memref<8x471xf32, #tpu.memory_space<vmem>>, vector<8x324xf32>
    %cst_199 = arith.constant dense<0.000000e+00> : vector<8x324xf32>
    %215 = tpu.matmul %213, %214, %cst_199 {dimension_numbers = #tpu.dot_dimension_numbers<[1], [0], [0], [1], [0, 0, 1, 1], [], []>} : vector<8x8xf32>, vector<8x324xf32>, vector<8x324xf32> -> vector<8x324xf32>
    %216 = arith.addf %211, %215 : vector<8x324xf32>
    %c32 = arith.constant 32 : index
    %c0_200 = arith.constant 0 : index
    %c0_201 = arith.constant 0 : index
    %217 = vector.load %arg2[%c32, %c0_200, %c0_201] : memref<54x8x8xf32, #tpu.memory_space<vmem>>, vector<1x8x8xf32>
    %218 = vector.shape_cast %217 : vector<1x8x8xf32> to vector<8x8xf32>
    %c0_202 = arith.constant 0 : index
    %c129_203 = arith.constant 129 : index
    %219 = vector.load %arg9[%c0_202, %c129_203] : memref<8x471xf32, #tpu.memory_space<vmem>>, vector<8x324xf32>
    %cst_204 = arith.constant dense<0.000000e+00> : vector<8x324xf32>
    %220 = tpu.matmul %218, %219, %cst_204 {dimension_numbers = #tpu.dot_dimension_numbers<[1], [0], [0], [1], [0, 0, 1, 1], [], []>} : vector<8x8xf32>, vector<8x324xf32>, vector<8x324xf32> -> vector<8x324xf32>
    %221 = arith.addf %216, %220 : vector<8x324xf32>
    %c33 = arith.constant 33 : index
    %c0_205 = arith.constant 0 : index
    %c0_206 = arith.constant 0 : index
    %222 = vector.load %arg2[%c33, %c0_205, %c0_206] : memref<54x8x8xf32, #tpu.memory_space<vmem>>, vector<1x8x8xf32>
    %223 = vector.shape_cast %222 : vector<1x8x8xf32> to vector<8x8xf32>
    %c0_207 = arith.constant 0 : index
    %c145_208 = arith.constant 145 : index
    %224 = vector.load %arg9[%c0_207, %c145_208] : memref<8x471xf32, #tpu.memory_space<vmem>>, vector<8x324xf32>
    %cst_209 = arith.constant dense<0.000000e+00> : vector<8x324xf32>
    %225 = tpu.matmul %223, %224, %cst_209 {dimension_numbers = #tpu.dot_dimension_numbers<[1], [0], [0], [1], [0, 0, 1, 1], [], []>} : vector<8x8xf32>, vector<8x324xf32>, vector<8x324xf32> -> vector<8x324xf32>
    %226 = arith.addf %221, %225 : vector<8x324xf32>
    %c34 = arith.constant 34 : index
    %c0_210 = arith.constant 0 : index
    %c0_211 = arith.constant 0 : index
    %227 = vector.load %arg2[%c34, %c0_210, %c0_211] : memref<54x8x8xf32, #tpu.memory_space<vmem>>, vector<1x8x8xf32>
    %228 = vector.shape_cast %227 : vector<1x8x8xf32> to vector<8x8xf32>
    %c0_212 = arith.constant 0 : index
    %c146_213 = arith.constant 146 : index
    %229 = vector.load %arg9[%c0_212, %c146_213] : memref<8x471xf32, #tpu.memory_space<vmem>>, vector<8x324xf32>
    %cst_214 = arith.constant dense<0.000000e+00> : vector<8x324xf32>
    %230 = tpu.matmul %228, %229, %cst_214 {dimension_numbers = #tpu.dot_dimension_numbers<[1], [0], [0], [1], [0, 0, 1, 1], [], []>} : vector<8x8xf32>, vector<8x324xf32>, vector<8x324xf32> -> vector<8x324xf32>
    %231 = arith.addf %226, %230 : vector<8x324xf32>
    %c35 = arith.constant 35 : index
    %c0_215 = arith.constant 0 : index
    %c0_216 = arith.constant 0 : index
    %232 = vector.load %arg2[%c35, %c0_215, %c0_216] : memref<54x8x8xf32, #tpu.memory_space<vmem>>, vector<1x8x8xf32>
    %233 = vector.shape_cast %232 : vector<1x8x8xf32> to vector<8x8xf32>
    %c0_217 = arith.constant 0 : index
    %c147_218 = arith.constant 147 : index
    %234 = vector.load %arg9[%c0_217, %c147_218] : memref<8x471xf32, #tpu.memory_space<vmem>>, vector<8x324xf32>
    %cst_219 = arith.constant dense<0.000000e+00> : vector<8x324xf32>
    %235 = tpu.matmul %233, %234, %cst_219 {dimension_numbers = #tpu.dot_dimension_numbers<[1], [0], [0], [1], [0, 0, 1, 1], [], []>} : vector<8x8xf32>, vector<8x324xf32>, vector<8x324xf32> -> vector<8x324xf32>
    %236 = arith.addf %231, %235 : vector<8x324xf32>
    %c3_220 = arith.constant 3 : index
    %c0_221 = arith.constant 0 : index
    %c0_222 = arith.constant 0 : index
    %237 = vector.load %arg3[%c3_220, %c0_221, %c0_222] : memref<6x8x1xf32, #tpu.memory_space<vmem>>, vector<1x8x1xf32>
    %238 = vector.shape_cast %237 : vector<1x8x1xf32> to vector<8x1xf32>
    %239 = vector.broadcast %238 : vector<8x1xf32> to vector<8x324xf32>
    %240 = arith.addf %236, %239 : vector<8x324xf32>
    %c3_223 = arith.constant 3 : index
    %c0_224 = arith.constant 0 : index
    %c0_225 = arith.constant 0 : index
    %241 = vector.load %arg4[%c3_223, %c0_224, %c0_225] : memref<4x8x1xf32, #tpu.memory_space<vmem>>, vector<1x8x1xf32>
    %242 = vector.shape_cast %241 : vector<1x8x1xf32> to vector<8x1xf32>
    %243 = vector.broadcast %242 : vector<8x1xf32> to vector<8x324xf32>
    %244 = arith.mulf %240, %243 : vector<8x324xf32>
    %c3_226 = arith.constant 3 : index
    %c0_227 = arith.constant 0 : index
    %c0_228 = arith.constant 0 : index
    %245 = vector.load %arg5[%c3_226, %c0_227, %c0_228] : memref<4x8x1xf32, #tpu.memory_space<vmem>>, vector<1x8x1xf32>
    %246 = vector.shape_cast %245 : vector<1x8x1xf32> to vector<8x1xf32>
    %247 = vector.broadcast %246 : vector<8x1xf32> to vector<8x324xf32>
    %248 = arith.addf %244, %247 : vector<8x324xf32>
    %cst_229 = arith.constant 0.000000e+00 : f32
    %249 = vector.broadcast %cst_229 : f32 to vector<8x324xf32>
    %250 = arith.maximumf %248, %249 : vector<8x324xf32>
    %251 = vector.broadcast %3 : vector<1x324xf32> to vector<8x324xf32>
    %252 = arith.mulf %250, %251 : vector<8x324xf32>
    %c0_230 = arith.constant 0 : index
    %c128_231 = arith.constant 128 : index
    %253 = vector.load %arg9[%c0_230, %c128_231] : memref<8x471xf32, #tpu.memory_space<vmem>>, vector<8x324xf32>
    tpu.vector_store %arg9[%c0_230, %c128_231], %252 {strides = array<i32>} : memref<8x471xf32, #tpu.memory_space<vmem>>, vector<8x324xf32>,
    %c36 = arith.constant 36 : index
    %c0_232 = arith.constant 0 : index
    %c0_233 = arith.constant 0 : index
    %254 = vector.load %arg2[%c36, %c0_232, %c0_233] : memref<54x8x8xf32, #tpu.memory_space<vmem>>, vector<1x8x8xf32>
    %255 = vector.shape_cast %254 : vector<1x8x8xf32> to vector<8x8xf32>
    %c0_234 = arith.constant 0 : index
    %c109_235 = arith.constant 109 : index
    %256 = vector.load %arg9[%c0_234, %c109_235] : memref<8x471xf32, #tpu.memory_space<vmem>>, vector<8x324xf32>
    %cst_236 = arith.constant dense<0.000000e+00> : vector<8x324xf32>
    %257 = tpu.matmul %255, %256, %cst_236 {dimension_numbers = #tpu.dot_dimension_numbers<[1], [0], [0], [1], [0, 0, 1, 1], [], []>} : vector<8x8xf32>, vector<8x324xf32>, vector<8x324xf32> -> vector<8x324xf32>
    %c37 = arith.constant 37 : index
    %c0_237 = arith.constant 0 : index
    %c0_238 = arith.constant 0 : index
    %258 = vector.load %arg2[%c37, %c0_237, %c0_238] : memref<54x8x8xf32, #tpu.memory_space<vmem>>, vector<1x8x8xf32>
    %259 = vector.shape_cast %258 : vector<1x8x8xf32> to vector<8x8xf32>
    %c0_239 = arith.constant 0 : index
    %c110_240 = arith.constant 110 : index
    %260 = vector.load %arg9[%c0_239, %c110_240] : memref<8x471xf32, #tpu.memory_space<vmem>>, vector<8x324xf32>
    %cst_241 = arith.constant dense<0.000000e+00> : vector<8x324xf32>
    %261 = tpu.matmul %259, %260, %cst_241 {dimension_numbers = #tpu.dot_dimension_numbers<[1], [0], [0], [1], [0, 0, 1, 1], [], []>} : vector<8x8xf32>, vector<8x324xf32>, vector<8x324xf32> -> vector<8x324xf32>
    %262 = arith.addf %257, %261 : vector<8x324xf32>
    %c38 = arith.constant 38 : index
    %c0_242 = arith.constant 0 : index
    %c0_243 = arith.constant 0 : index
    %263 = vector.load %arg2[%c38, %c0_242, %c0_243] : memref<54x8x8xf32, #tpu.memory_space<vmem>>, vector<1x8x8xf32>
    %264 = vector.shape_cast %263 : vector<1x8x8xf32> to vector<8x8xf32>
    %c0_244 = arith.constant 0 : index
    %c111_245 = arith.constant 111 : index
    %265 = vector.load %arg9[%c0_244, %c111_245] : memref<8x471xf32, #tpu.memory_space<vmem>>, vector<8x324xf32>
    %cst_246 = arith.constant dense<0.000000e+00> : vector<8x324xf32>
    %266 = tpu.matmul %264, %265, %cst_246 {dimension_numbers = #tpu.dot_dimension_numbers<[1], [0], [0], [1], [0, 0, 1, 1], [], []>} : vector<8x8xf32>, vector<8x324xf32>, vector<8x324xf32> -> vector<8x324xf32>
    %267 = arith.addf %262, %266 : vector<8x324xf32>
    %c39 = arith.constant 39 : index
    %c0_247 = arith.constant 0 : index
    %c0_248 = arith.constant 0 : index
    %268 = vector.load %arg2[%c39, %c0_247, %c0_248] : memref<54x8x8xf32, #tpu.memory_space<vmem>>, vector<1x8x8xf32>
    %269 = vector.shape_cast %268 : vector<1x8x8xf32> to vector<8x8xf32>
    %c0_249 = arith.constant 0 : index
    %c127_250 = arith.constant 127 : index
    %270 = vector.load %arg9[%c0_249, %c127_250] : memref<8x471xf32, #tpu.memory_space<vmem>>, vector<8x324xf32>
    %cst_251 = arith.constant dense<0.000000e+00> : vector<8x324xf32>
    %271 = tpu.matmul %269, %270, %cst_251 {dimension_numbers = #tpu.dot_dimension_numbers<[1], [0], [0], [1], [0, 0, 1, 1], [], []>} : vector<8x8xf32>, vector<8x324xf32>, vector<8x324xf32> -> vector<8x324xf32>
    %272 = arith.addf %267, %271 : vector<8x324xf32>
    %c40 = arith.constant 40 : index
    %c0_252 = arith.constant 0 : index
    %c0_253 = arith.constant 0 : index
    %273 = vector.load %arg2[%c40, %c0_252, %c0_253] : memref<54x8x8xf32, #tpu.memory_space<vmem>>, vector<1x8x8xf32>
    %274 = vector.shape_cast %273 : vector<1x8x8xf32> to vector<8x8xf32>
    %c0_254 = arith.constant 0 : index
    %c128_255 = arith.constant 128 : index
    %275 = vector.load %arg9[%c0_254, %c128_255] : memref<8x471xf32, #tpu.memory_space<vmem>>, vector<8x324xf32>
    %cst_256 = arith.constant dense<0.000000e+00> : vector<8x324xf32>
    %276 = tpu.matmul %274, %275, %cst_256 {dimension_numbers = #tpu.dot_dimension_numbers<[1], [0], [0], [1], [0, 0, 1, 1], [], []>} : vector<8x8xf32>, vector<8x324xf32>, vector<8x324xf32> -> vector<8x324xf32>
    %277 = arith.addf %272, %276 : vector<8x324xf32>
    %c41 = arith.constant 41 : index
    %c0_257 = arith.constant 0 : index
    %c0_258 = arith.constant 0 : index
    %278 = vector.load %arg2[%c41, %c0_257, %c0_258] : memref<54x8x8xf32, #tpu.memory_space<vmem>>, vector<1x8x8xf32>
    %279 = vector.shape_cast %278 : vector<1x8x8xf32> to vector<8x8xf32>
    %c0_259 = arith.constant 0 : index
    %c129_260 = arith.constant 129 : index
    %280 = vector.load %arg9[%c0_259, %c129_260] : memref<8x471xf32, #tpu.memory_space<vmem>>, vector<8x324xf32>
    %cst_261 = arith.constant dense<0.000000e+00> : vector<8x324xf32>
    %281 = tpu.matmul %279, %280, %cst_261 {dimension_numbers = #tpu.dot_dimension_numbers<[1], [0], [0], [1], [0, 0, 1, 1], [], []>} : vector<8x8xf32>, vector<8x324xf32>, vector<8x324xf32> -> vector<8x324xf32>
    %282 = arith.addf %277, %281 : vector<8x324xf32>
    %c42 = arith.constant 42 : index
    %c0_262 = arith.constant 0 : index
    %c0_263 = arith.constant 0 : index
    %283 = vector.load %arg2[%c42, %c0_262, %c0_263] : memref<54x8x8xf32, #tpu.memory_space<vmem>>, vector<1x8x8xf32>
    %284 = vector.shape_cast %283 : vector<1x8x8xf32> to vector<8x8xf32>
    %c0_264 = arith.constant 0 : index
    %c145_265 = arith.constant 145 : index
    %285 = vector.load %arg9[%c0_264, %c145_265] : memref<8x471xf32, #tpu.memory_space<vmem>>, vector<8x324xf32>
    %cst_266 = arith.constant dense<0.000000e+00> : vector<8x324xf32>
    %286 = tpu.matmul %284, %285, %cst_266 {dimension_numbers = #tpu.dot_dimension_numbers<[1], [0], [0], [1], [0, 0, 1, 1], [], []>} : vector<8x8xf32>, vector<8x324xf32>, vector<8x324xf32> -> vector<8x324xf32>
    %287 = arith.addf %282, %286 : vector<8x324xf32>
    %c43 = arith.constant 43 : index
    %c0_267 = arith.constant 0 : index
    %c0_268 = arith.constant 0 : index
    %288 = vector.load %arg2[%c43, %c0_267, %c0_268] : memref<54x8x8xf32, #tpu.memory_space<vmem>>, vector<1x8x8xf32>
    %289 = vector.shape_cast %288 : vector<1x8x8xf32> to vector<8x8xf32>
    %c0_269 = arith.constant 0 : index
    %c146_270 = arith.constant 146 : index
    %290 = vector.load %arg9[%c0_269, %c146_270] : memref<8x471xf32, #tpu.memory_space<vmem>>, vector<8x324xf32>
    %cst_271 = arith.constant dense<0.000000e+00> : vector<8x324xf32>
    %291 = tpu.matmul %289, %290, %cst_271 {dimension_numbers = #tpu.dot_dimension_numbers<[1], [0], [0], [1], [0, 0, 1, 1], [], []>} : vector<8x8xf32>, vector<8x324xf32>, vector<8x324xf32> -> vector<8x324xf32>
    %292 = arith.addf %287, %291 : vector<8x324xf32>
    %c44 = arith.constant 44 : index
    %c0_272 = arith.constant 0 : index
    %c0_273 = arith.constant 0 : index
    %293 = vector.load %arg2[%c44, %c0_272, %c0_273] : memref<54x8x8xf32, #tpu.memory_space<vmem>>, vector<1x8x8xf32>
    %294 = vector.shape_cast %293 : vector<1x8x8xf32> to vector<8x8xf32>
    %c0_274 = arith.constant 0 : index
    %c147_275 = arith.constant 147 : index
    %295 = vector.load %arg9[%c0_274, %c147_275] : memref<8x471xf32, #tpu.memory_space<vmem>>, vector<8x324xf32>
    %cst_276 = arith.constant dense<0.000000e+00> : vector<8x324xf32>
    %296 = tpu.matmul %294, %295, %cst_276 {dimension_numbers = #tpu.dot_dimension_numbers<[1], [0], [0], [1], [0, 0, 1, 1], [], []>} : vector<8x8xf32>, vector<8x324xf32>, vector<8x324xf32> -> vector<8x324xf32>
    %297 = arith.addf %292, %296 : vector<8x324xf32>
    %c4_277 = arith.constant 4 : index
    %c0_278 = arith.constant 0 : index
    %c0_279 = arith.constant 0 : index
    %298 = vector.load %arg3[%c4_277, %c0_278, %c0_279] : memref<6x8x1xf32, #tpu.memory_space<vmem>>, vector<1x8x1xf32>
    %299 = vector.shape_cast %298 : vector<1x8x1xf32> to vector<8x1xf32>
    %300 = vector.broadcast %299 : vector<8x1xf32> to vector<8x324xf32>
    %301 = arith.addf %297, %300 : vector<8x324xf32>
    %302 = arith.addf %179, %301 : vector<8x324xf32>
    %303 = arith.addf %56, %302 : vector<8x324xf32>
    %304 = vector.broadcast %3 : vector<1x324xf32> to vector<8x324xf32>
    %305 = arith.mulf %303, %304 : vector<8x324xf32>
    %c0_280 = arith.constant 0 : index
    %c128_281 = arith.constant 128 : index
    %306 = vector.load %arg9[%c0_280, %c128_281] : memref<8x471xf32, #tpu.memory_space<vmem>>, vector<8x324xf32>
    tpu.vector_store %arg9[%c0_280, %c128_281], %305 {strides = array<i32>} : memref<8x471xf32, #tpu.memory_space<vmem>>, vector<8x324xf32>,
    %c45 = arith.constant 45 : index
    %c0_282 = arith.constant 0 : index
    %c0_283 = arith.constant 0 : index
    %307 = vector.load %arg2[%c45, %c0_282, %c0_283] : memref<54x8x8xf32, #tpu.memory_space<vmem>>, vector<1x8x8xf32>
    %308 = vector.shape_cast %307 : vector<1x8x8xf32> to vector<8x8xf32>
    %c0_284 = arith.constant 0 : index
    %c109_285 = arith.constant 109 : index
    %309 = vector.load %arg9[%c0_284, %c109_285] : memref<8x471xf32, #tpu.memory_space<vmem>>, vector<8x324xf32>
    %cst_286 = arith.constant dense<0.000000e+00> : vector<8x324xf32>
    %310 = tpu.matmul %308, %309, %cst_286 {dimension_numbers = #tpu.dot_dimension_numbers<[1], [0], [0], [1], [0, 0, 1, 1], [], []>} : vector<8x8xf32>, vector<8x324xf32>, vector<8x324xf32> -> vector<8x324xf32>
    %c46 = arith.constant 46 : index
    %c0_287 = arith.constant 0 : index
    %c0_288 = arith.constant 0 : index
    %311 = vector.load %arg2[%c46, %c0_287, %c0_288] : memref<54x8x8xf32, #tpu.memory_space<vmem>>, vector<1x8x8xf32>
    %312 = vector.shape_cast %311 : vector<1x8x8xf32> to vector<8x8xf32>
    %c0_289 = arith.constant 0 : index
    %c110_290 = arith.constant 110 : index
    %313 = vector.load %arg9[%c0_289, %c110_290] : memref<8x471xf32, #tpu.memory_space<vmem>>, vector<8x324xf32>
    %cst_291 = arith.constant dense<0.000000e+00> : vector<8x324xf32>
    %314 = tpu.matmul %312, %313, %cst_291 {dimension_numbers = #tpu.dot_dimension_numbers<[1], [0], [0], [1], [0, 0, 1, 1], [], []>} : vector<8x8xf32>, vector<8x324xf32>, vector<8x324xf32> -> vector<8x324xf32>
    %315 = arith.addf %310, %314 : vector<8x324xf32>
    %c47 = arith.constant 47 : index
    %c0_292 = arith.constant 0 : index
    %c0_293 = arith.constant 0 : index
    %316 = vector.load %arg2[%c47, %c0_292, %c0_293] : memref<54x8x8xf32, #tpu.memory_space<vmem>>, vector<1x8x8xf32>
    %317 = vector.shape_cast %316 : vector<1x8x8xf32> to vector<8x8xf32>
    %c0_294 = arith.constant 0 : index
    %c111_295 = arith.constant 111 : index
    %318 = vector.load %arg9[%c0_294, %c111_295] : memref<8x471xf32, #tpu.memory_space<vmem>>, vector<8x324xf32>
    %cst_296 = arith.constant dense<0.000000e+00> : vector<8x324xf32>
    %319 = tpu.matmul %317, %318, %cst_296 {dimension_numbers = #tpu.dot_dimension_numbers<[1], [0], [0], [1], [0, 0, 1, 1], [], []>} : vector<8x8xf32>, vector<8x324xf32>, vector<8x324xf32> -> vector<8x324xf32>
    %320 = arith.addf %315, %319 : vector<8x324xf32>
    %c48 = arith.constant 48 : index
    %c0_297 = arith.constant 0 : index
    %c0_298 = arith.constant 0 : index
    %321 = vector.load %arg2[%c48, %c0_297, %c0_298] : memref<54x8x8xf32, #tpu.memory_space<vmem>>, vector<1x8x8xf32>
    %322 = vector.shape_cast %321 : vector<1x8x8xf32> to vector<8x8xf32>
    %c0_299 = arith.constant 0 : index
    %c127_300 = arith.constant 127 : index
    %323 = vector.load %arg9[%c0_299, %c127_300] : memref<8x471xf32, #tpu.memory_space<vmem>>, vector<8x324xf32>
    %cst_301 = arith.constant dense<0.000000e+00> : vector<8x324xf32>
    %324 = tpu.matmul %322, %323, %cst_301 {dimension_numbers = #tpu.dot_dimension_numbers<[1], [0], [0], [1], [0, 0, 1, 1], [], []>} : vector<8x8xf32>, vector<8x324xf32>, vector<8x324xf32> -> vector<8x324xf32>
    %325 = arith.addf %320, %324 : vector<8x324xf32>
    %c49 = arith.constant 49 : index
    %c0_302 = arith.constant 0 : index
    %c0_303 = arith.constant 0 : index
    %326 = vector.load %arg2[%c49, %c0_302, %c0_303] : memref<54x8x8xf32, #tpu.memory_space<vmem>>, vector<1x8x8xf32>
    %327 = vector.shape_cast %326 : vector<1x8x8xf32> to vector<8x8xf32>
    %c0_304 = arith.constant 0 : index
    %c128_305 = arith.constant 128 : index
    %328 = vector.load %arg9[%c0_304, %c128_305] : memref<8x471xf32, #tpu.memory_space<vmem>>, vector<8x324xf32>
    %cst_306 = arith.constant dense<0.000000e+00> : vector<8x324xf32>
    %329 = tpu.matmul %327, %328, %cst_306 {dimension_numbers = #tpu.dot_dimension_numbers<[1], [0], [0], [1], [0, 0, 1, 1], [], []>} : vector<8x8xf32>, vector<8x324xf32>, vector<8x324xf32> -> vector<8x324xf32>
    %330 = arith.addf %325, %329 : vector<8x324xf32>
    %c50 = arith.constant 50 : index
    %c0_307 = arith.constant 0 : index
    %c0_308 = arith.constant 0 : index
    %331 = vector.load %arg2[%c50, %c0_307, %c0_308] : memref<54x8x8xf32, #tpu.memory_space<vmem>>, vector<1x8x8xf32>
    %332 = vector.shape_cast %331 : vector<1x8x8xf32> to vector<8x8xf32>
    %c0_309 = arith.constant 0 : index
    %c129_310 = arith.constant 129 : index
    %333 = vector.load %arg9[%c0_309, %c129_310] : memref<8x471xf32, #tpu.memory_space<vmem>>, vector<8x324xf32>
    %cst_311 = arith.constant dense<0.000000e+00> : vector<8x324xf32>
    %334 = tpu.matmul %332, %333, %cst_311 {dimension_numbers = #tpu.dot_dimension_numbers<[1], [0], [0], [1], [0, 0, 1, 1], [], []>} : vector<8x8xf32>, vector<8x324xf32>, vector<8x324xf32> -> vector<8x324xf32>
    %335 = arith.addf %330, %334 : vector<8x324xf32>
    %c51 = arith.constant 51 : index
    %c0_312 = arith.constant 0 : index
    %c0_313 = arith.constant 0 : index
    %336 = vector.load %arg2[%c51, %c0_312, %c0_313] : memref<54x8x8xf32, #tpu.memory_space<vmem>>, vector<1x8x8xf32>
    %337 = vector.shape_cast %336 : vector<1x8x8xf32> to vector<8x8xf32>
    %c0_314 = arith.constant 0 : index
    %c145_315 = arith.constant 145 : index
    %338 = vector.load %arg9[%c0_314, %c145_315] : memref<8x471xf32, #tpu.memory_space<vmem>>, vector<8x324xf32>
    %cst_316 = arith.constant dense<0.000000e+00> : vector<8x324xf32>
    %339 = tpu.matmul %337, %338, %cst_316 {dimension_numbers = #tpu.dot_dimension_numbers<[1], [0], [0], [1], [0, 0, 1, 1], [], []>} : vector<8x8xf32>, vector<8x324xf32>, vector<8x324xf32> -> vector<8x324xf32>
    %340 = arith.addf %335, %339 : vector<8x324xf32>
    %c52 = arith.constant 52 : index
    %c0_317 = arith.constant 0 : index
    %c0_318 = arith.constant 0 : index
    %341 = vector.load %arg2[%c52, %c0_317, %c0_318] : memref<54x8x8xf32, #tpu.memory_space<vmem>>, vector<1x8x8xf32>
    %342 = vector.shape_cast %341 : vector<1x8x8xf32> to vector<8x8xf32>
    %c0_319 = arith.constant 0 : index
    %c146_320 = arith.constant 146 : index
    %343 = vector.load %arg9[%c0_319, %c146_320] : memref<8x471xf32, #tpu.memory_space<vmem>>, vector<8x324xf32>
    %cst_321 = arith.constant dense<0.000000e+00> : vector<8x324xf32>
    %344 = tpu.matmul %342, %343, %cst_321 {dimension_numbers = #tpu.dot_dimension_numbers<[1], [0], [0], [1], [0, 0, 1, 1], [], []>} : vector<8x8xf32>, vector<8x324xf32>, vector<8x324xf32> -> vector<8x324xf32>
    %345 = arith.addf %340, %344 : vector<8x324xf32>
    %c53 = arith.constant 53 : index
    %c0_322 = arith.constant 0 : index
    %c0_323 = arith.constant 0 : index
    %346 = vector.load %arg2[%c53, %c0_322, %c0_323] : memref<54x8x8xf32, #tpu.memory_space<vmem>>, vector<1x8x8xf32>
    %347 = vector.shape_cast %346 : vector<1x8x8xf32> to vector<8x8xf32>
    %c0_324 = arith.constant 0 : index
    %c147_325 = arith.constant 147 : index
    %348 = vector.load %arg9[%c0_324, %c147_325] : memref<8x471xf32, #tpu.memory_space<vmem>>, vector<8x324xf32>
    %cst_326 = arith.constant dense<0.000000e+00> : vector<8x324xf32>
    %349 = tpu.matmul %347, %348, %cst_326 {dimension_numbers = #tpu.dot_dimension_numbers<[1], [0], [0], [1], [0, 0, 1, 1], [], []>} : vector<8x8xf32>, vector<8x324xf32>, vector<8x324xf32> -> vector<8x324xf32>
    %350 = arith.addf %345, %349 : vector<8x324xf32>
    %c5_327 = arith.constant 5 : index
    %c0_328 = arith.constant 0 : index
    %c0_329 = arith.constant 0 : index
    %351 = vector.load %arg3[%c5_327, %c0_328, %c0_329] : memref<6x8x1xf32, #tpu.memory_space<vmem>>, vector<1x8x1xf32>
    %352 = vector.shape_cast %351 : vector<1x8x1xf32> to vector<8x1xf32>
    %353 = vector.broadcast %352 : vector<8x1xf32> to vector<8x324xf32>
    %354 = arith.addf %350, %353 : vector<8x324xf32>
    %c0_330 = arith.constant 0 : index
    %c0_331 = arith.constant 0 : index
    %c0_332 = arith.constant 0 : index
    %355 = vector.load %arg7[%c0_330, %c0_331, %c0_332] : memref<1x8x324xf32, #tpu.memory_space<vmem>>, vector<1x8x324xf32>
    %356 = vector.shape_cast %355 : vector<1x8x324xf32> to vector<8x324xf32>
    %357 = vector.shape_cast %303 : vector<8x324xf32> to vector<1x8x324xf32>
    tpu.vector_store %arg7[%c0_330, %c0_331, %c0_332], %357 {strides = array<i32>} : memref<1x8x324xf32, #tpu.memory_space<vmem>>, vector<1x8x324xf32>,
    %c0_333 = arith.constant 0 : index
    %c0_334 = arith.constant 0 : index
    %c0_335 = arith.constant 0 : index
    %358 = vector.load %arg8[%c0_333, %c0_334, %c0_335] : memref<1x8x324xf32, #tpu.memory_space<vmem>>, vector<1x8x324xf32>
    %359 = vector.shape_cast %358 : vector<1x8x324xf32> to vector<8x324xf32>
    %360 = vector.shape_cast %354 : vector<8x324xf32> to vector<1x8x324xf32>
    tpu.vector_store %arg8[%c0_333, %c0_334, %c0_335], %360 {strides = array<i32>} : memref<1x8x324xf32, #tpu.memory_space<vmem>>, vector<1x8x324xf32>,
    return
  }
  func.func @transform_0(%arg0: i32) -> (i32, i32, i32) {
    %c0_i32 = arith.constant 0 : i32
    %c0_i32_0 = arith.constant 0 : i32
    %c0_i32_1 = arith.constant 0 : i32
    return %arg0, %c0_i32, %c0_i32_0 : i32, i32, i32
  }
  func.func @transform_1(%arg0: i32) -> (i32, i32, i32) {
    %c0_i32 = arith.constant 0 : i32
    %c0_i32_0 = arith.constant 0 : i32
    %c0_i32_1 = arith.constant 0 : i32
    %c0_i32_2 = arith.constant 0 : i32
    return %c0_i32, %c0_i32_0, %c0_i32_1 : i32, i32, i32
  }
  func.func @transform_2(%arg0: i32) -> (i32, i32, i32) {
    %c0_i32 = arith.constant 0 : i32
    %c0_i32_0 = arith.constant 0 : i32
    %c0_i32_1 = arith.constant 0 : i32
    %c0_i32_2 = arith.constant 0 : i32
    return %c0_i32, %c0_i32_0, %c0_i32_1 : i32, i32, i32
  }
  func.func @transform_3(%arg0: i32) -> (i32, i32, i32) {
    %c0_i32 = arith.constant 0 : i32
    %c0_i32_0 = arith.constant 0 : i32
    %c0_i32_1 = arith.constant 0 : i32
    %c0_i32_2 = arith.constant 0 : i32
    return %c0_i32, %c0_i32_0, %c0_i32_1 : i32, i32, i32
  }
  func.func @transform_4(%arg0: i32) -> (i32, i32, i32) {
    %c0_i32 = arith.constant 0 : i32
    %c0_i32_0 = arith.constant 0 : i32
    %c0_i32_1 = arith.constant 0 : i32
    %c0_i32_2 = arith.constant 0 : i32
    return %c0_i32, %c0_i32_0, %c0_i32_1 : i32, i32, i32
  }
  func.func @transform_5(%arg0: i32) -> (i32, i32) {
    %c0_i32 = arith.constant 0 : i32
    %c0_i32_0 = arith.constant 0 : i32
    %c0_i32_1 = arith.constant 0 : i32
    return %c0_i32, %c0_i32_0 : i32, i32
  }
  func.func @transform_6(%arg0: i32) -> (i32, i32, i32) {
    %c0_i32 = arith.constant 0 : i32
    %c0_i32_0 = arith.constant 0 : i32
    %c0_i32_1 = arith.constant 0 : i32
    return %arg0, %c0_i32, %c0_i32_0 : i32, i32, i32
  }
  func.func @transform_7(%arg0: i32) -> (i32, i32, i32) {
    %c0_i32 = arith.constant 0 : i32
    %c0_i32_0 = arith.constant 0 : i32
    %c0_i32_1 = arith.constant 0 : i32
    return %arg0, %c0_i32, %c0_i32_0 : i32, i32, i32
  }
}

</mosaic_0001>

<llo_original>
// kernel: first_block_forward.1
$region0: #{first_block_forward.1}
  #allocation0 [shape = 'u32[]', space=smem, size = 0x4, offset = 0x4, fixed_abs, tag = 'smem constant byte address 0x4 - core index']
  #allocation1 [shape = 'u32[144,128]{1,0:T(1,128)}', space=vmem, size = 0x12000, scoped, tag = 'internal scratch']
  #allocation2 [shape = 'f32[8,471]{1,0:T(8,128)}', space=vmem, size = 0x4000, scoped, tag = 'scratch operand']
  %s0 = inlined_call_operand.vmem [shape: f32[2,4,324], index: 0, kind: input, shape index: {}]
  %s1 = inlined_call_operand.vmem [shape: f32[54,8,8], index: 1, kind: input, shape index: {}]
  %s2 = inlined_call_operand.vmem [shape: f32[6,8,1], index: 2, kind: input, shape index: {}]
  %s3 = inlined_call_operand.vmem [shape: f32[4,8,1], index: 3, kind: input, shape index: {}]
  %s4 = inlined_call_operand.vmem [shape: f32[4,8,1], index: 4, kind: input, shape index: {}]
  %s5 = inlined_call_operand.vmem [shape: f32[1,324], index: 5, kind: input, shape index: {}]
  %s6 = inlined_call_operand.vmem [shape: f32[2,8,324], index: 6, kind: output, shape index: {0}]
  %s7 = inlined_call_operand.vmem [shape: f32[2,8,324], index: 7, kind: output, shape index: {1}]
  %8 = xla_tuple %s6, %s7
  %s9 = sld [smem:[#allocation0]]
  $region65: #{first_block_forward.1} parent=0
    _
  %s11 = ssub.s32 1, %s9
  %s12 = scalar_select 0, %s11, %s9
  loop: start=0, step=1, limit=4
  $region2: #{first_block_forward.1} parent=0 // loop_pre_header
    _
  $region3: #{first_block_forward.1} parent=0 // loop_header
    %s14 = sphi 0, %s18
    %p15 = scmp.ge.s32.totalorder %s14, 4
    %s24 = sphi 0, %s26
    %s27 = sphi 0, %s24
    %s28 = sphi 0, %s27
    %s44 = sphi 0, %s28
    %s48 = sphi 0, %s48
    %s50 = sphi 0, %s48
    %s51 = sphi 0, %s50
    %s65 = sphi 0, %s51
    %s69 = sphi 0, %s69
    %s71 = sphi 0, %s69
    %s72 = sphi 0, %s71
    %s86 = sphi 0, %s72
    %s90 = sphi 0, %s90
    %s92 = sphi 0, %s90
    %s93 = sphi 0, %s92
    %s107 = sphi 0, %s93
    %s111 = sphi 0, %s111
    %s113 = sphi 0, %s111
    %s114 = sphi 0, %s113
    %s128 = sphi 0, %s114
    %s132 = sphi 0, %s132
    %s134 = sphi 0, %s132
    %s135 = sphi 0, %s134
    %s149 = sphi 0, %s135
    %s155 = sphi 0, %s157
    %s158 = sphi 0, %s155
    %s159 = sphi 0, %s158
    %s175 = sphi 0, %s159
    %s181 = sphi 0, %s183
    %s184 = sphi 0, %s181
    %s185 = sphi 0, %s184
    %s201 = sphi 0, %s185
  $region4: #{first_block_forward.1} parent=0 // loop_header_branch
    %17 = sbr.rel (%p15) target = $region8
  $region5: #{first_block_forward.1} parent=0 // loop_body
    %s19 = ssub.s32 %s14, 1
    %s20 = ssub.s32 %s14, 2
    %s21 = sadd.s32 %s14, 1
    %s22 = ssub.s32 %s14, %s21
    %p23 = scmp.eq.s32.totalorder %s22, 0
    %s25 = sadd.s32 %s24, 1
    %s26 = scalar_select %p23, %s24, %s25
    %p29 = pneg %p23
    %p30 = scmp.eq.s32.totalorder %s14, 1
    %p31 = por %p29, %p30
    %p32 = scmp.ne.s32.totalorder %s24, %s27
    %p33 = scmp.eq.s32.totalorder %s14, 0
    %p34 = por %p32, %p33
    %p35 = scmp.ne.s32.totalorder %s24, %s27
    %p36 = scmp.eq.s32.totalorder %s19, 1
    %p37 = por %p35, %p36
    %p38 = scmp.ne.s32.totalorder %s27, %s28
    %p39 = scmp.eq.s32.totalorder %s19, 0
    %p40 = por %p38, %p39
    %p41 = scmp.ne.s32.totalorder %s27, %s28
    %p42 = scmp.eq.s32.totalorder %s20, 1
    %p43 = por %p41, %p42
    %p45 = scmp.ne.s32.totalorder %s28, %s44
    %p46 = scmp.eq.s32.totalorder %s20, 0
    %p47 = por %p45, %p46
    %s49 = sadd.s32 %s48, 1
    %p52 = scmp.eq.s32.totalorder %s14, 1
    %p53 = scmp.ne.s32.totalorder %s48, %s50
    %p54 = scmp.eq.s32.totalorder %s14, 0
    %p55 = por %p53, %p54
    %p56 = scmp.ne.s32.totalorder %s48, %s50
    %p57 = scmp.eq.s32.totalorder %s19, 1
    %p58 = por %p56, %p57
    %p59 = scmp.ne.s32.totalorder %s50, %s51
    %p60 = scmp.eq.s32.totalorder %s19, 0
    %p61 = por %p59, %p60
    %p62 = scmp.ne.s32.totalorder %s50, %s51
    %p63 = scmp.eq.s32.totalorder %s20, 1
    %p64 = por %p62, %p63
    %p66 = scmp.ne.s32.totalorder %s51, %s65
    %p67 = scmp.eq.s32.totalorder %s20, 0
    %p68 = por %p66, %p67
    %s70 = sadd.s32 %s69, 1
    %p73 = scmp.eq.s32.totalorder %s14, 1
    %p74 = scmp.ne.s32.totalorder %s69, %s71
    %p75 = scmp.eq.s32.totalorder %s14, 0
    %p76 = por %p74, %p75
    %p77 = scmp.ne.s32.totalorder %s69, %s71
    %p78 = scmp.eq.s32.totalorder %s19, 1
    %p79 = por %p77, %p78
    %p80 = scmp.ne.s32.totalorder %s71, %s72
    %p81 = scmp.eq.s32.totalorder %s19, 0
    %p82 = por %p80, %p81
    %p83 = scmp.ne.s32.totalorder %s71, %s72
    %p84 = scmp.eq.s32.totalorder %s20, 1
    %p85 = por %p83, %p84
    %p87 = scmp.ne.s32.totalorder %s72, %s86
    %p88 = scmp.eq.s32.totalorder %s20, 0
    %p89 = por %p87, %p88
    %s91 = sadd.s32 %s90, 1
    %p94 = scmp.eq.s32.totalorder %s14, 1
    %p95 = scmp.ne.s32.totalorder %s90, %s92
    %p96 = scmp.eq.s32.totalorder %s14, 0
    %p97 = por %p95, %p96
    %p98 = scmp.ne.s32.totalorder %s90, %s92
    %p99 = scmp.eq.s32.totalorder %s19, 1
    %p100 = por %p98, %p99
    %p101 = scmp.ne.s32.totalorder %s92, %s93
    %p102 = scmp.eq.s32.totalorder %s19, 0
    %p103 = por %p101, %p102
    %p104 = scmp.ne.s32.totalorder %s92, %s93
    %p105 = scmp.eq.s32.totalorder %s20, 1
    %p106 = por %p104, %p105
    %p108 = scmp.ne.s32.totalorder %s93, %s107
    %p109 = scmp.eq.s32.totalorder %s20, 0
    %p110 = por %p108, %p109
    %s112 = sadd.s32 %s111, 1
    %p115 = scmp.eq.s32.totalorder %s14, 1
    %p116 = scmp.ne.s32.totalorder %s111, %s113
    %p117 = scmp.eq.s32.totalorder %s14, 0
    %p118 = por %p116, %p117
    %p119 = scmp.ne.s32.totalorder %s111, %s113
    %p120 = scmp.eq.s32.totalorder %s19, 1
    %p121 = por %p119, %p120
    %p122 = scmp.ne.s32.totalorder %s113, %s114
    %p123 = scmp.eq.s32.totalorder %s19, 0
    %p124 = por %p122, %p123
    %p125 = scmp.ne.s32.totalorder %s113, %s114
    %p126 = scmp.eq.s32.totalorder %s20, 1
    %p127 = por %p125, %p126
    %p129 = scmp.ne.s32.totalorder %s114, %s128
    %p130 = scmp.eq.s32.totalorder %s20, 0
    %p131 = por %p129, %p130
    %s133 = sadd.s32 %s132, 1
    %p136 = scmp.eq.s32.totalorder %s14, 1
    %p137 = scmp.ne.s32.totalorder %s132, %s134
    %p138 = scmp.eq.s32.totalorder %s14, 0
    %p139 = por %p137, %p138
    %p140 = scmp.ne.s32.totalorder %s132, %s134
    %p141 = scmp.eq.s32.totalorder %s19, 1
    %p142 = por %p140, %p141
    %p143 = scmp.ne.s32.totalorder %s134, %s135
    %p144 = scmp.eq.s32.totalorder %s19, 0
    %p145 = por %p143, %p144
    %p146 = scmp.ne.s32.totalorder %s134, %s135
    %p147 = scmp.eq.s32.totalorder %s20, 1
    %p148 = por %p146, %p147
    %p150 = scmp.ne.s32.totalorder %s135, %s149
    %p151 = scmp.eq.s32.totalorder %s20, 0
    %p152 = por %p150, %p151
    %s153 = ssub.s32 %s14, %s21
    %p154 = scmp.eq.s32.totalorder %s153, 0
    %s156 = sadd.s32 %s155, 1
    %s157 = scalar_select %p154, %s155, %s156
    %p160 = pneg %p154
    %p161 = scmp.eq.s32.totalorder %s14, 1
    %p162 = por %p160, %p161
    %p163 = scmp.ne.s32.totalorder %s155, %s158
    %p164 = scmp.eq.s32.totalorder %s14, 0
    %p165 = por %p163, %p164
    %p166 = scmp.ne.s32.totalorder %s155, %s158
    %p167 = scmp.eq.s32.totalorder %s19, 1
    %p168 = por %p166, %p167
    %p169 = scmp.ne.s32.totalorder %s158, %s159
    %p170 = scmp.eq.s32.totalorder %s19, 0
    %p171 = por %p169, %p170
    %p172 = scmp.ne.s32.totalorder %s158, %s159
    %p173 = scmp.eq.s32.totalorder %s20, 1
    %p174 = por %p172, %p173
    %p176 = scmp.ne.s32.totalorder %s159, %s175
    %p177 = scmp.eq.s32.totalorder %s20, 0
    %p178 = por %p176, %p177
    %s179 = ssub.s32 %s14, %s21
    %p180 = scmp.eq.s32.totalorder %s179, 0
    %s182 = sadd.s32 %s181, 1
    %s183 = scalar_select %p180, %s181, %s182
    %p186 = pneg %p180
    %p187 = scmp.eq.s32.totalorder %s14, 1
    %p188 = por %p186, %p187
    %p189 = scmp.ne.s32.totalorder %s181, %s184
    %p190 = scmp.eq.s32.totalorder %s14, 0
    %p191 = por %p189, %p190
    %p192 = scmp.ne.s32.totalorder %s181, %s184
    %p193 = scmp.eq.s32.totalorder %s19, 1
    %p194 = por %p192, %p193
    %p195 = scmp.ne.s32.totalorder %s184, %s185
    %p196 = scmp.eq.s32.totalorder %s19, 0
    %p197 = por %p195, %p196
    %p198 = scmp.ne.s32.totalorder %s184, %s185
    %p199 = scmp.eq.s32.totalorder %s20, 1
    %p200 = por %p198, %p199
    %p202 = scmp.ne.s32.totalorder %s185, %s201
    %p203 = scmp.eq.s32.totalorder %s20, 0
    %p204 = por %p202, %p203
    %p205 = scmp.le.s32.totalorder 1, %s14
    %p206 = scmp.lt.s32.totalorder %s14, 3
    %p207 = pnand %p205, %p206
    %p208 = pneg %p207
    // Predicated region
    $region9: #{first_block_forward.1} parent=5 // pred_check
      _
    $region10: #{first_block_forward.1} parent=5 // pred_check_branch
      %210 = sbr.rel (%p207) target = $region12
    $region11: #{first_block_forward.1} parent=5 // pred_region
      %s211 = ssub.s32 %s14, 1
      // Predicated region
      $region13: #{first_block_forward.1} parent=11 // pred_check
        %p212 = pneg %p61
      $region14: #{first_block_forward.1} parent=11 // pred_check_branch
        %214 = sbr.rel (%p212) target = $region16
      $region15: #{first_block_forward.1} parent=11 // pred_region
        _
      $region16: #{first_block_forward.1} parent=11 // pred_fallthru
        _
      // Predicated region
      $region17: #{first_block_forward.1} parent=11 // pred_check
        %p215 = pneg %p82
      $region18: #{first_block_forward.1} parent=11 // pred_check_branch
        %217 = sbr.rel (%p215) target = $region20
      $region19: #{first_block_forward.1} parent=11 // pred_region
        _
      $region20: #{first_block_forward.1} parent=11 // pred_fallthru
        _
      // Predicated region
      $region21: #{first_block_forward.1} parent=11 // pred_check
        %p218 = pneg %p103
      $region22: #{first_block_forward.1} parent=11 // pred_check_branch
        %220 = sbr.rel (%p218) target = $region24
      $region23: #{first_block_forward.1} parent=11 // pred_region
        _
      $region24: #{first_block_forward.1} parent=11 // pred_fallthru
        _
      // Predicated region
      $region25: #{first_block_forward.1} parent=11 // pred_check
        %p221 = pneg %p124
      $region26: #{first_block_forward.1} parent=11 // pred_check_branch
        %223 = sbr.rel (%p221) target = $region28
      $region27: #{first_block_forward.1} parent=11 // pred_region
        _
      $region28: #{first_block_forward.1} parent=11 // pred_fallthru
        _
      // Predicated region
      $region29: #{first_block_forward.1} parent=11 // pred_check
        %p224 = pneg %p145
      $region30: #{first_block_forward.1} parent=11 // pred_check_branch
        %226 = sbr.rel (%p224) target = $region32
      $region31: #{first_block_forward.1} parent=11 // pred_region
        _
      $region32: #{first_block_forward.1} parent=11 // pred_fallthru
        _
    $region12: #{first_block_forward.1} parent=5 // pred_fallthru
      _
    %p227 = scmp.lt.s32.totalorder %s14, 2
    // Predicated region
    $region33: #{first_block_forward.1} parent=5 // pred_check
      %p228 = pneg %p227
    $region34: #{first_block_forward.1} parent=5 // pred_check_branch
      %230 = sbr.rel (%p228) target = $region36
    $region35: #{first_block_forward.1} parent=5 // pred_region
      // Predicated region
      $region37: #{first_block_forward.1} parent=35 // pred_check
        %p231 = pneg %p34
      $region38: #{first_block_forward.1} parent=35 // pred_check_branch
        %233 = sbr.rel (%p231) target = $region40
      $region39: #{first_block_forward.1} parent=35 // pred_region
        %p234 = scmp.lt.s32.totalorder %s14, 1
        %s235 = scalar_select %p234, %s14, 1
        %s236 = smul.addr %s235, 3
        %s237 = smul.addr %s236, 4
        %s238 = scalar_lea.vmem %s0, %s237
      $region40: #{first_block_forward.1} parent=35 // pred_fallthru
        _
    $region36: #{first_block_forward.1} parent=5 // pred_fallthru
      _
    %p239 = scmp.le.s32.totalorder 1, %s14
    %p240 = scmp.lt.s32.totalorder %s14, 3
    %p241 = pnand %p239, %p240
    %p242 = pneg %p241
    // Predicated region
    $region41: #{first_block_forward.1} parent=5 // pred_check
      _
    $region42: #{first_block_forward.1} parent=5 // pred_check_branch
      %244 = sbr.rel (%p241) target = $region44
    $region43: #{first_block_forward.1} parent=5 // pred_region
      %s245 = ssub.s32 %s14, 1
      %p246 = scmp.lt.s32.totalorder %s19, 1
      %s247 = scalar_select %p246, %s19, 1
      %s248 = smul.addr %s247, 3
      %s249 = smul.addr %s248, 4
      %s250 = scalar_lea.vmem %s0, %s249
      %p251 = pneg %p40
      %p252 = pneg %p37
      %p253 = pneg %p61
      %p254 = pneg %p58
      %p255 = pneg %p82
      %p256 = pneg %p79
      %p257 = pneg %p103
      %p258 = pneg %p100
      %p259 = pneg %p124
      %p260 = pneg %p121
      %p261 = pneg %p145
      %p262 = pneg %p142
      %p263 = pneg %p171
      %p264 = pneg %p168
      %p265 = scmp.lt.s32.totalorder %s19, 1
      %s266 = scalar_select %p265, %s19, 1
      %s267 = smul.addr %s266, 3
      %s268 = smul.addr %s267, 8
      %s269 = scalar_lea.vmem %s6, %s268
      %p270 = pneg %p197
      %p271 = pneg %p194
      %p272 = scmp.lt.s32.totalorder %s19, 1
      %s273 = scalar_select %p272, %s19, 1
      %s274 = smul.addr %s273, 3
      %s275 = smul.addr %s274, 8
      %s276 = scalar_lea.vmem %s7, %s275
      %p277 = scmp.lt.s32.totalorder %s19, 1
      %s278 = scalar_select %p277, %s19, 1
      %s279 = smul.addr %s278, 3
      %s280 = smul.addr %s279, 4
      %s281 = scalar_lea.vmem %s0, %s280
      %p282 = scmp.lt.s32.totalorder %s19, 1
      %s283 = scalar_select %p282, %s19, 1
      %s284 = smul.addr %s283, 3
      %s285 = smul.addr %s284, 8
      %s286 = scalar_lea.vmem %s6, %s285
      %p287 = scmp.lt.s32.totalorder %s19, 1
      %s288 = scalar_select %p287, %s19, 1
      %s289 = smul.addr %s288, 3
      %s290 = smul.addr %s289, 8
      %s291 = scalar_lea.vmem %s7, %s290
      %vm292 = vcmask 1048424
      %293 = vst.msk [vmem:[#allocation2] sm:$0xff] %vm292, 0.0
      %vm294 = vcmask 712224
      %295 = vst.msk [vmem:[#allocation2 + $0x18] sm:$0xff] %vm294, 0.0
      %v296 = vld [vmem:[%s5] sm:$0x7]
      %v297 = vld [vmem:[%s281] sm:$0xff]
      %v298 = vld [vmem:[%s281 + $0x8] sm:$0xf]
      %v300 = vcombine.high %v297, %v297
      %302 = vst [vmem:[#allocation2 + $0x8] sm:$0xf] %v297
      %303 = vst [vmem:[#allocation2 + $0x10] sm:$0xf] %v300
      %vm304 = vcmask 551936
      %305 = vst.msk [vmem:[#allocation2 + $0x18] sm:$0xf] %vm304, %v298
      %306 = vst [vmem:[#allocation2 + $0x8] sm:$0xf0] 0.0
      %307 = vst [vmem:[#allocation2 + $0x10] sm:$0xf0] 0.0
      %vm308 = vcmask 556036
      %309 = vst.msk [vmem:[#allocation2 + $0x18] sm:$0xf0] %vm308, 0.0
      %v310 = vld [vmem:[%s1] sm:$0xff]
      %v311 = vld [vmem:[#allocation2] sm:$0xff]
      %v312 = vld [vmem:[#allocation2 + $0x8] sm:$0xff]
      %v313 = vld [vmem:[#allocation2 + $0x10] sm:$0xff]
      %v314 = vld [vmem:[#allocation2 + $0x18] sm:$0xff]
      %s315 = scalar_lea.vmem %s1, 8
      %v316 = vld [vmem:[%s315] sm:$0xff]
      %321 = vrot.lane.b32.xlu0 %v311, 18
      %v322 = vpop.permute.xlu0 %321
      %323 = vrot.lane.b32.xlu0 %v312, 18
      %v324 = vpop.permute.xlu0 %323
      %325 = vrot.lane.b32.xlu0 %v313, 18
      %v326 = vpop.permute.xlu0 %325
      %327 = vrot.lane.b32.xlu0 %v314, 18
      %v328 = vpop.permute.xlu0 %327
      %vm329 = vcmask 146432
      %v330 = vsel %vm329, %v322, %v324
      %v331 = vsel %vm329, %v324, %v326
      %v332 = vsel %vm329, %v326, %v328
      %vm336 = vcmask 64512
      %v338 = vsel %vm336, %v316, 0
      %340 = vmatprep.subr.mxu0 %v331
      %341 = vmatpush1.msra.mxu0 %v330
      %342 = vmatprep.subr.mxu0 0.0
      %343 = vmatpush1.msra.mxu0 0.0
      %344 = vmatprep.subr.mxu0 0.0
      %345 = vmatpush1.msra.mxu0 0.0
      %346 = vmatprep.subr.mxu0 0.0
      %347 = vmatpush1.msra.mxu0 0.0
      %348 = vmatprep.subr.mxu0 0.0
      %349 = vmatpush1.msra.mxu0 0.0
      %350 = vmatprep.subr.mxu0 0.0
      %351 = vmatpush1.msra.mxu0 0.0
      %352 = vmatprep.subr.mxu0 0.0
      %353 = vmatpush1.msra.mxu0 0.0
      %354 = vmatprep.subr.mxu0 0.0
      %355 = vmatpush1.msra.mxu0 0.0
      %356 = vmatprep.subr.mxu0 0.0
      %357 = vmatpush1.msra.mxu0 0.0
      %358 = vmatprep.subr.mxu0 0.0
      %359 = vmatpush1.msra.mxu0 0.0
      %360 = vmatprep.subr.mxu0 0.0
      %361 = vmatpush1.msra.mxu0 0.0
      %362 = vmatprep.subr.mxu0 0.0
      %363 = vmatpush1.msra.mxu0 0.0
      %364 = vmatprep.subr.mxu0 0.0
      %365 = vmatpush1.msra.mxu0 0.0
      %366 = vmatprep.subr.mxu0 0.0
      %367 = vmatpush1.msra.mxu0 0.0
      %368 = vmatprep.subr.mxu0 0.0
      %369 = vmatpush1.msra.mxu0 0.0
      %370 = vmatprep.subr.mxu0 0.0
      %371 = vmatpush1.msra.mxu0 0.0
      %372 = vmatprep.subr.mxu0 0.0
      %373 = vmatpush1.msra.mxu0 0.0
      %374 = vmatprep.subr.mxu0 0.0
      %375 = vmatpush1.msra.mxu0 0.0
      %376 = vmatprep.subr.mxu0 0.0
      %377 = vmatpush1.msra.mxu0 0.0
      %378 = vmatprep.subr.mxu0 0.0
      %379 = vmatpush1.msra.mxu0 0.0
      %380 = vmatprep.subr.mxu0 0.0
      %381 = vmatpush1.msra.mxu0 0.0
      %382 = vmatprep.subr.mxu0 0.0
      %383 = vmatpush1.msra.mxu0 0.0
      %384 = vmatprep.subr.mxu0 0.0
      %385 = vmatpush1.msra.mxu0 0.0
      %386 = vmatprep.subr.mxu0 0.0
      %387 = vmatpush1.msra.mxu0 0.0
      %388 = vmatprep.subr.mxu0 0.0
      %389 = vmatpush1.msra.mxu0 0.0
      %390 = vmatprep.subr.mxu0 0.0
      %391 = vmatpush1.msra.mxu0 0.0
      %392 = vmatprep.subr.mxu0 0.0
      %393 = vmatpush1.msra.mxu0 0.0
      %394 = vmatprep.subr.mxu0 0.0
      %395 = vmatpush1.msra.mxu0 0.0
      %396 = vmatprep.subr.mxu0 0.0
      %397 = vmatpush1.msra.mxu0 0.0
      %398 = vmatprep.subr.mxu0 0.0
      %399 = vmatpush1.msra.mxu0 0.0
      %400 = vmatprep.subr.mxu0 0.0
      %401 = vmatpush1.msra.mxu0 0.0
      %402 = vmatprep.subr.mxu0 0.0
      %403 = vmatpush1.msra.mxu0 0.0
      %404 = vmatprep.mubr.f32.mxu0 0.0
      %405 = vmatmul.mubr.f32.gmra.mrb[0].mxu0 %v338
      %v406 = vpop.f32.mrb[0].mxu0
      %v407 = vadd.f32 0.0, %v406
      %v408 = vpop.f32.mrb[0].mxu0
      %v409 = vadd.f32 0.0, %v408
      %410 = vdwg.mxu0
      %411 = vmatprep.subr.mxu0 0.0
      %412 = vmatpush1.msra.mxu0 %v332
      %413 = vmatprep.subr.mxu0 0.0
      %414 = vmatpush1.msra.mxu0 0.0
      %415 = vmatprep.subr.mxu0 0.0
      %416 = vmatpush1.msra.mxu0 0.0
      %417 = vmatprep.subr.mxu0 0.0
      %418 = vmatpush1.msra.mxu0 0.0
      %419 = vmatprep.subr.mxu0 0.0
      %420 = vmatpush1.msra.mxu0 0.0
      %421 = vmatprep.subr.mxu0 0.0
      %422 = vmatpush1.msra.mxu0 0.0
      %423 = vmatprep.subr.mxu0 0.0
      %424 = vmatpush1.msra.mxu0 0.0
      %425 = vmatprep.subr.mxu0 0.0
      %426 = vmatpush1.msra.mxu0 0.0
      %427 = vmatprep.subr.mxu0 0.0
      %428 = vmatpush1.msra.mxu0 0.0
      %429 = vmatprep.subr.mxu0 0.0
      %430 = vmatpush1.msra.mxu0 0.0
      %431 = vmatprep.subr.mxu0 0.0
      %432 = vmatpush1.msra.mxu0 0.0
      %433 = vmatprep.subr.mxu0 0.0
      %434 = vmatpush1.msra.mxu0 0.0
      %435 = vmatprep.subr.mxu0 0.0
      %436 = vmatpush1.msra.mxu0 0.0
      %437 = vmatprep.subr.mxu0 0.0
      %438 = vmatpush1.msra.mxu0 0.0
      %439 = vmatprep.subr.mxu0 0.0
      %440 = vmatpush1.msra.mxu0 0.0
      %441 = vmatprep.subr.mxu0 0.0
      %442 = vmatpush1.msra.mxu0 0.0
      %443 = vmatprep.subr.mxu0 0.0
      %444 = vmatpush1.msra.mxu0 0.0
      %445 = vmatprep.subr.mxu0 0.0
      %446 = vmatpush1.msra.mxu0 0.0
      %447 = vmatprep.subr.mxu0 0.0
      %448 = vmatpush1.msra.mxu0 0.0
      %449 = vmatprep.subr.mxu0 0.0
      %450 = vmatpush1.msra.mxu0 0.0
      %451 = vmatprep.subr.mxu0 0.0
      %452 = vmatpush1.msra.mxu0 0.0
      %453 = vmatprep.subr.mxu0 0.0
      %454 = vmatpush1.msra.mxu0 0.0
      %455 = vmatprep.subr.mxu0 0.0
      %456 = vmatpush1.msra.mxu0 0.0
      %457 = vmatprep.subr.mxu0 0.0
      %458 = vmatpush1.msra.mxu0 0.0
      %459 = vmatprep.subr.mxu0 0.0
      %460 = vmatpush1.msra.mxu0 0.0
      %461 = vmatprep.subr.mxu0 0.0
      %462 = vmatpush1.msra.mxu0 0.0
      %463 = vmatprep.subr.mxu0 0.0
      %464 = vmatpush1.msra.mxu0 0.0
      %465 = vmatprep.subr.mxu0 0.0
      %466 = vmatpush1.msra.mxu0 0.0
      %467 = vmatprep.subr.mxu0 0.0
      %468 = vmatpush1.msra.mxu0 0.0
      %469 = vmatprep.subr.mxu0 0.0
      %470 = vmatpush1.msra.mxu0 0.0
      %471 = vmatprep.subr.mxu0 0.0
      %472 = vmatpush1.msra.mxu0 0.0
      %473 = vmatprep.subr.mxu0 0.0
      %474 = vmatpush1.msra.mxu0 0.0
      %475 = vmatprep.mubr.f32.mxu0 0.0
      %476 = vmatmul.mubr.f32.gmra.mrb[0].mxu0 %v338
      %v477 = vpop.f32.mrb[0].mxu0
      %v478 = vadd.f32 0.0, %v477
      %v479 = vpop.f32.mrb[0].mxu0
      %480 = vdwg.mxu0
      %481 = vrot.lane.b32.xlu0 %v311, 19
      %v482 = vpop.permute.xlu0 %481
      %483 = vrot.lane.b32.xlu0 %v312, 19
      %v484 = vpop.permute.xlu0 %483
      %485 = vrot.lane.b32.xlu0 %v313, 19
      %v486 = vpop.permute.xlu0 %485
      %487 = vrot.lane.b32.xlu0 %v314, 19
      %v488 = vpop.permute.xlu0 %487
      %vm489 = vcmask 154624
      %v490 = vsel %vm489, %v482, %v484
      %v491 = vsel %vm489, %v484, %v486
      %v492 = vsel %vm489, %v486, %v488
      %v497 = vsel %vm336, %v310, 0
      %499 = vmatprep.subr.mxu0 %v491
      %500 = vmatpush1.msra.mxu0 %v490
      %501 = vmatprep.subr.mxu0 0.0
      %502 = vmatpush1.msra.mxu0 0.0
      %503 = vmatprep.subr.mxu0 0.0
      %504 = vmatpush1.msra.mxu0 0.0
      %505 = vmatprep.subr.mxu0 0.0
      %506 = vmatpush1.msra.mxu0 0.0
      %507 = vmatprep.subr.mxu0 0.0
      %508 = vmatpush1.msra.mxu0 0.0
      %509 = vmatprep.subr.mxu0 0.0
      %510 = vmatpush1.msra.mxu0 0.0
      %511 = vmatprep.subr.mxu0 0.0
      %512 = vmatpush1.msra.mxu0 0.0
      %513 = vmatprep.subr.mxu0 0.0
      %514 = vmatpush1.msra.mxu0 0.0
      %515 = vmatprep.subr.mxu0 0.0
      %516 = vmatpush1.msra.mxu0 0.0
      %517 = vmatprep.subr.mxu0 0.0
      %518 = vmatpush1.msra.mxu0 0.0
      %519 = vmatprep.subr.mxu0 0.0
      %520 = vmatpush1.msra.mxu0 0.0
      %521 = vmatprep.subr.mxu0 0.0
      %522 = vmatpush1.msra.mxu0 0.0
      %523 = vmatprep.subr.mxu0 0.0
      %524 = vmatpush1.msra.mxu0 0.0
      %525 = vmatprep.subr.mxu0 0.0
      %526 = vmatpush1.msra.mxu0 0.0
      %527 = vmatprep.subr.mxu0 0.0
      %528 = vmatpush1.msra.mxu0 0.0
      %529 = vmatprep.subr.mxu0 0.0
      %530 = vmatpush1.msra.mxu0 0.0
      %531 = vmatprep.subr.mxu0 0.0
      %532 = vmatpush1.msra.mxu0 0.0
      %533 = vmatprep.subr.mxu0 0.0
      %534 = vmatpush1.msra.mxu0 0.0
      %535 = vmatprep.subr.mxu0 0.0
      %536 = vmatpush1.msra.mxu0 0.0
      %537 = vmatprep.subr.mxu0 0.0
      %538 = vmatpush1.msra.mxu0 0.0
      %539 = vmatprep.subr.mxu0 0.0
      %540 = vmatpush1.msra.mxu0 0.0
      %541 = vmatprep.subr.mxu0 0.0
      %542 = vmatpush1.msra.mxu0 0.0
      %543 = vmatprep.subr.mxu0 0.0
      %544 = vmatpush1.msra.mxu0 0.0
      %545 = vmatprep.subr.mxu0 0.0
      %546 = vmatpush1.msra.mxu0 0.0
      %547 = vmatprep.subr.mxu0 0.0
      %548 = vmatpush1.msra.mxu0 0.0
      %549 = vmatprep.subr.mxu0 0.0
      %550 = vmatpush1.msra.mxu0 0.0
      %551 = vmatprep.subr.mxu0 0.0
      %552 = vmatpush1.msra.mxu0 0.0
      %553 = vmatprep.subr.mxu0 0.0
      %554 = vmatpush1.msra.mxu0 0.0
      %555 = vmatprep.subr.mxu0 0.0
      %556 = vmatpush1.msra.mxu0 0.0
      %557 = vmatprep.subr.mxu0 0.0
      %558 = vmatpush1.msra.mxu0 0.0
      %559 = vmatprep.subr.mxu0 0.0
      %560 = vmatpush1.msra.mxu0 0.0
      %561 = vmatprep.subr.mxu0 0.0
      %562 = vmatpush1.msra.mxu0 0.0
      %563 = vmatprep.mubr.f32.mxu0 0.0
      %564 = vmatmul.mubr.f32.gmra.mrb[0].mxu0 %v497
      %v565 = vpop.f32.mrb[0].mxu0
      %v566 = vadd.f32 %v407, %v565
      %v567 = vpop.f32.mrb[0].mxu0
      %v568 = vadd.f32 %v409, %v567
      %569 = vdwg.mxu0
      %570 = vmatprep.subr.mxu0 0.0
      %571 = vmatpush1.msra.mxu0 %v492
      %572 = vmatprep.subr.mxu0 0.0
      %573 = vmatpush1.msra.mxu0 0.0
      %574 = vmatprep.subr.mxu0 0.0
      %575 = vmatpush1.msra.mxu0 0.0
      %576 = vmatprep.subr.mxu0 0.0
      %577 = vmatpush1.msra.mxu0 0.0
      %578 = vmatprep.subr.mxu0 0.0
      %579 = vmatpush1.msra.mxu0 0.0
      %580 = vmatprep.subr.mxu0 0.0
      %581 = vmatpush1.msra.mxu0 0.0
      %582 = vmatprep.subr.mxu0 0.0
      %583 = vmatpush1.msra.mxu0 0.0
      %584 = vmatprep.subr.mxu0 0.0
      %585 = vmatpush1.msra.mxu0 0.0
      %586 = vmatprep.subr.mxu0 0.0
      %587 = vmatpush1.msra.mxu0 0.0
      %588 = vmatprep.subr.mxu0 0.0
      %589 = vmatpush1.msra.mxu0 0.0
      %590 = vmatprep.subr.mxu0 0.0
      %591 = vmatpush1.msra.mxu0 0.0
      %592 = vmatprep.subr.mxu0 0.0
      %593 = vmatpush1.msra.mxu0 0.0
      %594 = vmatprep.subr.mxu0 0.0
      %595 = vmatpush1.msra.mxu0 0.0
      %596 = vmatprep.subr.mxu0 0.0
      %597 = vmatpush1.msra.mxu0 0.0
      %598 = vmatprep.subr.mxu0 0.0
      %599 = vmatpush1.msra.mxu0 0.0
      %600 = vmatprep.subr.mxu0 0.0
      %601 = vmatpush1.msra.mxu0 0.0
      %602 = vmatprep.subr.mxu0 0.0
      %603 = vmatpush1.msra.mxu0 0.0
      %604 = vmatprep.subr.mxu0 0.0
      %605 = vmatpush1.msra.mxu0 0.0
      %606 = vmatprep.subr.mxu0 0.0
      %607 = vmatpush1.msra.mxu0 0.0
      %608 = vmatprep.subr.mxu0 0.0
      %609 = vmatpush1.msra.mxu0 0.0
      %610 = vmatprep.subr.mxu0 0.0
      %611 = vmatpush1.msra.mxu0 0.0
      %612 = vmatprep.subr.mxu0 0.0
      %613 = vmatpush1.msra.mxu0 0.0
      %614 = vmatprep.subr.mxu0 0.0
      %615 = vmatpush1.msra.mxu0 0.0
      %616 = vmatprep.subr.mxu0 0.0
      %617 = vmatpush1.msra.mxu0 0.0
      %618 = vmatprep.subr.mxu0 0.0
      %619 = vmatpush1.msra.mxu0 0.0
      %620 = vmatprep.subr.mxu0 0.0
      %621 = vmatpush1.msra.mxu0 0.0
      %622 = vmatprep.subr.mxu0 0.0
      %623 = vmatpush1.msra.mxu0 0.0
      %624 = vmatprep.subr.mxu0 0.0
      %625 = vmatpush1.msra.mxu0 0.0
      %626 = vmatprep.subr.mxu0 0.0
      %627 = vmatpush1.msra.mxu0 0.0
      %628 = vmatprep.subr.mxu0 0.0
      %629 = vmatpush1.msra.mxu0 0.0
      %630 = vmatprep.subr.mxu0 0.0
      %631 = vmatpush1.msra.mxu0 0.0
      %632 = vmatprep.subr.mxu0 0.0
      %633 = vmatpush1.msra.mxu0 0.0
      %634 = vmatprep.mubr.f32.mxu0 0.0
      %635 = vmatmul.mubr.f32.gmra.mrb[0].mxu0 %v497
      %v636 = vpop.f32.mrb[0].mxu0
      %v637 = vadd.f32 %v478, %v636
      %v638 = vpop.f32.mrb[0].mxu0
      %639 = vdwg.mxu0
      %s640 = scalar_lea.vmem %s1, 16
      %v641 = vld [vmem:[%s640] sm:$0xff]
      %642 = vrot.lane.b32.xlu0 %v311, 17
      %v643 = vpop.permute.xlu0 %642
      %644 = vrot.lane.b32.xlu0 %v312, 17
      %v645 = vpop.permute.xlu0 %644
      %646 = vrot.lane.b32.xlu0 %v313, 17
      %v647 = vpop.permute.xlu0 %646
      %648 = vrot.lane.b32.xlu0 %v314, 17
      %v649 = vpop.permute.xlu0 %648
      %vm650 = vcmask 138240
      %v651 = vsel %vm650, %v643, %v645
      %v652 = vsel %vm650, %v645, %v647
      %v653 = vsel %vm650, %v647, %v649
      %v658 = vsel %vm336, %v641, 0
      %660 = vmatprep.subr.mxu0 %v652
      %661 = vmatpush1.msra.mxu0 %v651
      %662 = vmatprep.subr.mxu0 0.0
      %663 = vmatpush1.msra.mxu0 0.0
      %664 = vmatprep.subr.mxu0 0.0
      %665 = vmatpush1.msra.mxu0 0.0
      %666 = vmatprep.subr.mxu0 0.0
      %667 = vmatpush1.msra.mxu0 0.0
      %668 = vmatprep.subr.mxu0 0.0
      %669 = vmatpush1.msra.mxu0 0.0
      %670 = vmatprep.subr.mxu0 0.0
      %671 = vmatpush1.msra.mxu0 0.0
      %672 = vmatprep.subr.mxu0 0.0
      %673 = vmatpush1.msra.mxu0 0.0
      %674 = vmatprep.subr.mxu0 0.0
      %675 = vmatpush1.msra.mxu0 0.0
      %676 = vmatprep.subr.mxu0 0.0
      %677 = vmatpush1.msra.mxu0 0.0
      %678 = vmatprep.subr.mxu0 0.0
      %679 = vmatpush1.msra.mxu0 0.0
      %680 = vmatprep.subr.mxu0 0.0
      %681 = vmatpush1.msra.mxu0 0.0
      %682 = vmatprep.subr.mxu0 0.0
      %683 = vmatpush1.msra.mxu0 0.0
      %684 = vmatprep.subr.mxu0 0.0
      %685 = vmatpush1.msra.mxu0 0.0
      %686 = vmatprep.subr.mxu0 0.0
      %687 = vmatpush1.msra.mxu0 0.0
      %688 = vmatprep.subr.mxu0 0.0
      %689 = vmatpush1.msra.mxu0 0.0
      %690 = vmatprep.subr.mxu0 0.0
      %691 = vmatpush1.msra.mxu0 0.0
      %692 = vmatprep.subr.mxu0 0.0
      %693 = vmatpush1.msra.mxu0 0.0
      %694 = vmatprep.subr.mxu0 0.0
      %695 = vmatpush1.msra.mxu0 0.0
      %696 = vmatprep.subr.mxu0 0.0
      %697 = vmatpush1.msra.mxu0 0.0
      %698 = vmatprep.subr.mxu0 0.0
      %699 = vmatpush1.msra.mxu0 0.0
      %700 = vmatprep.subr.mxu0 0.0
      %701 = vmatpush1.msra.mxu0 0.0
      %702 = vmatprep.subr.mxu0 0.0
      %703 = vmatpush1.msra.mxu0 0.0
      %704 = vmatprep.subr.mxu0 0.0
      %705 = vmatpush1.msra.mxu0 0.0
      %706 = vmatprep.subr.mxu0 0.0
      %707 = vmatpush1.msra.mxu0 0.0
      %708 = vmatprep.subr.mxu0 0.0
      %709 = vmatpush1.msra.mxu0 0.0
      %710 = vmatprep.subr.mxu0 0.0
      %711 = vmatpush1.msra.mxu0 0.0
      %712 = vmatprep.subr.mxu0 0.0
      %713 = vmatpush1.msra.mxu0 0.0
      %714 = vmatprep.subr.mxu0 0.0
      %715 = vmatpush1.msra.mxu0 0.0
      %716 = vmatprep.subr.mxu0 0.0
      %717 = vmatpush1.msra.mxu0 0.0
      %718 = vmatprep.subr.mxu0 0.0
      %719 = vmatpush1.msra.mxu0 0.0
      %720 = vmatprep.subr.mxu0 0.0
      %721 = vmatpush1.msra.mxu0 0.0
      %722 = vmatprep.subr.mxu0 0.0
      %723 = vmatpush1.msra.mxu0 0.0
      %724 = vmatprep.mubr.f32.mxu0 0.0
      %725 = vmatmul.mubr.f32.gmra.mrb[0].mxu0 %v658
      %v726 = vpop.f32.mrb[0].mxu0
      %v727 = vadd.f32 0.0, %v726
      %v728 = vpop.f32.mrb[0].mxu0
      %v729 = vadd.f32 0.0, %v728
      %730 = vdwg.mxu0
      %731 = vmatprep.subr.mxu0 0.0
      %732 = vmatpush1.msra.mxu0 %v653
      %733 = vmatprep.subr.mxu0 0.0
      %734 = vmatpush1.msra.mxu0 0.0
      %735 = vmatprep.subr.mxu0 0.0
      %736 = vmatpush1.msra.mxu0 0.0
      %737 = vmatprep.subr.mxu0 0.0
      %738 = vmatpush1.msra.mxu0 0.0
      %739 = vmatprep.subr.mxu0 0.0
      %740 = vmatpush1.msra.mxu0 0.0
      %741 = vmatprep.subr.mxu0 0.0
      %742 = vmatpush1.msra.mxu0 0.0
      %743 = vmatprep.subr.mxu0 0.0
      %744 = vmatpush1.msra.mxu0 0.0
      %745 = vmatprep.subr.mxu0 0.0
      %746 = vmatpush1.msra.mxu0 0.0
      %747 = vmatprep.subr.mxu0 0.0
      %748 = vmatpush1.msra.mxu0 0.0
      %749 = vmatprep.subr.mxu0 0.0
      %750 = vmatpush1.msra.mxu0 0.0
      %751 = vmatprep.subr.mxu0 0.0
      %752 = vmatpush1.msra.mxu0 0.0
      %753 = vmatprep.subr.mxu0 0.0
      %754 = vmatpush1.msra.mxu0 0.0
      %755 = vmatprep.subr.mxu0 0.0
      %756 = vmatpush1.msra.mxu0 0.0
      %757 = vmatprep.subr.mxu0 0.0
      %758 = vmatpush1.msra.mxu0 0.0
      %759 = vmatprep.subr.mxu0 0.0
      %760 = vmatpush1.msra.mxu0 0.0
      %761 = vmatprep.subr.mxu0 0.0
      %762 = vmatpush1.msra.mxu0 0.0
      %763 = vmatprep.subr.mxu0 0.0
      %764 = vmatpush1.msra.mxu0 0.0
      %765 = vmatprep.subr.mxu0 0.0
      %766 = vmatpush1.msra.mxu0 0.0
      %767 = vmatprep.subr.mxu0 0.0
      %768 = vmatpush1.msra.mxu0 0.0
      %769 = vmatprep.subr.mxu0 0.0
      %770 = vmatpush1.msra.mxu0 0.0
      %771 = vmatprep.subr.mxu0 0.0
      %772 = vmatpush1.msra.mxu0 0.0
      %773 = vmatprep.subr.mxu0 0.0
      %774 = vmatpush1.msra.mxu0 0.0
      %775 = vmatprep.subr.mxu0 0.0
      %776 = vmatpush1.msra.mxu0 0.0
      %777 = vmatprep.subr.mxu0 0.0
      %778 = vmatpush1.msra.mxu0 0.0
      %779 = vmatprep.subr.mxu0 0.0
      %780 = vmatpush1.msra.mxu0 0.0
      %781 = vmatprep.subr.mxu0 0.0
      %782 = vmatpush1.msra.mxu0 0.0
      %783 = vmatprep.subr.mxu0 0.0
      %784 = vmatpush1.msra.mxu0 0.0
      %785 = vmatprep.subr.mxu0 0.0
      %786 = vmatpush1.msra.mxu0 0.0
      %787 = vmatprep.subr.mxu0 0.0
      %788 = vmatpush1.msra.mxu0 0.0
      %789 = vmatprep.subr.mxu0 0.0
      %790 = vmatpush1.msra.mxu0 0.0
      %791 = vmatprep.subr.mxu0 0.0
      %792 = vmatpush1.msra.mxu0 0.0
      %793 = vmatprep.subr.mxu0 0.0
      %794 = vmatpush1.msra.mxu0 0.0
      %795 = vmatprep.mubr.f32.mxu0 0.0
      %796 = vmatmul.mubr.f32.gmra.mrb[0].mxu0 %v658
      %v797 = vpop.f32.mrb[0].mxu0
      %v798 = vadd.f32 0.0, %v797
      %v799 = vpop.f32.mrb[0].mxu0
      %800 = vdwg.mxu0
      %v801 = vadd.f32 %v566, %v727
      %v802 = vadd.f32 %v568, %v729
      %v803 = vadd.f32 %v637, %v798
      %s804 = scalar_lea.vmem %s1, 24
      %v805 = vld [vmem:[%s804] sm:$0xff]
      %806 = vrot.lane.b32.xlu0 %v311, 1
      %v807 = vpop.permute.xlu0 %806
      %808 = vrot.lane.b32.xlu0 %v312, 1
      %v809 = vpop.permute.xlu0 %808
      %810 = vrot.lane.b32.xlu0 %v313, 1
      %v811 = vpop.permute.xlu0 %810
      %812 = vrot.lane.b32.xlu0 %v314, 1
      %v813 = vpop.permute.xlu0 %812
      %vm814 = vcmask 7168
      %v815 = vsel %vm814, %v807, %v809
      %v816 = vsel %vm814, %v809, %v811
      %v817 = vsel %vm814, %v811, %v813
      %v822 = vsel %vm336, %v805, 0
      %824 = vmatprep.subr.mxu0 %v816
      %825 = vmatpush1.msra.mxu0 %v815
      %826 = vmatprep.subr.mxu0 0.0
      %827 = vmatpush1.msra.mxu0 0.0
      %828 = vmatprep.subr.mxu0 0.0
      %829 = vmatpush1.msra.mxu0 0.0
      %830 = vmatprep.subr.mxu0 0.0
      %831 = vmatpush1.msra.mxu0 0.0
      %832 = vmatprep.subr.mxu0 0.0
      %833 = vmatpush1.msra.mxu0 0.0
      %834 = vmatprep.subr.mxu0 0.0
      %835 = vmatpush1.msra.mxu0 0.0
      %836 = vmatprep.subr.mxu0 0.0
      %837 = vmatpush1.msra.mxu0 0.0
      %838 = vmatprep.subr.mxu0 0.0
      %839 = vmatpush1.msra.mxu0 0.0
      %840 = vmatprep.subr.mxu0 0.0
      %841 = vmatpush1.msra.mxu0 0.0
      %842 = vmatprep.subr.mxu0 0.0
      %843 = vmatpush1.msra.mxu0 0.0
      %844 = vmatprep.subr.mxu0 0.0
      %845 = vmatpush1.msra.mxu0 0.0
      %846 = vmatprep.subr.mxu0 0.0
      %847 = vmatpush1.msra.mxu0 0.0
      %848 = vmatprep.subr.mxu0 0.0
      %849 = vmatpush1.msra.mxu0 0.0
      %850 = vmatprep.subr.mxu0 0.0
      %851 = vmatpush1.msra.mxu0 0.0
      %852 = vmatprep.subr.mxu0 0.0
      %853 = vmatpush1.msra.mxu0 0.0
      %854 = vmatprep.subr.mxu0 0.0
      %855 = vmatpush1.msra.mxu0 0.0
      %856 = vmatprep.subr.mxu0 0.0
      %857 = vmatpush1.msra.mxu0 0.0
      %858 = vmatprep.subr.mxu0 0.0
      %859 = vmatpush1.msra.mxu0 0.0
      %860 = vmatprep.subr.mxu0 0.0
      %861 = vmatpush1.msra.mxu0 0.0
      %862 = vmatprep.subr.mxu0 0.0
      %863 = vmatpush1.msra.mxu0 0.0
      %864 = vmatprep.subr.mxu0 0.0
      %865 = vmatpush1.msra.mxu0 0.0
      %866 = vmatprep.subr.mxu0 0.0
      %867 = vmatpush1.msra.mxu0 0.0
      %868 = vmatprep.subr.mxu0 0.0
      %869 = vmatpush1.msra.mxu0 0.0
      %870 = vmatprep.subr.mxu0 0.0
      %871 = vmatpush1.msra.mxu0 0.0
      %872 = vmatprep.subr.mxu0 0.0
      %873 = vmatpush1.msra.mxu0 0.0
      %874 = vmatprep.subr.mxu0 0.0
      %875 = vmatpush1.msra.mxu0 0.0
      %876 = vmatprep.subr.mxu0 0.0
      %877 = vmatpush1.msra.mxu0 0.0
      %878 = vmatprep.subr.mxu0 0.0
      %879 = vmatpush1.msra.mxu0 0.0
      %880 = vmatprep.subr.mxu0 0.0
      %881 = vmatpush1.msra.mxu0 0.0
      %882 = vmatprep.subr.mxu0 0.0
      %883 = vmatpush1.msra.mxu0 0.0
      %884 = vmatprep.subr.mxu0 0.0
      %885 = vmatpush1.msra.mxu0 0.0
      %886 = vmatprep.subr.mxu0 0.0
      %887 = vmatpush1.msra.mxu0 0.0
      %888 = vmatprep.mubr.f32.mxu0 0.0
      %889 = vmatmul.mubr.f32.gmra.mrb[0].mxu0 %v822
      %v890 = vpop.f32.mrb[0].mxu0
      %v891 = vadd.f32 0.0, %v890
      %v892 = vpop.f32.mrb[0].mxu0
      %v893 = vadd.f32 0.0, %v892
      %894 = vdwg.mxu0
      %895 = vmatprep.subr.mxu0 0.0
      %896 = vmatpush1.msra.mxu0 %v817
      %897 = vmatprep.subr.mxu0 0.0
      %898 = vmatpush1.msra.mxu0 0.0
      %899 = vmatprep.subr.mxu0 0.0
      %900 = vmatpush1.msra.mxu0 0.0
      %901 = vmatprep.subr.mxu0 0.0
      %902 = vmatpush1.msra.mxu0 0.0
      %903 = vmatprep.subr.mxu0 0.0
      %904 = vmatpush1.msra.mxu0 0.0
      %905 = vmatprep.subr.mxu0 0.0
      %906 = vmatpush1.msra.mxu0 0.0
      %907 = vmatprep.subr.mxu0 0.0
      %908 = vmatpush1.msra.mxu0 0.0
      %909 = vmatprep.subr.mxu0 0.0
      %910 = vmatpush1.msra.mxu0 0.0
      %911 = vmatprep.subr.mxu0 0.0
      %912 = vmatpush1.msra.mxu0 0.0
      %913 = vmatprep.subr.mxu0 0.0
      %914 = vmatpush1.msra.mxu0 0.0
      %915 = vmatprep.subr.mxu0 0.0
      %916 = vmatpush1.msra.mxu0 0.0
      %917 = vmatprep.subr.mxu0 0.0
      %918 = vmatpush1.msra.mxu0 0.0
      %919 = vmatprep.subr.mxu0 0.0
      %920 = vmatpush1.msra.mxu0 0.0
      %921 = vmatprep.subr.mxu0 0.0
      %922 = vmatpush1.msra.mxu0 0.0
      %923 = vmatprep.subr.mxu0 0.0
      %924 = vmatpush1.msra.mxu0 0.0
      %925 = vmatprep.subr.mxu0 0.0
      %926 = vmatpush1.msra.mxu0 0.0
      %927 = vmatprep.subr.mxu0 0.0
      %928 = vmatpush1.msra.mxu0 0.0
      %929 = vmatprep.subr.mxu0 0.0
      %930 = vmatpush1.msra.mxu0 0.0
      %931 = vmatprep.subr.mxu0 0.0
      %932 = vmatpush1.msra.mxu0 0.0
      %933 = vmatprep.subr.mxu0 0.0
      %934 = vmatpush1.msra.mxu0 0.0
      %935 = vmatprep.subr.mxu0 0.0
      %936 = vmatpush1.msra.mxu0 0.0
      %937 = vmatprep.subr.mxu0 0.0
      %938 = vmatpush1.msra.mxu0 0.0
      %939 = vmatprep.subr.mxu0 0.0
      %940 = vmatpush1.msra.mxu0 0.0
      %941 = vmatprep.subr.mxu0 0.0
      %942 = vmatpush1.msra.mxu0 0.0
      %943 = vmatprep.subr.mxu0 0.0
      %944 = vmatpush1.msra.mxu0 0.0
      %945 = vmatprep.subr.mxu0 0.0
      %946 = vmatpush1.msra.mxu0 0.0
      %947 = vmatprep.subr.mxu0 0.0
      %948 = vmatpush1.msra.mxu0 0.0
      %949 = vmatprep.subr.mxu0 0.0
      %950 = vmatpush1.msra.mxu0 0.0
      %951 = vmatprep.subr.mxu0 0.0
      %952 = vmatpush1.msra.mxu0 0.0
      %953 = vmatprep.subr.mxu0 0.0
      %954 = vmatpush1.msra.mxu0 0.0
      %955 = vmatprep.subr.mxu0 0.0
      %956 = vmatpush1.msra.mxu0 0.0
      %957 = vmatprep.subr.mxu0 0.0
      %958 = vmatpush1.msra.mxu0 0.0
      %959 = vmatprep.mubr.f32.mxu0 0.0
      %960 = vmatmul.mubr.f32.gmra.mrb[0].mxu0 %v822
      %v961 = vpop.f32.mrb[0].mxu0
      %v962 = vadd.f32 0.0, %v961
      %v963 = vpop.f32.mrb[0].mxu0
      %964 = vdwg.mxu0
      %v965 = vadd.f32 %v801, %v891
      %v966 = vadd.f32 %v802, %v893
      %v967 = vadd.f32 %v803, %v962
      %s968 = scalar_lea.vmem %s1, 32
      %v969 = vld [vmem:[%s968] sm:$0xff]
      %v971 = vsel %vm336, %v969, 0
      %973 = vmatprep.subr.mxu0 %v313
      %974 = vmatpush1.msra.mxu0 %v312
      %975 = vmatprep.subr.mxu0 0.0
      %976 = vmatpush1.msra.mxu0 0.0
      %977 = vmatprep.subr.mxu0 0.0
      %978 = vmatpush1.msra.mxu0 0.0
      %979 = vmatprep.subr.mxu0 0.0
      %980 = vmatpush1.msra.mxu0 0.0
      %981 = vmatprep.subr.mxu0 0.0
      %982 = vmatpush1.msra.mxu0 0.0
      %983 = vmatprep.subr.mxu0 0.0
      %984 = vmatpush1.msra.mxu0 0.0
      %985 = vmatprep.subr.mxu0 0.0
      %986 = vmatpush1.msra.mxu0 0.0
      %987 = vmatprep.subr.mxu0 0.0
      %988 = vmatpush1.msra.mxu0 0.0
      %989 = vmatprep.subr.mxu0 0.0
      %990 = vmatpush1.msra.mxu0 0.0
      %991 = vmatprep.subr.mxu0 0.0
      %992 = vmatpush1.msra.mxu0 0.0
      %993 = vmatprep.subr.mxu0 0.0
      %994 = vmatpush1.msra.mxu0 0.0
      %995 = vmatprep.subr.mxu0 0.0
      %996 = vmatpush1.msra.mxu0 0.0
      %997 = vmatprep.subr.mxu0 0.0
      %998 = vmatpush1.msra.mxu0 0.0
      %999 = vmatprep.subr.mxu0 0.0
      %1000 = vmatpush1.msra.mxu0 0.0
      %1001 = vmatprep.subr.mxu0 0.0
      %1002 = vmatpush1.msra.mxu0 0.0
      %1003 = vmatprep.subr.mxu0 0.0
      %1004 = vmatpush1.msra.mxu0 0.0
      %1005 = vmatprep.subr.mxu0 0.0
      %1006 = vmatpush1.msra.mxu0 0.0
      %1007 = vmatprep.subr.mxu0 0.0
      %1008 = vmatpush1.msra.mxu0 0.0
      %1009 = vmatprep.subr.mxu0 0.0
      %1010 = vmatpush1.msra.mxu0 0.0
      %1011 = vmatprep.subr.mxu0 0.0
      %1012 = vmatpush1.msra.mxu0 0.0
      %1013 = vmatprep.subr.mxu0 0.0
      %1014 = vmatpush1.msra.mxu0 0.0
      %1015 = vmatprep.subr.mxu0 0.0
      %1016 = vmatpush1.msra.mxu0 0.0
      %1017 = vmatprep.subr.mxu0 0.0
      %1018 = vmatpush1.msra.mxu0 0.0
      %1019 = vmatprep.subr.mxu0 0.0
      %1020 = vmatpush1.msra.mxu0 0.0
      %1021 = vmatprep.subr.mxu0 0.0
      %1022 = vmatpush1.msra.mxu0 0.0
      %1023 = vmatprep.subr.mxu0 0.0
      %1024 = vmatpush1.msra.mxu0 0.0
      %1025 = vmatprep.subr.mxu0 0.0
      %1026 = vmatpush1.msra.mxu0 0.0
      %1027 = vmatprep.subr.mxu0 0.0
      %1028 = vmatpush1.msra.mxu0 0.0
      %1029 = vmatprep.subr.mxu0 0.0
      %1030 = vmatpush1.msra.mxu0 0.0
      %1031 = vmatprep.subr.mxu0 0.0
      %1032 = vmatpush1.msra.mxu0 0.0
      %1033 = vmatprep.subr.mxu0 0.0
      %1034 = vmatpush1.msra.mxu0 0.0
      %1035 = vmatprep.subr.mxu0 0.0
      %1036 = vmatpush1.msra.mxu0 0.0
      %1037 = vmatprep.mubr.f32.mxu0 0.0
      %1038 = vmatmul.mubr.f32.gmra.mrb[0].mxu0 %v971
      %v1039 = vpop.f32.mrb[0].mxu0
      %v1040 = vadd.f32 0.0, %v1039
      %v1041 = vpop.f32.mrb[0].mxu0
      %v1042 = vadd.f32 0.0, %v1041
      %1043 = vdwg.mxu0
      %1044 = vmatprep.subr.mxu0 0.0
      %1045 = vmatpush1.msra.mxu0 %v314
      %1046 = vmatprep.subr.mxu0 0.0
      %1047 = vmatpush1.msra.mxu0 0.0
      %1048 = vmatprep.subr.mxu0 0.0
      %1049 = vmatpush1.msra.mxu0 0.0
      %1050 = vmatprep.subr.mxu0 0.0
      %1051 = vmatpush1.msra.mxu0 0.0
      %1052 = vmatprep.subr.mxu0 0.0
      %1053 = vmatpush1.msra.mxu0 0.0
      %1054 = vmatprep.subr.mxu0 0.0
      %1055 = vmatpush1.msra.mxu0 0.0
      %1056 = vmatprep.subr.mxu0 0.0
      %1057 = vmatpush1.msra.mxu0 0.0
      %1058 = vmatprep.subr.mxu0 0.0
      %1059 = vmatpush1.msra.mxu0 0.0
      %1060 = vmatprep.subr.mxu0 0.0
      %1061 = vmatpush1.msra.mxu0 0.0
      %1062 = vmatprep.subr.mxu0 0.0
      %1063 = vmatpush1.msra.mxu0 0.0
      %1064 = vmatprep.subr.mxu0 0.0
      %1065 = vmatpush1.msra.mxu0 0.0
      %1066 = vmatprep.subr.mxu0 0.0
      %1067 = vmatpush1.msra.mxu0 0.0
      %1068 = vmatprep.subr.mxu0 0.0
      %1069 = vmatpush1.msra.mxu0 0.0
      %1070 = vmatprep.subr.mxu0 0.0
      %1071 = vmatpush1.msra.mxu0 0.0
      %1072 = vmatprep.subr.mxu0 0.0
      %1073 = vmatpush1.msra.mxu0 0.0
      %1074 = vmatprep.subr.mxu0 0.0
      %1075 = vmatpush1.msra.mxu0 0.0
      %1076 = vmatprep.subr.mxu0 0.0
      %1077 = vmatpush1.msra.mxu0 0.0
      %1078 = vmatprep.subr.mxu0 0.0
      %1079 = vmatpush1.msra.mxu0 0.0
      %1080 = vmatprep.subr.mxu0 0.0
      %1081 = vmatpush1.msra.mxu0 0.0
      %1082 = vmatprep.subr.mxu0 0.0
      %1083 = vmatpush1.msra.mxu0 0.0
      %1084 = vmatprep.subr.mxu0 0.0
      %1085 = vmatpush1.msra.mxu0 0.0
      %1086 = vmatprep.subr.mxu0 0.0
      %1087 = vmatpush1.msra.mxu0 0.0
      %1088 = vmatprep.subr.mxu0 0.0
      %1089 = vmatpush1.msra.mxu0 0.0
      %1090 = vmatprep.subr.mxu0 0.0
      %1091 = vmatpush1.msra.mxu0 0.0
      %1092 = vmatprep.subr.mxu0 0.0
      %1093 = vmatpush1.msra.mxu0 0.0
      %1094 = vmatprep.subr.mxu0 0.0
      %1095 = vmatpush1.msra.mxu0 0.0
      %1096 = vmatprep.subr.mxu0 0.0
      %1097 = vmatpush1.msra.mxu0 0.0
      %1098 = vmatprep.subr.mxu0 0.0
      %1099 = vmatpush1.msra.mxu0 0.0
      %1100 = vmatprep.subr.mxu0 0.0
      %1101 = vmatpush1.msra.mxu0 0.0
      %1102 = vmatprep.subr.mxu0 0.0
      %1103 = vmatpush1.msra.mxu0 0.0
      %1104 = vmatprep.subr.mxu0 0.0
      %1105 = vmatpush1.msra.mxu0 0.0
      %1106 = vmatprep.subr.mxu0 0.0
      %1107 = vmatpush1.msra.mxu0 0.0
      %1108 = vmatprep.mubr.f32.mxu0 0.0
      %1109 = vmatmul.mubr.f32.gmra.mrb[0].mxu0 %v971
      %v1110 = vpop.f32.mrb[0].mxu0
      %v1111 = vadd.f32 0.0, %v1110
      %v1112 = vpop.f32.mrb[0].mxu0
      %1113 = vdwg.mxu0
      %v1114 = vadd.f32 %v965, %v1040
      %v1115 = vadd.f32 %v966, %v1042
      %v1116 = vadd.f32 %v967, %v1111
      %s1117 = scalar_lea.vmem %s1, 40
      %v1118 = vld [vmem:[%s1117] sm:$0xff]
      %1119 = vrot.lane.b32.xlu0 %v312, 127
      %v1120 = vpop.permute.xlu0 %1119
      %1121 = vrot.lane.b32.xlu0 %v313, 127
      %v1122 = vpop.permute.xlu0 %1121
      %1123 = vrot.lane.b32.xlu0 %v314, 127
      %v1124 = vpop.permute.xlu0 %1123
      %vm1125 = vcmask 1039360
      %v1126 = vsel %vm1125, %v1120, %v1122
      %v1127 = vsel %vm1125, %v1122, %v1124
      %v1132 = vsel %vm336, %v1118, 0
      %1134 = vmatprep.subr.mxu0 %v1127
      %1135 = vmatpush1.msra.mxu0 %v1126
      %1136 = vmatprep.subr.mxu0 0.0
      %1137 = vmatpush1.msra.mxu0 0.0
      %1138 = vmatprep.subr.mxu0 0.0
      %1139 = vmatpush1.msra.mxu0 0.0
      %1140 = vmatprep.subr.mxu0 0.0
      %1141 = vmatpush1.msra.mxu0 0.0
      %1142 = vmatprep.subr.mxu0 0.0
      %1143 = vmatpush1.msra.mxu0 0.0
      %1144 = vmatprep.subr.mxu0 0.0
      %1145 = vmatpush1.msra.mxu0 0.0
      %1146 = vmatprep.subr.mxu0 0.0
      %1147 = vmatpush1.msra.mxu0 0.0
      %1148 = vmatprep.subr.mxu0 0.0
      %1149 = vmatpush1.msra.mxu0 0.0
      %1150 = vmatprep.subr.mxu0 0.0
      %1151 = vmatpush1.msra.mxu0 0.0
      %1152 = vmatprep.subr.mxu0 0.0
      %1153 = vmatpush1.msra.mxu0 0.0
      %1154 = vmatprep.subr.mxu0 0.0
      %1155 = vmatpush1.msra.mxu0 0.0
      %1156 = vmatprep.subr.mxu0 0.0
      %1157 = vmatpush1.msra.mxu0 0.0
      %1158 = vmatprep.subr.mxu0 0.0
      %1159 = vmatpush1.msra.mxu0 0.0
      %1160 = vmatprep.subr.mxu0 0.0
      %1161 = vmatpush1.msra.mxu0 0.0
      %1162 = vmatprep.subr.mxu0 0.0
      %1163 = vmatpush1.msra.mxu0 0.0
      %1164 = vmatprep.subr.mxu0 0.0
      %1165 = vmatpush1.msra.mxu0 0.0
      %1166 = vmatprep.subr.mxu0 0.0
      %1167 = vmatpush1.msra.mxu0 0.0
      %1168 = vmatprep.subr.mxu0 0.0
      %1169 = vmatpush1.msra.mxu0 0.0
      %1170 = vmatprep.subr.mxu0 0.0
      %1171 = vmatpush1.msra.mxu0 0.0
      %1172 = vmatprep.subr.mxu0 0.0
      %1173 = vmatpush1.msra.mxu0 0.0
      %1174 = vmatprep.subr.mxu0 0.0
      %1175 = vmatpush1.msra.mxu0 0.0
      %1176 = vmatprep.subr.mxu0 0.0
      %1177 = vmatpush1.msra.mxu0 0.0
      %1178 = vmatprep.subr.mxu0 0.0
      %1179 = vmatpush1.msra.mxu0 0.0
      %1180 = vmatprep.subr.mxu0 0.0
      %1181 = vmatpush1.msra.mxu0 0.0
      %1182 = vmatprep.subr.mxu0 0.0
      %1183 = vmatpush1.msra.mxu0 0.0
      %1184 = vmatprep.subr.mxu0 0.0
      %1185 = vmatpush1.msra.mxu0 0.0
      %1186 = vmatprep.subr.mxu0 0.0
      %1187 = vmatpush1.msra.mxu0 0.0
      %1188 = vmatprep.subr.mxu0 0.0
      %1189 = vmatpush1.msra.mxu0 0.0
      %1190 = vmatprep.subr.mxu0 0.0
      %1191 = vmatpush1.msra.mxu0 0.0
      %1192 = vmatprep.subr.mxu0 0.0
      %1193 = vmatpush1.msra.mxu0 0.0
      %1194 = vmatprep.subr.mxu0 0.0
      %1195 = vmatpush1.msra.mxu0 0.0
      %1196 = vmatprep.subr.mxu0 0.0
      %1197 = vmatpush1.msra.mxu0 0.0
      %1198 = vmatprep.mubr.f32.mxu0 0.0
      %1199 = vmatmul.mubr.f32.gmra.mrb[0].mxu0 %v1132
      %v1200 = vpop.f32.mrb[0].mxu0
      %v1201 = vadd.f32 0.0, %v1200
      %v1202 = vpop.f32.mrb[0].mxu0
      %v1203 = vadd.f32 0.0, %v1202
      %1204 = vdwg.mxu0
      %1205 = vmatprep.subr.mxu0 0.0
      %1206 = vmatpush1.msra.mxu0 %v1124
      %1207 = vmatprep.subr.mxu0 0.0
      %1208 = vmatpush1.msra.mxu0 0.0
      %1209 = vmatprep.subr.mxu0 0.0
      %1210 = vmatpush1.msra.mxu0 0.0
      %1211 = vmatprep.subr.mxu0 0.0
      %1212 = vmatpush1.msra.mxu0 0.0
      %1213 = vmatprep.subr.mxu0 0.0
      %1214 = vmatpush1.msra.mxu0 0.0
      %1215 = vmatprep.subr.mxu0 0.0
      %1216 = vmatpush1.msra.mxu0 0.0
      %1217 = vmatprep.subr.mxu0 0.0
      %1218 = vmatpush1.msra.mxu0 0.0
      %1219 = vmatprep.subr.mxu0 0.0
      %1220 = vmatpush1.msra.mxu0 0.0
      %1221 = vmatprep.subr.mxu0 0.0
      %1222 = vmatpush1.msra.mxu0 0.0
      %1223 = vmatprep.subr.mxu0 0.0
      %1224 = vmatpush1.msra.mxu0 0.0
      %1225 = vmatprep.subr.mxu0 0.0
      %1226 = vmatpush1.msra.mxu0 0.0
      %1227 = vmatprep.subr.mxu0 0.0
      %1228 = vmatpush1.msra.mxu0 0.0
      %1229 = vmatprep.subr.mxu0 0.0
      %1230 = vmatpush1.msra.mxu0 0.0
      %1231 = vmatprep.subr.mxu0 0.0
      %1232 = vmatpush1.msra.mxu0 0.0
      %1233 = vmatprep.subr.mxu0 0.0
      %1234 = vmatpush1.msra.mxu0 0.0
      %1235 = vmatprep.subr.mxu0 0.0
      %1236 = vmatpush1.msra.mxu0 0.0
      %1237 = vmatprep.subr.mxu0 0.0
      %1238 = vmatpush1.msra.mxu0 0.0
      %1239 = vmatprep.subr.mxu0 0.0
      %1240 = vmatpush1.msra.mxu0 0.0
      %1241 = vmatprep.subr.mxu0 0.0
      %1242 = vmatpush1.msra.mxu0 0.0
      %1243 = vmatprep.subr.mxu0 0.0
      %1244 = vmatpush1.msra.mxu0 0.0
      %1245 = vmatprep.subr.mxu0 0.0
      %1246 = vmatpush1.msra.mxu0 0.0
      %1247 = vmatprep.subr.mxu0 0.0
      %1248 = vmatpush1.msra.mxu0 0.0
      %1249 = vmatprep.subr.mxu0 0.0
      %1250 = vmatpush1.msra.mxu0 0.0
      %1251 = vmatprep.subr.mxu0 0.0
      %1252 = vmatpush1.msra.mxu0 0.0
      %1253 = vmatprep.subr.mxu0 0.0
      %1254 = vmatpush1.msra.mxu0 0.0
      %1255 = vmatprep.subr.mxu0 0.0
      %1256 = vmatpush1.msra.mxu0 0.0
      %1257 = vmatprep.subr.mxu0 0.0
      %1258 = vmatpush1.msra.mxu0 0.0
      %1259 = vmatprep.subr.mxu0 0.0
      %1260 = vmatpush1.msra.mxu0 0.0
      %1261 = vmatprep.subr.mxu0 0.0
      %1262 = vmatpush1.msra.mxu0 0.0
      %1263 = vmatprep.subr.mxu0 0.0
      %1264 = vmatpush1.msra.mxu0 0.0
      %1265 = vmatprep.subr.mxu0 0.0
      %1266 = vmatpush1.msra.mxu0 0.0
      %1267 = vmatprep.subr.mxu0 0.0
      %1268 = vmatpush1.msra.mxu0 0.0
      %1269 = vmatprep.mubr.f32.mxu0 0.0
      %1270 = vmatmul.mubr.f32.gmra.mrb[0].mxu0 %v1132
      %v1271 = vpop.f32.mrb[0].mxu0
      %v1272 = vadd.f32 0.0, %v1271
      %v1273 = vpop.f32.mrb[0].mxu0
      %1274 = vdwg.mxu0
      %v1275 = vadd.f32 %v1114, %v1201
      %v1276 = vadd.f32 %v1115, %v1203
      %v1277 = vadd.f32 %v1116, %v1272
      %s1278 = scalar_lea.vmem %s1, 48
      %v1279 = vld [vmem:[%s1278] sm:$0xff]
      %1280 = vrot.lane.b32.xlu0 %v312, 111
      %v1281 = vpop.permute.xlu0 %1280
      %1282 = vrot.lane.b32.xlu0 %v313, 111
      %v1283 = vpop.permute.xlu0 %1282
      %1284 = vrot.lane.b32.xlu0 %v314, 111
      %v1285 = vpop.permute.xlu0 %1284
      %vm1286 = vcmask 908288
      %v1287 = vsel %vm1286, %v1281, %v1283
      %v1288 = vsel %vm1286, %v1283, %v1285
      %v1293 = vsel %vm336, %v1279, 0
      %1295 = vmatprep.subr.mxu0 %v1288
      %1296 = vmatpush1.msra.mxu0 %v1287
      %1297 = vmatprep.subr.mxu0 0.0
      %1298 = vmatpush1.msra.mxu0 0.0
      %1299 = vmatprep.subr.mxu0 0.0
      %1300 = vmatpush1.msra.mxu0 0.0
      %1301 = vmatprep.subr.mxu0 0.0
      %1302 = vmatpush1.msra.mxu0 0.0
      %1303 = vmatprep.subr.mxu0 0.0
      %1304 = vmatpush1.msra.mxu0 0.0
      %1305 = vmatprep.subr.mxu0 0.0
      %1306 = vmatpush1.msra.mxu0 0.0
      %1307 = vmatprep.subr.mxu0 0.0
      %1308 = vmatpush1.msra.mxu0 0.0
      %1309 = vmatprep.subr.mxu0 0.0
      %1310 = vmatpush1.msra.mxu0 0.0
      %1311 = vmatprep.subr.mxu0 0.0
      %1312 = vmatpush1.msra.mxu0 0.0
      %1313 = vmatprep.subr.mxu0 0.0
      %1314 = vmatpush1.msra.mxu0 0.0
      %1315 = vmatprep.subr.mxu0 0.0
      %1316 = vmatpush1.msra.mxu0 0.0
      %1317 = vmatprep.subr.mxu0 0.0
      %1318 = vmatpush1.msra.mxu0 0.0
      %1319 = vmatprep.subr.mxu0 0.0
      %1320 = vmatpush1.msra.mxu0 0.0
      %1321 = vmatprep.subr.mxu0 0.0
      %1322 = vmatpush1.msra.mxu0 0.0
      %1323 = vmatprep.subr.mxu0 0.0
      %1324 = vmatpush1.msra.mxu0 0.0
      %1325 = vmatprep.subr.mxu0 0.0
      %1326 = vmatpush1.msra.mxu0 0.0
      %1327 = vmatprep.subr.mxu0 0.0
      %1328 = vmatpush1.msra.mxu0 0.0
      %1329 = vmatprep.subr.mxu0 0.0
      %1330 = vmatpush1.msra.mxu0 0.0
      %1331 = vmatprep.subr.mxu0 0.0
      %1332 = vmatpush1.msra.mxu0 0.0
      %1333 = vmatprep.subr.mxu0 0.0
      %1334 = vmatpush1.msra.mxu0 0.0
      %1335 = vmatprep.subr.mxu0 0.0
      %1336 = vmatpush1.msra.mxu0 0.0
      %1337 = vmatprep.subr.mxu0 0.0
      %1338 = vmatpush1.msra.mxu0 0.0
      %1339 = vmatprep.subr.mxu0 0.0
      %1340 = vmatpush1.msra.mxu0 0.0
      %1341 = vmatprep.subr.mxu0 0.0
      %1342 = vmatpush1.msra.mxu0 0.0
      %1343 = vmatprep.subr.mxu0 0.0
      %1344 = vmatpush1.msra.mxu0 0.0
      %1345 = vmatprep.subr.mxu0 0.0
      %1346 = vmatpush1.msra.mxu0 0.0
      %1347 = vmatprep.subr.mxu0 0.0
      %1348 = vmatpush1.msra.mxu0 0.0
      %1349 = vmatprep.subr.mxu0 0.0
      %1350 = vmatpush1.msra.mxu0 0.0
      %1351 = vmatprep.subr.mxu0 0.0
      %1352 = vmatpush1.msra.mxu0 0.0
      %1353 = vmatprep.subr.mxu0 0.0
      %1354 = vmatpush1.msra.mxu0 0.0
      %1355 = vmatprep.subr.mxu0 0.0
      %1356 = vmatpush1.msra.mxu0 0.0
      %1357 = vmatprep.subr.mxu0 0.0
      %1358 = vmatpush1.msra.mxu0 0.0
      %1359 = vmatprep.mubr.f32.mxu0 0.0
      %1360 = vmatmul.mubr.f32.gmra.mrb[0].mxu0 %v1293
      %v1361 = vpop.f32.mrb[0].mxu0
      %v1362 = vadd.f32 0.0, %v1361
      %v1363 = vpop.f32.mrb[0].mxu0
      %v1364 = vadd.f32 0.0, %v1363
      %1365 = vdwg.mxu0
      %1366 = vmatprep.subr.mxu0 0.0
      %1367 = vmatpush1.msra.mxu0 %v1285
      %1368 = vmatprep.subr.mxu0 0.0
      %1369 = vmatpush1.msra.mxu0 0.0
      %1370 = vmatprep.subr.mxu0 0.0
      %1371 = vmatpush1.msra.mxu0 0.0
      %1372 = vmatprep.subr.mxu0 0.0
      %1373 = vmatpush1.msra.mxu0 0.0
      %1374 = vmatprep.subr.mxu0 0.0
      %1375 = vmatpush1.msra.mxu0 0.0
      %1376 = vmatprep.subr.mxu0 0.0
      %1377 = vmatpush1.msra.mxu0 0.0
      %1378 = vmatprep.subr.mxu0 0.0
      %1379 = vmatpush1.msra.mxu0 0.0
      %1380 = vmatprep.subr.mxu0 0.0
      %1381 = vmatpush1.msra.mxu0 0.0
      %1382 = vmatprep.subr.mxu0 0.0
      %1383 = vmatpush1.msra.mxu0 0.0
      %1384 = vmatprep.subr.mxu0 0.0
      %1385 = vmatpush1.msra.mxu0 0.0
      %1386 = vmatprep.subr.mxu0 0.0
      %1387 = vmatpush1.msra.mxu0 0.0
      %1388 = vmatprep.subr.mxu0 0.0
      %1389 = vmatpush1.msra.mxu0 0.0
      %1390 = vmatprep.subr.mxu0 0.0
      %1391 = vmatpush1.msra.mxu0 0.0
      %1392 = vmatprep.subr.mxu0 0.0
      %1393 = vmatpush1.msra.mxu0 0.0
      %1394 = vmatprep.subr.mxu0 0.0
      %1395 = vmatpush1.msra.mxu0 0.0
      %1396 = vmatprep.subr.mxu0 0.0
      %1397 = vmatpush1.msra.mxu0 0.0
      %1398 = vmatprep.subr.mxu0 0.0
      %1399 = vmatpush1.msra.mxu0 0.0
      %1400 = vmatprep.subr.mxu0 0.0
      %1401 = vmatpush1.msra.mxu0 0.0
      %1402 = vmatprep.subr.mxu0 0.0
      %1403 = vmatpush1.msra.mxu0 0.0
      %1404 = vmatprep.subr.mxu0 0.0
      %1405 = vmatpush1.msra.mxu0 0.0
      %1406 = vmatprep.subr.mxu0 0.0
      %1407 = vmatpush1.msra.mxu0 0.0
      %1408 = vmatprep.subr.mxu0 0.0
      %1409 = vmatpush1.msra.mxu0 0.0
      %1410 = vmatprep.subr.mxu0 0.0
      %1411 = vmatpush1.msra.mxu0 0.0
      %1412 = vmatprep.subr.mxu0 0.0
      %1413 = vmatpush1.msra.mxu0 0.0
      %1414 = vmatprep.subr.mxu0 0.0
      %1415 = vmatpush1.msra.mxu0 0.0
      %1416 = vmatprep.subr.mxu0 0.0
      %1417 = vmatpush1.msra.mxu0 0.0
      %1418 = vmatprep.subr.mxu0 0.0
      %1419 = vmatpush1.msra.mxu0 0.0
      %1420 = vmatprep.subr.mxu0 0.0
      %1421 = vmatpush1.msra.mxu0 0.0
      %1422 = vmatprep.subr.mxu0 0.0
      %1423 = vmatpush1.msra.mxu0 0.0
      %1424 = vmatprep.subr.mxu0 0.0
      %1425 = vmatpush1.msra.mxu0 0.0
      %1426 = vmatprep.subr.mxu0 0.0
      %1427 = vmatpush1.msra.mxu0 0.0
      %1428 = vmatprep.subr.mxu0 0.0
      %1429 = vmatpush1.msra.mxu0 0.0
      %1430 = vmatprep.mubr.f32.mxu0 0.0
      %1431 = vmatmul.mubr.f32.gmra.mrb[0].mxu0 %v1293
      %v1432 = vpop.f32.mrb[0].mxu0
      %v1433 = vadd.f32 0.0, %v1432
      %v1434 = vpop.f32.mrb[0].mxu0
      %1435 = vdwg.mxu0
      %v1436 = vadd.f32 %v1275, %v1362
      %v1437 = vadd.f32 %v1276, %v1364
      %v1438 = vadd.f32 %v1277, %v1433
      %s1439 = scalar_lea.vmem %s1, 56
      %v1440 = vld [vmem:[%s1439] sm:$0xff]
      %1441 = vrot.lane.b32.xlu0 %v312, 110
      %v1442 = vpop.permute.xlu0 %1441
      %1443 = vrot.lane.b32.xlu0 %v313, 110
      %v1444 = vpop.permute.xlu0 %1443
      %1445 = vrot.lane.b32.xlu0 %v314, 110
      %v1446 = vpop.permute.xlu0 %1445
      %vm1447 = vcmask 900096
      %v1448 = vsel %vm1447, %v1442, %v1444
      %v1449 = vsel %vm1447, %v1444, %v1446
      %v1454 = vsel %vm336, %v1440, 0
      %1456 = vmatprep.subr.mxu0 %v1449
      %1457 = vmatpush1.msra.mxu0 %v1448
      %1458 = vmatprep.subr.mxu0 0.0
      %1459 = vmatpush1.msra.mxu0 0.0
      %1460 = vmatprep.subr.mxu0 0.0
      %1461 = vmatpush1.msra.mxu0 0.0
      %1462 = vmatprep.subr.mxu0 0.0
      %1463 = vmatpush1.msra.mxu0 0.0
      %1464 = vmatprep.subr.mxu0 0.0
      %1465 = vmatpush1.msra.mxu0 0.0
      %1466 = vmatprep.subr.mxu0 0.0
      %1467 = vmatpush1.msra.mxu0 0.0
      %1468 = vmatprep.subr.mxu0 0.0
      %1469 = vmatpush1.msra.mxu0 0.0
      %1470 = vmatprep.subr.mxu0 0.0
      %1471 = vmatpush1.msra.mxu0 0.0
      %1472 = vmatprep.subr.mxu0 0.0
      %1473 = vmatpush1.msra.mxu0 0.0
      %1474 = vmatprep.subr.mxu0 0.0
      %1475 = vmatpush1.msra.mxu0 0.0
      %1476 = vmatprep.subr.mxu0 0.0
      %1477 = vmatpush1.msra.mxu0 0.0
      %1478 = vmatprep.subr.mxu0 0.0
      %1479 = vmatpush1.msra.mxu0 0.0
      %1480 = vmatprep.subr.mxu0 0.0
      %1481 = vmatpush1.msra.mxu0 0.0
      %1482 = vmatprep.subr.mxu0 0.0
      %1483 = vmatpush1.msra.mxu0 0.0
      %1484 = vmatprep.subr.mxu0 0.0
      %1485 = vmatpush1.msra.mxu0 0.0
      %1486 = vmatprep.subr.mxu0 0.0
      %1487 = vmatpush1.msra.mxu0 0.0
      %1488 = vmatprep.subr.mxu0 0.0
      %1489 = vmatpush1.msra.mxu0 0.0
      %1490 = vmatprep.subr.mxu0 0.0
      %1491 = vmatpush1.msra.mxu0 0.0
      %1492 = vmatprep.subr.mxu0 0.0
      %1493 = vmatpush1.msra.mxu0 0.0
      %1494 = vmatprep.subr.mxu0 0.0
      %1495 = vmatpush1.msra.mxu0 0.0
      %1496 = vmatprep.subr.mxu0 0.0
      %1497 = vmatpush1.msra.mxu0 0.0
      %1498 = vmatprep.subr.mxu0 0.0
      %1499 = vmatpush1.msra.mxu0 0.0
      %1500 = vmatprep.subr.mxu0 0.0
      %1501 = vmatpush1.msra.mxu0 0.0
      %1502 = vmatprep.subr.mxu0 0.0
      %1503 = vmatpush1.msra.mxu0 0.0
      %1504 = vmatprep.subr.mxu0 0.0
      %1505 = vmatpush1.msra.mxu0 0.0
      %1506 = vmatprep.subr.mxu0 0.0
      %1507 = vmatpush1.msra.mxu0 0.0
      %1508 = vmatprep.subr.mxu0 0.0
      %1509 = vmatpush1.msra.mxu0 0.0
      %1510 = vmatprep.subr.mxu0 0.0
      %1511 = vmatpush1.msra.mxu0 0.0
      %1512 = vmatprep.subr.mxu0 0.0
      %1513 = vmatpush1.msra.mxu0 0.0
      %1514 = vmatprep.subr.mxu0 0.0
      %1515 = vmatpush1.msra.mxu0 0.0
      %1516 = vmatprep.subr.mxu0 0.0
      %1517 = vmatpush1.msra.mxu0 0.0
      %1518 = vmatprep.subr.mxu0 0.0
      %1519 = vmatpush1.msra.mxu0 0.0
      %1520 = vmatprep.mubr.f32.mxu0 0.0
      %1521 = vmatmul.mubr.f32.gmra.mrb[0].mxu0 %v1454
      %v1522 = vpop.f32.mrb[0].mxu0
      %v1523 = vadd.f32 0.0, %v1522
      %v1524 = vpop.f32.mrb[0].mxu0
      %v1525 = vadd.f32 0.0, %v1524
      %1526 = vdwg.mxu0
      %1527 = vmatprep.subr.mxu0 0.0
      %1528 = vmatpush1.msra.mxu0 %v1446
      %1529 = vmatprep.subr.mxu0 0.0
      %1530 = vmatpush1.msra.mxu0 0.0
      %1531 = vmatprep.subr.mxu0 0.0
      %1532 = vmatpush1.msra.mxu0 0.0
      %1533 = vmatprep.subr.mxu0 0.0
      %1534 = vmatpush1.msra.mxu0 0.0
      %1535 = vmatprep.subr.mxu0 0.0
      %1536 = vmatpush1.msra.mxu0 0.0
      %1537 = vmatprep.subr.mxu0 0.0
      %1538 = vmatpush1.msra.mxu0 0.0
      %1539 = vmatprep.subr.mxu0 0.0
      %1540 = vmatpush1.msra.mxu0 0.0
      %1541 = vmatprep.subr.mxu0 0.0
      %1542 = vmatpush1.msra.mxu0 0.0
      %1543 = vmatprep.subr.mxu0 0.0
      %1544 = vmatpush1.msra.mxu0 0.0
      %1545 = vmatprep.subr.mxu0 0.0
      %1546 = vmatpush1.msra.mxu0 0.0
      %1547 = vmatprep.subr.mxu0 0.0
      %1548 = vmatpush1.msra.mxu0 0.0
      %1549 = vmatprep.subr.mxu0 0.0
      %1550 = vmatpush1.msra.mxu0 0.0
      %1551 = vmatprep.subr.mxu0 0.0
      %1552 = vmatpush1.msra.mxu0 0.0
      %1553 = vmatprep.subr.mxu0 0.0
      %1554 = vmatpush1.msra.mxu0 0.0
      %1555 = vmatprep.subr.mxu0 0.0
      %1556 = vmatpush1.msra.mxu0 0.0
      %1557 = vmatprep.subr.mxu0 0.0
      %1558 = vmatpush1.msra.mxu0 0.0
      %1559 = vmatprep.subr.mxu0 0.0
      %1560 = vmatpush1.msra.mxu0 0.0
      %1561 = vmatprep.subr.mxu0 0.0
      %1562 = vmatpush1.msra.mxu0 0.0
      %1563 = vmatprep.subr.mxu0 0.0
      %1564 = vmatpush1.msra.mxu0 0.0
      %1565 = vmatprep.subr.mxu0 0.0
      %1566 = vmatpush1.msra.mxu0 0.0
      %1567 = vmatprep.subr.mxu0 0.0
      %1568 = vmatpush1.msra.mxu0 0.0
      %1569 = vmatprep.subr.mxu0 0.0
      %1570 = vmatpush1.msra.mxu0 0.0
      %1571 = vmatprep.subr.mxu0 0.0
      %1572 = vmatpush1.msra.mxu0 0.0
      %1573 = vmatprep.subr.mxu0 0.0
      %1574 = vmatpush1.msra.mxu0 0.0
      %1575 = vmatprep.subr.mxu0 0.0
      %1576 = vmatpush1.msra.mxu0 0.0
      %1577 = vmatprep.subr.mxu0 0.0
      %1578 = vmatpush1.msra.mxu0 0.0
      %1579 = vmatprep.subr.mxu0 0.0
      %1580 = vmatpush1.msra.mxu0 0.0
      %1581 = vmatprep.subr.mxu0 0.0
      %1582 = vmatpush1.msra.mxu0 0.0
      %1583 = vmatprep.subr.mxu0 0.0
      %1584 = vmatpush1.msra.mxu0 0.0
      %1585 = vmatprep.subr.mxu0 0.0
      %1586 = vmatpush1.msra.mxu0 0.0
      %1587 = vmatprep.subr.mxu0 0.0
      %1588 = vmatpush1.msra.mxu0 0.0
      %1589 = vmatprep.subr.mxu0 0.0
      %1590 = vmatpush1.msra.mxu0 0.0
      %1591 = vmatprep.mubr.f32.mxu0 0.0
      %1592 = vmatmul.mubr.f32.gmra.mrb[0].mxu0 %v1454
      %v1593 = vpop.f32.mrb[0].mxu0
      %v1594 = vadd.f32 0.0, %v1593
      %v1595 = vpop.f32.mrb[0].mxu0
      %1596 = vdwg.mxu0
      %v1597 = vadd.f32 %v1436, %v1523
      %v1598 = vadd.f32 %v1437, %v1525
      %v1599 = vadd.f32 %v1438, %v1594
      %s1600 = scalar_lea.vmem %s1, 64
      %v1601 = vld [vmem:[%s1600] sm:$0xff]
      %1602 = vrot.lane.b32.xlu0 %v312, 109
      %v1603 = vpop.permute.xlu0 %1602
      %1604 = vrot.lane.b32.xlu0 %v313, 109
      %v1605 = vpop.permute.xlu0 %1604
      %1606 = vrot.lane.b32.xlu0 %v314, 109
      %v1607 = vpop.permute.xlu0 %1606
      %vm1608 = vcmask 891904
      %v1609 = vsel %vm1608, %v1603, %v1605
      %v1610 = vsel %vm1608, %v1605, %v1607
      %v1615 = vsel %vm336, %v1601, 0
      %1617 = vmatprep.subr.mxu0 %v1610
      %1618 = vmatpush1.msra.mxu0 %v1609
      %1619 = vmatprep.subr.mxu0 0.0
      %1620 = vmatpush1.msra.mxu0 0.0
      %1621 = vmatprep.subr.mxu0 0.0
      %1622 = vmatpush1.msra.mxu0 0.0
      %1623 = vmatprep.subr.mxu0 0.0
      %1624 = vmatpush1.msra.mxu0 0.0
      %1625 = vmatprep.subr.mxu0 0.0
      %1626 = vmatpush1.msra.mxu0 0.0
      %1627 = vmatprep.subr.mxu0 0.0
      %1628 = vmatpush1.msra.mxu0 0.0
      %1629 = vmatprep.subr.mxu0 0.0
      %1630 = vmatpush1.msra.mxu0 0.0
      %1631 = vmatprep.subr.mxu0 0.0
      %1632 = vmatpush1.msra.mxu0 0.0
      %1633 = vmatprep.subr.mxu0 0.0
      %1634 = vmatpush1.msra.mxu0 0.0
      %1635 = vmatprep.subr.mxu0 0.0
      %1636 = vmatpush1.msra.mxu0 0.0
      %1637 = vmatprep.subr.mxu0 0.0
      %1638 = vmatpush1.msra.mxu0 0.0
      %1639 = vmatprep.subr.mxu0 0.0
      %1640 = vmatpush1.msra.mxu0 0.0
      %1641 = vmatprep.subr.mxu0 0.0
      %1642 = vmatpush1.msra.mxu0 0.0
      %1643 = vmatprep.subr.mxu0 0.0
      %1644 = vmatpush1.msra.mxu0 0.0
      %1645 = vmatprep.subr.mxu0 0.0
      %1646 = vmatpush1.msra.mxu0 0.0
      %1647 = vmatprep.subr.mxu0 0.0
      %1648 = vmatpush1.msra.mxu0 0.0
      %1649 = vmatprep.subr.mxu0 0.0
      %1650 = vmatpush1.msra.mxu0 0.0
      %1651 = vmatprep.subr.mxu0 0.0
      %1652 = vmatpush1.msra.mxu0 0.0
      %1653 = vmatprep.subr.mxu0 0.0
      %1654 = vmatpush1.msra.mxu0 0.0
      %1655 = vmatprep.subr.mxu0 0.0
      %1656 = vmatpush1.msra.mxu0 0.0
      %1657 = vmatprep.subr.mxu0 0.0
      %1658 = vmatpush1.msra.mxu0 0.0
      %1659 = vmatprep.subr.mxu0 0.0
      %1660 = vmatpush1.msra.mxu0 0.0
      %1661 = vmatprep.subr.mxu0 0.0
      %1662 = vmatpush1.msra.mxu0 0.0
      %1663 = vmatprep.subr.mxu0 0.0
      %1664 = vmatpush1.msra.mxu0 0.0
      %1665 = vmatprep.subr.mxu0 0.0
      %1666 = vmatpush1.msra.mxu0 0.0
      %1667 = vmatprep.subr.mxu0 0.0
      %1668 = vmatpush1.msra.mxu0 0.0
      %1669 = vmatprep.subr.mxu0 0.0
      %1670 = vmatpush1.msra.mxu0 0.0
      %1671 = vmatprep.subr.mxu0 0.0
      %1672 = vmatpush1.msra.mxu0 0.0
      %1673 = vmatprep.subr.mxu0 0.0
      %1674 = vmatpush1.msra.mxu0 0.0
      %1675 = vmatprep.subr.mxu0 0.0
      %1676 = vmatpush1.msra.mxu0 0.0
      %1677 = vmatprep.subr.mxu0 0.0
      %1678 = vmatpush1.msra.mxu0 0.0
      %1679 = vmatprep.subr.mxu0 0.0
      %1680 = vmatpush1.msra.mxu0 0.0
      %1681 = vmatprep.mubr.f32.mxu0 0.0
      %1682 = vmatmul.mubr.f32.gmra.mrb[0].mxu0 %v1615
      %v1683 = vpop.f32.mrb[0].mxu0
      %v1684 = vadd.f32 0.0, %v1683
      %v1685 = vpop.f32.mrb[0].mxu0
      %v1686 = vadd.f32 0.0, %v1685
      %1687 = vdwg.mxu0
      %1688 = vmatprep.subr.mxu0 0.0
      %1689 = vmatpush1.msra.mxu0 %v1607
      %1690 = vmatprep.subr.mxu0 0.0
      %1691 = vmatpush1.msra.mxu0 0.0
      %1692 = vmatprep.subr.mxu0 0.0
      %1693 = vmatpush1.msra.mxu0 0.0
      %1694 = vmatprep.subr.mxu0 0.0
      %1695 = vmatpush1.msra.mxu0 0.0
      %1696 = vmatprep.subr.mxu0 0.0
      %1697 = vmatpush1.msra.mxu0 0.0
      %1698 = vmatprep.subr.mxu0 0.0
      %1699 = vmatpush1.msra.mxu0 0.0
      %1700 = vmatprep.subr.mxu0 0.0
      %1701 = vmatpush1.msra.mxu0 0.0
      %1702 = vmatprep.subr.mxu0 0.0
      %1703 = vmatpush1.msra.mxu0 0.0
      %1704 = vmatprep.subr.mxu0 0.0
      %1705 = vmatpush1.msra.mxu0 0.0
      %1706 = vmatprep.subr.mxu0 0.0
      %1707 = vmatpush1.msra.mxu0 0.0
      %1708 = vmatprep.subr.mxu0 0.0
      %1709 = vmatpush1.msra.mxu0 0.0
      %1710 = vmatprep.subr.mxu0 0.0
      %1711 = vmatpush1.msra.mxu0 0.0
      %1712 = vmatprep.subr.mxu0 0.0
      %1713 = vmatpush1.msra.mxu0 0.0
      %1714 = vmatprep.subr.mxu0 0.0
      %1715 = vmatpush1.msra.mxu0 0.0
      %1716 = vmatprep.subr.mxu0 0.0
      %1717 = vmatpush1.msra.mxu0 0.0
      %1718 = vmatprep.subr.mxu0 0.0
      %1719 = vmatpush1.msra.mxu0 0.0
      %1720 = vmatprep.subr.mxu0 0.0
      %1721 = vmatpush1.msra.mxu0 0.0
      %1722 = vmatprep.subr.mxu0 0.0
      %1723 = vmatpush1.msra.mxu0 0.0
      %1724 = vmatprep.subr.mxu0 0.0
      %1725 = vmatpush1.msra.mxu0 0.0
      %1726 = vmatprep.subr.mxu0 0.0
      %1727 = vmatpush1.msra.mxu0 0.0
      %1728 = vmatprep.subr.mxu0 0.0
      %1729 = vmatpush1.msra.mxu0 0.0
      %1730 = vmatprep.subr.mxu0 0.0
      %1731 = vmatpush1.msra.mxu0 0.0
      %1732 = vmatprep.subr.mxu0 0.0
      %1733 = vmatpush1.msra.mxu0 0.0
      %1734 = vmatprep.subr.mxu0 0.0
      %1735 = vmatpush1.msra.mxu0 0.0
      %1736 = vmatprep.subr.mxu0 0.0
      %1737 = vmatpush1.msra.mxu0 0.0
      %1738 = vmatprep.subr.mxu0 0.0
      %1739 = vmatpush1.msra.mxu0 0.0
      %1740 = vmatprep.subr.mxu0 0.0
      %1741 = vmatpush1.msra.mxu0 0.0
      %1742 = vmatprep.subr.mxu0 0.0
      %1743 = vmatpush1.msra.mxu0 0.0
      %1744 = vmatprep.subr.mxu0 0.0
      %1745 = vmatpush1.msra.mxu0 0.0
      %1746 = vmatprep.subr.mxu0 0.0
      %1747 = vmatpush1.msra.mxu0 0.0
      %1748 = vmatprep.subr.mxu0 0.0
      %1749 = vmatpush1.msra.mxu0 0.0
      %1750 = vmatprep.subr.mxu0 0.0
      %1751 = vmatpush1.msra.mxu0 0.0
      %1752 = vmatprep.mubr.f32.mxu0 0.0
      %1753 = vmatmul.mubr.f32.gmra.mrb[0].mxu0 %v1615
      %v1754 = vpop.f32.mrb[0].mxu0
      %v1755 = vadd.f32 0.0, %v1754
      %v1756 = vpop.f32.mrb[0].mxu0
      %1757 = vdwg.mxu0
      %v1758 = vadd.f32 %v1597, %v1684
      %v1759 = vadd.f32 %v1598, %v1686
      %v1760 = vadd.f32 %v1599, %v1755
      %v1761 = vld [vmem:[%s2] sm:$0xff]
      %1763 = vset.pattern.permute.xlu0 0
      %1764 = vperm.xlu0 %1763, %v1761
      %v1765 = vpop.permute.xlu0 %1764
      %v1767 = vadd.f32 %v1758, %v1765
      %v1768 = vadd.f32 %v1759, %v1765
      %v1769 = vadd.f32 %v1760, %v1765
      %v1770 = vld [vmem:[%s3] sm:$0xff]
      %1772 = vset.pattern.permute.xlu0 0
      %1773 = vperm.xlu0 %1772, %v1770
      %v1774 = vpop.permute.xlu0 %1773
      %v1776 = vmul.f32 %v1767, %v1774
      %v1777 = vmul.f32 %v1768, %v1774
      %v1778 = vmul.f32 %v1769, %v1774
      %v1779 = vld [vmem:[%s4] sm:$0xff]
      %1781 = vset.pattern.permute.xlu0 0
      %1782 = vperm.xlu0 %1781, %v1779
      %v1783 = vpop.permute.xlu0 %1782
      %v1785 = vadd.f32 %v1776, %v1783
      %v1786 = vadd.f32 %v1777, %v1783
      %v1787 = vadd.f32 %v1778, %v1783
      %v1788 = vmax.f32 %v1785, 0.0
      %v1789 = vmax.f32 %v1786, 0.0
      %v1790 = vmax.f32 %v1787, 0.0
      %v1792 = vlaneseq
      %v1793 = vshrl.u32 %v1792, 7
      %v1794 = vsub.s32 0, %v1793
      %v1795 = vrot.slane %v296, %v1794
      %v1796 = vlaneseq
      %v1797 = vshrl.u32 %v1796, 7
      %v1798 = vsub.s32 1, %v1797
      %v1799 = vrot.slane %v296, %v1798
      %v1800 = vlaneseq
      %v1801 = vshrl.u32 %v1800, 7
      %v1802 = vsub.s32 2, %v1801
      %v1803 = vrot.slane %v296, %v1802
      %v1807 = vmul.f32 %v1788, %v1795
      %v1808 = vmul.f32 %v1789, %v1799
      %v1809 = vmul.f32 %v1790, %v1803
      %1810 = vst [vmem:[#allocation2 + $0x8] sm:$0xff] %v1807
      %1811 = vst [vmem:[#allocation2 + $0x10] sm:$0xff] %v1808
      %vm1812 = vcmask 556032
      %1813 = vst.msk [vmem:[#allocation2 + $0x18] sm:$0xff] %vm1812, %v1809
      %s1814 = scalar_lea.vmem %s1, 72
      %v1815 = vld [vmem:[%s1814] sm:$0xff]
      %v1816 = vld [vmem:[#allocation2] sm:$0xff]
      %v1817 = vld [vmem:[#allocation2 + $0x8] sm:$0xff]
      %v1818 = vld [vmem:[#allocation2 + $0x10] sm:$0xff]
      %v1819 = vld [vmem:[#allocation2 + $0x18] sm:$0xff]
      %s1820 = scalar_lea.vmem %s1, 80
      %v1821 = vld [vmem:[%s1820] sm:$0xff]
      %1826 = vrot.lane.b32.xlu0 %v1816, 18
      %v1827 = vpop.permute.xlu0 %1826
      %1828 = vrot.lane.b32.xlu0 %v1817, 18
      %v1829 = vpop.permute.xlu0 %1828
      %1830 = vrot.lane.b32.xlu0 %v1818, 18
      %v1831 = vpop.permute.xlu0 %1830
      %1832 = vrot.lane.b32.xlu0 %v1819, 18
      %v1833 = vpop.permute.xlu0 %1832
      %v1834 = vsel %vm329, %v1827, %v1829
      %v1835 = vsel %vm329, %v1829, %v1831
      %v1836 = vsel %vm329, %v1831, %v1833
      %v1841 = vsel %vm336, %v1821, 0
      %1843 = vmatprep.subr.mxu0 %v1835
      %1844 = vmatpush1.msra.mxu0 %v1834
      %1845 = vmatprep.subr.mxu0 0.0
      %1846 = vmatpush1.msra.mxu0 0.0
      %1847 = vmatprep.subr.mxu0 0.0
      %1848 = vmatpush1.msra.mxu0 0.0
      %1849 = vmatprep.subr.mxu0 0.0
      %1850 = vmatpush1.msra.mxu0 0.0
      %1851 = vmatprep.subr.mxu0 0.0
      %1852 = vmatpush1.msra.mxu0 0.0
      %1853 = vmatprep.subr.mxu0 0.0
      %1854 = vmatpush1.msra.mxu0 0.0
      %1855 = vmatprep.subr.mxu0 0.0
      %1856 = vmatpush1.msra.mxu0 0.0
      %1857 = vmatprep.subr.mxu0 0.0
      %1858 = vmatpush1.msra.mxu0 0.0
      %1859 = vmatprep.subr.mxu0 0.0
      %1860 = vmatpush1.msra.mxu0 0.0
      %1861 = vmatprep.subr.mxu0 0.0
      %1862 = vmatpush1.msra.mxu0 0.0
      %1863 = vmatprep.subr.mxu0 0.0
      %1864 = vmatpush1.msra.mxu0 0.0
      %1865 = vmatprep.subr.mxu0 0.0
      %1866 = vmatpush1.msra.mxu0 0.0
      %1867 = vmatprep.subr.mxu0 0.0
      %1868 = vmatpush1.msra.mxu0 0.0
      %1869 = vmatprep.subr.mxu0 0.0
      %1870 = vmatpush1.msra.mxu0 0.0
      %1871 = vmatprep.subr.mxu0 0.0
      %1872 = vmatpush1.msra.mxu0 0.0
      %1873 = vmatprep.subr.mxu0 0.0
      %1874 = vmatpush1.msra.mxu0 0.0
      %1875 = vmatprep.subr.mxu0 0.0
      %1876 = vmatpush1.msra.mxu0 0.0
      %1877 = vmatprep.subr.mxu0 0.0
      %1878 = vmatpush1.msra.mxu0 0.0
      %1879 = vmatprep.subr.mxu0 0.0
      %1880 = vmatpush1.msra.mxu0 0.0
      %1881 = vmatprep.subr.mxu0 0.0
      %1882 = vmatpush1.msra.mxu0 0.0
      %1883 = vmatprep.subr.mxu0 0.0
      %1884 = vmatpush1.msra.mxu0 0.0
      %1885 = vmatprep.subr.mxu0 0.0
      %1886 = vmatpush1.msra.mxu0 0.0
      %1887 = vmatprep.subr.mxu0 0.0
      %1888 = vmatpush1.msra.mxu0 0.0
      %1889 = vmatprep.subr.mxu0 0.0
      %1890 = vmatpush1.msra.mxu0 0.0
      %1891 = vmatprep.subr.mxu0 0.0
      %1892 = vmatpush1.msra.mxu0 0.0
      %1893 = vmatprep.subr.mxu0 0.0
      %1894 = vmatpush1.msra.mxu0 0.0
      %1895 = vmatprep.subr.mxu0 0.0
      %1896 = vmatpush1.msra.mxu0 0.0
      %1897 = vmatprep.subr.mxu0 0.0
      %1898 = vmatpush1.msra.mxu0 0.0
      %1899 = vmatprep.subr.mxu0 0.0
      %1900 = vmatpush1.msra.mxu0 0.0
      %1901 = vmatprep.subr.mxu0 0.0
      %1902 = vmatpush1.msra.mxu0 0.0
      %1903 = vmatprep.subr.mxu0 0.0
      %1904 = vmatpush1.msra.mxu0 0.0
      %1905 = vmatprep.subr.mxu0 0.0
      %1906 = vmatpush1.msra.mxu0 0.0
      %1907 = vmatprep.mubr.f32.mxu0 0.0
      %1908 = vmatmul.mubr.f32.gmra.mrb[0].mxu0 %v1841
      %v1909 = vpop.f32.mrb[0].mxu0
      %v1910 = vadd.f32 0.0, %v1909
      %v1911 = vpop.f32.mrb[0].mxu0
      %v1912 = vadd.f32 0.0, %v1911
      %1913 = vdwg.mxu0
      %1914 = vmatprep.subr.mxu0 0.0
      %1915 = vmatpush1.msra.mxu0 %v1836
      %1916 = vmatprep.subr.mxu0 0.0
      %1917 = vmatpush1.msra.mxu0 0.0
      %1918 = vmatprep.subr.mxu0 0.0
      %1919 = vmatpush1.msra.mxu0 0.0
      %1920 = vmatprep.subr.mxu0 0.0
      %1921 = vmatpush1.msra.mxu0 0.0
      %1922 = vmatprep.subr.mxu0 0.0
      %1923 = vmatpush1.msra.mxu0 0.0
      %1924 = vmatprep.subr.mxu0 0.0
      %1925 = vmatpush1.msra.mxu0 0.0
      %1926 = vmatprep.subr.mxu0 0.0
      %1927 = vmatpush1.msra.mxu0 0.0
      %1928 = vmatprep.subr.mxu0 0.0
      %1929 = vmatpush1.msra.mxu0 0.0
      %1930 = vmatprep.subr.mxu0 0.0
      %1931 = vmatpush1.msra.mxu0 0.0
      %1932 = vmatprep.subr.mxu0 0.0
      %1933 = vmatpush1.msra.mxu0 0.0
      %1934 = vmatprep.subr.mxu0 0.0
      %1935 = vmatpush1.msra.mxu0 0.0
      %1936 = vmatprep.subr.mxu0 0.0
      %1937 = vmatpush1.msra.mxu0 0.0
      %1938 = vmatprep.subr.mxu0 0.0
      %1939 = vmatpush1.msra.mxu0 0.0
      %1940 = vmatprep.subr.mxu0 0.0
      %1941 = vmatpush1.msra.mxu0 0.0
      %1942 = vmatprep.subr.mxu0 0.0
      %1943 = vmatpush1.msra.mxu0 0.0
      %1944 = vmatprep.subr.mxu0 0.0
      %1945 = vmatpush1.msra.mxu0 0.0
      %1946 = vmatprep.subr.mxu0 0.0
      %1947 = vmatpush1.msra.mxu0 0.0
      %1948 = vmatprep.subr.mxu0 0.0
      %1949 = vmatpush1.msra.mxu0 0.0
      %1950 = vmatprep.subr.mxu0 0.0
      %1951 = vmatpush1.msra.mxu0 0.0
      %1952 = vmatprep.subr.mxu0 0.0
      %1953 = vmatpush1.msra.mxu0 0.0
      %1954 = vmatprep.subr.mxu0 0.0
      %1955 = vmatpush1.msra.mxu0 0.0
      %1956 = vmatprep.subr.mxu0 0.0
      %1957 = vmatpush1.msra.mxu0 0.0
      %1958 = vmatprep.subr.mxu0 0.0
      %1959 = vmatpush1.msra.mxu0 0.0
      %1960 = vmatprep.subr.mxu0 0.0
      %1961 = vmatpush1.msra.mxu0 0.0
      %1962 = vmatprep.subr.mxu0 0.0
      %1963 = vmatpush1.msra.mxu0 0.0
      %1964 = vmatprep.subr.mxu0 0.0
      %1965 = vmatpush1.msra.mxu0 0.0
      %1966 = vmatprep.subr.mxu0 0.0
      %1967 = vmatpush1.msra.mxu0 0.0
      %1968 = vmatprep.subr.mxu0 0.0
      %1969 = vmatpush1.msra.mxu0 0.0
      %1970 = vmatprep.subr.mxu0 0.0
      %1971 = vmatpush1.msra.mxu0 0.0
      %1972 = vmatprep.subr.mxu0 0.0
      %1973 = vmatpush1.msra.mxu0 0.0
      %1974 = vmatprep.subr.mxu0 0.0
      %1975 = vmatpush1.msra.mxu0 0.0
      %1976 = vmatprep.subr.mxu0 0.0
      %1977 = vmatpush1.msra.mxu0 0.0
      %1978 = vmatprep.mubr.f32.mxu0 0.0
      %1979 = vmatmul.mubr.f32.gmra.mrb[0].mxu0 %v1841
      %v1980 = vpop.f32.mrb[0].mxu0
      %v1981 = vadd.f32 0.0, %v1980
      %v1982 = vpop.f32.mrb[0].mxu0
      %1983 = vdwg.mxu0
      %1984 = vrot.lane.b32.xlu0 %v1816, 19
      %v1985 = vpop.permute.xlu0 %1984
      %1986 = vrot.lane.b32.xlu0 %v1817, 19
      %v1987 = vpop.permute.xlu0 %1986
      %1988 = vrot.lane.b32.xlu0 %v1818, 19
      %v1989 = vpop.permute.xlu0 %1988
      %1990 = vrot.lane.b32.xlu0 %v1819, 19
      %v1991 = vpop.permute.xlu0 %1990
      %v1992 = vsel %vm489, %v1985, %v1987
      %v1993 = vsel %vm489, %v1987, %v1989
      %v1994 = vsel %vm489, %v1989, %v1991
      %v1999 = vsel %vm336, %v1815, 0
      %2001 = vmatprep.subr.mxu0 %v1993
      %2002 = vmatpush1.msra.mxu0 %v1992
      %2003 = vmatprep.subr.mxu0 0.0
      %2004 = vmatpush1.msra.mxu0 0.0
      %2005 = vmatprep.subr.mxu0 0.0
      %2006 = vmatpush1.msra.mxu0 0.0
      %2007 = vmatprep.subr.mxu0 0.0
      %2008 = vmatpush1.msra.mxu0 0.0
      %2009 = vmatprep.subr.mxu0 0.0
      %2010 = vmatpush1.msra.mxu0 0.0
      %2011 = vmatprep.subr.mxu0 0.0
      %2012 = vmatpush1.msra.mxu0 0.0
      %2013 = vmatprep.subr.mxu0 0.0
      %2014 = vmatpush1.msra.mxu0 0.0
      %2015 = vmatprep.subr.mxu0 0.0
      %2016 = vmatpush1.msra.mxu0 0.0
      %2017 = vmatprep.subr.mxu0 0.0
      %2018 = vmatpush1.msra.mxu0 0.0
      %2019 = vmatprep.subr.mxu0 0.0
      %2020 = vmatpush1.msra.mxu0 0.0
      %2021 = vmatprep.subr.mxu0 0.0
      %2022 = vmatpush1.msra.mxu0 0.0
      %2023 = vmatprep.subr.mxu0 0.0
      %2024 = vmatpush1.msra.mxu0 0.0
      %2025 = vmatprep.subr.mxu0 0.0
      %2026 = vmatpush1.msra.mxu0 0.0
      %2027 = vmatprep.subr.mxu0 0.0
      %2028 = vmatpush1.msra.mxu0 0.0
      %2029 = vmatprep.subr.mxu0 0.0
      %2030 = vmatpush1.msra.mxu0 0.0
      %2031 = vmatprep.subr.mxu0 0.0
      %2032 = vmatpush1.msra.mxu0 0.0
      %2033 = vmatprep.subr.mxu0 0.0
      %2034 = vmatpush1.msra.mxu0 0.0
      %2035 = vmatprep.subr.mxu0 0.0
      %2036 = vmatpush1.msra.mxu0 0.0
      %2037 = vmatprep.subr.mxu0 0.0
      %2038 = vmatpush1.msra.mxu0 0.0
      %2039 = vmatprep.subr.mxu0 0.0
      %2040 = vmatpush1.msra.mxu0 0.0
      %2041 = vmatprep.subr.mxu0 0.0
      %2042 = vmatpush1.msra.mxu0 0.0
      %2043 = vmatprep.subr.mxu0 0.0
      %2044 = vmatpush1.msra.mxu0 0.0
      %2045 = vmatprep.subr.mxu0 0.0
      %2046 = vmatpush1.msra.mxu0 0.0
      %2047 = vmatprep.subr.mxu0 0.0
      %2048 = vmatpush1.msra.mxu0 0.0
      %2049 = vmatprep.subr.mxu0 0.0
      %2050 = vmatpush1.msra.mxu0 0.0
      %2051 = vmatprep.subr.mxu0 0.0
      %2052 = vmatpush1.msra.mxu0 0.0
      %2053 = vmatprep.subr.mxu0 0.0
      %2054 = vmatpush1.msra.mxu0 0.0
      %2055 = vmatprep.subr.mxu0 0.0
      %2056 = vmatpush1.msra.mxu0 0.0
      %2057 = vmatprep.subr.mxu0 0.0
      %2058 = vmatpush1.msra.mxu0 0.0
      %2059 = vmatprep.subr.mxu0 0.0
      %2060 = vmatpush1.msra.mxu0 0.0
      %2061 = vmatprep.subr.mxu0 0.0
      %2062 = vmatpush1.msra.mxu0 0.0
      %2063 = vmatprep.subr.mxu0 0.0
      %2064 = vmatpush1.msra.mxu0 0.0
      %2065 = vmatprep.mubr.f32.mxu0 0.0
      %2066 = vmatmul.mubr.f32.gmra.mrb[0].mxu0 %v1999
      %v2067 = vpop.f32.mrb[0].mxu0
      %v2068 = vadd.f32 %v1910, %v2067
      %v2069 = vpop.f32.mrb[0].mxu0
      %v2070 = vadd.f32 %v1912, %v2069
      %2071 = vdwg.mxu0
      %2072 = vmatprep.subr.mxu0 0.0
      %2073 = vmatpush1.msra.mxu0 %v1994
      %2074 = vmatprep.subr.mxu0 0.0
      %2075 = vmatpush1.msra.mxu0 0.0
      %2076 = vmatprep.subr.mxu0 0.0
      %2077 = vmatpush1.msra.mxu0 0.0
      %2078 = vmatprep.subr.mxu0 0.0
      %2079 = vmatpush1.msra.mxu0 0.0
      %2080 = vmatprep.subr.mxu0 0.0
      %2081 = vmatpush1.msra.mxu0 0.0
      %2082 = vmatprep.subr.mxu0 0.0
      %2083 = vmatpush1.msra.mxu0 0.0
      %2084 = vmatprep.subr.mxu0 0.0
      %2085 = vmatpush1.msra.mxu0 0.0
      %2086 = vmatprep.subr.mxu0 0.0
      %2087 = vmatpush1.msra.mxu0 0.0
      %2088 = vmatprep.subr.mxu0 0.0
      %2089 = vmatpush1.msra.mxu0 0.0
      %2090 = vmatprep.subr.mxu0 0.0
      %2091 = vmatpush1.msra.mxu0 0.0
      %2092 = vmatprep.subr.mxu0 0.0
      %2093 = vmatpush1.msra.mxu0 0.0
      %2094 = vmatprep.subr.mxu0 0.0
      %2095 = vmatpush1.msra.mxu0 0.0
      %2096 = vmatprep.subr.mxu0 0.0
      %2097 = vmatpush1.msra.mxu0 0.0
      %2098 = vmatprep.subr.mxu0 0.0
      %2099 = vmatpush1.msra.mxu0 0.0
      %2100 = vmatprep.subr.mxu0 0.0
      %2101 = vmatpush1.msra.mxu0 0.0
      %2102 = vmatprep.subr.mxu0 0.0
      %2103 = vmatpush1.msra.mxu0 0.0
      %2104 = vmatprep.subr.mxu0 0.0
      %2105 = vmatpush1.msra.mxu0 0.0
      %2106 = vmatprep.subr.mxu0 0.0
      %2107 = vmatpush1.msra.mxu0 0.0
      %2108 = vmatprep.subr.mxu0 0.0
      %2109 = vmatpush1.msra.mxu0 0.0
      %2110 = vmatprep.subr.mxu0 0.0
      %2111 = vmatpush1.msra.mxu0 0.0
      %2112 = vmatprep.subr.mxu0 0.0
      %2113 = vmatpush1.msra.mxu0 0.0
      %2114 = vmatprep.subr.mxu0 0.0
      %2115 = vmatpush1.msra.mxu0 0.0
      %2116 = vmatprep.subr.mxu0 0.0
      %2117 = vmatpush1.msra.mxu0 0.0
      %2118 = vmatprep.subr.mxu0 0.0
      %2119 = vmatpush1.msra.mxu0 0.0
      %2120 = vmatprep.subr.mxu0 0.0
      %2121 = vmatpush1.msra.mxu0 0.0
      %2122 = vmatprep.subr.mxu0 0.0
      %2123 = vmatpush1.msra.mxu0 0.0
      %2124 = vmatprep.subr.mxu0 0.0
      %2125 = vmatpush1.msra.mxu0 0.0
      %2126 = vmatprep.subr.mxu0 0.0
      %2127 = vmatpush1.msra.mxu0 0.0
      %2128 = vmatprep.subr.mxu0 0.0
      %2129 = vmatpush1.msra.mxu0 0.0
      %2130 = vmatprep.subr.mxu0 0.0
      %2131 = vmatpush1.msra.mxu0 0.0
      %2132 = vmatprep.subr.mxu0 0.0
      %2133 = vmatpush1.msra.mxu0 0.0
      %2134 = vmatprep.subr.mxu0 0.0
      %2135 = vmatpush1.msra.mxu0 0.0
      %2136 = vmatprep.mubr.f32.mxu0 0.0
      %2137 = vmatmul.mubr.f32.gmra.mrb[0].mxu0 %v1999
      %v2138 = vpop.f32.mrb[0].mxu0
      %v2139 = vadd.f32 %v1981, %v2138
      %v2140 = vpop.f32.mrb[0].mxu0
      %2141 = vdwg.mxu0
      %s2142 = scalar_lea.vmem %s1, 88
      %v2143 = vld [vmem:[%s2142] sm:$0xff]
      %2144 = vrot.lane.b32.xlu0 %v1816, 17
      %v2145 = vpop.permute.xlu0 %2144
      %2146 = vrot.lane.b32.xlu0 %v1817, 17
      %v2147 = vpop.permute.xlu0 %2146
      %2148 = vrot.lane.b32.xlu0 %v1818, 17
      %v2149 = vpop.permute.xlu0 %2148
      %2150 = vrot.lane.b32.xlu0 %v1819, 17
      %v2151 = vpop.permute.xlu0 %2150
      %v2152 = vsel %vm650, %v2145, %v2147
      %v2153 = vsel %vm650, %v2147, %v2149
      %v2154 = vsel %vm650, %v2149, %v2151
      %v2159 = vsel %vm336, %v2143, 0
      %2161 = vmatprep.subr.mxu0 %v2153
      %2162 = vmatpush1.msra.mxu0 %v2152
      %2163 = vmatprep.subr.mxu0 0.0
      %2164 = vmatpush1.msra.mxu0 0.0
      %2165 = vmatprep.subr.mxu0 0.0
      %2166 = vmatpush1.msra.mxu0 0.0
      %2167 = vmatprep.subr.mxu0 0.0
      %2168 = vmatpush1.msra.mxu0 0.0
      %2169 = vmatprep.subr.mxu0 0.0
      %2170 = vmatpush1.msra.mxu0 0.0
      %2171 = vmatprep.subr.mxu0 0.0
      %2172 = vmatpush1.msra.mxu0 0.0
      %2173 = vmatprep.subr.mxu0 0.0
      %2174 = vmatpush1.msra.mxu0 0.0
      %2175 = vmatprep.subr.mxu0 0.0
      %2176 = vmatpush1.msra.mxu0 0.0
      %2177 = vmatprep.subr.mxu0 0.0
      %2178 = vmatpush1.msra.mxu0 0.0
      %2179 = vmatprep.subr.mxu0 0.0
      %2180 = vmatpush1.msra.mxu0 0.0
      %2181 = vmatprep.subr.mxu0 0.0
      %2182 = vmatpush1.msra.mxu0 0.0
      %2183 = vmatprep.subr.mxu0 0.0
      %2184 = vmatpush1.msra.mxu0 0.0
      %2185 = vmatprep.subr.mxu0 0.0
      %2186 = vmatpush1.msra.mxu0 0.0
      %2187 = vmatprep.subr.mxu0 0.0
      %2188 = vmatpush1.msra.mxu0 0.0
      %2189 = vmatprep.subr.mxu0 0.0
      %2190 = vmatpush1.msra.mxu0 0.0
      %2191 = vmatprep.subr.mxu0 0.0
      %2192 = vmatpush1.msra.mxu0 0.0
      %2193 = vmatprep.subr.mxu0 0.0
      %2194 = vmatpush1.msra.mxu0 0.0
      %2195 = vmatprep.subr.mxu0 0.0
      %2196 = vmatpush1.msra.mxu0 0.0
      %2197 = vmatprep.subr.mxu0 0.0
      %2198 = vmatpush1.msra.mxu0 0.0
      %2199 = vmatprep.subr.mxu0 0.0
      %2200 = vmatpush1.msra.mxu0 0.0
      %2201 = vmatprep.subr.mxu0 0.0
      %2202 = vmatpush1.msra.mxu0 0.0
      %2203 = vmatprep.subr.mxu0 0.0
      %2204 = vmatpush1.msra.mxu0 0.0
      %2205 = vmatprep.subr.mxu0 0.0
      %2206 = vmatpush1.msra.mxu0 0.0
      %2207 = vmatprep.subr.mxu0 0.0
      %2208 = vmatpush1.msra.mxu0 0.0
      %2209 = vmatprep.subr.mxu0 0.0
      %2210 = vmatpush1.msra.mxu0 0.0
      %2211 = vmatprep.subr.mxu0 0.0
      %2212 = vmatpush1.msra.mxu0 0.0
      %2213 = vmatprep.subr.mxu0 0.0
      %2214 = vmatpush1.msra.mxu0 0.0
      %2215 = vmatprep.subr.mxu0 0.0
      %2216 = vmatpush1.msra.mxu0 0.0
      %2217 = vmatprep.subr.mxu0 0.0
      %2218 = vmatpush1.msra.mxu0 0.0
      %2219 = vmatprep.subr.mxu0 0.0
      %2220 = vmatpush1.msra.mxu0 0.0
      %2221 = vmatprep.subr.mxu0 0.0
      %2222 = vmatpush1.msra.mxu0 0.0
      %2223 = vmatprep.subr.mxu0 0.0
      %2224 = vmatpush1.msra.mxu0 0.0
      %2225 = vmatprep.mubr.f32.mxu0 0.0
      %2226 = vmatmul.mubr.f32.gmra.mrb[0].mxu0 %v2159
      %v2227 = vpop.f32.mrb[0].mxu0
      %v2228 = vadd.f32 0.0, %v2227
      %v2229 = vpop.f32.mrb[0].mxu0
      %v2230 = vadd.f32 0.0, %v2229
      %2231 = vdwg.mxu0
      %2232 = vmatprep.subr.mxu0 0.0
      %2233 = vmatpush1.msra.mxu0 %v2154
      %2234 = vmatprep.subr.mxu0 0.0
      %2235 = vmatpush1.msra.mxu0 0.0
      %2236 = vmatprep.subr.mxu0 0.0
      %2237 = vmatpush1.msra.mxu0 0.0
      %2238 = vmatprep.subr.mxu0 0.0
      %2239 = vmatpush1.msra.mxu0 0.0
      %2240 = vmatprep.subr.mxu0 0.0
      %2241 = vmatpush1.msra.mxu0 0.0
      %2242 = vmatprep.subr.mxu0 0.0
      %2243 = vmatpush1.msra.mxu0 0.0
      %2244 = vmatprep.subr.mxu0 0.0
      %2245 = vmatpush1.msra.mxu0 0.0
      %2246 = vmatprep.subr.mxu0 0.0
      %2247 = vmatpush1.msra.mxu0 0.0
      %2248 = vmatprep.subr.mxu0 0.0
      %2249 = vmatpush1.msra.mxu0 0.0
      %2250 = vmatprep.subr.mxu0 0.0
      %2251 = vmatpush1.msra.mxu0 0.0
      %2252 = vmatprep.subr.mxu0 0.0
      %2253 = vmatpush1.msra.mxu0 0.0
      %2254 = vmatprep.subr.mxu0 0.0
      %2255 = vmatpush1.msra.mxu0 0.0
      %2256 = vmatprep.subr.mxu0 0.0
      %2257 = vmatpush1.msra.mxu0 0.0
      %2258 = vmatprep.subr.mxu0 0.0
      %2259 = vmatpush1.msra.mxu0 0.0
      %2260 = vmatprep.subr.mxu0 0.0
      %2261 = vmatpush1.msra.mxu0 0.0
      %2262 = vmatprep.subr.mxu0 0.0
      %2263 = vmatpush1.msra.mxu0 0.0
      %2264 = vmatprep.subr.mxu0 0.0
      %2265 = vmatpush1.msra.mxu0 0.0
      %2266 = vmatprep.subr.mxu0 0.0
      %2267 = vmatpush1.msra.mxu0 0.0
      %2268 = vmatprep.subr.mxu0 0.0
      %2269 = vmatpush1.msra.mxu0 0.0
      %2270 = vmatprep.subr.mxu0 0.0
      %2271 = vmatpush1.msra.mxu0 0.0
      %2272 = vmatprep.subr.mxu0 0.0
      %2273 = vmatpush1.msra.mxu0 0.0
      %2274 = vmatprep.subr.mxu0 0.0
      %2275 = vmatpush1.msra.mxu0 0.0
      %2276 = vmatprep.subr.mxu0 0.0
      %2277 = vmatpush1.msra.mxu0 0.0
      %2278 = vmatprep.subr.mxu0 0.0
      %2279 = vmatpush1.msra.mxu0 0.0
      %2280 = vmatprep.subr.mxu0 0.0
      %2281 = vmatpush1.msra.mxu0 0.0
      %2282 = vmatprep.subr.mxu0 0.0
      %2283 = vmatpush1.msra.mxu0 0.0
      %2284 = vmatprep.subr.mxu0 0.0
      %2285 = vmatpush1.msra.mxu0 0.0
      %2286 = vmatprep.subr.mxu0 0.0
      %2287 = vmatpush1.msra.mxu0 0.0
      %2288 = vmatprep.subr.mxu0 0.0
      %2289 = vmatpush1.msra.mxu0 0.0
      %2290 = vmatprep.subr.mxu0 0.0
      %2291 = vmatpush1.msra.mxu0 0.0
      %2292 = vmatprep.subr.mxu0 0.0
      %2293 = vmatpush1.msra.mxu0 0.0
      %2294 = vmatprep.subr.mxu0 0.0
      %2295 = vmatpush1.msra.mxu0 0.0
      %2296 = vmatprep.mubr.f32.mxu0 0.0
      %2297 = vmatmul.mubr.f32.gmra.mrb[0].mxu0 %v2159
      %v2298 = vpop.f32.mrb[0].mxu0
      %v2299 = vadd.f32 0.0, %v2298
      %v2300 = vpop.f32.mrb[0].mxu0
      %2301 = vdwg.mxu0
      %v2302 = vadd.f32 %v2068, %v2228
      %v2303 = vadd.f32 %v2070, %v2230
      %v2304 = vadd.f32 %v2139, %v2299
      %s2305 = scalar_lea.vmem %s1, 96
      %v2306 = vld [vmem:[%s2305] sm:$0xff]
      %2307 = vrot.lane.b32.xlu0 %v1816, 1
      %v2308 = vpop.permute.xlu0 %2307
      %2309 = vrot.lane.b32.xlu0 %v1817, 1
      %v2310 = vpop.permute.xlu0 %2309
      %2311 = vrot.lane.b32.xlu0 %v1818, 1
      %v2312 = vpop.permute.xlu0 %2311
      %2313 = vrot.lane.b32.xlu0 %v1819, 1
      %v2314 = vpop.permute.xlu0 %2313
      %v2315 = vsel %vm814, %v2308, %v2310
      %v2316 = vsel %vm814, %v2310, %v2312
      %v2317 = vsel %vm814, %v2312, %v2314
      %v2322 = vsel %vm336, %v2306, 0
      %2324 = vmatprep.subr.mxu0 %v2316
      %2325 = vmatpush1.msra.mxu0 %v2315
      %2326 = vmatprep.subr.mxu0 0.0
      %2327 = vmatpush1.msra.mxu0 0.0
      %2328 = vmatprep.subr.mxu0 0.0
      %2329 = vmatpush1.msra.mxu0 0.0
      %2330 = vmatprep.subr.mxu0 0.0
      %2331 = vmatpush1.msra.mxu0 0.0
      %2332 = vmatprep.subr.mxu0 0.0
      %2333 = vmatpush1.msra.mxu0 0.0
      %2334 = vmatprep.subr.mxu0 0.0
      %2335 = vmatpush1.msra.mxu0 0.0
      %2336 = vmatprep.subr.mxu0 0.0
      %2337 = vmatpush1.msra.mxu0 0.0
      %2338 = vmatprep.subr.mxu0 0.0
      %2339 = vmatpush1.msra.mxu0 0.0
      %2340 = vmatprep.subr.mxu0 0.0
      %2341 = vmatpush1.msra.mxu0 0.0
      %2342 = vmatprep.subr.mxu0 0.0
      %2343 = vmatpush1.msra.mxu0 0.0
      %2344 = vmatprep.subr.mxu0 0.0
      %2345 = vmatpush1.msra.mxu0 0.0
      %2346 = vmatprep.subr.mxu0 0.0
      %2347 = vmatpush1.msra.mxu0 0.0
      %2348 = vmatprep.subr.mxu0 0.0
      %2349 = vmatpush1.msra.mxu0 0.0
      %2350 = vmatprep.subr.mxu0 0.0
      %2351 = vmatpush1.msra.mxu0 0.0
      %2352 = vmatprep.subr.mxu0 0.0
      %2353 = vmatpush1.msra.mxu0 0.0
      %2354 = vmatprep.subr.mxu0 0.0
      %2355 = vmatpush1.msra.mxu0 0.0
      %2356 = vmatprep.subr.mxu0 0.0
      %2357 = vmatpush1.msra.mxu0 0.0
      %2358 = vmatprep.subr.mxu0 0.0
      %2359 = vmatpush1.msra.mxu0 0.0
      %2360 = vmatprep.subr.mxu0 0.0
      %2361 = vmatpush1.msra.mxu0 0.0
      %2362 = vmatprep.subr.mxu0 0.0
      %2363 = vmatpush1.msra.mxu0 0.0
      %2364 = vmatprep.subr.mxu0 0.0
      %2365 = vmatpush1.msra.mxu0 0.0
      %2366 = vmatprep.subr.mxu0 0.0
      %2367 = vmatpush1.msra.mxu0 0.0
      %2368 = vmatprep.subr.mxu0 0.0
      %2369 = vmatpush1.msra.mxu0 0.0
      %2370 = vmatprep.subr.mxu0 0.0
      %2371 = vmatpush1.msra.mxu0 0.0
      %2372 = vmatprep.subr.mxu0 0.0
      %2373 = vmatpush1.msra.mxu0 0.0
      %2374 = vmatprep.subr.mxu0 0.0
      %2375 = vmatpush1.msra.mxu0 0.0
      %2376 = vmatprep.subr.mxu0 0.0
      %2377 = vmatpush1.msra.mxu0 0.0
      %2378 = vmatprep.subr.mxu0 0.0
      %2379 = vmatpush1.msra.mxu0 0.0
      %2380 = vmatprep.subr.mxu0 0.0
      %2381 = vmatpush1.msra.mxu0 0.0
      %2382 = vmatprep.subr.mxu0 0.0
      %2383 = vmatpush1.msra.mxu0 0.0
      %2384 = vmatprep.subr.mxu0 0.0
      %2385 = vmatpush1.msra.mxu0 0.0
      %2386 = vmatprep.subr.mxu0 0.0
      %2387 = vmatpush1.msra.mxu0 0.0
      %2388 = vmatprep.mubr.f32.mxu0 0.0
      %2389 = vmatmul.mubr.f32.gmra.mrb[0].mxu0 %v2322
      %v2390 = vpop.f32.mrb[0].mxu0
      %v2391 = vadd.f32 0.0, %v2390
      %v2392 = vpop.f32.mrb[0].mxu0
      %v2393 = vadd.f32 0.0, %v2392
      %2394 = vdwg.mxu0
      %2395 = vmatprep.subr.mxu0 0.0
      %2396 = vmatpush1.msra.mxu0 %v2317
      %2397 = vmatprep.subr.mxu0 0.0
      %2398 = vmatpush1.msra.mxu0 0.0
      %2399 = vmatprep.subr.mxu0 0.0
      %2400 = vmatpush1.msra.mxu0 0.0
      %2401 = vmatprep.subr.mxu0 0.0
      %2402 = vmatpush1.msra.mxu0 0.0
      %2403 = vmatprep.subr.mxu0 0.0
      %2404 = vmatpush1.msra.mxu0 0.0
      %2405 = vmatprep.subr.mxu0 0.0
      %2406 = vmatpush1.msra.mxu0 0.0
      %2407 = vmatprep.subr.mxu0 0.0
      %2408 = vmatpush1.msra.mxu0 0.0
      %2409 = vmatprep.subr.mxu0 0.0
      %2410 = vmatpush1.msra.mxu0 0.0
      %2411 = vmatprep.subr.mxu0 0.0
      %2412 = vmatpush1.msra.mxu0 0.0
      %2413 = vmatprep.subr.mxu0 0.0
      %2414 = vmatpush1.msra.mxu0 0.0
      %2415 = vmatprep.subr.mxu0 0.0
      %2416 = vmatpush1.msra.mxu0 0.0
      %2417 = vmatprep.subr.mxu0 0.0
      %2418 = vmatpush1.msra.mxu0 0.0
      %2419 = vmatprep.subr.mxu0 0.0
      %2420 = vmatpush1.msra.mxu0 0.0
      %2421 = vmatprep.subr.mxu0 0.0
      %2422 = vmatpush1.msra.mxu0 0.0
      %2423 = vmatprep.subr.mxu0 0.0
      %2424 = vmatpush1.msra.mxu0 0.0
      %2425 = vmatprep.subr.mxu0 0.0
      %2426 = vmatpush1.msra.mxu0 0.0
      %2427 = vmatprep.subr.mxu0 0.0
      %2428 = vmatpush1.msra.mxu0 0.0
      %2429 = vmatprep.subr.mxu0 0.0
      %2430 = vmatpush1.msra.mxu0 0.0
      %2431 = vmatprep.subr.mxu0 0.0
      %2432 = vmatpush1.msra.mxu0 0.0
      %2433 = vmatprep.subr.mxu0 0.0
      %2434 = vmatpush1.msra.mxu0 0.0
      %2435 = vmatprep.subr.mxu0 0.0
      %2436 = vmatpush1.msra.mxu0 0.0
      %2437 = vmatprep.subr.mxu0 0.0
      %2438 = vmatpush1.msra.mxu0 0.0
      %2439 = vmatprep.subr.mxu0 0.0
      %2440 = vmatpush1.msra.mxu0 0.0
      %2441 = vmatprep.subr.mxu0 0.0
      %2442 = vmatpush1.msra.mxu0 0.0
      %2443 = vmatprep.subr.mxu0 0.0
      %2444 = vmatpush1.msra.mxu0 0.0
      %2445 = vmatprep.subr.mxu0 0.0
      %2446 = vmatpush1.msra.mxu0 0.0
      %2447 = vmatprep.subr.mxu0 0.0
      %2448 = vmatpush1.msra.mxu0 0.0
      %2449 = vmatprep.subr.mxu0 0.0
      %2450 = vmatpush1.msra.mxu0 0.0
      %2451 = vmatprep.subr.mxu0 0.0
      %2452 = vmatpush1.msra.mxu0 0.0
      %2453 = vmatprep.subr.mxu0 0.0
      %2454 = vmatpush1.msra.mxu0 0.0
      %2455 = vmatprep.subr.mxu0 0.0
      %2456 = vmatpush1.msra.mxu0 0.0
      %2457 = vmatprep.subr.mxu0 0.0
      %2458 = vmatpush1.msra.mxu0 0.0
      %2459 = vmatprep.mubr.f32.mxu0 0.0
      %2460 = vmatmul.mubr.f32.gmra.mrb[0].mxu0 %v2322
      %v2461 = vpop.f32.mrb[0].mxu0
      %v2462 = vadd.f32 0.0, %v2461
      %v2463 = vpop.f32.mrb[0].mxu0
      %2464 = vdwg.mxu0
      %v2465 = vadd.f32 %v2302, %v2391
      %v2466 = vadd.f32 %v2303, %v2393
      %v2467 = vadd.f32 %v2304, %v2462
      %s2468 = scalar_lea.vmem %s1, 104
      %v2469 = vld [vmem:[%s2468] sm:$0xff]
      %v2471 = vsel %vm336, %v2469, 0
      %2473 = vmatprep.subr.mxu0 %v1818
      %2474 = vmatpush1.msra.mxu0 %v1817
      %2475 = vmatprep.subr.mxu0 0.0
      %2476 = vmatpush1.msra.mxu0 0.0
      %2477 = vmatprep.subr.mxu0 0.0
      %2478 = vmatpush1.msra.mxu0 0.0
      %2479 = vmatprep.subr.mxu0 0.0
      %2480 = vmatpush1.msra.mxu0 0.0
      %2481 = vmatprep.subr.mxu0 0.0
      %2482 = vmatpush1.msra.mxu0 0.0
      %2483 = vmatprep.subr.mxu0 0.0
      %2484 = vmatpush1.msra.mxu0 0.0
      %2485 = vmatprep.subr.mxu0 0.0
      %2486 = vmatpush1.msra.mxu0 0.0
      %2487 = vmatprep.subr.mxu0 0.0
      %2488 = vmatpush1.msra.mxu0 0.0
      %2489 = vmatprep.subr.mxu0 0.0
      %2490 = vmatpush1.msra.mxu0 0.0
      %2491 = vmatprep.subr.mxu0 0.0
      %2492 = vmatpush1.msra.mxu0 0.0
      %2493 = vmatprep.subr.mxu0 0.0
      %2494 = vmatpush1.msra.mxu0 0.0
      %2495 = vmatprep.subr.mxu0 0.0
      %2496 = vmatpush1.msra.mxu0 0.0
      %2497 = vmatprep.subr.mxu0 0.0
      %2498 = vmatpush1.msra.mxu0 0.0
      %2499 = vmatprep.subr.mxu0 0.0
      %2500 = vmatpush1.msra.mxu0 0.0
      %2501 = vmatprep.subr.mxu0 0.0
      %2502 = vmatpush1.msra.mxu0 0.0
      %2503 = vmatprep.subr.mxu0 0.0
      %2504 = vmatpush1.msra.mxu0 0.0
      %2505 = vmatprep.subr.mxu0 0.0
      %2506 = vmatpush1.msra.mxu0 0.0
      %2507 = vmatprep.subr.mxu0 0.0
      %2508 = vmatpush1.msra.mxu0 0.0
      %2509 = vmatprep.subr.mxu0 0.0
      %2510 = vmatpush1.msra.mxu0 0.0
      %2511 = vmatprep.subr.mxu0 0.0
      %2512 = vmatpush1.msra.mxu0 0.0
      %2513 = vmatprep.subr.mxu0 0.0
      %2514 = vmatpush1.msra.mxu0 0.0
      %2515 = vmatprep.subr.mxu0 0.0
      %2516 = vmatpush1.msra.mxu0 0.0
      %2517 = vmatprep.subr.mxu0 0.0
      %2518 = vmatpush1.msra.mxu0 0.0
      %2519 = vmatprep.subr.mxu0 0.0
      %2520 = vmatpush1.msra.mxu0 0.0
      %2521 = vmatprep.subr.mxu0 0.0
      %2522 = vmatpush1.msra.mxu0 0.0
      %2523 = vmatprep.subr.mxu0 0.0
      %2524 = vmatpush1.msra.mxu0 0.0
      %2525 = vmatprep.subr.mxu0 0.0
      %2526 = vmatpush1.msra.mxu0 0.0
      %2527 = vmatprep.subr.mxu0 0.0
      %2528 = vmatpush1.msra.mxu0 0.0
      %2529 = vmatprep.subr.mxu0 0.0
      %2530 = vmatpush1.msra.mxu0 0.0
      %2531 = vmatprep.subr.mxu0 0.0
      %2532 = vmatpush1.msra.mxu0 0.0
      %2533 = vmatprep.subr.mxu0 0.0
      %2534 = vmatpush1.msra.mxu0 0.0
      %2535 = vmatprep.subr.mxu0 0.0
      %2536 = vmatpush1.msra.mxu0 0.0
      %2537 = vmatprep.mubr.f32.mxu0 0.0
      %2538 = vmatmul.mubr.f32.gmra.mrb[0].mxu0 %v2471
      %v2539 = vpop.f32.mrb[0].mxu0
      %v2540 = vadd.f32 0.0, %v2539
      %v2541 = vpop.f32.mrb[0].mxu0
      %v2542 = vadd.f32 0.0, %v2541
      %2543 = vdwg.mxu0
      %2544 = vmatprep.subr.mxu0 0.0
      %2545 = vmatpush1.msra.mxu0 %v1819
      %2546 = vmatprep.subr.mxu0 0.0
      %2547 = vmatpush1.msra.mxu0 0.0
      %2548 = vmatprep.subr.mxu0 0.0
      %2549 = vmatpush1.msra.mxu0 0.0
      %2550 = vmatprep.subr.mxu0 0.0
      %2551 = vmatpush1.msra.mxu0 0.0
      %2552 = vmatprep.subr.mxu0 0.0
      %2553 = vmatpush1.msra.mxu0 0.0
      %2554 = vmatprep.subr.mxu0 0.0
      %2555 = vmatpush1.msra.mxu0 0.0
      %2556 = vmatprep.subr.mxu0 0.0
      %2557 = vmatpush1.msra.mxu0 0.0
      %2558 = vmatprep.subr.mxu0 0.0
      %2559 = vmatpush1.msra.mxu0 0.0
      %2560 = vmatprep.subr.mxu0 0.0
      %2561 = vmatpush1.msra.mxu0 0.0
      %2562 = vmatprep.subr.mxu0 0.0
      %2563 = vmatpush1.msra.mxu0 0.0
      %2564 = vmatprep.subr.mxu0 0.0
      %2565 = vmatpush1.msra.mxu0 0.0
      %2566 = vmatprep.subr.mxu0 0.0
      %2567 = vmatpush1.msra.mxu0 0.0
      %2568 = vmatprep.subr.mxu0 0.0
      %2569 = vmatpush1.msra.mxu0 0.0
      %2570 = vmatprep.subr.mxu0 0.0
      %2571 = vmatpush1.msra.mxu0 0.0
      %2572 = vmatprep.subr.mxu0 0.0
      %2573 = vmatpush1.msra.mxu0 0.0
      %2574 = vmatprep.subr.mxu0 0.0
      %2575 = vmatpush1.msra.mxu0 0.0
      %2576 = vmatprep.subr.mxu0 0.0
      %2577 = vmatpush1.msra.mxu0 0.0
      %2578 = vmatprep.subr.mxu0 0.0
      %2579 = vmatpush1.msra.mxu0 0.0
      %2580 = vmatprep.subr.mxu0 0.0
      %2581 = vmatpush1.msra.mxu0 0.0
      %2582 = vmatprep.subr.mxu0 0.0
      %2583 = vmatpush1.msra.mxu0 0.0
      %2584 = vmatprep.subr.mxu0 0.0
      %2585 = vmatpush1.msra.mxu0 0.0
      %2586 = vmatprep.subr.mxu0 0.0
      %2587 = vmatpush1.msra.mxu0 0.0
      %2588 = vmatprep.subr.mxu0 0.0
      %2589 = vmatpush1.msra.mxu0 0.0
      %2590 = vmatprep.subr.mxu0 0.0
      %2591 = vmatpush1.msra.mxu0 0.0
      %2592 = vmatprep.subr.mxu0 0.0
      %2593 = vmatpush1.msra.mxu0 0.0
      %2594 = vmatprep.subr.mxu0 0.0
      %2595 = vmatpush1.msra.mxu0 0.0
      %2596 = vmatprep.subr.mxu0 0.0
      %2597 = vmatpush1.msra.mxu0 0.0
      %2598 = vmatprep.subr.mxu0 0.0
      %2599 = vmatpush1.msra.mxu0 0.0
      %2600 = vmatprep.subr.mxu0 0.0
      %2601 = vmatpush1.msra.mxu0 0.0
      %2602 = vmatprep.subr.mxu0 0.0
      %2603 = vmatpush1.msra.mxu0 0.0
      %2604 = vmatprep.subr.mxu0 0.0
      %2605 = vmatpush1.msra.mxu0 0.0
      %2606 = vmatprep.subr.mxu0 0.0
      %2607 = vmatpush1.msra.mxu0 0.0
      %2608 = vmatprep.mubr.f32.mxu0 0.0
      %2609 = vmatmul.mubr.f32.gmra.mrb[0].mxu0 %v2471
      %v2610 = vpop.f32.mrb[0].mxu0
      %v2611 = vadd.f32 0.0, %v2610
      %v2612 = vpop.f32.mrb[0].mxu0
      %2613 = vdwg.mxu0
      %v2614 = vadd.f32 %v2465, %v2540
      %v2615 = vadd.f32 %v2466, %v2542
      %v2616 = vadd.f32 %v2467, %v2611
      %s2617 = scalar_lea.vmem %s1, 112
      %v2618 = vld [vmem:[%s2617] sm:$0xff]
      %2619 = vrot.lane.b32.xlu0 %v1817, 127
      %v2620 = vpop.permute.xlu0 %2619
      %2621 = vrot.lane.b32.xlu0 %v1818, 127
      %v2622 = vpop.permute.xlu0 %2621
      %2623 = vrot.lane.b32.xlu0 %v1819, 127
      %v2624 = vpop.permute.xlu0 %2623
      %v2625 = vsel %vm1125, %v2620, %v2622
      %v2626 = vsel %vm1125, %v2622, %v2624
      %v2631 = vsel %vm336, %v2618, 0
      %2633 = vmatprep.subr.mxu0 %v2626
      %2634 = vmatpush1.msra.mxu0 %v2625
      %2635 = vmatprep.subr.mxu0 0.0
      %2636 = vmatpush1.msra.mxu0 0.0
      %2637 = vmatprep.subr.mxu0 0.0
      %2638 = vmatpush1.msra.mxu0 0.0
      %2639 = vmatprep.subr.mxu0 0.0
      %2640 = vmatpush1.msra.mxu0 0.0
      %2641 = vmatprep.subr.mxu0 0.0
      %2642 = vmatpush1.msra.mxu0 0.0
      %2643 = vmatprep.subr.mxu0 0.0
      %2644 = vmatpush1.msra.mxu0 0.0
      %2645 = vmatprep.subr.mxu0 0.0
      %2646 = vmatpush1.msra.mxu0 0.0
      %2647 = vmatprep.subr.mxu0 0.0
      %2648 = vmatpush1.msra.mxu0 0.0
      %2649 = vmatprep.subr.mxu0 0.0
      %2650 = vmatpush1.msra.mxu0 0.0
      %2651 = vmatprep.subr.mxu0 0.0
      %2652 = vmatpush1.msra.mxu0 0.0
      %2653 = vmatprep.subr.mxu0 0.0
      %2654 = vmatpush1.msra.mxu0 0.0
      %2655 = vmatprep.subr.mxu0 0.0
      %2656 = vmatpush1.msra.mxu0 0.0
      %2657 = vmatprep.subr.mxu0 0.0
      %2658 = vmatpush1.msra.mxu0 0.0
      %2659 = vmatprep.subr.mxu0 0.0
      %2660 = vmatpush1.msra.mxu0 0.0
      %2661 = vmatprep.subr.mxu0 0.0
      %2662 = vmatpush1.msra.mxu0 0.0
      %2663 = vmatprep.subr.mxu0 0.0
      %2664 = vmatpush1.msra.mxu0 0.0
      %2665 = vmatprep.subr.mxu0 0.0
      %2666 = vmatpush1.msra.mxu0 0.0
      %2667 = vmatprep.subr.mxu0 0.0
      %2668 = vmatpush1.msra.mxu0 0.0
      %2669 = vmatprep.subr.mxu0 0.0
      %2670 = vmatpush1.msra.mxu0 0.0
      %2671 = vmatprep.subr.mxu0 0.0
      %2672 = vmatpush1.msra.mxu0 0.0
      %2673 = vmatprep.subr.mxu0 0.0
      %2674 = vmatpush1.msra.mxu0 0.0
      %2675 = vmatprep.subr.mxu0 0.0
      %2676 = vmatpush1.msra.mxu0 0.0
      %2677 = vmatprep.subr.mxu0 0.0
      %2678 = vmatpush1.msra.mxu0 0.0
      %2679 = vmatprep.subr.mxu0 0.0
      %2680 = vmatpush1.msra.mxu0 0.0
      %2681 = vmatprep.subr.mxu0 0.0
      %2682 = vmatpush1.msra.mxu0 0.0
      %2683 = vmatprep.subr.mxu0 0.0
      %2684 = vmatpush1.msra.mxu0 0.0
      %2685 = vmatprep.subr.mxu0 0.0
      %2686 = vmatpush1.msra.mxu0 0.0
      %2687 = vmatprep.subr.mxu0 0.0
      %2688 = vmatpush1.msra.mxu0 0.0
      %2689 = vmatprep.subr.mxu0 0.0
      %2690 = vmatpush1.msra.mxu0 0.0
      %2691 = vmatprep.subr.mxu0 0.0
      %2692 = vmatpush1.msra.mxu0 0.0
      %2693 = vmatprep.subr.mxu0 0.0
      %2694 = vmatpush1.msra.mxu0 0.0
      %2695 = vmatprep.subr.mxu0 0.0
      %2696 = vmatpush1.msra.mxu0 0.0
      %2697 = vmatprep.mubr.f32.mxu0 0.0
      %2698 = vmatmul.mubr.f32.gmra.mrb[0].mxu0 %v2631
      %v2699 = vpop.f32.mrb[0].mxu0
      %v2700 = vadd.f32 0.0, %v2699
      %v2701 = vpop.f32.mrb[0].mxu0
      %v2702 = vadd.f32 0.0, %v2701
      %2703 = vdwg.mxu0
      %2704 = vmatprep.subr.mxu0 0.0
      %2705 = vmatpush1.msra.mxu0 %v2624
      %2706 = vmatprep.subr.mxu0 0.0
      %2707 = vmatpush1.msra.mxu0 0.0
      %2708 = vmatprep.subr.mxu0 0.0
      %2709 = vmatpush1.msra.mxu0 0.0
      %2710 = vmatprep.subr.mxu0 0.0
      %2711 = vmatpush1.msra.mxu0 0.0
      %2712 = vmatprep.subr.mxu0 0.0
      %2713 = vmatpush1.msra.mxu0 0.0
      %2714 = vmatprep.subr.mxu0 0.0
      %2715 = vmatpush1.msra.mxu0 0.0
      %2716 = vmatprep.subr.mxu0 0.0
      %2717 = vmatpush1.msra.mxu0 0.0
      %2718 = vmatprep.subr.mxu0 0.0
      %2719 = vmatpush1.msra.mxu0 0.0
      %2720 = vmatprep.subr.mxu0 0.0
      %2721 = vmatpush1.msra.mxu0 0.0
      %2722 = vmatprep.subr.mxu0 0.0
      %2723 = vmatpush1.msra.mxu0 0.0
      %2724 = vmatprep.subr.mxu0 0.0
      %2725 = vmatpush1.msra.mxu0 0.0
      %2726 = vmatprep.subr.mxu0 0.0
      %2727 = vmatpush1.msra.mxu0 0.0
      %2728 = vmatprep.subr.mxu0 0.0
      %2729 = vmatpush1.msra.mxu0 0.0
      %2730 = vmatprep.subr.mxu0 0.0
      %2731 = vmatpush1.msra.mxu0 0.0
      %2732 = vmatprep.subr.mxu0 0.0
      %2733 = vmatpush1.msra.mxu0 0.0
      %2734 = vmatprep.subr.mxu0 0.0
      %2735 = vmatpush1.msra.mxu0 0.0
      %2736 = vmatprep.subr.mxu0 0.0
      %2737 = vmatpush1.msra.mxu0 0.0
      %2738 = vmatprep.subr.mxu0 0.0
      %2739 = vmatpush1.msra.mxu0 0.0
      %2740 = vmatprep.subr.mxu0 0.0
      %2741 = vmatpush1.msra.mxu0 0.0
      %2742 = vmatprep.subr.mxu0 0.0
      %2743 = vmatpush1.msra.mxu0 0.0
      %2744 = vmatprep.subr.mxu0 0.0
      %2745 = vmatpush1.msra.mxu0 0.0
      %2746 = vmatprep.subr.mxu0 0.0
      %2747 = vmatpush1.msra.mxu0 0.0
      %2748 = vmatprep.subr.mxu0 0.0
      %2749 = vmatpush1.msra.mxu0 0.0
      %2750 = vmatprep.subr.mxu0 0.0
      %2751 = vmatpush1.msra.mxu0 0.0
      %2752 = vmatprep.subr.mxu0 0.0
      %2753 = vmatpush1.msra.mxu0 0.0
      %2754 = vmatprep.subr.mxu0 0.0
      %2755 = vmatpush1.msra.mxu0 0.0
      %2756 = vmatprep.subr.mxu0 0.0
      %2757 = vmatpush1.msra.mxu0 0.0
      %2758 = vmatprep.subr.mxu0 0.0
      %2759 = vmatpush1.msra.mxu0 0.0
      %2760 = vmatprep.subr.mxu0 0.0
      %2761 = vmatpush1.msra.mxu0 0.0
      %2762 = vmatprep.subr.mxu0 0.0
      %2763 = vmatpush1.msra.mxu0 0.0
      %2764 = vmatprep.subr.mxu0 0.0
      %2765 = vmatpush1.msra.mxu0 0.0
      %2766 = vmatprep.subr.mxu0 0.0
      %2767 = vmatpush1.msra.mxu0 0.0
      %2768 = vmatprep.mubr.f32.mxu0 0.0
      %2769 = vmatmul.mubr.f32.gmra.mrb[0].mxu0 %v2631
      %v2770 = vpop.f32.mrb[0].mxu0
      %v2771 = vadd.f32 0.0, %v2770
      %v2772 = vpop.f32.mrb[0].mxu0
      %2773 = vdwg.mxu0
      %v2774 = vadd.f32 %v2614, %v2700
      %v2775 = vadd.f32 %v2615, %v2702
      %v2776 = vadd.f32 %v2616, %v2771
      %s2777 = scalar_lea.vmem %s1, 120
      %v2778 = vld [vmem:[%s2777] sm:$0xff]
      %2779 = vrot.lane.b32.xlu0 %v1817, 111
      %v2780 = vpop.permute.xlu0 %2779
      %2781 = vrot.lane.b32.xlu0 %v1818, 111
      %v2782 = vpop.permute.xlu0 %2781
      %2783 = vrot.lane.b32.xlu0 %v1819, 111
      %v2784 = vpop.permute.xlu0 %2783
      %v2785 = vsel %vm1286, %v2780, %v2782
      %v2786 = vsel %vm1286, %v2782, %v2784
      %v2791 = vsel %vm336, %v2778, 0
      %2793 = vmatprep.subr.mxu0 %v2786
      %2794 = vmatpush1.msra.mxu0 %v2785
      %2795 = vmatprep.subr.mxu0 0.0
      %2796 = vmatpush1.msra.mxu0 0.0
      %2797 = vmatprep.subr.mxu0 0.0
      %2798 = vmatpush1.msra.mxu0 0.0
      %2799 = vmatprep.subr.mxu0 0.0
      %2800 = vmatpush1.msra.mxu0 0.0
      %2801 = vmatprep.subr.mxu0 0.0
      %2802 = vmatpush1.msra.mxu0 0.0
      %2803 = vmatprep.subr.mxu0 0.0
      %2804 = vmatpush1.msra.mxu0 0.0
      %2805 = vmatprep.subr.mxu0 0.0
      %2806 = vmatpush1.msra.mxu0 0.0
      %2807 = vmatprep.subr.mxu0 0.0
      %2808 = vmatpush1.msra.mxu0 0.0
      %2809 = vmatprep.subr.mxu0 0.0
      %2810 = vmatpush1.msra.mxu0 0.0
      %2811 = vmatprep.subr.mxu0 0.0
      %2812 = vmatpush1.msra.mxu0 0.0
      %2813 = vmatprep.subr.mxu0 0.0
      %2814 = vmatpush1.msra.mxu0 0.0
      %2815 = vmatprep.subr.mxu0 0.0
      %2816 = vmatpush1.msra.mxu0 0.0
      %2817 = vmatprep.subr.mxu0 0.0
      %2818 = vmatpush1.msra.mxu0 0.0
      %2819 = vmatprep.subr.mxu0 0.0
      %2820 = vmatpush1.msra.mxu0 0.0
      %2821 = vmatprep.subr.mxu0 0.0
      %2822 = vmatpush1.msra.mxu0 0.0
      %2823 = vmatprep.subr.mxu0 0.0
      %2824 = vmatpush1.msra.mxu0 0.0
      %2825 = vmatprep.subr.mxu0 0.0
      %2826 = vmatpush1.msra.mxu0 0.0
      %2827 = vmatprep.subr.mxu0 0.0
      %2828 = vmatpush1.msra.mxu0 0.0
      %2829 = vmatprep.subr.mxu0 0.0
      %2830 = vmatpush1.msra.mxu0 0.0
      %2831 = vmatprep.subr.mxu0 0.0
      %2832 = vmatpush1.msra.mxu0 0.0
      %2833 = vmatprep.subr.mxu0 0.0
      %2834 = vmatpush1.msra.mxu0 0.0
      %2835 = vmatprep.subr.mxu0 0.0
      %2836 = vmatpush1.msra.mxu0 0.0
      %2837 = vmatprep.subr.mxu0 0.0
      %2838 = vmatpush1.msra.mxu0 0.0
      %2839 = vmatprep.subr.mxu0 0.0
      %2840 = vmatpush1.msra.mxu0 0.0
      %2841 = vmatprep.subr.mxu0 0.0
      %2842 = vmatpush1.msra.mxu0 0.0
      %2843 = vmatprep.subr.mxu0 0.0
      %2844 = vmatpush1.msra.mxu0 0.0
      %2845 = vmatprep.subr.mxu0 0.0
      %2846 = vmatpush1.msra.mxu0 0.0
      %2847 = vmatprep.subr.mxu0 0.0
      %2848 = vmatpush1.msra.mxu0 0.0
      %2849 = vmatprep.subr.mxu0 0.0
      %2850 = vmatpush1.msra.mxu0 0.0
      %2851 = vmatprep.subr.mxu0 0.0
      %2852 = vmatpush1.msra.mxu0 0.0
      %2853 = vmatprep.subr.mxu0 0.0
      %2854 = vmatpush1.msra.mxu0 0.0
      %2855 = vmatprep.subr.mxu0 0.0
      %2856 = vmatpush1.msra.mxu0 0.0
      %2857 = vmatprep.mubr.f32.mxu0 0.0
      %2858 = vmatmul.mubr.f32.gmra.mrb[0].mxu0 %v2791
      %v2859 = vpop.f32.mrb[0].mxu0
      %v2860 = vadd.f32 0.0, %v2859
      %v2861 = vpop.f32.mrb[0].mxu0
      %v2862 = vadd.f32 0.0, %v2861
      %2863 = vdwg.mxu0
      %2864 = vmatprep.subr.mxu0 0.0
      %2865 = vmatpush1.msra.mxu0 %v2784
      %2866 = vmatprep.subr.mxu0 0.0
      %2867 = vmatpush1.msra.mxu0 0.0
      %2868 = vmatprep.subr.mxu0 0.0
      %2869 = vmatpush1.msra.mxu0 0.0
      %2870 = vmatprep.subr.mxu0 0.0
      %2871 = vmatpush1.msra.mxu0 0.0
      %2872 = vmatprep.subr.mxu0 0.0
      %2873 = vmatpush1.msra.mxu0 0.0
      %2874 = vmatprep.subr.mxu0 0.0
      %2875 = vmatpush1.msra.mxu0 0.0
      %2876 = vmatprep.subr.mxu0 0.0
      %2877 = vmatpush1.msra.mxu0 0.0
      %2878 = vmatprep.subr.mxu0 0.0
      %2879 = vmatpush1.msra.mxu0 0.0
      %2880 = vmatprep.subr.mxu0 0.0
      %2881 = vmatpush1.msra.mxu0 0.0
      %2882 = vmatprep.subr.mxu0 0.0
      %2883 = vmatpush1.msra.mxu0 0.0
      %2884 = vmatprep.subr.mxu0 0.0
      %2885 = vmatpush1.msra.mxu0 0.0
      %2886 = vmatprep.subr.mxu0 0.0
      %2887 = vmatpush1.msra.mxu0 0.0
      %2888 = vmatprep.subr.mxu0 0.0
      %2889 = vmatpush1.msra.mxu0 0.0
      %2890 = vmatprep.subr.mxu0 0.0
      %2891 = vmatpush1.msra.mxu0 0.0
      %2892 = vmatprep.subr.mxu0 0.0
      %2893 = vmatpush1.msra.mxu0 0.0
      %2894 = vmatprep.subr.mxu0 0.0
      %2895 = vmatpush1.msra.mxu0 0.0
      %2896 = vmatprep.subr.mxu0 0.0
      %2897 = vmatpush1.msra.mxu0 0.0
      %2898 = vmatprep.subr.mxu0 0.0
      %2899 = vmatpush1.msra.mxu0 0.0
      %2900 = vmatprep.subr.mxu0 0.0
      %2901 = vmatpush1.msra.mxu0 0.0
      %2902 = vmatprep.subr.mxu0 0.0
      %2903 = vmatpush1.msra.mxu0 0.0
      %2904 = vmatprep.subr.mxu0 0.0
      %2905 = vmatpush1.msra.mxu0 0.0
      %2906 = vmatprep.subr.mxu0 0.0
      %2907 = vmatpush1.msra.mxu0 0.0
      %2908 = vmatprep.subr.mxu0 0.0
      %2909 = vmatpush1.msra.mxu0 0.0
      %2910 = vmatprep.subr.mxu0 0.0
      %2911 = vmatpush1.msra.mxu0 0.0
      %2912 = vmatprep.subr.mxu0 0.0
      %2913 = vmatpush1.msra.mxu0 0.0
      %2914 = vmatprep.subr.mxu0 0.0
      %2915 = vmatpush1.msra.mxu0 0.0
      %2916 = vmatprep.subr.mxu0 0.0
      %2917 = vmatpush1.msra.mxu0 0.0
      %2918 = vmatprep.subr.mxu0 0.0
      %2919 = vmatpush1.msra.mxu0 0.0
      %2920 = vmatprep.subr.mxu0 0.0
      %2921 = vmatpush1.msra.mxu0 0.0
      %2922 = vmatprep.subr.mxu0 0.0
      %2923 = vmatpush1.msra.mxu0 0.0
      %2924 = vmatprep.subr.mxu0 0.0
      %2925 = vmatpush1.msra.mxu0 0.0
      %2926 = vmatprep.subr.mxu0 0.0
      %2927 = vmatpush1.msra.mxu0 0.0
      %2928 = vmatprep.mubr.f32.mxu0 0.0
      %2929 = vmatmul.mubr.f32.gmra.mrb[0].mxu0 %v2791
      %v2930 = vpop.f32.mrb[0].mxu0
      %v2931 = vadd.f32 0.0, %v2930
      %v2932 = vpop.f32.mrb[0].mxu0
      %2933 = vdwg.mxu0
      %v2934 = vadd.f32 %v2774, %v2860
      %v2935 = vadd.f32 %v2775, %v2862
      %v2936 = vadd.f32 %v2776, %v2931
      %s2937 = scalar_lea.vmem %s1, 128
      %v2938 = vld [vmem:[%s2937] sm:$0xff]
      %2939 = vrot.lane.b32.xlu0 %v1817, 110
      %v2940 = vpop.permute.xlu0 %2939
      %2941 = vrot.lane.b32.xlu0 %v1818, 110
      %v2942 = vpop.permute.xlu0 %2941
      %2943 = vrot.lane.b32.xlu0 %v1819, 110
      %v2944 = vpop.permute.xlu0 %2943
      %v2945 = vsel %vm1447, %v2940, %v2942
      %v2946 = vsel %vm1447, %v2942, %v2944
      %v2951 = vsel %vm336, %v2938, 0
      %2953 = vmatprep.subr.mxu0 %v2946
      %2954 = vmatpush1.msra.mxu0 %v2945
      %2955 = vmatprep.subr.mxu0 0.0
      %2956 = vmatpush1.msra.mxu0 0.0
      %2957 = vmatprep.subr.mxu0 0.0
      %2958 = vmatpush1.msra.mxu0 0.0
      %2959 = vmatprep.subr.mxu0 0.0
      %2960 = vmatpush1.msra.mxu0 0.0
      %2961 = vmatprep.subr.mxu0 0.0
      %2962 = vmatpush1.msra.mxu0 0.0
      %2963 = vmatprep.subr.mxu0 0.0
      %2964 = vmatpush1.msra.mxu0 0.0
      %2965 = vmatprep.subr.mxu0 0.0
      %2966 = vmatpush1.msra.mxu0 0.0
      %2967 = vmatprep.subr.mxu0 0.0
      %2968 = vmatpush1.msra.mxu0 0.0
      %2969 = vmatprep.subr.mxu0 0.0
      %2970 = vmatpush1.msra.mxu0 0.0
      %2971 = vmatprep.subr.mxu0 0.0
      %2972 = vmatpush1.msra.mxu0 0.0
      %2973 = vmatprep.subr.mxu0 0.0
      %2974 = vmatpush1.msra.mxu0 0.0
      %2975 = vmatprep.subr.mxu0 0.0
      %2976 = vmatpush1.msra.mxu0 0.0
      %2977 = vmatprep.subr.mxu0 0.0
      %2978 = vmatpush1.msra.mxu0 0.0
      %2979 = vmatprep.subr.mxu0 0.0
      %2980 = vmatpush1.msra.mxu0 0.0
      %2981 = vmatprep.subr.mxu0 0.0
      %2982 = vmatpush1.msra.mxu0 0.0
      %2983 = vmatprep.subr.mxu0 0.0
      %2984 = vmatpush1.msra.mxu0 0.0
      %2985 = vmatprep.subr.mxu0 0.0
      %2986 = vmatpush1.msra.mxu0 0.0
      %2987 = vmatprep.subr.mxu0 0.0
      %2988 = vmatpush1.msra.mxu0 0.0
      %2989 = vmatprep.subr.mxu0 0.0
      %2990 = vmatpush1.msra.mxu0 0.0
      %2991 = vmatprep.subr.mxu0 0.0
      %2992 = vmatpush1.msra.mxu0 0.0
      %2993 = vmatprep.subr.mxu0 0.0
      %2994 = vmatpush1.msra.mxu0 0.0
      %2995 = vmatprep.subr.mxu0 0.0
      %2996 = vmatpush1.msra.mxu0 0.0
      %2997 = vmatprep.subr.mxu0 0.0
      %2998 = vmatpush1.msra.mxu0 0.0
      %2999 = vmatprep.subr.mxu0 0.0
      %3000 = vmatpush1.msra.mxu0 0.0
      %3001 = vmatprep.subr.mxu0 0.0
      %3002 = vmatpush1.msra.mxu0 0.0
      %3003 = vmatprep.subr.mxu0 0.0
      %3004 = vmatpush1.msra.mxu0 0.0
      %3005 = vmatprep.subr.mxu0 0.0
      %3006 = vmatpush1.msra.mxu0 0.0
      %3007 = vmatprep.subr.mxu0 0.0
      %3008 = vmatpush1.msra.mxu0 0.0
      %3009 = vmatprep.subr.mxu0 0.0
      %3010 = vmatpush1.msra.mxu0 0.0
      %3011 = vmatprep.subr.mxu0 0.0
      %3012 = vmatpush1.msra.mxu0 0.0
      %3013 = vmatprep.subr.mxu0 0.0
      %3014 = vmatpush1.msra.mxu0 0.0
      %3015 = vmatprep.subr.mxu0 0.0
      %3016 = vmatpush1.msra.mxu0 0.0
      %3017 = vmatprep.mubr.f32.mxu0 0.0
      %3018 = vmatmul.mubr.f32.gmra.mrb[0].mxu0 %v2951
      %v3019 = vpop.f32.mrb[0].mxu0
      %v3020 = vadd.f32 0.0, %v3019
      %v3021 = vpop.f32.mrb[0].mxu0
      %v3022 = vadd.f32 0.0, %v3021
      %3023 = vdwg.mxu0
      %3024 = vmatprep.subr.mxu0 0.0
      %3025 = vmatpush1.msra.mxu0 %v2944
      %3026 = vmatprep.subr.mxu0 0.0
      %3027 = vmatpush1.msra.mxu0 0.0
      %3028 = vmatprep.subr.mxu0 0.0
      %3029 = vmatpush1.msra.mxu0 0.0
      %3030 = vmatprep.subr.mxu0 0.0
      %3031 = vmatpush1.msra.mxu0 0.0
      %3032 = vmatprep.subr.mxu0 0.0
      %3033 = vmatpush1.msra.mxu0 0.0
      %3034 = vmatprep.subr.mxu0 0.0
      %3035 = vmatpush1.msra.mxu0 0.0
      %3036 = vmatprep.subr.mxu0 0.0
      %3037 = vmatpush1.msra.mxu0 0.0
      %3038 = vmatprep.subr.mxu0 0.0
      %3039 = vmatpush1.msra.mxu0 0.0
      %3040 = vmatprep.subr.mxu0 0.0
      %3041 = vmatpush1.msra.mxu0 0.0
      %3042 = vmatprep.subr.mxu0 0.0
      %3043 = vmatpush1.msra.mxu0 0.0
      %3044 = vmatprep.subr.mxu0 0.0
      %3045 = vmatpush1.msra.mxu0 0.0
      %3046 = vmatprep.subr.mxu0 0.0
      %3047 = vmatpush1.msra.mxu0 0.0
      %3048 = vmatprep.subr.mxu0 0.0
      %3049 = vmatpush1.msra.mxu0 0.0
      %3050 = vmatprep.subr.mxu0 0.0
      %3051 = vmatpush1.msra.mxu0 0.0
      %3052 = vmatprep.subr.mxu0 0.0
      %3053 = vmatpush1.msra.mxu0 0.0
      %3054 = vmatprep.subr.mxu0 0.0
      %3055 = vmatpush1.msra.mxu0 0.0
      %3056 = vmatprep.subr.mxu0 0.0
      %3057 = vmatpush1.msra.mxu0 0.0
      %3058 = vmatprep.subr.mxu0 0.0
      %3059 = vmatpush1.msra.mxu0 0.0
      %3060 = vmatprep.subr.mxu0 0.0
      %3061 = vmatpush1.msra.mxu0 0.0
      %3062 = vmatprep.subr.mxu0 0.0
      %3063 = vmatpush1.msra.mxu0 0.0
      %3064 = vmatprep.subr.mxu0 0.0
      %3065 = vmatpush1.msra.mxu0 0.0
      %3066 = vmatprep.subr.mxu0 0.0
      %3067 = vmatpush1.msra.mxu0 0.0
      %3068 = vmatprep.subr.mxu0 0.0
      %3069 = vmatpush1.msra.mxu0 0.0
      %3070 = vmatprep.subr.mxu0 0.0
      %3071 = vmatpush1.msra.mxu0 0.0
      %3072 = vmatprep.subr.mxu0 0.0
      %3073 = vmatpush1.msra.mxu0 0.0
      %3074 = vmatprep.subr.mxu0 0.0
      %3075 = vmatpush1.msra.mxu0 0.0
      %3076 = vmatprep.subr.mxu0 0.0
      %3077 = vmatpush1.msra.mxu0 0.0
      %3078 = vmatprep.subr.mxu0 0.0
      %3079 = vmatpush1.msra.mxu0 0.0
      %3080 = vmatprep.subr.mxu0 0.0
      %3081 = vmatpush1.msra.mxu0 0.0
      %3082 = vmatprep.subr.mxu0 0.0
      %3083 = vmatpush1.msra.mxu0 0.0
      %3084 = vmatprep.subr.mxu0 0.0
      %3085 = vmatpush1.msra.mxu0 0.0
      %3086 = vmatprep.subr.mxu0 0.0
      %3087 = vmatpush1.msra.mxu0 0.0
      %3088 = vmatprep.mubr.f32.mxu0 0.0
      %3089 = vmatmul.mubr.f32.gmra.mrb[0].mxu0 %v2951
      %v3090 = vpop.f32.mrb[0].mxu0
      %v3091 = vadd.f32 0.0, %v3090
      %v3092 = vpop.f32.mrb[0].mxu0
      %3093 = vdwg.mxu0
      %v3094 = vadd.f32 %v2934, %v3020
      %v3095 = vadd.f32 %v2935, %v3022
      %v3096 = vadd.f32 %v2936, %v3091
      %s3097 = scalar_lea.vmem %s1, 136
      %v3098 = vld [vmem:[%s3097] sm:$0xff]
      %3099 = vrot.lane.b32.xlu0 %v1817, 109
      %v3100 = vpop.permute.xlu0 %3099
      %3101 = vrot.lane.b32.xlu0 %v1818, 109
      %v3102 = vpop.permute.xlu0 %3101
      %3103 = vrot.lane.b32.xlu0 %v1819, 109
      %v3104 = vpop.permute.xlu0 %3103
      %v3105 = vsel %vm1608, %v3100, %v3102
      %v3106 = vsel %vm1608, %v3102, %v3104
      %v3111 = vsel %vm336, %v3098, 0
      %3113 = vmatprep.subr.mxu0 %v3106
      %3114 = vmatpush1.msra.mxu0 %v3105
      %3115 = vmatprep.subr.mxu0 0.0
      %3116 = vmatpush1.msra.mxu0 0.0
      %3117 = vmatprep.subr.mxu0 0.0
      %3118 = vmatpush1.msra.mxu0 0.0
      %3119 = vmatprep.subr.mxu0 0.0
      %3120 = vmatpush1.msra.mxu0 0.0
      %3121 = vmatprep.subr.mxu0 0.0
      %3122 = vmatpush1.msra.mxu0 0.0
      %3123 = vmatprep.subr.mxu0 0.0
      %3124 = vmatpush1.msra.mxu0 0.0
      %3125 = vmatprep.subr.mxu0 0.0
      %3126 = vmatpush1.msra.mxu0 0.0
      %3127 = vmatprep.subr.mxu0 0.0
      %3128 = vmatpush1.msra.mxu0 0.0
      %3129 = vmatprep.subr.mxu0 0.0
      %3130 = vmatpush1.msra.mxu0 0.0
      %3131 = vmatprep.subr.mxu0 0.0
      %3132 = vmatpush1.msra.mxu0 0.0
      %3133 = vmatprep.subr.mxu0 0.0
      %3134 = vmatpush1.msra.mxu0 0.0
      %3135 = vmatprep.subr.mxu0 0.0
      %3136 = vmatpush1.msra.mxu0 0.0
      %3137 = vmatprep.subr.mxu0 0.0
      %3138 = vmatpush1.msra.mxu0 0.0
      %3139 = vmatprep.subr.mxu0 0.0
      %3140 = vmatpush1.msra.mxu0 0.0
      %3141 = vmatprep.subr.mxu0 0.0
      %3142 = vmatpush1.msra.mxu0 0.0
      %3143 = vmatprep.subr.mxu0 0.0
      %3144 = vmatpush1.msra.mxu0 0.0
      %3145 = vmatprep.subr.mxu0 0.0
      %3146 = vmatpush1.msra.mxu0 0.0
      %3147 = vmatprep.subr.mxu0 0.0
      %3148 = vmatpush1.msra.mxu0 0.0
      %3149 = vmatprep.subr.mxu0 0.0
      %3150 = vmatpush1.msra.mxu0 0.0
      %3151 = vmatprep.subr.mxu0 0.0
      %3152 = vmatpush1.msra.mxu0 0.0
      %3153 = vmatprep.subr.mxu0 0.0
      %3154 = vmatpush1.msra.mxu0 0.0
      %3155 = vmatprep.subr.mxu0 0.0
      %3156 = vmatpush1.msra.mxu0 0.0
      %3157 = vmatprep.subr.mxu0 0.0
      %3158 = vmatpush1.msra.mxu0 0.0
      %3159 = vmatprep.subr.mxu0 0.0
      %3160 = vmatpush1.msra.mxu0 0.0
      %3161 = vmatprep.subr.mxu0 0.0
      %3162 = vmatpush1.msra.mxu0 0.0
      %3163 = vmatprep.subr.mxu0 0.0
      %3164 = vmatpush1.msra.mxu0 0.0
      %3165 = vmatprep.subr.mxu0 0.0
      %3166 = vmatpush1.msra.mxu0 0.0
      %3167 = vmatprep.subr.mxu0 0.0
      %3168 = vmatpush1.msra.mxu0 0.0
      %3169 = vmatprep.subr.mxu0 0.0
      %3170 = vmatpush1.msra.mxu0 0.0
      %3171 = vmatprep.subr.mxu0 0.0
      %3172 = vmatpush1.msra.mxu0 0.0
      %3173 = vmatprep.subr.mxu0 0.0
      %3174 = vmatpush1.msra.mxu0 0.0
      %3175 = vmatprep.subr.mxu0 0.0
      %3176 = vmatpush1.msra.mxu0 0.0
      %3177 = vmatprep.mubr.f32.mxu0 0.0
      %3178 = vmatmul.mubr.f32.gmra.mrb[0].mxu0 %v3111
      %v3179 = vpop.f32.mrb[0].mxu0
      %v3180 = vadd.f32 0.0, %v3179
      %v3181 = vpop.f32.mrb[0].mxu0
      %v3182 = vadd.f32 0.0, %v3181
      %3183 = vdwg.mxu0
      %3184 = vmatprep.subr.mxu0 0.0
      %3185 = vmatpush1.msra.mxu0 %v3104
      %3186 = vmatprep.subr.mxu0 0.0
      %3187 = vmatpush1.msra.mxu0 0.0
      %3188 = vmatprep.subr.mxu0 0.0
      %3189 = vmatpush1.msra.mxu0 0.0
      %3190 = vmatprep.subr.mxu0 0.0
      %3191 = vmatpush1.msra.mxu0 0.0
      %3192 = vmatprep.subr.mxu0 0.0
      %3193 = vmatpush1.msra.mxu0 0.0
      %3194 = vmatprep.subr.mxu0 0.0
      %3195 = vmatpush1.msra.mxu0 0.0
      %3196 = vmatprep.subr.mxu0 0.0
      %3197 = vmatpush1.msra.mxu0 0.0
      %3198 = vmatprep.subr.mxu0 0.0
      %3199 = vmatpush1.msra.mxu0 0.0
      %3200 = vmatprep.subr.mxu0 0.0
      %3201 = vmatpush1.msra.mxu0 0.0
      %3202 = vmatprep.subr.mxu0 0.0
      %3203 = vmatpush1.msra.mxu0 0.0
      %3204 = vmatprep.subr.mxu0 0.0
      %3205 = vmatpush1.msra.mxu0 0.0
      %3206 = vmatprep.subr.mxu0 0.0
      %3207 = vmatpush1.msra.mxu0 0.0
      %3208 = vmatprep.subr.mxu0 0.0
      %3209 = vmatpush1.msra.mxu0 0.0
      %3210 = vmatprep.subr.mxu0 0.0
      %3211 = vmatpush1.msra.mxu0 0.0
      %3212 = vmatprep.subr.mxu0 0.0
      %3213 = vmatpush1.msra.mxu0 0.0
      %3214 = vmatprep.subr.mxu0 0.0
      %3215 = vmatpush1.msra.mxu0 0.0
      %3216 = vmatprep.subr.mxu0 0.0
      %3217 = vmatpush1.msra.mxu0 0.0
      %3218 = vmatprep.subr.mxu0 0.0
      %3219 = vmatpush1.msra.mxu0 0.0
      %3220 = vmatprep.subr.mxu0 0.0
      %3221 = vmatpush1.msra.mxu0 0.0
      %3222 = vmatprep.subr.mxu0 0.0
      %3223 = vmatpush1.msra.mxu0 0.0
      %3224 = vmatprep.subr.mxu0 0.0
      %3225 = vmatpush1.msra.mxu0 0.0
      %3226 = vmatprep.subr.mxu0 0.0
      %3227 = vmatpush1.msra.mxu0 0.0
      %3228 = vmatprep.subr.mxu0 0.0
      %3229 = vmatpush1.msra.mxu0 0.0
      %3230 = vmatprep.subr.mxu0 0.0
      %3231 = vmatpush1.msra.mxu0 0.0
      %3232 = vmatprep.subr.mxu0 0.0
      %3233 = vmatpush1.msra.mxu0 0.0
      %3234 = vmatprep.subr.mxu0 0.0
      %3235 = vmatpush1.msra.mxu0 0.0
      %3236 = vmatprep.subr.mxu0 0.0
      %3237 = vmatpush1.msra.mxu0 0.0
      %3238 = vmatprep.subr.mxu0 0.0
      %3239 = vmatpush1.msra.mxu0 0.0
      %3240 = vmatprep.subr.mxu0 0.0
      %3241 = vmatpush1.msra.mxu0 0.0
      %3242 = vmatprep.subr.mxu0 0.0
      %3243 = vmatpush1.msra.mxu0 0.0
      %3244 = vmatprep.subr.mxu0 0.0
      %3245 = vmatpush1.msra.mxu0 0.0
      %3246 = vmatprep.subr.mxu0 0.0
      %3247 = vmatpush1.msra.mxu0 0.0
      %3248 = vmatprep.mubr.f32.mxu0 0.0
      %3249 = vmatmul.mubr.f32.gmra.mrb[0].mxu0 %v3111
      %v3250 = vpop.f32.mrb[0].mxu0
      %v3251 = vadd.f32 0.0, %v3250
      %v3252 = vpop.f32.mrb[0].mxu0
      %3253 = vdwg.mxu0
      %v3254 = vadd.f32 %v3094, %v3180
      %v3255 = vadd.f32 %v3095, %v3182
      %v3256 = vadd.f32 %v3096, %v3251
      %s3257 = scalar_lea.vmem %s2, 8
      %v3258 = vld [vmem:[%s3257] sm:$0xff]
      %3260 = vset.pattern.permute.xlu0 0
      %3261 = vperm.xlu0 %3260, %v3258
      %v3262 = vpop.permute.xlu0 %3261
      %v3264 = vadd.f32 %v3254, %v3262
      %v3265 = vadd.f32 %v3255, %v3262
      %v3266 = vadd.f32 %v3256, %v3262
      %s3267 = scalar_lea.vmem %s3, 8
      %v3268 = vld [vmem:[%s3267] sm:$0xff]
      %3270 = vset.pattern.permute.xlu0 0
      %3271 = vperm.xlu0 %3270, %v3268
      %v3272 = vpop.permute.xlu0 %3271
      %v3274 = vmul.f32 %v3264, %v3272
      %v3275 = vmul.f32 %v3265, %v3272
      %v3276 = vmul.f32 %v3266, %v3272
      %s3277 = scalar_lea.vmem %s4, 8
      %v3278 = vld [vmem:[%s3277] sm:$0xff]
      %3280 = vset.pattern.permute.xlu0 0
      %3281 = vperm.xlu0 %3280, %v3278
      %v3282 = vpop.permute.xlu0 %3281
      %v3284 = vadd.f32 %v3274, %v3282
      %v3285 = vadd.f32 %v3275, %v3282
      %v3286 = vadd.f32 %v3276, %v3282
      %v3287 = vmax.f32 %v3284, 0.0
      %v3288 = vmax.f32 %v3285, 0.0
      %v3289 = vmax.f32 %v3286, 0.0
      %v3290 = vmul.f32 %v3287, %v1795
      %v3291 = vmul.f32 %v3288, %v1799
      %v3292 = vmul.f32 %v3289, %v1803
      %3293 = vst [vmem:[#allocation2 + $0x8] sm:$0xff] %v3290
      %3294 = vst [vmem:[#allocation2 + $0x10] sm:$0xff] %v3291
      %3295 = vst.msk [vmem:[#allocation2 + $0x18] sm:$0xff] %vm1812, %v3292
      %s3296 = scalar_lea.vmem %s1, 144
      %v3297 = vld [vmem:[%s3296] sm:$0xff]
      %v3298 = vld [vmem:[#allocation2] sm:$0xff]
      %v3299 = vld [vmem:[#allocation2 + $0x8] sm:$0xff]
      %v3300 = vld [vmem:[#allocation2 + $0x10] sm:$0xff]
      %v3301 = vld [vmem:[#allocation2 + $0x18] sm:$0xff]
      %s3302 = scalar_lea.vmem %s1, 152
      %v3303 = vld [vmem:[%s3302] sm:$0xff]
      %3308 = vrot.lane.b32.xlu0 %v3298, 18
      %v3309 = vpop.permute.xlu0 %3308
      %3310 = vrot.lane.b32.xlu0 %v3299, 18
      %v3311 = vpop.permute.xlu0 %3310
      %3312 = vrot.lane.b32.xlu0 %v3300, 18
      %v3313 = vpop.permute.xlu0 %3312
      %3314 = vrot.lane.b32.xlu0 %v3301, 18
      %v3315 = vpop.permute.xlu0 %3314
      %v3316 = vsel %vm329, %v3309, %v3311
      %v3317 = vsel %vm329, %v3311, %v3313
      %v3318 = vsel %vm329, %v3313, %v3315
      %v3323 = vsel %vm336, %v3303, 0
      %3325 = vmatprep.subr.mxu0 %v3317
      %3326 = vmatpush1.msra.mxu0 %v3316
      %3327 = vmatprep.subr.mxu0 0.0
      %3328 = vmatpush1.msra.mxu0 0.0
      %3329 = vmatprep.subr.mxu0 0.0
      %3330 = vmatpush1.msra.mxu0 0.0
      %3331 = vmatprep.subr.mxu0 0.0
      %3332 = vmatpush1.msra.mxu0 0.0
      %3333 = vmatprep.subr.mxu0 0.0
      %3334 = vmatpush1.msra.mxu0 0.0
      %3335 = vmatprep.subr.mxu0 0.0
      %3336 = vmatpush1.msra.mxu0 0.0
      %3337 = vmatprep.subr.mxu0 0.0
      %3338 = vmatpush1.msra.mxu0 0.0
      %3339 = vmatprep.subr.mxu0 0.0
      %3340 = vmatpush1.msra.mxu0 0.0
      %3341 = vmatprep.subr.mxu0 0.0
      %3342 = vmatpush1.msra.mxu0 0.0
      %3343 = vmatprep.subr.mxu0 0.0
      %3344 = vmatpush1.msra.mxu0 0.0
      %3345 = vmatprep.subr.mxu0 0.0
      %3346 = vmatpush1.msra.mxu0 0.0
      %3347 = vmatprep.subr.mxu0 0.0
      %3348 = vmatpush1.msra.mxu0 0.0
      %3349 = vmatprep.subr.mxu0 0.0
      %3350 = vmatpush1.msra.mxu0 0.0
      %3351 = vmatprep.subr.mxu0 0.0
      %3352 = vmatpush1.msra.mxu0 0.0
      %3353 = vmatprep.subr.mxu0 0.0
      %3354 = vmatpush1.msra.mxu0 0.0
      %3355 = vmatprep.subr.mxu0 0.0
      %3356 = vmatpush1.msra.mxu0 0.0
      %3357 = vmatprep.subr.mxu0 0.0
      %3358 = vmatpush1.msra.mxu0 0.0
      %3359 = vmatprep.subr.mxu0 0.0
      %3360 = vmatpush1.msra.mxu0 0.0
      %3361 = vmatprep.subr.mxu0 0.0
      %3362 = vmatpush1.msra.mxu0 0.0
      %3363 = vmatprep.subr.mxu0 0.0
      %3364 = vmatpush1.msra.mxu0 0.0
      %3365 = vmatprep.subr.mxu0 0.0
      %3366 = vmatpush1.msra.mxu0 0.0
      %3367 = vmatprep.subr.mxu0 0.0
      %3368 = vmatpush1.msra.mxu0 0.0
      %3369 = vmatprep.subr.mxu0 0.0
      %3370 = vmatpush1.msra.mxu0 0.0
      %3371 = vmatprep.subr.mxu0 0.0
      %3372 = vmatpush1.msra.mxu0 0.0
      %3373 = vmatprep.subr.mxu0 0.0
      %3374 = vmatpush1.msra.mxu0 0.0
      %3375 = vmatprep.subr.mxu0 0.0
      %3376 = vmatpush1.msra.mxu0 0.0
      %3377 = vmatprep.subr.mxu0 0.0
      %3378 = vmatpush1.msra.mxu0 0.0
      %3379 = vmatprep.subr.mxu0 0.0
      %3380 = vmatpush1.msra.mxu0 0.0
      %3381 = vmatprep.subr.mxu0 0.0
      %3382 = vmatpush1.msra.mxu0 0.0
      %3383 = vmatprep.subr.mxu0 0.0
      %3384 = vmatpush1.msra.mxu0 0.0
      %3385 = vmatprep.subr.mxu0 0.0
      %3386 = vmatpush1.msra.mxu0 0.0
      %3387 = vmatprep.subr.mxu0 0.0
      %3388 = vmatpush1.msra.mxu0 0.0
      %3389 = vmatprep.mubr.f32.mxu0 0.0
      %3390 = vmatmul.mubr.f32.gmra.mrb[0].mxu0 %v3323
      %v3391 = vpop.f32.mrb[0].mxu0
      %v3392 = vadd.f32 0.0, %v3391
      %v3393 = vpop.f32.mrb[0].mxu0
      %v3394 = vadd.f32 0.0, %v3393
      %3395 = vdwg.mxu0
      %3396 = vmatprep.subr.mxu0 0.0
      %3397 = vmatpush1.msra.mxu0 %v3318
      %3398 = vmatprep.subr.mxu0 0.0
      %3399 = vmatpush1.msra.mxu0 0.0
      %3400 = vmatprep.subr.mxu0 0.0
      %3401 = vmatpush1.msra.mxu0 0.0
      %3402 = vmatprep.subr.mxu0 0.0
      %3403 = vmatpush1.msra.mxu0 0.0
      %3404 = vmatprep.subr.mxu0 0.0
      %3405 = vmatpush1.msra.mxu0 0.0
      %3406 = vmatprep.subr.mxu0 0.0
      %3407 = vmatpush1.msra.mxu0 0.0
      %3408 = vmatprep.subr.mxu0 0.0
      %3409 = vmatpush1.msra.mxu0 0.0
      %3410 = vmatprep.subr.mxu0 0.0
      %3411 = vmatpush1.msra.mxu0 0.0
      %3412 = vmatprep.subr.mxu0 0.0
      %3413 = vmatpush1.msra.mxu0 0.0
      %3414 = vmatprep.subr.mxu0 0.0
      %3415 = vmatpush1.msra.mxu0 0.0
      %3416 = vmatprep.subr.mxu0 0.0
      %3417 = vmatpush1.msra.mxu0 0.0
      %3418 = vmatprep.subr.mxu0 0.0
      %3419 = vmatpush1.msra.mxu0 0.0
      %3420 = vmatprep.subr.mxu0 0.0
      %3421 = vmatpush1.msra.mxu0 0.0
      %3422 = vmatprep.subr.mxu0 0.0
      %3423 = vmatpush1.msra.mxu0 0.0
      %3424 = vmatprep.subr.mxu0 0.0
      %3425 = vmatpush1.msra.mxu0 0.0
      %3426 = vmatprep.subr.mxu0 0.0
      %3427 = vmatpush1.msra.mxu0 0.0
      %3428 = vmatprep.subr.mxu0 0.0
      %3429 = vmatpush1.msra.mxu0 0.0
      %3430 = vmatprep.subr.mxu0 0.0
      %3431 = vmatpush1.msra.mxu0 0.0
      %3432 = vmatprep.subr.mxu0 0.0
      %3433 = vmatpush1.msra.mxu0 0.0
      %3434 = vmatprep.subr.mxu0 0.0
      %3435 = vmatpush1.msra.mxu0 0.0
      %3436 = vmatprep.subr.mxu0 0.0
      %3437 = vmatpush1.msra.mxu0 0.0
      %3438 = vmatprep.subr.mxu0 0.0
      %3439 = vmatpush1.msra.mxu0 0.0
      %3440 = vmatprep.subr.mxu0 0.0
      %3441 = vmatpush1.msra.mxu0 0.0
      %3442 = vmatprep.subr.mxu0 0.0
      %3443 = vmatpush1.msra.mxu0 0.0
      %3444 = vmatprep.subr.mxu0 0.0
      %3445 = vmatpush1.msra.mxu0 0.0
      %3446 = vmatprep.subr.mxu0 0.0
      %3447 = vmatpush1.msra.mxu0 0.0
      %3448 = vmatprep.subr.mxu0 0.0
      %3449 = vmatpush1.msra.mxu0 0.0
      %3450 = vmatprep.subr.mxu0 0.0
      %3451 = vmatpush1.msra.mxu0 0.0
      %3452 = vmatprep.subr.mxu0 0.0
      %3453 = vmatpush1.msra.mxu0 0.0
      %3454 = vmatprep.subr.mxu0 0.0
      %3455 = vmatpush1.msra.mxu0 0.0
      %3456 = vmatprep.subr.mxu0 0.0
      %3457 = vmatpush1.msra.mxu0 0.0
      %3458 = vmatprep.subr.mxu0 0.0
      %3459 = vmatpush1.msra.mxu0 0.0
      %3460 = vmatprep.mubr.f32.mxu0 0.0
      %3461 = vmatmul.mubr.f32.gmra.mrb[0].mxu0 %v3323
      %v3462 = vpop.f32.mrb[0].mxu0
      %v3463 = vadd.f32 0.0, %v3462
      %v3464 = vpop.f32.mrb[0].mxu0
      %3465 = vdwg.mxu0
      %3466 = vrot.lane.b32.xlu0 %v3298, 19
      %v3467 = vpop.permute.xlu0 %3466
      %3468 = vrot.lane.b32.xlu0 %v3299, 19
      %v3469 = vpop.permute.xlu0 %3468
      %3470 = vrot.lane.b32.xlu0 %v3300, 19
      %v3471 = vpop.permute.xlu0 %3470
      %3472 = vrot.lane.b32.xlu0 %v3301, 19
      %v3473 = vpop.permute.xlu0 %3472
      %v3474 = vsel %vm489, %v3467, %v3469
      %v3475 = vsel %vm489, %v3469, %v3471
      %v3476 = vsel %vm489, %v3471, %v3473
      %v3481 = vsel %vm336, %v3297, 0
      %3483 = vmatprep.subr.mxu0 %v3475
      %3484 = vmatpush1.msra.mxu0 %v3474
      %3485 = vmatprep.subr.mxu0 0.0
      %3486 = vmatpush1.msra.mxu0 0.0
      %3487 = vmatprep.subr.mxu0 0.0
      %3488 = vmatpush1.msra.mxu0 0.0
      %3489 = vmatprep.subr.mxu0 0.0
      %3490 = vmatpush1.msra.mxu0 0.0
      %3491 = vmatprep.subr.mxu0 0.0
      %3492 = vmatpush1.msra.mxu0 0.0
      %3493 = vmatprep.subr.mxu0 0.0
      %3494 = vmatpush1.msra.mxu0 0.0
      %3495 = vmatprep.subr.mxu0 0.0
      %3496 = vmatpush1.msra.mxu0 0.0
      %3497 = vmatprep.subr.mxu0 0.0
      %3498 = vmatpush1.msra.mxu0 0.0
      %3499 = vmatprep.subr.mxu0 0.0
      %3500 = vmatpush1.msra.mxu0 0.0
      %3501 = vmatprep.subr.mxu0 0.0
      %3502 = vmatpush1.msra.mxu0 0.0
      %3503 = vmatprep.subr.mxu0 0.0
      %3504 = vmatpush1.msra.mxu0 0.0
      %3505 = vmatprep.subr.mxu0 0.0
      %3506 = vmatpush1.msra.mxu0 0.0
      %3507 = vmatprep.subr.mxu0 0.0
      %3508 = vmatpush1.msra.mxu0 0.0
      %3509 = vmatprep.subr.mxu0 0.0
      %3510 = vmatpush1.msra.mxu0 0.0
      %3511 = vmatprep.subr.mxu0 0.0
      %3512 = vmatpush1.msra.mxu0 0.0
      %3513 = vmatprep.subr.mxu0 0.0
      %3514 = vmatpush1.msra.mxu0 0.0
      %3515 = vmatprep.subr.mxu0 0.0
      %3516 = vmatpush1.msra.mxu0 0.0
      %3517 = vmatprep.subr.mxu0 0.0
      %3518 = vmatpush1.msra.mxu0 0.0
      %3519 = vmatprep.subr.mxu0 0.0
      %3520 = vmatpush1.msra.mxu0 0.0
      %3521 = vmatprep.subr.mxu0 0.0
      %3522 = vmatpush1.msra.mxu0 0.0
      %3523 = vmatprep.subr.mxu0 0.0
      %3524 = vmatpush1.msra.mxu0 0.0
      %3525 = vmatprep.subr.mxu0 0.0
      %3526 = vmatpush1.msra.mxu0 0.0
      %3527 = vmatprep.subr.mxu0 0.0
      %3528 = vmatpush1.msra.mxu0 0.0
      %3529 = vmatprep.subr.mxu0 0.0
      %3530 = vmatpush1.msra.mxu0 0.0
      %3531 = vmatprep.subr.mxu0 0.0
      %3532 = vmatpush1.msra.mxu0 0.0
      %3533 = vmatprep.subr.mxu0 0.0
      %3534 = vmatpush1.msra.mxu0 0.0
      %3535 = vmatprep.subr.mxu0 0.0
      %3536 = vmatpush1.msra.mxu0 0.0
      %3537 = vmatprep.subr.mxu0 0.0
      %3538 = vmatpush1.msra.mxu0 0.0
      %3539 = vmatprep.subr.mxu0 0.0
      %3540 = vmatpush1.msra.mxu0 0.0
      %3541 = vmatprep.subr.mxu0 0.0
      %3542 = vmatpush1.msra.mxu0 0.0
      %3543 = vmatprep.subr.mxu0 0.0
      %3544 = vmatpush1.msra.mxu0 0.0
      %3545 = vmatprep.subr.mxu0 0.0
      %3546 = vmatpush1.msra.mxu0 0.0
      %3547 = vmatprep.mubr.f32.mxu0 0.0
      %3548 = vmatmul.mubr.f32.gmra.mrb[0].mxu0 %v3481
      %v3549 = vpop.f32.mrb[0].mxu0
      %v3550 = vadd.f32 %v3392, %v3549
      %v3551 = vpop.f32.mrb[0].mxu0
      %v3552 = vadd.f32 %v3394, %v3551
      %3553 = vdwg.mxu0
      %3554 = vmatprep.subr.mxu0 0.0
      %3555 = vmatpush1.msra.mxu0 %v3476
      %3556 = vmatprep.subr.mxu0 0.0
      %3557 = vmatpush1.msra.mxu0 0.0
      %3558 = vmatprep.subr.mxu0 0.0
      %3559 = vmatpush1.msra.mxu0 0.0
      %3560 = vmatprep.subr.mxu0 0.0
      %3561 = vmatpush1.msra.mxu0 0.0
      %3562 = vmatprep.subr.mxu0 0.0
      %3563 = vmatpush1.msra.mxu0 0.0
      %3564 = vmatprep.subr.mxu0 0.0
      %3565 = vmatpush1.msra.mxu0 0.0
      %3566 = vmatprep.subr.mxu0 0.0
      %3567 = vmatpush1.msra.mxu0 0.0
      %3568 = vmatprep.subr.mxu0 0.0
      %3569 = vmatpush1.msra.mxu0 0.0
      %3570 = vmatprep.subr.mxu0 0.0
      %3571 = vmatpush1.msra.mxu0 0.0
      %3572 = vmatprep.subr.mxu0 0.0
      %3573 = vmatpush1.msra.mxu0 0.0
      %3574 = vmatprep.subr.mxu0 0.0
      %3575 = vmatpush1.msra.mxu0 0.0
      %3576 = vmatprep.subr.mxu0 0.0
      %3577 = vmatpush1.msra.mxu0 0.0
      %3578 = vmatprep.subr.mxu0 0.0
      %3579 = vmatpush1.msra.mxu0 0.0
      %3580 = vmatprep.subr.mxu0 0.0
      %3581 = vmatpush1.msra.mxu0 0.0
      %3582 = vmatprep.subr.mxu0 0.0
      %3583 = vmatpush1.msra.mxu0 0.0
      %3584 = vmatprep.subr.mxu0 0.0
      %3585 = vmatpush1.msra.mxu0 0.0
      %3586 = vmatprep.subr.mxu0 0.0
      %3587 = vmatpush1.msra.mxu0 0.0
      %3588 = vmatprep.subr.mxu0 0.0
      %3589 = vmatpush1.msra.mxu0 0.0
      %3590 = vmatprep.subr.mxu0 0.0
      %3591 = vmatpush1.msra.mxu0 0.0
      %3592 = vmatprep.subr.mxu0 0.0
      %3593 = vmatpush1.msra.mxu0 0.0
      %3594 = vmatprep.subr.mxu0 0.0
      %3595 = vmatpush1.msra.mxu0 0.0
      %3596 = vmatprep.subr.mxu0 0.0
      %3597 = vmatpush1.msra.mxu0 0.0
      %3598 = vmatprep.subr.mxu0 0.0
      %3599 = vmatpush1.msra.mxu0 0.0
      %3600 = vmatprep.subr.mxu0 0.0
      %3601 = vmatpush1.msra.mxu0 0.0
      %3602 = vmatprep.subr.mxu0 0.0
      %3603 = vmatpush1.msra.mxu0 0.0
      %3604 = vmatprep.subr.mxu0 0.0
      %3605 = vmatpush1.msra.mxu0 0.0
      %3606 = vmatprep.subr.mxu0 0.0
      %3607 = vmatpush1.msra.mxu0 0.0
      %3608 = vmatprep.subr.mxu0 0.0
      %3609 = vmatpush1.msra.mxu0 0.0
      %3610 = vmatprep.subr.mxu0 0.0
      %3611 = vmatpush1.msra.mxu0 0.0
      %3612 = vmatprep.subr.mxu0 0.0
      %3613 = vmatpush1.msra.mxu0 0.0
      %3614 = vmatprep.subr.mxu0 0.0
      %3615 = vmatpush1.msra.mxu0 0.0
      %3616 = vmatprep.subr.mxu0 0.0
      %3617 = vmatpush1.msra.mxu0 0.0
      %3618 = vmatprep.mubr.f32.mxu0 0.0
      %3619 = vmatmul.mubr.f32.gmra.mrb[0].mxu0 %v3481
      %v3620 = vpop.f32.mrb[0].mxu0
      %v3621 = vadd.f32 %v3463, %v3620
      %v3622 = vpop.f32.mrb[0].mxu0
      %3623 = vdwg.mxu0
      %s3624 = scalar_lea.vmem %s1, 160
      %v3625 = vld [vmem:[%s3624] sm:$0xff]
      %3626 = vrot.lane.b32.xlu0 %v3298, 17
      %v3627 = vpop.permute.xlu0 %3626
      %3628 = vrot.lane.b32.xlu0 %v3299, 17
      %v3629 = vpop.permute.xlu0 %3628
      %3630 = vrot.lane.b32.xlu0 %v3300, 17
      %v3631 = vpop.permute.xlu0 %3630
      %3632 = vrot.lane.b32.xlu0 %v3301, 17
      %v3633 = vpop.permute.xlu0 %3632
      %v3634 = vsel %vm650, %v3627, %v3629
      %v3635 = vsel %vm650, %v3629, %v3631
      %v3636 = vsel %vm650, %v3631, %v3633
      %v3641 = vsel %vm336, %v3625, 0
      %3643 = vmatprep.subr.mxu0 %v3635
      %3644 = vmatpush1.msra.mxu0 %v3634
      %3645 = vmatprep.subr.mxu0 0.0
      %3646 = vmatpush1.msra.mxu0 0.0
      %3647 = vmatprep.subr.mxu0 0.0
      %3648 = vmatpush1.msra.mxu0 0.0
      %3649 = vmatprep.subr.mxu0 0.0
      %3650 = vmatpush1.msra.mxu0 0.0
      %3651 = vmatprep.subr.mxu0 0.0
      %3652 = vmatpush1.msra.mxu0 0.0
      %3653 = vmatprep.subr.mxu0 0.0
      %3654 = vmatpush1.msra.mxu0 0.0
      %3655 = vmatprep.subr.mxu0 0.0
      %3656 = vmatpush1.msra.mxu0 0.0
      %3657 = vmatprep.subr.mxu0 0.0
      %3658 = vmatpush1.msra.mxu0 0.0
      %3659 = vmatprep.subr.mxu0 0.0
      %3660 = vmatpush1.msra.mxu0 0.0
      %3661 = vmatprep.subr.mxu0 0.0
      %3662 = vmatpush1.msra.mxu0 0.0
      %3663 = vmatprep.subr.mxu0 0.0
      %3664 = vmatpush1.msra.mxu0 0.0
      %3665 = vmatprep.subr.mxu0 0.0
      %3666 = vmatpush1.msra.mxu0 0.0
      %3667 = vmatprep.subr.mxu0 0.0
      %3668 = vmatpush1.msra.mxu0 0.0
      %3669 = vmatprep.subr.mxu0 0.0
      %3670 = vmatpush1.msra.mxu0 0.0
      %3671 = vmatprep.subr.mxu0 0.0
      %3672 = vmatpush1.msra.mxu0 0.0
      %3673 = vmatprep.subr.mxu0 0.0
      %3674 = vmatpush1.msra.mxu0 0.0
      %3675 = vmatprep.subr.mxu0 0.0
      %3676 = vmatpush1.msra.mxu0 0.0
      %3677 = vmatprep.subr.mxu0 0.0
      %3678 = vmatpush1.msra.mxu0 0.0
      %3679 = vmatprep.subr.mxu0 0.0
      %3680 = vmatpush1.msra.mxu0 0.0
      %3681 = vmatprep.subr.mxu0 0.0
      %3682 = vmatpush1.msra.mxu0 0.0
      %3683 = vmatprep.subr.mxu0 0.0
      %3684 = vmatpush1.msra.mxu0 0.0
      %3685 = vmatprep.subr.mxu0 0.0
      %3686 = vmatpush1.msra.mxu0 0.0
      %3687 = vmatprep.subr.mxu0 0.0
      %3688 = vmatpush1.msra.mxu0 0.0
      %3689 = vmatprep.subr.mxu0 0.0
      %3690 = vmatpush1.msra.mxu0 0.0
      %3691 = vmatprep.subr.mxu0 0.0
      %3692 = vmatpush1.msra.mxu0 0.0
      %3693 = vmatprep.subr.mxu0 0.0
      %3694 = vmatpush1.msra.mxu0 0.0
      %3695 = vmatprep.subr.mxu0 0.0
      %3696 = vmatpush1.msra.mxu0 0.0
      %3697 = vmatprep.subr.mxu0 0.0
      %3698 = vmatpush1.msra.mxu0 0.0
      %3699 = vmatprep.subr.mxu0 0.0
      %3700 = vmatpush1.msra.mxu0 0.0
      %3701 = vmatprep.subr.mxu0 0.0
      %3702 = vmatpush1.msra.mxu0 0.0
      %3703 = vmatprep.subr.mxu0 0.0
      %3704 = vmatpush1.msra.mxu0 0.0
      %3705 = vmatprep.subr.mxu0 0.0
      %3706 = vmatpush1.msra.mxu0 0.0
      %3707 = vmatprep.mubr.f32.mxu0 0.0
      %3708 = vmatmul.mubr.f32.gmra.mrb[0].mxu0 %v3641
      %v3709 = vpop.f32.mrb[0].mxu0
      %v3710 = vadd.f32 0.0, %v3709
      %v3711 = vpop.f32.mrb[0].mxu0
      %v3712 = vadd.f32 0.0, %v3711
      %3713 = vdwg.mxu0
      %3714 = vmatprep.subr.mxu0 0.0
      %3715 = vmatpush1.msra.mxu0 %v3636
      %3716 = vmatprep.subr.mxu0 0.0
      %3717 = vmatpush1.msra.mxu0 0.0
      %3718 = vmatprep.subr.mxu0 0.0
      %3719 = vmatpush1.msra.mxu0 0.0
      %3720 = vmatprep.subr.mxu0 0.0
      %3721 = vmatpush1.msra.mxu0 0.0
      %3722 = vmatprep.subr.mxu0 0.0
      %3723 = vmatpush1.msra.mxu0 0.0
      %3724 = vmatprep.subr.mxu0 0.0
      %3725 = vmatpush1.msra.mxu0 0.0
      %3726 = vmatprep.subr.mxu0 0.0
      %3727 = vmatpush1.msra.mxu0 0.0
      %3728 = vmatprep.subr.mxu0 0.0
      %3729 = vmatpush1.msra.mxu0 0.0
      %3730 = vmatprep.subr.mxu0 0.0
      %3731 = vmatpush1.msra.mxu0 0.0
      %3732 = vmatprep.subr.mxu0 0.0
      %3733 = vmatpush1.msra.mxu0 0.0
      %3734 = vmatprep.subr.mxu0 0.0
      %3735 = vmatpush1.msra.mxu0 0.0
      %3736 = vmatprep.subr.mxu0 0.0
      %3737 = vmatpush1.msra.mxu0 0.0
      %3738 = vmatprep.subr.mxu0 0.0
      %3739 = vmatpush1.msra.mxu0 0.0
      %3740 = vmatprep.subr.mxu0 0.0
      %3741 = vmatpush1.msra.mxu0 0.0
      %3742 = vmatprep.subr.mxu0 0.0
      %3743 = vmatpush1.msra.mxu0 0.0
      %3744 = vmatprep.subr.mxu0 0.0
      %3745 = vmatpush1.msra.mxu0 0.0
      %3746 = vmatprep.subr.mxu0 0.0
      %3747 = vmatpush1.msra.mxu0 0.0
      %3748 = vmatprep.subr.mxu0 0.0
      %3749 = vmatpush1.msra.mxu0 0.0
      %3750 = vmatprep.subr.mxu0 0.0
      %3751 = vmatpush1.msra.mxu0 0.0
      %3752 = vmatprep.subr.mxu0 0.0
      %3753 = vmatpush1.msra.mxu0 0.0
      %3754 = vmatprep.subr.mxu0 0.0
      %3755 = vmatpush1.msra.mxu0 0.0
      %3756 = vmatprep.subr.mxu0 0.0
      %3757 = vmatpush1.msra.mxu0 0.0
      %3758 = vmatprep.subr.mxu0 0.0
      %3759 = vmatpush1.msra.mxu0 0.0
      %3760 = vmatprep.subr.mxu0 0.0
      %3761 = vmatpush1.msra.mxu0 0.0
      %3762 = vmatprep.subr.mxu0 0.0
      %3763 = vmatpush1.msra.mxu0 0.0
      %3764 = vmatprep.subr.mxu0 0.0
      %3765 = vmatpush1.msra.mxu0 0.0
      %3766 = vmatprep.subr.mxu0 0.0
      %3767 = vmatpush1.msra.mxu0 0.0
      %3768 = vmatprep.subr.mxu0 0.0
      %3769 = vmatpush1.msra.mxu0 0.0
      %3770 = vmatprep.subr.mxu0 0.0
      %3771 = vmatpush1.msra.mxu0 0.0
      %3772 = vmatprep.subr.mxu0 0.0
      %3773 = vmatpush1.msra.mxu0 0.0
      %3774 = vmatprep.subr.mxu0 0.0
      %3775 = vmatpush1.msra.mxu0 0.0
      %3776 = vmatprep.subr.mxu0 0.0
      %3777 = vmatpush1.msra.mxu0 0.0
      %3778 = vmatprep.mubr.f32.mxu0 0.0
      %3779 = vmatmul.mubr.f32.gmra.mrb[0].mxu0 %v3641
      %v3780 = vpop.f32.mrb[0].mxu0
      %v3781 = vadd.f32 0.0, %v3780
      %v3782 = vpop.f32.mrb[0].mxu0
      %3783 = vdwg.mxu0
      %v3784 = vadd.f32 %v3550, %v3710
      %v3785 = vadd.f32 %v3552, %v3712
      %v3786 = vadd.f32 %v3621, %v3781
      %s3787 = scalar_lea.vmem %s1, 168
      %v3788 = vld [vmem:[%s3787] sm:$0xff]
      %3789 = vrot.lane.b32.xlu0 %v3298, 1
      %v3790 = vpop.permute.xlu0 %3789
      %3791 = vrot.lane.b32.xlu0 %v3299, 1
      %v3792 = vpop.permute.xlu0 %3791
      %3793 = vrot.lane.b32.xlu0 %v3300, 1
      %v3794 = vpop.permute.xlu0 %3793
      %3795 = vrot.lane.b32.xlu0 %v3301, 1
      %v3796 = vpop.permute.xlu0 %3795
      %v3797 = vsel %vm814, %v3790, %v3792
      %v3798 = vsel %vm814, %v3792, %v3794
      %v3799 = vsel %vm814, %v3794, %v3796
      %v3804 = vsel %vm336, %v3788, 0
      %3806 = vmatprep.subr.mxu0 %v3798
      %3807 = vmatpush1.msra.mxu0 %v3797
      %3808 = vmatprep.subr.mxu0 0.0
      %3809 = vmatpush1.msra.mxu0 0.0
      %3810 = vmatprep.subr.mxu0 0.0
      %3811 = vmatpush1.msra.mxu0 0.0
      %3812 = vmatprep.subr.mxu0 0.0
      %3813 = vmatpush1.msra.mxu0 0.0
      %3814 = vmatprep.subr.mxu0 0.0
      %3815 = vmatpush1.msra.mxu0 0.0
      %3816 = vmatprep.subr.mxu0 0.0
      %3817 = vmatpush1.msra.mxu0 0.0
      %3818 = vmatprep.subr.mxu0 0.0
      %3819 = vmatpush1.msra.mxu0 0.0
      %3820 = vmatprep.subr.mxu0 0.0
      %3821 = vmatpush1.msra.mxu0 0.0
      %3822 = vmatprep.subr.mxu0 0.0
      %3823 = vmatpush1.msra.mxu0 0.0
      %3824 = vmatprep.subr.mxu0 0.0
      %3825 = vmatpush1.msra.mxu0 0.0
      %3826 = vmatprep.subr.mxu0 0.0
      %3827 = vmatpush1.msra.mxu0 0.0
      %3828 = vmatprep.subr.mxu0 0.0
      %3829 = vmatpush1.msra.mxu0 0.0
      %3830 = vmatprep.subr.mxu0 0.0
      %3831 = vmatpush1.msra.mxu0 0.0
      %3832 = vmatprep.subr.mxu0 0.0
      %3833 = vmatpush1.msra.mxu0 0.0
      %3834 = vmatprep.subr.mxu0 0.0
      %3835 = vmatpush1.msra.mxu0 0.0
      %3836 = vmatprep.subr.mxu0 0.0
      %3837 = vmatpush1.msra.mxu0 0.0
      %3838 = vmatprep.subr.mxu0 0.0
      %3839 = vmatpush1.msra.mxu0 0.0
      %3840 = vmatprep.subr.mxu0 0.0
      %3841 = vmatpush1.msra.mxu0 0.0
      %3842 = vmatprep.subr.mxu0 0.0
      %3843 = vmatpush1.msra.mxu0 0.0
      %3844 = vmatprep.subr.mxu0 0.0
      %3845 = vmatpush1.msra.mxu0 0.0
      %3846 = vmatprep.subr.mxu0 0.0
      %3847 = vmatpush1.msra.mxu0 0.0
      %3848 = vmatprep.subr.mxu0 0.0
      %3849 = vmatpush1.msra.mxu0 0.0
      %3850 = vmatprep.subr.mxu0 0.0
      %3851 = vmatpush1.msra.mxu0 0.0
      %3852 = vmatprep.subr.mxu0 0.0
      %3853 = vmatpush1.msra.mxu0 0.0
      %3854 = vmatprep.subr.mxu0 0.0
      %3855 = vmatpush1.msra.mxu0 0.0
      %3856 = vmatprep.subr.mxu0 0.0
      %3857 = vmatpush1.msra.mxu0 0.0
      %3858 = vmatprep.subr.mxu0 0.0
      %3859 = vmatpush1.msra.mxu0 0.0
      %3860 = vmatprep.subr.mxu0 0.0
      %3861 = vmatpush1.msra.mxu0 0.0
      %3862 = vmatprep.subr.mxu0 0.0
      %3863 = vmatpush1.msra.mxu0 0.0
      %3864 = vmatprep.subr.mxu0 0.0
      %3865 = vmatpush1.msra.mxu0 0.0
      %3866 = vmatprep.subr.mxu0 0.0
      %3867 = vmatpush1.msra.mxu0 0.0
      %3868 = vmatprep.subr.mxu0 0.0
      %3869 = vmatpush1.msra.mxu0 0.0
      %3870 = vmatprep.mubr.f32.mxu0 0.0
      %3871 = vmatmul.mubr.f32.gmra.mrb[0].mxu0 %v3804
      %v3872 = vpop.f32.mrb[0].mxu0
      %v3873 = vadd.f32 0.0, %v3872
      %v3874 = vpop.f32.mrb[0].mxu0
      %v3875 = vadd.f32 0.0, %v3874
      %3876 = vdwg.mxu0
      %3877 = vmatprep.subr.mxu0 0.0
      %3878 = vmatpush1.msra.mxu0 %v3799
      %3879 = vmatprep.subr.mxu0 0.0
      %3880 = vmatpush1.msra.mxu0 0.0
      %3881 = vmatprep.subr.mxu0 0.0
      %3882 = vmatpush1.msra.mxu0 0.0
      %3883 = vmatprep.subr.mxu0 0.0
      %3884 = vmatpush1.msra.mxu0 0.0
      %3885 = vmatprep.subr.mxu0 0.0
      %3886 = vmatpush1.msra.mxu0 0.0
      %3887 = vmatprep.subr.mxu0 0.0
      %3888 = vmatpush1.msra.mxu0 0.0
      %3889 = vmatprep.subr.mxu0 0.0
      %3890 = vmatpush1.msra.mxu0 0.0
      %3891 = vmatprep.subr.mxu0 0.0
      %3892 = vmatpush1.msra.mxu0 0.0
      %3893 = vmatprep.subr.mxu0 0.0
      %3894 = vmatpush1.msra.mxu0 0.0
      %3895 = vmatprep.subr.mxu0 0.0
      %3896 = vmatpush1.msra.mxu0 0.0
      %3897 = vmatprep.subr.mxu0 0.0
      %3898 = vmatpush1.msra.mxu0 0.0
      %3899 = vmatprep.subr.mxu0 0.0
      %3900 = vmatpush1.msra.mxu0 0.0
      %3901 = vmatprep.subr.mxu0 0.0
      %3902 = vmatpush1.msra.mxu0 0.0
      %3903 = vmatprep.subr.mxu0 0.0
      %3904 = vmatpush1.msra.mxu0 0.0
      %3905 = vmatprep.subr.mxu0 0.0
      %3906 = vmatpush1.msra.mxu0 0.0
      %3907 = vmatprep.subr.mxu0 0.0
      %3908 = vmatpush1.msra.mxu0 0.0
      %3909 = vmatprep.subr.mxu0 0.0
      %3910 = vmatpush1.msra.mxu0 0.0
      %3911 = vmatprep.subr.mxu0 0.0
      %3912 = vmatpush1.msra.mxu0 0.0
      %3913 = vmatprep.subr.mxu0 0.0
      %3914 = vmatpush1.msra.mxu0 0.0
      %3915 = vmatprep.subr.mxu0 0.0
      %3916 = vmatpush1.msra.mxu0 0.0
      %3917 = vmatprep.subr.mxu0 0.0
      %3918 = vmatpush1.msra.mxu0 0.0
      %3919 = vmatprep.subr.mxu0 0.0
      %3920 = vmatpush1.msra.mxu0 0.0
      %3921 = vmatprep.subr.mxu0 0.0
      %3922 = vmatpush1.msra.mxu0 0.0
      %3923 = vmatprep.subr.mxu0 0.0
      %3924 = vmatpush1.msra.mxu0 0.0
      %3925 = vmatprep.subr.mxu0 0.0
      %3926 = vmatpush1.msra.mxu0 0.0
      %3927 = vmatprep.subr.mxu0 0.0
      %3928 = vmatpush1.msra.mxu0 0.0
      %3929 = vmatprep.subr.mxu0 0.0
      %3930 = vmatpush1.msra.mxu0 0.0
      %3931 = vmatprep.subr.mxu0 0.0
      %3932 = vmatpush1.msra.mxu0 0.0
      %3933 = vmatprep.subr.mxu0 0.0
      %3934 = vmatpush1.msra.mxu0 0.0
      %3935 = vmatprep.subr.mxu0 0.0
      %3936 = vmatpush1.msra.mxu0 0.0
      %3937 = vmatprep.subr.mxu0 0.0
      %3938 = vmatpush1.msra.mxu0 0.0
      %3939 = vmatprep.subr.mxu0 0.0
      %3940 = vmatpush1.msra.mxu0 0.0
      %3941 = vmatprep.mubr.f32.mxu0 0.0
      %3942 = vmatmul.mubr.f32.gmra.mrb[0].mxu0 %v3804
      %v3943 = vpop.f32.mrb[0].mxu0
      %v3944 = vadd.f32 0.0, %v3943
      %v3945 = vpop.f32.mrb[0].mxu0
      %3946 = vdwg.mxu0
      %v3947 = vadd.f32 %v3784, %v3873
      %v3948 = vadd.f32 %v3785, %v3875
      %v3949 = vadd.f32 %v3786, %v3944
      %s3950 = scalar_lea.vmem %s1, 176
      %v3951 = vld [vmem:[%s3950] sm:$0xff]
      %v3953 = vsel %vm336, %v3951, 0
      %3955 = vmatprep.subr.mxu0 %v3300
      %3956 = vmatpush1.msra.mxu0 %v3299
      %3957 = vmatprep.subr.mxu0 0.0
      %3958 = vmatpush1.msra.mxu0 0.0
      %3959 = vmatprep.subr.mxu0 0.0
      %3960 = vmatpush1.msra.mxu0 0.0
      %3961 = vmatprep.subr.mxu0 0.0
      %3962 = vmatpush1.msra.mxu0 0.0
      %3963 = vmatprep.subr.mxu0 0.0
      %3964 = vmatpush1.msra.mxu0 0.0
      %3965 = vmatprep.subr.mxu0 0.0
      %3966 = vmatpush1.msra.mxu0 0.0
      %3967 = vmatprep.subr.mxu0 0.0
      %3968 = vmatpush1.msra.mxu0 0.0
      %3969 = vmatprep.subr.mxu0 0.0
      %3970 = vmatpush1.msra.mxu0 0.0
      %3971 = vmatprep.subr.mxu0 0.0
      %3972 = vmatpush1.msra.mxu0 0.0
      %3973 = vmatprep.subr.mxu0 0.0
      %3974 = vmatpush1.msra.mxu0 0.0
      %3975 = vmatprep.subr.mxu0 0.0
      %3976 = vmatpush1.msra.mxu0 0.0
      %3977 = vmatprep.subr.mxu0 0.0
      %3978 = vmatpush1.msra.mxu0 0.0
      %3979 = vmatprep.subr.mxu0 0.0
      %3980 = vmatpush1.msra.mxu0 0.0
      %3981 = vmatprep.subr.mxu0 0.0
      %3982 = vmatpush1.msra.mxu0 0.0
      %3983 = vmatprep.subr.mxu0 0.0
      %3984 = vmatpush1.msra.mxu0 0.0
      %3985 = vmatprep.subr.mxu0 0.0
      %3986 = vmatpush1.msra.mxu0 0.0
      %3987 = vmatprep.subr.mxu0 0.0
      %3988 = vmatpush1.msra.mxu0 0.0
      %3989 = vmatprep.subr.mxu0 0.0
      %3990 = vmatpush1.msra.mxu0 0.0
      %3991 = vmatprep.subr.mxu0 0.0
      %3992 = vmatpush1.msra.mxu0 0.0
      %3993 = vmatprep.subr.mxu0 0.0
      %3994 = vmatpush1.msra.mxu0 0.0
      %3995 = vmatprep.subr.mxu0 0.0
      %3996 = vmatpush1.msra.mxu0 0.0
      %3997 = vmatprep.subr.mxu0 0.0
      %3998 = vmatpush1.msra.mxu0 0.0
      %3999 = vmatprep.subr.mxu0 0.0
      %4000 = vmatpush1.msra.mxu0 0.0
      %4001 = vmatprep.subr.mxu0 0.0
      %4002 = vmatpush1.msra.mxu0 0.0
      %4003 = vmatprep.subr.mxu0 0.0
      %4004 = vmatpush1.msra.mxu0 0.0
      %4005 = vmatprep.subr.mxu0 0.0
      %4006 = vmatpush1.msra.mxu0 0.0
      %4007 = vmatprep.subr.mxu0 0.0
      %4008 = vmatpush1.msra.mxu0 0.0
      %4009 = vmatprep.subr.mxu0 0.0
      %4010 = vmatpush1.msra.mxu0 0.0
      %4011 = vmatprep.subr.mxu0 0.0
      %4012 = vmatpush1.msra.mxu0 0.0
      %4013 = vmatprep.subr.mxu0 0.0
      %4014 = vmatpush1.msra.mxu0 0.0
      %4015 = vmatprep.subr.mxu0 0.0
      %4016 = vmatpush1.msra.mxu0 0.0
      %4017 = vmatprep.subr.mxu0 0.0
      %4018 = vmatpush1.msra.mxu0 0.0
      %4019 = vmatprep.mubr.f32.mxu0 0.0
      %4020 = vmatmul.mubr.f32.gmra.mrb[0].mxu0 %v3953
      %v4021 = vpop.f32.mrb[0].mxu0
      %v4022 = vadd.f32 0.0, %v4021
      %v4023 = vpop.f32.mrb[0].mxu0
      %v4024 = vadd.f32 0.0, %v4023
      %4025 = vdwg.mxu0
      %4026 = vmatprep.subr.mxu0 0.0
      %4027 = vmatpush1.msra.mxu0 %v3301
      %4028 = vmatprep.subr.mxu0 0.0
      %4029 = vmatpush1.msra.mxu0 0.0
      %4030 = vmatprep.subr.mxu0 0.0
      %4031 = vmatpush1.msra.mxu0 0.0
      %4032 = vmatprep.subr.mxu0 0.0
      %4033 = vmatpush1.msra.mxu0 0.0
      %4034 = vmatprep.subr.mxu0 0.0
      %4035 = vmatpush1.msra.mxu0 0.0
      %4036 = vmatprep.subr.mxu0 0.0
      %4037 = vmatpush1.msra.mxu0 0.0
      %4038 = vmatprep.subr.mxu0 0.0
      %4039 = vmatpush1.msra.mxu0 0.0
      %4040 = vmatprep.subr.mxu0 0.0
      %4041 = vmatpush1.msra.mxu0 0.0
      %4042 = vmatprep.subr.mxu0 0.0
      %4043 = vmatpush1.msra.mxu0 0.0
      %4044 = vmatprep.subr.mxu0 0.0
      %4045 = vmatpush1.msra.mxu0 0.0
      %4046 = vmatprep.subr.mxu0 0.0
      %4047 = vmatpush1.msra.mxu0 0.0
      %4048 = vmatprep.subr.mxu0 0.0
      %4049 = vmatpush1.msra.mxu0 0.0
      %4050 = vmatprep.subr.mxu0 0.0
      %4051 = vmatpush1.msra.mxu0 0.0
      %4052 = vmatprep.subr.mxu0 0.0
      %4053 = vmatpush1.msra.mxu0 0.0
      %4054 = vmatprep.subr.mxu0 0.0
      %4055 = vmatpush1.msra.mxu0 0.0
      %4056 = vmatprep.subr.mxu0 0.0
      %4057 = vmatpush1.msra.mxu0 0.0
      %4058 = vmatprep.subr.mxu0 0.0
      %4059 = vmatpush1.msra.mxu0 0.0
      %4060 = vmatprep.subr.mxu0 0.0
      %4061 = vmatpush1.msra.mxu0 0.0
      %4062 = vmatprep.subr.mxu0 0.0
      %4063 = vmatpush1.msra.mxu0 0.0
      %4064 = vmatprep.subr.mxu0 0.0
      %4065 = vmatpush1.msra.mxu0 0.0
      %4066 = vmatprep.subr.mxu0 0.0
      %4067 = vmatpush1.msra.mxu0 0.0
      %4068 = vmatprep.subr.mxu0 0.0
      %4069 = vmatpush1.msra.mxu0 0.0
      %4070 = vmatprep.subr.mxu0 0.0
      %4071 = vmatpush1.msra.mxu0 0.0
      %4072 = vmatprep.subr.mxu0 0.0
      %4073 = vmatpush1.msra.mxu0 0.0
      %4074 = vmatprep.subr.mxu0 0.0
      %4075 = vmatpush1.msra.mxu0 0.0
      %4076 = vmatprep.subr.mxu0 0.0
      %4077 = vmatpush1.msra.mxu0 0.0
      %4078 = vmatprep.subr.mxu0 0.0
      %4079 = vmatpush1.msra.mxu0 0.0
      %4080 = vmatprep.subr.mxu0 0.0
      %4081 = vmatpush1.msra.mxu0 0.0
      %4082 = vmatprep.subr.mxu0 0.0
      %4083 = vmatpush1.msra.mxu0 0.0
      %4084 = vmatprep.subr.mxu0 0.0
      %4085 = vmatpush1.msra.mxu0 0.0
      %4086 = vmatprep.subr.mxu0 0.0
      %4087 = vmatpush1.msra.mxu0 0.0
      %4088 = vmatprep.subr.mxu0 0.0
      %4089 = vmatpush1.msra.mxu0 0.0
      %4090 = vmatprep.mubr.f32.mxu0 0.0
      %4091 = vmatmul.mubr.f32.gmra.mrb[0].mxu0 %v3953
      %v4092 = vpop.f32.mrb[0].mxu0
      %v4093 = vadd.f32 0.0, %v4092
      %v4094 = vpop.f32.mrb[0].mxu0
      %4095 = vdwg.mxu0
      %v4096 = vadd.f32 %v3947, %v4022
      %v4097 = vadd.f32 %v3948, %v4024
      %v4098 = vadd.f32 %v3949, %v4093
      %s4099 = scalar_lea.vmem %s1, 184
      %v4100 = vld [vmem:[%s4099] sm:$0xff]
      %4101 = vrot.lane.b32.xlu0 %v3299, 127
      %v4102 = vpop.permute.xlu0 %4101
      %4103 = vrot.lane.b32.xlu0 %v3300, 127
      %v4104 = vpop.permute.xlu0 %4103
      %4105 = vrot.lane.b32.xlu0 %v3301, 127
      %v4106 = vpop.permute.xlu0 %4105
      %v4107 = vsel %vm1125, %v4102, %v4104
      %v4108 = vsel %vm1125, %v4104, %v4106
      %v4113 = vsel %vm336, %v4100, 0
      %4115 = vmatprep.subr.mxu0 %v4108
      %4116 = vmatpush1.msra.mxu0 %v4107
      %4117 = vmatprep.subr.mxu0 0.0
      %4118 = vmatpush1.msra.mxu0 0.0
      %4119 = vmatprep.subr.mxu0 0.0
      %4120 = vmatpush1.msra.mxu0 0.0
      %4121 = vmatprep.subr.mxu0 0.0
      %4122 = vmatpush1.msra.mxu0 0.0
      %4123 = vmatprep.subr.mxu0 0.0
      %4124 = vmatpush1.msra.mxu0 0.0
      %4125 = vmatprep.subr.mxu0 0.0
      %4126 = vmatpush1.msra.mxu0 0.0
      %4127 = vmatprep.subr.mxu0 0.0
      %4128 = vmatpush1.msra.mxu0 0.0
      %4129 = vmatprep.subr.mxu0 0.0
      %4130 = vmatpush1.msra.mxu0 0.0
      %4131 = vmatprep.subr.mxu0 0.0
      %4132 = vmatpush1.msra.mxu0 0.0
      %4133 = vmatprep.subr.mxu0 0.0
      %4134 = vmatpush1.msra.mxu0 0.0
      %4135 = vmatprep.subr.mxu0 0.0
      %4136 = vmatpush1.msra.mxu0 0.0
      %4137 = vmatprep.subr.mxu0 0.0
      %4138 = vmatpush1.msra.mxu0 0.0
      %4139 = vmatprep.subr.mxu0 0.0
      %4140 = vmatpush1.msra.mxu0 0.0
      %4141 = vmatprep.subr.mxu0 0.0
      %4142 = vmatpush1.msra.mxu0 0.0
      %4143 = vmatprep.subr.mxu0 0.0
      %4144 = vmatpush1.msra.mxu0 0.0
      %4145 = vmatprep.subr.mxu0 0.0
      %4146 = vmatpush1.msra.mxu0 0.0
      %4147 = vmatprep.subr.mxu0 0.0
      %4148 = vmatpush1.msra.mxu0 0.0
      %4149 = vmatprep.subr.mxu0 0.0
      %4150 = vmatpush1.msra.mxu0 0.0
      %4151 = vmatprep.subr.mxu0 0.0
      %4152 = vmatpush1.msra.mxu0 0.0
      %4153 = vmatprep.subr.mxu0 0.0
      %4154 = vmatpush1.msra.mxu0 0.0
      %4155 = vmatprep.subr.mxu0 0.0
      %4156 = vmatpush1.msra.mxu0 0.0
      %4157 = vmatprep.subr.mxu0 0.0
      %4158 = vmatpush1.msra.mxu0 0.0
      %4159 = vmatprep.subr.mxu0 0.0
      %4160 = vmatpush1.msra.mxu0 0.0
      %4161 = vmatprep.subr.mxu0 0.0
      %4162 = vmatpush1.msra.mxu0 0.0
      %4163 = vmatprep.subr.mxu0 0.0
      %4164 = vmatpush1.msra.mxu0 0.0
      %4165 = vmatprep.subr.mxu0 0.0
      %4166 = vmatpush1.msra.mxu0 0.0
      %4167 = vmatprep.subr.mxu0 0.0
      %4168 = vmatpush1.msra.mxu0 0.0
      %4169 = vmatprep.subr.mxu0 0.0
      %4170 = vmatpush1.msra.mxu0 0.0
      %4171 = vmatprep.subr.mxu0 0.0
      %4172 = vmatpush1.msra.mxu0 0.0
      %4173 = vmatprep.subr.mxu0 0.0
      %4174 = vmatpush1.msra.mxu0 0.0
      %4175 = vmatprep.subr.mxu0 0.0
      %4176 = vmatpush1.msra.mxu0 0.0
      %4177 = vmatprep.subr.mxu0 0.0
      %4178 = vmatpush1.msra.mxu0 0.0
      %4179 = vmatprep.mubr.f32.mxu0 0.0
      %4180 = vmatmul.mubr.f32.gmra.mrb[0].mxu0 %v4113
      %v4181 = vpop.f32.mrb[0].mxu0
      %v4182 = vadd.f32 0.0, %v4181
      %v4183 = vpop.f32.mrb[0].mxu0
      %v4184 = vadd.f32 0.0, %v4183
      %4185 = vdwg.mxu0
      %4186 = vmatprep.subr.mxu0 0.0
      %4187 = vmatpush1.msra.mxu0 %v4106
      %4188 = vmatprep.subr.mxu0 0.0
      %4189 = vmatpush1.msra.mxu0 0.0
      %4190 = vmatprep.subr.mxu0 0.0
      %4191 = vmatpush1.msra.mxu0 0.0
      %4192 = vmatprep.subr.mxu0 0.0
      %4193 = vmatpush1.msra.mxu0 0.0
      %4194 = vmatprep.subr.mxu0 0.0
      %4195 = vmatpush1.msra.mxu0 0.0
      %4196 = vmatprep.subr.mxu0 0.0
      %4197 = vmatpush1.msra.mxu0 0.0
      %4198 = vmatprep.subr.mxu0 0.0
      %4199 = vmatpush1.msra.mxu0 0.0
      %4200 = vmatprep.subr.mxu0 0.0
      %4201 = vmatpush1.msra.mxu0 0.0
      %4202 = vmatprep.subr.mxu0 0.0
      %4203 = vmatpush1.msra.mxu0 0.0
      %4204 = vmatprep.subr.mxu0 0.0
      %4205 = vmatpush1.msra.mxu0 0.0
      %4206 = vmatprep.subr.mxu0 0.0
      %4207 = vmatpush1.msra.mxu0 0.0
      %4208 = vmatprep.subr.mxu0 0.0
      %4209 = vmatpush1.msra.mxu0 0.0
      %4210 = vmatprep.subr.mxu0 0.0
      %4211 = vmatpush1.msra.mxu0 0.0
      %4212 = vmatprep.subr.mxu0 0.0
      %4213 = vmatpush1.msra.mxu0 0.0
      %4214 = vmatprep.subr.mxu0 0.0
      %4215 = vmatpush1.msra.mxu0 0.0
      %4216 = vmatprep.subr.mxu0 0.0
      %4217 = vmatpush1.msra.mxu0 0.0
      %4218 = vmatprep.subr.mxu0 0.0
      %4219 = vmatpush1.msra.mxu0 0.0
      %4220 = vmatprep.subr.mxu0 0.0
      %4221 = vmatpush1.msra.mxu0 0.0
      %4222 = vmatprep.subr.mxu0 0.0
      %4223 = vmatpush1.msra.mxu0 0.0
      %4224 = vmatprep.subr.mxu0 0.0
      %4225 = vmatpush1.msra.mxu0 0.0
      %4226 = vmatprep.subr.mxu0 0.0
      %4227 = vmatpush1.msra.mxu0 0.0
      %4228 = vmatprep.subr.mxu0 0.0
      %4229 = vmatpush1.msra.mxu0 0.0
      %4230 = vmatprep.subr.mxu0 0.0
      %4231 = vmatpush1.msra.mxu0 0.0
      %4232 = vmatprep.subr.mxu0 0.0
      %4233 = vmatpush1.msra.mxu0 0.0
      %4234 = vmatprep.subr.mxu0 0.0
      %4235 = vmatpush1.msra.mxu0 0.0
      %4236 = vmatprep.subr.mxu0 0.0
      %4237 = vmatpush1.msra.mxu0 0.0
      %4238 = vmatprep.subr.mxu0 0.0
      %4239 = vmatpush1.msra.mxu0 0.0
      %4240 = vmatprep.subr.mxu0 0.0
      %4241 = vmatpush1.msra.mxu0 0.0
      %4242 = vmatprep.subr.mxu0 0.0
      %4243 = vmatpush1.msra.mxu0 0.0
      %4244 = vmatprep.subr.mxu0 0.0
      %4245 = vmatpush1.msra.mxu0 0.0
      %4246 = vmatprep.subr.mxu0 0.0
      %4247 = vmatpush1.msra.mxu0 0.0
      %4248 = vmatprep.subr.mxu0 0.0
      %4249 = vmatpush1.msra.mxu0 0.0
      %4250 = vmatprep.mubr.f32.mxu0 0.0
      %4251 = vmatmul.mubr.f32.gmra.mrb[0].mxu0 %v4113
      %v4252 = vpop.f32.mrb[0].mxu0
      %v4253 = vadd.f32 0.0, %v4252
      %v4254 = vpop.f32.mrb[0].mxu0
      %4255 = vdwg.mxu0
      %v4256 = vadd.f32 %v4096, %v4182
      %v4257 = vadd.f32 %v4097, %v4184
      %v4258 = vadd.f32 %v4098, %v4253
      %s4259 = scalar_lea.vmem %s1, 192
      %v4260 = vld [vmem:[%s4259] sm:$0xff]
      %4261 = vrot.lane.b32.xlu0 %v3299, 111
      %v4262 = vpop.permute.xlu0 %4261
      %4263 = vrot.lane.b32.xlu0 %v3300, 111
      %v4264 = vpop.permute.xlu0 %4263
      %4265 = vrot.lane.b32.xlu0 %v3301, 111
      %v4266 = vpop.permute.xlu0 %4265
      %v4267 = vsel %vm1286, %v4262, %v4264
      %v4268 = vsel %vm1286, %v4264, %v4266
      %v4273 = vsel %vm336, %v4260, 0
      %4275 = vmatprep.subr.mxu0 %v4268
      %4276 = vmatpush1.msra.mxu0 %v4267
      %4277 = vmatprep.subr.mxu0 0.0
      %4278 = vmatpush1.msra.mxu0 0.0
      %4279 = vmatprep.subr.mxu0 0.0
      %4280 = vmatpush1.msra.mxu0 0.0
      %4281 = vmatprep.subr.mxu0 0.0
      %4282 = vmatpush1.msra.mxu0 0.0
      %4283 = vmatprep.subr.mxu0 0.0
      %4284 = vmatpush1.msra.mxu0 0.0
      %4285 = vmatprep.subr.mxu0 0.0
      %4286 = vmatpush1.msra.mxu0 0.0
      %4287 = vmatprep.subr.mxu0 0.0
      %4288 = vmatpush1.msra.mxu0 0.0
      %4289 = vmatprep.subr.mxu0 0.0
      %4290 = vmatpush1.msra.mxu0 0.0
      %4291 = vmatprep.subr.mxu0 0.0
      %4292 = vmatpush1.msra.mxu0 0.0
      %4293 = vmatprep.subr.mxu0 0.0
      %4294 = vmatpush1.msra.mxu0 0.0
      %4295 = vmatprep.subr.mxu0 0.0
      %4296 = vmatpush1.msra.mxu0 0.0
      %4297 = vmatprep.subr.mxu0 0.0
      %4298 = vmatpush1.msra.mxu0 0.0
      %4299 = vmatprep.subr.mxu0 0.0
      %4300 = vmatpush1.msra.mxu0 0.0
      %4301 = vmatprep.subr.mxu0 0.0
      %4302 = vmatpush1.msra.mxu0 0.0
      %4303 = vmatprep.subr.mxu0 0.0
      %4304 = vmatpush1.msra.mxu0 0.0
      %4305 = vmatprep.subr.mxu0 0.0
      %4306 = vmatpush1.msra.mxu0 0.0
      %4307 = vmatprep.subr.mxu0 0.0
      %4308 = vmatpush1.msra.mxu0 0.0
      %4309 = vmatprep.subr.mxu0 0.0
      %4310 = vmatpush1.msra.mxu0 0.0
      %4311 = vmatprep.subr.mxu0 0.0
      %4312 = vmatpush1.msra.mxu0 0.0
      %4313 = vmatprep.subr.mxu0 0.0
      %4314 = vmatpush1.msra.mxu0 0.0
      %4315 = vmatprep.subr.mxu0 0.0
      %4316 = vmatpush1.msra.mxu0 0.0
      %4317 = vmatprep.subr.mxu0 0.0
      %4318 = vmatpush1.msra.mxu0 0.0
      %4319 = vmatprep.subr.mxu0 0.0
      %4320 = vmatpush1.msra.mxu0 0.0
      %4321 = vmatprep.subr.mxu0 0.0
      %4322 = vmatpush1.msra.mxu0 0.0
      %4323 = vmatprep.subr.mxu0 0.0
      %4324 = vmatpush1.msra.mxu0 0.0
      %4325 = vmatprep.subr.mxu0 0.0
      %4326 = vmatpush1.msra.mxu0 0.0
      %4327 = vmatprep.subr.mxu0 0.0
      %4328 = vmatpush1.msra.mxu0 0.0
      %4329 = vmatprep.subr.mxu0 0.0
      %4330 = vmatpush1.msra.mxu0 0.0
      %4331 = vmatprep.subr.mxu0 0.0
      %4332 = vmatpush1.msra.mxu0 0.0
      %4333 = vmatprep.subr.mxu0 0.0
      %4334 = vmatpush1.msra.mxu0 0.0
      %4335 = vmatprep.subr.mxu0 0.0
      %4336 = vmatpush1.msra.mxu0 0.0
      %4337 = vmatprep.subr.mxu0 0.0
      %4338 = vmatpush1.msra.mxu0 0.0
      %4339 = vmatprep.mubr.f32.mxu0 0.0
      %4340 = vmatmul.mubr.f32.gmra.mrb[0].mxu0 %v4273
      %v4341 = vpop.f32.mrb[0].mxu0
      %v4342 = vadd.f32 0.0, %v4341
      %v4343 = vpop.f32.mrb[0].mxu0
      %v4344 = vadd.f32 0.0, %v4343
      %4345 = vdwg.mxu0
      %4346 = vmatprep.subr.mxu0 0.0
      %4347 = vmatpush1.msra.mxu0 %v4266
      %4348 = vmatprep.subr.mxu0 0.0
      %4349 = vmatpush1.msra.mxu0 0.0
      %4350 = vmatprep.subr.mxu0 0.0
      %4351 = vmatpush1.msra.mxu0 0.0
      %4352 = vmatprep.subr.mxu0 0.0
      %4353 = vmatpush1.msra.mxu0 0.0
      %4354 = vmatprep.subr.mxu0 0.0
      %4355 = vmatpush1.msra.mxu0 0.0
      %4356 = vmatprep.subr.mxu0 0.0
      %4357 = vmatpush1.msra.mxu0 0.0
      %4358 = vmatprep.subr.mxu0 0.0
      %4359 = vmatpush1.msra.mxu0 0.0
      %4360 = vmatprep.subr.mxu0 0.0
      %4361 = vmatpush1.msra.mxu0 0.0
      %4362 = vmatprep.subr.mxu0 0.0
      %4363 = vmatpush1.msra.mxu0 0.0
      %4364 = vmatprep.subr.mxu0 0.0
      %4365 = vmatpush1.msra.mxu0 0.0
      %4366 = vmatprep.subr.mxu0 0.0
      %4367 = vmatpush1.msra.mxu0 0.0
      %4368 = vmatprep.subr.mxu0 0.0
      %4369 = vmatpush1.msra.mxu0 0.0
      %4370 = vmatprep.subr.mxu0 0.0
      %4371 = vmatpush1.msra.mxu0 0.0
      %4372 = vmatprep.subr.mxu0 0.0
      %4373 = vmatpush1.msra.mxu0 0.0
      %4374 = vmatprep.subr.mxu0 0.0
      %4375 = vmatpush1.msra.mxu0 0.0
      %4376 = vmatprep.subr.mxu0 0.0
      %4377 = vmatpush1.msra.mxu0 0.0
      %4378 = vmatprep.subr.mxu0 0.0
      %4379 = vmatpush1.msra.mxu0 0.0
      %4380 = vmatprep.subr.mxu0 0.0
      %4381 = vmatpush1.msra.mxu0 0.0
      %4382 = vmatprep.subr.mxu0 0.0
      %4383 = vmatpush1.msra.mxu0 0.0
      %4384 = vmatprep.subr.mxu0 0.0
      %4385 = vmatpush1.msra.mxu0 0.0
      %4386 = vmatprep.subr.mxu0 0.0
      %4387 = vmatpush1.msra.mxu0 0.0
      %4388 = vmatprep.subr.mxu0 0.0
      %4389 = vmatpush1.msra.mxu0 0.0
      %4390 = vmatprep.subr.mxu0 0.0
      %4391 = vmatpush1.msra.mxu0 0.0
      %4392 = vmatprep.subr.mxu0 0.0
      %4393 = vmatpush1.msra.mxu0 0.0
      %4394 = vmatprep.subr.mxu0 0.0
      %4395 = vmatpush1.msra.mxu0 0.0
      %4396 = vmatprep.subr.mxu0 0.0
      %4397 = vmatpush1.msra.mxu0 0.0
      %4398 = vmatprep.subr.mxu0 0.0
      %4399 = vmatpush1.msra.mxu0 0.0
      %4400 = vmatprep.subr.mxu0 0.0
      %4401 = vmatpush1.msra.mxu0 0.0
      %4402 = vmatprep.subr.mxu0 0.0
      %4403 = vmatpush1.msra.mxu0 0.0
      %4404 = vmatprep.subr.mxu0 0.0
      %4405 = vmatpush1.msra.mxu0 0.0
      %4406 = vmatprep.subr.mxu0 0.0
      %4407 = vmatpush1.msra.mxu0 0.0
      %4408 = vmatprep.subr.mxu0 0.0
      %4409 = vmatpush1.msra.mxu0 0.0
      %4410 = vmatprep.mubr.f32.mxu0 0.0
      %4411 = vmatmul.mubr.f32.gmra.mrb[0].mxu0 %v4273
      %v4412 = vpop.f32.mrb[0].mxu0
      %v4413 = vadd.f32 0.0, %v4412
      %v4414 = vpop.f32.mrb[0].mxu0
      %4415 = vdwg.mxu0
      %v4416 = vadd.f32 %v4256, %v4342
      %v4417 = vadd.f32 %v4257, %v4344
      %v4418 = vadd.f32 %v4258, %v4413
      %s4419 = scalar_lea.vmem %s1, 200
      %v4420 = vld [vmem:[%s4419] sm:$0xff]
      %4421 = vrot.lane.b32.xlu0 %v3299, 110
      %v4422 = vpop.permute.xlu0 %4421
      %4423 = vrot.lane.b32.xlu0 %v3300, 110
      %v4424 = vpop.permute.xlu0 %4423
      %4425 = vrot.lane.b32.xlu0 %v3301, 110
      %v4426 = vpop.permute.xlu0 %4425
      %v4427 = vsel %vm1447, %v4422, %v4424
      %v4428 = vsel %vm1447, %v4424, %v4426
      %v4433 = vsel %vm336, %v4420, 0
      %4435 = vmatprep.subr.mxu0 %v4428
      %4436 = vmatpush1.msra.mxu0 %v4427
      %4437 = vmatprep.subr.mxu0 0.0
      %4438 = vmatpush1.msra.mxu0 0.0
      %4439 = vmatprep.subr.mxu0 0.0
      %4440 = vmatpush1.msra.mxu0 0.0
      %4441 = vmatprep.subr.mxu0 0.0
      %4442 = vmatpush1.msra.mxu0 0.0
      %4443 = vmatprep.subr.mxu0 0.0
      %4444 = vmatpush1.msra.mxu0 0.0
      %4445 = vmatprep.subr.mxu0 0.0
      %4446 = vmatpush1.msra.mxu0 0.0
      %4447 = vmatprep.subr.mxu0 0.0
      %4448 = vmatpush1.msra.mxu0 0.0
      %4449 = vmatprep.subr.mxu0 0.0
      %4450 = vmatpush1.msra.mxu0 0.0
      %4451 = vmatprep.subr.mxu0 0.0
      %4452 = vmatpush1.msra.mxu0 0.0
      %4453 = vmatprep.subr.mxu0 0.0
      %4454 = vmatpush1.msra.mxu0 0.0
      %4455 = vmatprep.subr.mxu0 0.0
      %4456 = vmatpush1.msra.mxu0 0.0
      %4457 = vmatprep.subr.mxu0 0.0
      %4458 = vmatpush1.msra.mxu0 0.0
      %4459 = vmatprep.subr.mxu0 0.0
      %4460 = vmatpush1.msra.mxu0 0.0
      %4461 = vmatprep.subr.mxu0 0.0
      %4462 = vmatpush1.msra.mxu0 0.0
      %4463 = vmatprep.subr.mxu0 0.0
      %4464 = vmatpush1.msra.mxu0 0.0
      %4465 = vmatprep.subr.mxu0 0.0
      %4466 = vmatpush1.msra.mxu0 0.0
      %4467 = vmatprep.subr.mxu0 0.0
      %4468 = vmatpush1.msra.mxu0 0.0
      %4469 = vmatprep.subr.mxu0 0.0
      %4470 = vmatpush1.msra.mxu0 0.0
      %4471 = vmatprep.subr.mxu0 0.0
      %4472 = vmatpush1.msra.mxu0 0.0
      %4473 = vmatprep.subr.mxu0 0.0
      %4474 = vmatpush1.msra.mxu0 0.0
      %4475 = vmatprep.subr.mxu0 0.0
      %4476 = vmatpush1.msra.mxu0 0.0
      %4477 = vmatprep.subr.mxu0 0.0
      %4478 = vmatpush1.msra.mxu0 0.0
      %4479 = vmatprep.subr.mxu0 0.0
      %4480 = vmatpush1.msra.mxu0 0.0
      %4481 = vmatprep.subr.mxu0 0.0
      %4482 = vmatpush1.msra.mxu0 0.0
      %4483 = vmatprep.subr.mxu0 0.0
      %4484 = vmatpush1.msra.mxu0 0.0
      %4485 = vmatprep.subr.mxu0 0.0
      %4486 = vmatpush1.msra.mxu0 0.0
      %4487 = vmatprep.subr.mxu0 0.0
      %4488 = vmatpush1.msra.mxu0 0.0
      %4489 = vmatprep.subr.mxu0 0.0
      %4490 = vmatpush1.msra.mxu0 0.0
      %4491 = vmatprep.subr.mxu0 0.0
      %4492 = vmatpush1.msra.mxu0 0.0
      %4493 = vmatprep.subr.mxu0 0.0
      %4494 = vmatpush1.msra.mxu0 0.0
      %4495 = vmatprep.subr.mxu0 0.0
      %4496 = vmatpush1.msra.mxu0 0.0
      %4497 = vmatprep.subr.mxu0 0.0
      %4498 = vmatpush1.msra.mxu0 0.0
      %4499 = vmatprep.mubr.f32.mxu0 0.0
      %4500 = vmatmul.mubr.f32.gmra.mrb[0].mxu0 %v4433
      %v4501 = vpop.f32.mrb[0].mxu0
      %v4502 = vadd.f32 0.0, %v4501
      %v4503 = vpop.f32.mrb[0].mxu0
      %v4504 = vadd.f32 0.0, %v4503
      %4505 = vdwg.mxu0
      %4506 = vmatprep.subr.mxu0 0.0
      %4507 = vmatpush1.msra.mxu0 %v4426
      %4508 = vmatprep.subr.mxu0 0.0
      %4509 = vmatpush1.msra.mxu0 0.0
      %4510 = vmatprep.subr.mxu0 0.0
      %4511 = vmatpush1.msra.mxu0 0.0
      %4512 = vmatprep.subr.mxu0 0.0
      %4513 = vmatpush1.msra.mxu0 0.0
      %4514 = vmatprep.subr.mxu0 0.0
      %4515 = vmatpush1.msra.mxu0 0.0
      %4516 = vmatprep.subr.mxu0 0.0
      %4517 = vmatpush1.msra.mxu0 0.0
      %4518 = vmatprep.subr.mxu0 0.0
      %4519 = vmatpush1.msra.mxu0 0.0
      %4520 = vmatprep.subr.mxu0 0.0
      %4521 = vmatpush1.msra.mxu0 0.0
      %4522 = vmatprep.subr.mxu0 0.0
      %4523 = vmatpush1.msra.mxu0 0.0
      %4524 = vmatprep.subr.mxu0 0.0
      %4525 = vmatpush1.msra.mxu0 0.0
      %4526 = vmatprep.subr.mxu0 0.0
      %4527 = vmatpush1.msra.mxu0 0.0
      %4528 = vmatprep.subr.mxu0 0.0
      %4529 = vmatpush1.msra.mxu0 0.0
      %4530 = vmatprep.subr.mxu0 0.0
      %4531 = vmatpush1.msra.mxu0 0.0
      %4532 = vmatprep.subr.mxu0 0.0
      %4533 = vmatpush1.msra.mxu0 0.0
      %4534 = vmatprep.subr.mxu0 0.0
      %4535 = vmatpush1.msra.mxu0 0.0
      %4536 = vmatprep.subr.mxu0 0.0
      %4537 = vmatpush1.msra.mxu0 0.0
      %4538 = vmatprep.subr.mxu0 0.0
      %4539 = vmatpush1.msra.mxu0 0.0
      %4540 = vmatprep.subr.mxu0 0.0
      %4541 = vmatpush1.msra.mxu0 0.0
      %4542 = vmatprep.subr.mxu0 0.0
      %4543 = vmatpush1.msra.mxu0 0.0
      %4544 = vmatprep.subr.mxu0 0.0
      %4545 = vmatpush1.msra.mxu0 0.0
      %4546 = vmatprep.subr.mxu0 0.0
      %4547 = vmatpush1.msra.mxu0 0.0
      %4548 = vmatprep.subr.mxu0 0.0
      %4549 = vmatpush1.msra.mxu0 0.0
      %4550 = vmatprep.subr.mxu0 0.0
      %4551 = vmatpush1.msra.mxu0 0.0
      %4552 = vmatprep.subr.mxu0 0.0
      %4553 = vmatpush1.msra.mxu0 0.0
      %4554 = vmatprep.subr.mxu0 0.0
      %4555 = vmatpush1.msra.mxu0 0.0
      %4556 = vmatprep.subr.mxu0 0.0
      %4557 = vmatpush1.msra.mxu0 0.0
      %4558 = vmatprep.subr.mxu0 0.0
      %4559 = vmatpush1.msra.mxu0 0.0
      %4560 = vmatprep.subr.mxu0 0.0
      %4561 = vmatpush1.msra.mxu0 0.0
      %4562 = vmatprep.subr.mxu0 0.0
      %4563 = vmatpush1.msra.mxu0 0.0
      %4564 = vmatprep.subr.mxu0 0.0
      %4565 = vmatpush1.msra.mxu0 0.0
      %4566 = vmatprep.subr.mxu0 0.0
      %4567 = vmatpush1.msra.mxu0 0.0
      %4568 = vmatprep.subr.mxu0 0.0
      %4569 = vmatpush1.msra.mxu0 0.0
      %4570 = vmatprep.mubr.f32.mxu0 0.0
      %4571 = vmatmul.mubr.f32.gmra.mrb[0].mxu0 %v4433
      %v4572 = vpop.f32.mrb[0].mxu0
      %v4573 = vadd.f32 0.0, %v4572
      %v4574 = vpop.f32.mrb[0].mxu0
      %4575 = vdwg.mxu0
      %v4576 = vadd.f32 %v4416, %v4502
      %v4577 = vadd.f32 %v4417, %v4504
      %v4578 = vadd.f32 %v4418, %v4573
      %s4579 = scalar_lea.vmem %s1, 208
      %v4580 = vld [vmem:[%s4579] sm:$0xff]
      %4581 = vrot.lane.b32.xlu0 %v3299, 109
      %v4582 = vpop.permute.xlu0 %4581
      %4583 = vrot.lane.b32.xlu0 %v3300, 109
      %v4584 = vpop.permute.xlu0 %4583
      %4585 = vrot.lane.b32.xlu0 %v3301, 109
      %v4586 = vpop.permute.xlu0 %4585
      %v4587 = vsel %vm1608, %v4582, %v4584
      %v4588 = vsel %vm1608, %v4584, %v4586
      %v4593 = vsel %vm336, %v4580, 0
      %4595 = vmatprep.subr.mxu0 %v4588
      %4596 = vmatpush1.msra.mxu0 %v4587
      %4597 = vmatprep.subr.mxu0 0.0
      %4598 = vmatpush1.msra.mxu0 0.0
      %4599 = vmatprep.subr.mxu0 0.0
      %4600 = vmatpush1.msra.mxu0 0.0
      %4601 = vmatprep.subr.mxu0 0.0
      %4602 = vmatpush1.msra.mxu0 0.0
      %4603 = vmatprep.subr.mxu0 0.0
      %4604 = vmatpush1.msra.mxu0 0.0
      %4605 = vmatprep.subr.mxu0 0.0
      %4606 = vmatpush1.msra.mxu0 0.0
      %4607 = vmatprep.subr.mxu0 0.0
      %4608 = vmatpush1.msra.mxu0 0.0
      %4609 = vmatprep.subr.mxu0 0.0
      %4610 = vmatpush1.msra.mxu0 0.0
      %4611 = vmatprep.subr.mxu0 0.0
      %4612 = vmatpush1.msra.mxu0 0.0
      %4613 = vmatprep.subr.mxu0 0.0
      %4614 = vmatpush1.msra.mxu0 0.0
      %4615 = vmatprep.subr.mxu0 0.0
      %4616 = vmatpush1.msra.mxu0 0.0
      %4617 = vmatprep.subr.mxu0 0.0
      %4618 = vmatpush1.msra.mxu0 0.0
      %4619 = vmatprep.subr.mxu0 0.0
      %4620 = vmatpush1.msra.mxu0 0.0
      %4621 = vmatprep.subr.mxu0 0.0
      %4622 = vmatpush1.msra.mxu0 0.0
      %4623 = vmatprep.subr.mxu0 0.0
      %4624 = vmatpush1.msra.mxu0 0.0
      %4625 = vmatprep.subr.mxu0 0.0
      %4626 = vmatpush1.msra.mxu0 0.0
      %4627 = vmatprep.subr.mxu0 0.0
      %4628 = vmatpush1.msra.mxu0 0.0
      %4629 = vmatprep.subr.mxu0 0.0
      %4630 = vmatpush1.msra.mxu0 0.0
      %4631 = vmatprep.subr.mxu0 0.0
      %4632 = vmatpush1.msra.mxu0 0.0
      %4633 = vmatprep.subr.mxu0 0.0
      %4634 = vmatpush1.msra.mxu0 0.0
      %4635 = vmatprep.subr.mxu0 0.0
      %4636 = vmatpush1.msra.mxu0 0.0
      %4637 = vmatprep.subr.mxu0 0.0
      %4638 = vmatpush1.msra.mxu0 0.0
      %4639 = vmatprep.subr.mxu0 0.0
      %4640 = vmatpush1.msra.mxu0 0.0
      %4641 = vmatprep.subr.mxu0 0.0
      %4642 = vmatpush1.msra.mxu0 0.0
      %4643 = vmatprep.subr.mxu0 0.0
      %4644 = vmatpush1.msra.mxu0 0.0
      %4645 = vmatprep.subr.mxu0 0.0
      %4646 = vmatpush1.msra.mxu0 0.0
      %4647 = vmatprep.subr.mxu0 0.0
      %4648 = vmatpush1.msra.mxu0 0.0
      %4649 = vmatprep.subr.mxu0 0.0
      %4650 = vmatpush1.msra.mxu0 0.0
      %4651 = vmatprep.subr.mxu0 0.0
      %4652 = vmatpush1.msra.mxu0 0.0
      %4653 = vmatprep.subr.mxu0 0.0
      %4654 = vmatpush1.msra.mxu0 0.0
      %4655 = vmatprep.subr.mxu0 0.0
      %4656 = vmatpush1.msra.mxu0 0.0
      %4657 = vmatprep.subr.mxu0 0.0
      %4658 = vmatpush1.msra.mxu0 0.0
      %4659 = vmatprep.mubr.f32.mxu0 0.0
      %4660 = vmatmul.mubr.f32.gmra.mrb[0].mxu0 %v4593
      %v4661 = vpop.f32.mrb[0].mxu0
      %v4662 = vadd.f32 0.0, %v4661
      %v4663 = vpop.f32.mrb[0].mxu0
      %v4664 = vadd.f32 0.0, %v4663
      %4665 = vdwg.mxu0
      %4666 = vmatprep.subr.mxu0 0.0
      %4667 = vmatpush1.msra.mxu0 %v4586
      %4668 = vmatprep.subr.mxu0 0.0
      %4669 = vmatpush1.msra.mxu0 0.0
      %4670 = vmatprep.subr.mxu0 0.0
      %4671 = vmatpush1.msra.mxu0 0.0
      %4672 = vmatprep.subr.mxu0 0.0
      %4673 = vmatpush1.msra.mxu0 0.0
      %4674 = vmatprep.subr.mxu0 0.0
      %4675 = vmatpush1.msra.mxu0 0.0
      %4676 = vmatprep.subr.mxu0 0.0
      %4677 = vmatpush1.msra.mxu0 0.0
      %4678 = vmatprep.subr.mxu0 0.0
      %4679 = vmatpush1.msra.mxu0 0.0
      %4680 = vmatprep.subr.mxu0 0.0
      %4681 = vmatpush1.msra.mxu0 0.0
      %4682 = vmatprep.subr.mxu0 0.0
      %4683 = vmatpush1.msra.mxu0 0.0
      %4684 = vmatprep.subr.mxu0 0.0
      %4685 = vmatpush1.msra.mxu0 0.0
      %4686 = vmatprep.subr.mxu0 0.0
      %4687 = vmatpush1.msra.mxu0 0.0
      %4688 = vmatprep.subr.mxu0 0.0
      %4689 = vmatpush1.msra.mxu0 0.0
      %4690 = vmatprep.subr.mxu0 0.0
      %4691 = vmatpush1.msra.mxu0 0.0
      %4692 = vmatprep.subr.mxu0 0.0
      %4693 = vmatpush1.msra.mxu0 0.0
      %4694 = vmatprep.subr.mxu0 0.0
      %4695 = vmatpush1.msra.mxu0 0.0
      %4696 = vmatprep.subr.mxu0 0.0
      %4697 = vmatpush1.msra.mxu0 0.0
      %4698 = vmatprep.subr.mxu0 0.0
      %4699 = vmatpush1.msra.mxu0 0.0
      %4700 = vmatprep.subr.mxu0 0.0
      %4701 = vmatpush1.msra.mxu0 0.0
      %4702 = vmatprep.subr.mxu0 0.0
      %4703 = vmatpush1.msra.mxu0 0.0
      %4704 = vmatprep.subr.mxu0 0.0
      %4705 = vmatpush1.msra.mxu0 0.0
      %4706 = vmatprep.subr.mxu0 0.0
      %4707 = vmatpush1.msra.mxu0 0.0
      %4708 = vmatprep.subr.mxu0 0.0
      %4709 = vmatpush1.msra.mxu0 0.0
      %4710 = vmatprep.subr.mxu0 0.0
      %4711 = vmatpush1.msra.mxu0 0.0
      %4712 = vmatprep.subr.mxu0 0.0
      %4713 = vmatpush1.msra.mxu0 0.0
      %4714 = vmatprep.subr.mxu0 0.0
      %4715 = vmatpush1.msra.mxu0 0.0
      %4716 = vmatprep.subr.mxu0 0.0
      %4717 = vmatpush1.msra.mxu0 0.0
      %4718 = vmatprep.subr.mxu0 0.0
      %4719 = vmatpush1.msra.mxu0 0.0
      %4720 = vmatprep.subr.mxu0 0.0
      %4721 = vmatpush1.msra.mxu0 0.0
      %4722 = vmatprep.subr.mxu0 0.0
      %4723 = vmatpush1.msra.mxu0 0.0
      %4724 = vmatprep.subr.mxu0 0.0
      %4725 = vmatpush1.msra.mxu0 0.0
      %4726 = vmatprep.subr.mxu0 0.0
      %4727 = vmatpush1.msra.mxu0 0.0
      %4728 = vmatprep.subr.mxu0 0.0
      %4729 = vmatpush1.msra.mxu0 0.0
      %4730 = vmatprep.mubr.f32.mxu0 0.0
      %4731 = vmatmul.mubr.f32.gmra.mrb[0].mxu0 %v4593
      %v4732 = vpop.f32.mrb[0].mxu0
      %v4733 = vadd.f32 0.0, %v4732
      %v4734 = vpop.f32.mrb[0].mxu0
      %4735 = vdwg.mxu0
      %v4736 = vadd.f32 %v4576, %v4662
      %v4737 = vadd.f32 %v4577, %v4664
      %v4738 = vadd.f32 %v4578, %v4733
      %s4739 = scalar_lea.vmem %s2, 16
      %v4740 = vld [vmem:[%s4739] sm:$0xff]
      %4742 = vset.pattern.permute.xlu0 0
      %4743 = vperm.xlu0 %4742, %v4740
      %v4744 = vpop.permute.xlu0 %4743
      %v4746 = vadd.f32 %v4736, %v4744
      %v4747 = vadd.f32 %v4737, %v4744
      %v4748 = vadd.f32 %v4738, %v4744
      %v4749 = vadd.f32 %v1767, %v4746
      %v4750 = vadd.f32 %v1768, %v4747
      %v4751 = vadd.f32 %v1769, %v4748
      %s4752 = scalar_lea.vmem %s3, 16
      %v4753 = vld [vmem:[%s4752] sm:$0xff]
      %4755 = vset.pattern.permute.xlu0 0
      %4756 = vperm.xlu0 %4755, %v4753
      %v4757 = vpop.permute.xlu0 %4756
      %v4759 = vmul.f32 %v4749, %v4757
      %v4760 = vmul.f32 %v4750, %v4757
      %v4761 = vmul.f32 %v4751, %v4757
      %s4762 = scalar_lea.vmem %s4, 16
      %v4763 = vld [vmem:[%s4762] sm:$0xff]
      %4765 = vset.pattern.permute.xlu0 0
      %4766 = vperm.xlu0 %4765, %v4763
      %v4767 = vpop.permute.xlu0 %4766
      %v4769 = vadd.f32 %v4759, %v4767
      %v4770 = vadd.f32 %v4760, %v4767
      %v4771 = vadd.f32 %v4761, %v4767
      %v4772 = vmax.f32 %v4769, 0.0
      %v4773 = vmax.f32 %v4770, 0.0
      %v4774 = vmax.f32 %v4771, 0.0
      %v4775 = vmul.f32 %v4772, %v1795
      %v4776 = vmul.f32 %v4773, %v1799
      %v4777 = vmul.f32 %v4774, %v1803
      %4778 = vst [vmem:[#allocation2 + $0x8] sm:$0xff] %v4775
      %4779 = vst [vmem:[#allocation2 + $0x10] sm:$0xff] %v4776
      %4780 = vst.msk [vmem:[#allocation2 + $0x18] sm:$0xff] %vm1812, %v4777
      %s4781 = scalar_lea.vmem %s1, 216
      %v4782 = vld [vmem:[%s4781] sm:$0xff]
      %v4783 = vld [vmem:[#allocation2] sm:$0xff]
      %v4784 = vld [vmem:[#allocation2 + $0x8] sm:$0xff]
      %v4785 = vld [vmem:[#allocation2 + $0x10] sm:$0xff]
      %v4786 = vld [vmem:[#allocation2 + $0x18] sm:$0xff]
      %s4787 = scalar_lea.vmem %s1, 224
      %v4788 = vld [vmem:[%s4787] sm:$0xff]
      %4793 = vrot.lane.b32.xlu0 %v4783, 18
      %v4794 = vpop.permute.xlu0 %4793
      %4795 = vrot.lane.b32.xlu0 %v4784, 18
      %v4796 = vpop.permute.xlu0 %4795
      %4797 = vrot.lane.b32.xlu0 %v4785, 18
      %v4798 = vpop.permute.xlu0 %4797
      %4799 = vrot.lane.b32.xlu0 %v4786, 18
      %v4800 = vpop.permute.xlu0 %4799
      %v4801 = vsel %vm329, %v4794, %v4796
      %v4802 = vsel %vm329, %v4796, %v4798
      %v4803 = vsel %vm329, %v4798, %v4800
      %v4808 = vsel %vm336, %v4788, 0
      %4810 = vmatprep.subr.mxu0 %v4802
      %4811 = vmatpush1.msra.mxu0 %v4801
      %4812 = vmatprep.subr.mxu0 0.0
      %4813 = vmatpush1.msra.mxu0 0.0
      %4814 = vmatprep.subr.mxu0 0.0
      %4815 = vmatpush1.msra.mxu0 0.0
      %4816 = vmatprep.subr.mxu0 0.0
      %4817 = vmatpush1.msra.mxu0 0.0
      %4818 = vmatprep.subr.mxu0 0.0
      %4819 = vmatpush1.msra.mxu0 0.0
      %4820 = vmatprep.subr.mxu0 0.0
      %4821 = vmatpush1.msra.mxu0 0.0
      %4822 = vmatprep.subr.mxu0 0.0
      %4823 = vmatpush1.msra.mxu0 0.0
      %4824 = vmatprep.subr.mxu0 0.0
      %4825 = vmatpush1.msra.mxu0 0.0
      %4826 = vmatprep.subr.mxu0 0.0
      %4827 = vmatpush1.msra.mxu0 0.0
      %4828 = vmatprep.subr.mxu0 0.0
      %4829 = vmatpush1.msra.mxu0 0.0
      %4830 = vmatprep.subr.mxu0 0.0
      %4831 = vmatpush1.msra.mxu0 0.0
      %4832 = vmatprep.subr.mxu0 0.0
      %4833 = vmatpush1.msra.mxu0 0.0
      %4834 = vmatprep.subr.mxu0 0.0
      %4835 = vmatpush1.msra.mxu0 0.0
      %4836 = vmatprep.subr.mxu0 0.0
      %4837 = vmatpush1.msra.mxu0 0.0
      %4838 = vmatprep.subr.mxu0 0.0
      %4839 = vmatpush1.msra.mxu0 0.0
      %4840 = vmatprep.subr.mxu0 0.0
      %4841 = vmatpush1.msra.mxu0 0.0
      %4842 = vmatprep.subr.mxu0 0.0
      %4843 = vmatpush1.msra.mxu0 0.0
      %4844 = vmatprep.subr.mxu0 0.0
      %4845 = vmatpush1.msra.mxu0 0.0
      %4846 = vmatprep.subr.mxu0 0.0
      %4847 = vmatpush1.msra.mxu0 0.0
      %4848 = vmatprep.subr.mxu0 0.0
      %4849 = vmatpush1.msra.mxu0 0.0
      %4850 = vmatprep.subr.mxu0 0.0
      %4851 = vmatpush1.msra.mxu0 0.0
      %4852 = vmatprep.subr.mxu0 0.0
      %4853 = vmatpush1.msra.mxu0 0.0
      %4854 = vmatprep.subr.mxu0 0.0
      %4855 = vmatpush1.msra.mxu0 0.0
      %4856 = vmatprep.subr.mxu0 0.0
      %4857 = vmatpush1.msra.mxu0 0.0
      %4858 = vmatprep.subr.mxu0 0.0
      %4859 = vmatpush1.msra.mxu0 0.0
      %4860 = vmatprep.subr.mxu0 0.0
      %4861 = vmatpush1.msra.mxu0 0.0
      %4862 = vmatprep.subr.mxu0 0.0
      %4863 = vmatpush1.msra.mxu0 0.0
      %4864 = vmatprep.subr.mxu0 0.0
      %4865 = vmatpush1.msra.mxu0 0.0
      %4866 = vmatprep.subr.mxu0 0.0
      %4867 = vmatpush1.msra.mxu0 0.0
      %4868 = vmatprep.subr.mxu0 0.0
      %4869 = vmatpush1.msra.mxu0 0.0
      %4870 = vmatprep.subr.mxu0 0.0
      %4871 = vmatpush1.msra.mxu0 0.0
      %4872 = vmatprep.subr.mxu0 0.0
      %4873 = vmatpush1.msra.mxu0 0.0
      %4874 = vmatprep.mubr.f32.mxu0 0.0
      %4875 = vmatmul.mubr.f32.gmra.mrb[0].mxu0 %v4808
      %v4876 = vpop.f32.mrb[0].mxu0
      %v4877 = vadd.f32 0.0, %v4876
      %v4878 = vpop.f32.mrb[0].mxu0
      %v4879 = vadd.f32 0.0, %v4878
      %4880 = vdwg.mxu0
      %4881 = vmatprep.subr.mxu0 0.0
      %4882 = vmatpush1.msra.mxu0 %v4803
      %4883 = vmatprep.subr.mxu0 0.0
      %4884 = vmatpush1.msra.mxu0 0.0
      %4885 = vmatprep.subr.mxu0 0.0
      %4886 = vmatpush1.msra.mxu0 0.0
      %4887 = vmatprep.subr.mxu0 0.0
      %4888 = vmatpush1.msra.mxu0 0.0
      %4889 = vmatprep.subr.mxu0 0.0
      %4890 = vmatpush1.msra.mxu0 0.0
      %4891 = vmatprep.subr.mxu0 0.0
      %4892 = vmatpush1.msra.mxu0 0.0
      %4893 = vmatprep.subr.mxu0 0.0
      %4894 = vmatpush1.msra.mxu0 0.0
      %4895 = vmatprep.subr.mxu0 0.0
      %4896 = vmatpush1.msra.mxu0 0.0
      %4897 = vmatprep.subr.mxu0 0.0
      %4898 = vmatpush1.msra.mxu0 0.0
      %4899 = vmatprep.subr.mxu0 0.0
      %4900 = vmatpush1.msra.mxu0 0.0
      %4901 = vmatprep.subr.mxu0 0.0
      %4902 = vmatpush1.msra.mxu0 0.0
      %4903 = vmatprep.subr.mxu0 0.0
      %4904 = vmatpush1.msra.mxu0 0.0
      %4905 = vmatprep.subr.mxu0 0.0
      %4906 = vmatpush1.msra.mxu0 0.0
      %4907 = vmatprep.subr.mxu0 0.0
      %4908 = vmatpush1.msra.mxu0 0.0
      %4909 = vmatprep.subr.mxu0 0.0
      %4910 = vmatpush1.msra.mxu0 0.0
      %4911 = vmatprep.subr.mxu0 0.0
      %4912 = vmatpush1.msra.mxu0 0.0
      %4913 = vmatprep.subr.mxu0 0.0
      %4914 = vmatpush1.msra.mxu0 0.0
      %4915 = vmatprep.subr.mxu0 0.0
      %4916 = vmatpush1.msra.mxu0 0.0
      %4917 = vmatprep.subr.mxu0 0.0
      %4918 = vmatpush1.msra.mxu0 0.0
      %4919 = vmatprep.subr.mxu0 0.0
      %4920 = vmatpush1.msra.mxu0 0.0
      %4921 = vmatprep.subr.mxu0 0.0
      %4922 = vmatpush1.msra.mxu0 0.0
      %4923 = vmatprep.subr.mxu0 0.0
      %4924 = vmatpush1.msra.mxu0 0.0
      %4925 = vmatprep.subr.mxu0 0.0
      %4926 = vmatpush1.msra.mxu0 0.0
      %4927 = vmatprep.subr.mxu0 0.0
      %4928 = vmatpush1.msra.mxu0 0.0
      %4929 = vmatprep.subr.mxu0 0.0
      %4930 = vmatpush1.msra.mxu0 0.0
      %4931 = vmatprep.subr.mxu0 0.0
      %4932 = vmatpush1.msra.mxu0 0.0
      %4933 = vmatprep.subr.mxu0 0.0
      %4934 = vmatpush1.msra.mxu0 0.0
      %4935 = vmatprep.subr.mxu0 0.0
      %4936 = vmatpush1.msra.mxu0 0.0
      %4937 = vmatprep.subr.mxu0 0.0
      %4938 = vmatpush1.msra.mxu0 0.0
      %4939 = vmatprep.subr.mxu0 0.0
      %4940 = vmatpush1.msra.mxu0 0.0
      %4941 = vmatprep.subr.mxu0 0.0
      %4942 = vmatpush1.msra.mxu0 0.0
      %4943 = vmatprep.subr.mxu0 0.0
      %4944 = vmatpush1.msra.mxu0 0.0
      %4945 = vmatprep.mubr.f32.mxu0 0.0
      %4946 = vmatmul.mubr.f32.gmra.mrb[0].mxu0 %v4808
      %v4947 = vpop.f32.mrb[0].mxu0
      %v4948 = vadd.f32 0.0, %v4947
      %v4949 = vpop.f32.mrb[0].mxu0
      %4950 = vdwg.mxu0
      %4951 = vrot.lane.b32.xlu0 %v4783, 19
      %v4952 = vpop.permute.xlu0 %4951
      %4953 = vrot.lane.b32.xlu0 %v4784, 19
      %v4954 = vpop.permute.xlu0 %4953
      %4955 = vrot.lane.b32.xlu0 %v4785, 19
      %v4956 = vpop.permute.xlu0 %4955
      %4957 = vrot.lane.b32.xlu0 %v4786, 19
      %v4958 = vpop.permute.xlu0 %4957
      %v4959 = vsel %vm489, %v4952, %v4954
      %v4960 = vsel %vm489, %v4954, %v4956
      %v4961 = vsel %vm489, %v4956, %v4958
      %v4966 = vsel %vm336, %v4782, 0
      %4968 = vmatprep.subr.mxu0 %v4960
      %4969 = vmatpush1.msra.mxu0 %v4959
      %4970 = vmatprep.subr.mxu0 0.0
      %4971 = vmatpush1.msra.mxu0 0.0
      %4972 = vmatprep.subr.mxu0 0.0
      %4973 = vmatpush1.msra.mxu0 0.0
      %4974 = vmatprep.subr.mxu0 0.0
      %4975 = vmatpush1.msra.mxu0 0.0
      %4976 = vmatprep.subr.mxu0 0.0
      %4977 = vmatpush1.msra.mxu0 0.0
      %4978 = vmatprep.subr.mxu0 0.0
      %4979 = vmatpush1.msra.mxu0 0.0
      %4980 = vmatprep.subr.mxu0 0.0
      %4981 = vmatpush1.msra.mxu0 0.0
      %4982 = vmatprep.subr.mxu0 0.0
      %4983 = vmatpush1.msra.mxu0 0.0
      %4984 = vmatprep.subr.mxu0 0.0
      %4985 = vmatpush1.msra.mxu0 0.0
      %4986 = vmatprep.subr.mxu0 0.0
      %4987 = vmatpush1.msra.mxu0 0.0
      %4988 = vmatprep.subr.mxu0 0.0
      %4989 = vmatpush1.msra.mxu0 0.0
      %4990 = vmatprep.subr.mxu0 0.0
      %4991 = vmatpush1.msra.mxu0 0.0
      %4992 = vmatprep.subr.mxu0 0.0
      %4993 = vmatpush1.msra.mxu0 0.0
      %4994 = vmatprep.subr.mxu0 0.0
      %4995 = vmatpush1.msra.mxu0 0.0
      %4996 = vmatprep.subr.mxu0 0.0
      %4997 = vmatpush1.msra.mxu0 0.0
      %4998 = vmatprep.subr.mxu0 0.0
      %4999 = vmatpush1.msra.mxu0 0.0
      %5000 = vmatprep.subr.mxu0 0.0
      %5001 = vmatpush1.msra.mxu0 0.0
      %5002 = vmatprep.subr.mxu0 0.0
      %5003 = vmatpush1.msra.mxu0 0.0
      %5004 = vmatprep.subr.mxu0 0.0
      %5005 = vmatpush1.msra.mxu0 0.0
      %5006 = vmatprep.subr.mxu0 0.0
      %5007 = vmatpush1.msra.mxu0 0.0
      %5008 = vmatprep.subr.mxu0 0.0
      %5009 = vmatpush1.msra.mxu0 0.0
      %5010 = vmatprep.subr.mxu0 0.0
      %5011 = vmatpush1.msra.mxu0 0.0
      %5012 = vmatprep.subr.mxu0 0.0
      %5013 = vmatpush1.msra.mxu0 0.0
      %5014 = vmatprep.subr.mxu0 0.0
      %5015 = vmatpush1.msra.mxu0 0.0
      %5016 = vmatprep.subr.mxu0 0.0
      %5017 = vmatpush1.msra.mxu0 0.0
      %5018 = vmatprep.subr.mxu0 0.0
      %5019 = vmatpush1.msra.mxu0 0.0
      %5020 = vmatprep.subr.mxu0 0.0
      %5021 = vmatpush1.msra.mxu0 0.0
      %5022 = vmatprep.subr.mxu0 0.0
      %5023 = vmatpush1.msra.mxu0 0.0
      %5024 = vmatprep.subr.mxu0 0.0
      %5025 = vmatpush1.msra.mxu0 0.0
      %5026 = vmatprep.subr.mxu0 0.0
      %5027 = vmatpush1.msra.mxu0 0.0
      %5028 = vmatprep.subr.mxu0 0.0
      %5029 = vmatpush1.msra.mxu0 0.0
      %5030 = vmatprep.subr.mxu0 0.0
      %5031 = vmatpush1.msra.mxu0 0.0
      %5032 = vmatprep.mubr.f32.mxu0 0.0
      %5033 = vmatmul.mubr.f32.gmra.mrb[0].mxu0 %v4966
      %v5034 = vpop.f32.mrb[0].mxu0
      %v5035 = vadd.f32 %v4877, %v5034
      %v5036 = vpop.f32.mrb[0].mxu0
      %v5037 = vadd.f32 %v4879, %v5036
      %5038 = vdwg.mxu0
      %5039 = vmatprep.subr.mxu0 0.0
      %5040 = vmatpush1.msra.mxu0 %v4961
      %5041 = vmatprep.subr.mxu0 0.0
      %5042 = vmatpush1.msra.mxu0 0.0
      %5043 = vmatprep.subr.mxu0 0.0
      %5044 = vmatpush1.msra.mxu0 0.0
      %5045 = vmatprep.subr.mxu0 0.0
      %5046 = vmatpush1.msra.mxu0 0.0
      %5047 = vmatprep.subr.mxu0 0.0
      %5048 = vmatpush1.msra.mxu0 0.0
      %5049 = vmatprep.subr.mxu0 0.0
      %5050 = vmatpush1.msra.mxu0 0.0
      %5051 = vmatprep.subr.mxu0 0.0
      %5052 = vmatpush1.msra.mxu0 0.0
      %5053 = vmatprep.subr.mxu0 0.0
      %5054 = vmatpush1.msra.mxu0 0.0
      %5055 = vmatprep.subr.mxu0 0.0
      %5056 = vmatpush1.msra.mxu0 0.0
      %5057 = vmatprep.subr.mxu0 0.0
      %5058 = vmatpush1.msra.mxu0 0.0
      %5059 = vmatprep.subr.mxu0 0.0
      %5060 = vmatpush1.msra.mxu0 0.0
      %5061 = vmatprep.subr.mxu0 0.0
      %5062 = vmatpush1.msra.mxu0 0.0
      %5063 = vmatprep.subr.mxu0 0.0
      %5064 = vmatpush1.msra.mxu0 0.0
      %5065 = vmatprep.subr.mxu0 0.0
      %5066 = vmatpush1.msra.mxu0 0.0
      %5067 = vmatprep.subr.mxu0 0.0
      %5068 = vmatpush1.msra.mxu0 0.0
      %5069 = vmatprep.subr.mxu0 0.0
      %5070 = vmatpush1.msra.mxu0 0.0
      %5071 = vmatprep.subr.mxu0 0.0
      %5072 = vmatpush1.msra.mxu0 0.0
      %5073 = vmatprep.subr.mxu0 0.0
      %5074 = vmatpush1.msra.mxu0 0.0
      %5075 = vmatprep.subr.mxu0 0.0
      %5076 = vmatpush1.msra.mxu0 0.0
      %5077 = vmatprep.subr.mxu0 0.0
      %5078 = vmatpush1.msra.mxu0 0.0
      %5079 = vmatprep.subr.mxu0 0.0
      %5080 = vmatpush1.msra.mxu0 0.0
      %5081 = vmatprep.subr.mxu0 0.0
      %5082 = vmatpush1.msra.mxu0 0.0
      %5083 = vmatprep.subr.mxu0 0.0
      %5084 = vmatpush1.msra.mxu0 0.0
      %5085 = vmatprep.subr.mxu0 0.0
      %5086 = vmatpush1.msra.mxu0 0.0
      %5087 = vmatprep.subr.mxu0 0.0
      %5088 = vmatpush1.msra.mxu0 0.0
      %5089 = vmatprep.subr.mxu0 0.0
      %5090 = vmatpush1.msra.mxu0 0.0
      %5091 = vmatprep.subr.mxu0 0.0
      %5092 = vmatpush1.msra.mxu0 0.0
      %5093 = vmatprep.subr.mxu0 0.0
      %5094 = vmatpush1.msra.mxu0 0.0
      %5095 = vmatprep.subr.mxu0 0.0
      %5096 = vmatpush1.msra.mxu0 0.0
      %5097 = vmatprep.subr.mxu0 0.0
      %5098 = vmatpush1.msra.mxu0 0.0
      %5099 = vmatprep.subr.mxu0 0.0
      %5100 = vmatpush1.msra.mxu0 0.0
      %5101 = vmatprep.subr.mxu0 0.0
      %5102 = vmatpush1.msra.mxu0 0.0
      %5103 = vmatprep.mubr.f32.mxu0 0.0
      %5104 = vmatmul.mubr.f32.gmra.mrb[0].mxu0 %v4966
      %v5105 = vpop.f32.mrb[0].mxu0
      %v5106 = vadd.f32 %v4948, %v5105
      %v5107 = vpop.f32.mrb[0].mxu0
      %5108 = vdwg.mxu0
      %s5109 = scalar_lea.vmem %s1, 232
      %v5110 = vld [vmem:[%s5109] sm:$0xff]
      %5111 = vrot.lane.b32.xlu0 %v4783, 17
      %v5112 = vpop.permute.xlu0 %5111
      %5113 = vrot.lane.b32.xlu0 %v4784, 17
      %v5114 = vpop.permute.xlu0 %5113
      %5115 = vrot.lane.b32.xlu0 %v4785, 17
      %v5116 = vpop.permute.xlu0 %5115
      %5117 = vrot.lane.b32.xlu0 %v4786, 17
      %v5118 = vpop.permute.xlu0 %5117
      %v5119 = vsel %vm650, %v5112, %v5114
      %v5120 = vsel %vm650, %v5114, %v5116
      %v5121 = vsel %vm650, %v5116, %v5118
      %v5126 = vsel %vm336, %v5110, 0
      %5128 = vmatprep.subr.mxu0 %v5120
      %5129 = vmatpush1.msra.mxu0 %v5119
      %5130 = vmatprep.subr.mxu0 0.0
      %5131 = vmatpush1.msra.mxu0 0.0
      %5132 = vmatprep.subr.mxu0 0.0
      %5133 = vmatpush1.msra.mxu0 0.0
      %5134 = vmatprep.subr.mxu0 0.0
      %5135 = vmatpush1.msra.mxu0 0.0
      %5136 = vmatprep.subr.mxu0 0.0
      %5137 = vmatpush1.msra.mxu0 0.0
      %5138 = vmatprep.subr.mxu0 0.0
      %5139 = vmatpush1.msra.mxu0 0.0
      %5140 = vmatprep.subr.mxu0 0.0
      %5141 = vmatpush1.msra.mxu0 0.0
      %5142 = vmatprep.subr.mxu0 0.0
      %5143 = vmatpush1.msra.mxu0 0.0
      %5144 = vmatprep.subr.mxu0 0.0
      %5145 = vmatpush1.msra.mxu0 0.0
      %5146 = vmatprep.subr.mxu0 0.0
      %5147 = vmatpush1.msra.mxu0 0.0
      %5148 = vmatprep.subr.mxu0 0.0
      %5149 = vmatpush1.msra.mxu0 0.0
      %5150 = vmatprep.subr.mxu0 0.0
      %5151 = vmatpush1.msra.mxu0 0.0
      %5152 = vmatprep.subr.mxu0 0.0
      %5153 = vmatpush1.msra.mxu0 0.0
      %5154 = vmatprep.subr.mxu0 0.0
      %5155 = vmatpush1.msra.mxu0 0.0
      %5156 = vmatprep.subr.mxu0 0.0
      %5157 = vmatpush1.msra.mxu0 0.0
      %5158 = vmatprep.subr.mxu0 0.0
      %5159 = vmatpush1.msra.mxu0 0.0
      %5160 = vmatprep.subr.mxu0 0.0
      %5161 = vmatpush1.msra.mxu0 0.0
      %5162 = vmatprep.subr.mxu0 0.0
      %5163 = vmatpush1.msra.mxu0 0.0
      %5164 = vmatprep.subr.mxu0 0.0
      %5165 = vmatpush1.msra.mxu0 0.0
      %5166 = vmatprep.subr.mxu0 0.0
      %5167 = vmatpush1.msra.mxu0 0.0
      %5168 = vmatprep.subr.mxu0 0.0
      %5169 = vmatpush1.msra.mxu0 0.0
      %5170 = vmatprep.subr.mxu0 0.0
      %5171 = vmatpush1.msra.mxu0 0.0
      %5172 = vmatprep.subr.mxu0 0.0
      %5173 = vmatpush1.msra.mxu0 0.0
      %5174 = vmatprep.subr.mxu0 0.0
      %5175 = vmatpush1.msra.mxu0 0.0
      %5176 = vmatprep.subr.mxu0 0.0
      %5177 = vmatpush1.msra.mxu0 0.0
      %5178 = vmatprep.subr.mxu0 0.0
      %5179 = vmatpush1.msra.mxu0 0.0
      %5180 = vmatprep.subr.mxu0 0.0
      %5181 = vmatpush1.msra.mxu0 0.0
      %5182 = vmatprep.subr.mxu0 0.0
      %5183 = vmatpush1.msra.mxu0 0.0
      %5184 = vmatprep.subr.mxu0 0.0
      %5185 = vmatpush1.msra.mxu0 0.0
      %5186 = vmatprep.subr.mxu0 0.0
      %5187 = vmatpush1.msra.mxu0 0.0
      %5188 = vmatprep.subr.mxu0 0.0
      %5189 = vmatpush1.msra.mxu0 0.0
      %5190 = vmatprep.subr.mxu0 0.0
      %5191 = vmatpush1.msra.mxu0 0.0
      %5192 = vmatprep.mubr.f32.mxu0 0.0
      %5193 = vmatmul.mubr.f32.gmra.mrb[0].mxu0 %v5126
      %v5194 = vpop.f32.mrb[0].mxu0
      %v5195 = vadd.f32 0.0, %v5194
      %v5196 = vpop.f32.mrb[0].mxu0
      %v5197 = vadd.f32 0.0, %v5196
      %5198 = vdwg.mxu0
      %5199 = vmatprep.subr.mxu0 0.0
      %5200 = vmatpush1.msra.mxu0 %v5121
      %5201 = vmatprep.subr.mxu0 0.0
      %5202 = vmatpush1.msra.mxu0 0.0
      %5203 = vmatprep.subr.mxu0 0.0
      %5204 = vmatpush1.msra.mxu0 0.0
      %5205 = vmatprep.subr.mxu0 0.0
      %5206 = vmatpush1.msra.mxu0 0.0
      %5207 = vmatprep.subr.mxu0 0.0
      %5208 = vmatpush1.msra.mxu0 0.0
      %5209 = vmatprep.subr.mxu0 0.0
      %5210 = vmatpush1.msra.mxu0 0.0
      %5211 = vmatprep.subr.mxu0 0.0
      %5212 = vmatpush1.msra.mxu0 0.0
      %5213 = vmatprep.subr.mxu0 0.0
      %5214 = vmatpush1.msra.mxu0 0.0
      %5215 = vmatprep.subr.mxu0 0.0
      %5216 = vmatpush1.msra.mxu0 0.0
      %5217 = vmatprep.subr.mxu0 0.0
      %5218 = vmatpush1.msra.mxu0 0.0
      %5219 = vmatprep.subr.mxu0 0.0
      %5220 = vmatpush1.msra.mxu0 0.0
      %5221 = vmatprep.subr.mxu0 0.0
      %5222 = vmatpush1.msra.mxu0 0.0
      %5223 = vmatprep.subr.mxu0 0.0
      %5224 = vmatpush1.msra.mxu0 0.0
      %5225 = vmatprep.subr.mxu0 0.0
      %5226 = vmatpush1.msra.mxu0 0.0
      %5227 = vmatprep.subr.mxu0 0.0
      %5228 = vmatpush1.msra.mxu0 0.0
      %5229 = vmatprep.subr.mxu0 0.0
      %5230 = vmatpush1.msra.mxu0 0.0
      %5231 = vmatprep.subr.mxu0 0.0
      %5232 = vmatpush1.msra.mxu0 0.0
      %5233 = vmatprep.subr.mxu0 0.0
      %5234 = vmatpush1.msra.mxu0 0.0
      %5235 = vmatprep.subr.mxu0 0.0
      %5236 = vmatpush1.msra.mxu0 0.0
      %5237 = vmatprep.subr.mxu0 0.0
      %5238 = vmatpush1.msra.mxu0 0.0
      %5239 = vmatprep.subr.mxu0 0.0
      %5240 = vmatpush1.msra.mxu0 0.0
      %5241 = vmatprep.subr.mxu0 0.0
      %5242 = vmatpush1.msra.mxu0 0.0
      %5243 = vmatprep.subr.mxu0 0.0
      %5244 = vmatpush1.msra.mxu0 0.0
      %5245 = vmatprep.subr.mxu0 0.0
      %5246 = vmatpush1.msra.mxu0 0.0
      %5247 = vmatprep.subr.mxu0 0.0
      %5248 = vmatpush1.msra.mxu0 0.0
      %5249 = vmatprep.subr.mxu0 0.0
      %5250 = vmatpush1.msra.mxu0 0.0
      %5251 = vmatprep.subr.mxu0 0.0
      %5252 = vmatpush1.msra.mxu0 0.0
      %5253 = vmatprep.subr.mxu0 0.0
      %5254 = vmatpush1.msra.mxu0 0.0
      %5255 = vmatprep.subr.mxu0 0.0
      %5256 = vmatpush1.msra.mxu0 0.0
      %5257 = vmatprep.subr.mxu0 0.0
      %5258 = vmatpush1.msra.mxu0 0.0
      %5259 = vmatprep.subr.mxu0 0.0
      %5260 = vmatpush1.msra.mxu0 0.0
      %5261 = vmatprep.subr.mxu0 0.0
      %5262 = vmatpush1.msra.mxu0 0.0
      %5263 = vmatprep.mubr.f32.mxu0 0.0
      %5264 = vmatmul.mubr.f32.gmra.mrb[0].mxu0 %v5126
      %v5265 = vpop.f32.mrb[0].mxu0
      %v5266 = vadd.f32 0.0, %v5265
      %v5267 = vpop.f32.mrb[0].mxu0
      %5268 = vdwg.mxu0
      %v5269 = vadd.f32 %v5035, %v5195
      %v5270 = vadd.f32 %v5037, %v5197
      %v5271 = vadd.f32 %v5106, %v5266
      %s5272 = scalar_lea.vmem %s1, 240
      %v5273 = vld [vmem:[%s5272] sm:$0xff]
      %5274 = vrot.lane.b32.xlu0 %v4783, 1
      %v5275 = vpop.permute.xlu0 %5274
      %5276 = vrot.lane.b32.xlu0 %v4784, 1
      %v5277 = vpop.permute.xlu0 %5276
      %5278 = vrot.lane.b32.xlu0 %v4785, 1
      %v5279 = vpop.permute.xlu0 %5278
      %5280 = vrot.lane.b32.xlu0 %v4786, 1
      %v5281 = vpop.permute.xlu0 %5280
      %v5282 = vsel %vm814, %v5275, %v5277
      %v5283 = vsel %vm814, %v5277, %v5279
      %v5284 = vsel %vm814, %v5279, %v5281
      %v5289 = vsel %vm336, %v5273, 0
      %5291 = vmatprep.subr.mxu0 %v5283
      %5292 = vmatpush1.msra.mxu0 %v5282
      %5293 = vmatprep.subr.mxu0 0.0
      %5294 = vmatpush1.msra.mxu0 0.0
      %5295 = vmatprep.subr.mxu0 0.0
      %5296 = vmatpush1.msra.mxu0 0.0
      %5297 = vmatprep.subr.mxu0 0.0
      %5298 = vmatpush1.msra.mxu0 0.0
      %5299 = vmatprep.subr.mxu0 0.0
      %5300 = vmatpush1.msra.mxu0 0.0
      %5301 = vmatprep.subr.mxu0 0.0
      %5302 = vmatpush1.msra.mxu0 0.0
      %5303 = vmatprep.subr.mxu0 0.0
      %5304 = vmatpush1.msra.mxu0 0.0
      %5305 = vmatprep.subr.mxu0 0.0
      %5306 = vmatpush1.msra.mxu0 0.0
      %5307 = vmatprep.subr.mxu0 0.0
      %5308 = vmatpush1.msra.mxu0 0.0
      %5309 = vmatprep.subr.mxu0 0.0
      %5310 = vmatpush1.msra.mxu0 0.0
      %5311 = vmatprep.subr.mxu0 0.0
      %5312 = vmatpush1.msra.mxu0 0.0
      %5313 = vmatprep.subr.mxu0 0.0
      %5314 = vmatpush1.msra.mxu0 0.0
      %5315 = vmatprep.subr.mxu0 0.0
      %5316 = vmatpush1.msra.mxu0 0.0
      %5317 = vmatprep.subr.mxu0 0.0
      %5318 = vmatpush1.msra.mxu0 0.0
      %5319 = vmatprep.subr.mxu0 0.0
      %5320 = vmatpush1.msra.mxu0 0.0
      %5321 = vmatprep.subr.mxu0 0.0
      %5322 = vmatpush1.msra.mxu0 0.0
      %5323 = vmatprep.subr.mxu0 0.0
      %5324 = vmatpush1.msra.mxu0 0.0
      %5325 = vmatprep.subr.mxu0 0.0
      %5326 = vmatpush1.msra.mxu0 0.0
      %5327 = vmatprep.subr.mxu0 0.0
      %5328 = vmatpush1.msra.mxu0 0.0
      %5329 = vmatprep.subr.mxu0 0.0
      %5330 = vmatpush1.msra.mxu0 0.0
      %5331 = vmatprep.subr.mxu0 0.0
      %5332 = vmatpush1.msra.mxu0 0.0
      %5333 = vmatprep.subr.mxu0 0.0
      %5334 = vmatpush1.msra.mxu0 0.0
      %5335 = vmatprep.subr.mxu0 0.0
      %5336 = vmatpush1.msra.mxu0 0.0
      %5337 = vmatprep.subr.mxu0 0.0
      %5338 = vmatpush1.msra.mxu0 0.0
      %5339 = vmatprep.subr.mxu0 0.0
      %5340 = vmatpush1.msra.mxu0 0.0
      %5341 = vmatprep.subr.mxu0 0.0
      %5342 = vmatpush1.msra.mxu0 0.0
      %5343 = vmatprep.subr.mxu0 0.0
      %5344 = vmatpush1.msra.mxu0 0.0
      %5345 = vmatprep.subr.mxu0 0.0
      %5346 = vmatpush1.msra.mxu0 0.0
      %5347 = vmatprep.subr.mxu0 0.0
      %5348 = vmatpush1.msra.mxu0 0.0
      %5349 = vmatprep.subr.mxu0 0.0
      %5350 = vmatpush1.msra.mxu0 0.0
      %5351 = vmatprep.subr.mxu0 0.0
      %5352 = vmatpush1.msra.mxu0 0.0
      %5353 = vmatprep.subr.mxu0 0.0
      %5354 = vmatpush1.msra.mxu0 0.0
      %5355 = vmatprep.mubr.f32.mxu0 0.0
      %5356 = vmatmul.mubr.f32.gmra.mrb[0].mxu0 %v5289
      %v5357 = vpop.f32.mrb[0].mxu0
      %v5358 = vadd.f32 0.0, %v5357
      %v5359 = vpop.f32.mrb[0].mxu0
      %v5360 = vadd.f32 0.0, %v5359
      %5361 = vdwg.mxu0
      %5362 = vmatprep.subr.mxu0 0.0
      %5363 = vmatpush1.msra.mxu0 %v5284
      %5364 = vmatprep.subr.mxu0 0.0
      %5365 = vmatpush1.msra.mxu0 0.0
      %5366 = vmatprep.subr.mxu0 0.0
      %5367 = vmatpush1.msra.mxu0 0.0
      %5368 = vmatprep.subr.mxu0 0.0
      %5369 = vmatpush1.msra.mxu0 0.0
      %5370 = vmatprep.subr.mxu0 0.0
      %5371 = vmatpush1.msra.mxu0 0.0
      %5372 = vmatprep.subr.mxu0 0.0
      %5373 = vmatpush1.msra.mxu0 0.0
      %5374 = vmatprep.subr.mxu0 0.0
      %5375 = vmatpush1.msra.mxu0 0.0
      %5376 = vmatprep.subr.mxu0 0.0
      %5377 = vmatpush1.msra.mxu0 0.0
      %5378 = vmatprep.subr.mxu0 0.0
      %5379 = vmatpush1.msra.mxu0 0.0
      %5380 = vmatprep.subr.mxu0 0.0
      %5381 = vmatpush1.msra.mxu0 0.0
      %5382 = vmatprep.subr.mxu0 0.0
      %5383 = vmatpush1.msra.mxu0 0.0
      %5384 = vmatprep.subr.mxu0 0.0
      %5385 = vmatpush1.msra.mxu0 0.0
      %5386 = vmatprep.subr.mxu0 0.0
      %5387 = vmatpush1.msra.mxu0 0.0
      %5388 = vmatprep.subr.mxu0 0.0
      %5389 = vmatpush1.msra.mxu0 0.0
      %5390 = vmatprep.subr.mxu0 0.0
      %5391 = vmatpush1.msra.mxu0 0.0
      %5392 = vmatprep.subr.mxu0 0.0
      %5393 = vmatpush1.msra.mxu0 0.0
      %5394 = vmatprep.subr.mxu0 0.0
      %5395 = vmatpush1.msra.mxu0 0.0
      %5396 = vmatprep.subr.mxu0 0.0
      %5397 = vmatpush1.msra.mxu0 0.0
      %5398 = vmatprep.subr.mxu0 0.0
      %5399 = vmatpush1.msra.mxu0 0.0
      %5400 = vmatprep.subr.mxu0 0.0
      %5401 = vmatpush1.msra.mxu0 0.0
      %5402 = vmatprep.subr.mxu0 0.0
      %5403 = vmatpush1.msra.mxu0 0.0
      %5404 = vmatprep.subr.mxu0 0.0
      %5405 = vmatpush1.msra.mxu0 0.0
      %5406 = vmatprep.subr.mxu0 0.0
      %5407 = vmatpush1.msra.mxu0 0.0
      %5408 = vmatprep.subr.mxu0 0.0
      %5409 = vmatpush1.msra.mxu0 0.0
      %5410 = vmatprep.subr.mxu0 0.0
      %5411 = vmatpush1.msra.mxu0 0.0
      %5412 = vmatprep.subr.mxu0 0.0
      %5413 = vmatpush1.msra.mxu0 0.0
      %5414 = vmatprep.subr.mxu0 0.0
      %5415 = vmatpush1.msra.mxu0 0.0
      %5416 = vmatprep.subr.mxu0 0.0
      %5417 = vmatpush1.msra.mxu0 0.0
      %5418 = vmatprep.subr.mxu0 0.0
      %5419 = vmatpush1.msra.mxu0 0.0
      %5420 = vmatprep.subr.mxu0 0.0
      %5421 = vmatpush1.msra.mxu0 0.0
      %5422 = vmatprep.subr.mxu0 0.0
      %5423 = vmatpush1.msra.mxu0 0.0
      %5424 = vmatprep.subr.mxu0 0.0
      %5425 = vmatpush1.msra.mxu0 0.0
      %5426 = vmatprep.mubr.f32.mxu0 0.0
      %5427 = vmatmul.mubr.f32.gmra.mrb[0].mxu0 %v5289
      %v5428 = vpop.f32.mrb[0].mxu0
      %v5429 = vadd.f32 0.0, %v5428
      %v5430 = vpop.f32.mrb[0].mxu0
      %5431 = vdwg.mxu0
      %v5432 = vadd.f32 %v5269, %v5358
      %v5433 = vadd.f32 %v5270, %v5360
      %v5434 = vadd.f32 %v5271, %v5429
      %s5435 = scalar_lea.vmem %s1, 248
      %v5436 = vld [vmem:[%s5435] sm:$0xff]
      %v5438 = vsel %vm336, %v5436, 0
      %5440 = vmatprep.subr.mxu0 %v4785
      %5441 = vmatpush1.msra.mxu0 %v4784
      %5442 = vmatprep.subr.mxu0 0.0
      %5443 = vmatpush1.msra.mxu0 0.0
      %5444 = vmatprep.subr.mxu0 0.0
      %5445 = vmatpush1.msra.mxu0 0.0
      %5446 = vmatprep.subr.mxu0 0.0
      %5447 = vmatpush1.msra.mxu0 0.0
      %5448 = vmatprep.subr.mxu0 0.0
      %5449 = vmatpush1.msra.mxu0 0.0
      %5450 = vmatprep.subr.mxu0 0.0
      %5451 = vmatpush1.msra.mxu0 0.0
      %5452 = vmatprep.subr.mxu0 0.0
      %5453 = vmatpush1.msra.mxu0 0.0
      %5454 = vmatprep.subr.mxu0 0.0
      %5455 = vmatpush1.msra.mxu0 0.0
      %5456 = vmatprep.subr.mxu0 0.0
      %5457 = vmatpush1.msra.mxu0 0.0
      %5458 = vmatprep.subr.mxu0 0.0
      %5459 = vmatpush1.msra.mxu0 0.0
      %5460 = vmatprep.subr.mxu0 0.0
      %5461 = vmatpush1.msra.mxu0 0.0
      %5462 = vmatprep.subr.mxu0 0.0
      %5463 = vmatpush1.msra.mxu0 0.0
      %5464 = vmatprep.subr.mxu0 0.0
      %5465 = vmatpush1.msra.mxu0 0.0
      %5466 = vmatprep.subr.mxu0 0.0
      %5467 = vmatpush1.msra.mxu0 0.0
      %5468 = vmatprep.subr.mxu0 0.0
      %5469 = vmatpush1.msra.mxu0 0.0
      %5470 = vmatprep.subr.mxu0 0.0
      %5471 = vmatpush1.msra.mxu0 0.0
      %5472 = vmatprep.subr.mxu0 0.0
      %5473 = vmatpush1.msra.mxu0 0.0
      %5474 = vmatprep.subr.mxu0 0.0
      %5475 = vmatpush1.msra.mxu0 0.0
      %5476 = vmatprep.subr.mxu0 0.0
      %5477 = vmatpush1.msra.mxu0 0.0
      %5478 = vmatprep.subr.mxu0 0.0
      %5479 = vmatpush1.msra.mxu0 0.0
      %5480 = vmatprep.subr.mxu0 0.0
      %5481 = vmatpush1.msra.mxu0 0.0
      %5482 = vmatprep.subr.mxu0 0.0
      %5483 = vmatpush1.msra.mxu0 0.0
      %5484 = vmatprep.subr.mxu0 0.0
      %5485 = vmatpush1.msra.mxu0 0.0
      %5486 = vmatprep.subr.mxu0 0.0
      %5487 = vmatpush1.msra.mxu0 0.0
      %5488 = vmatprep.subr.mxu0 0.0
      %5489 = vmatpush1.msra.mxu0 0.0
      %5490 = vmatprep.subr.mxu0 0.0
      %5491 = vmatpush1.msra.mxu0 0.0
      %5492 = vmatprep.subr.mxu0 0.0
      %5493 = vmatpush1.msra.mxu0 0.0
      %5494 = vmatprep.subr.mxu0 0.0
      %5495 = vmatpush1.msra.mxu0 0.0
      %5496 = vmatprep.subr.mxu0 0.0
      %5497 = vmatpush1.msra.mxu0 0.0
      %5498 = vmatprep.subr.mxu0 0.0
      %5499 = vmatpush1.msra.mxu0 0.0
      %5500 = vmatprep.subr.mxu0 0.0
      %5501 = vmatpush1.msra.mxu0 0.0
      %5502 = vmatprep.subr.mxu0 0.0
      %5503 = vmatpush1.msra.mxu0 0.0
      %5504 = vmatprep.mubr.f32.mxu0 0.0
      %5505 = vmatmul.mubr.f32.gmra.mrb[0].mxu0 %v5438
      %v5506 = vpop.f32.mrb[0].mxu0
      %v5507 = vadd.f32 0.0, %v5506
      %v5508 = vpop.f32.mrb[0].mxu0
      %v5509 = vadd.f32 0.0, %v5508
      %5510 = vdwg.mxu0
      %5511 = vmatprep.subr.mxu0 0.0
      %5512 = vmatpush1.msra.mxu0 %v4786
      %5513 = vmatprep.subr.mxu0 0.0
      %5514 = vmatpush1.msra.mxu0 0.0
      %5515 = vmatprep.subr.mxu0 0.0
      %5516 = vmatpush1.msra.mxu0 0.0
      %5517 = vmatprep.subr.mxu0 0.0
      %5518 = vmatpush1.msra.mxu0 0.0
      %5519 = vmatprep.subr.mxu0 0.0
      %5520 = vmatpush1.msra.mxu0 0.0
      %5521 = vmatprep.subr.mxu0 0.0
      %5522 = vmatpush1.msra.mxu0 0.0
      %5523 = vmatprep.subr.mxu0 0.0
      %5524 = vmatpush1.msra.mxu0 0.0
      %5525 = vmatprep.subr.mxu0 0.0
      %5526 = vmatpush1.msra.mxu0 0.0
      %5527 = vmatprep.subr.mxu0 0.0
      %5528 = vmatpush1.msra.mxu0 0.0
      %5529 = vmatprep.subr.mxu0 0.0
      %5530 = vmatpush1.msra.mxu0 0.0
      %5531 = vmatprep.subr.mxu0 0.0
      %5532 = vmatpush1.msra.mxu0 0.0
      %5533 = vmatprep.subr.mxu0 0.0
      %5534 = vmatpush1.msra.mxu0 0.0
      %5535 = vmatprep.subr.mxu0 0.0
      %5536 = vmatpush1.msra.mxu0 0.0
      %5537 = vmatprep.subr.mxu0 0.0
      %5538 = vmatpush1.msra.mxu0 0.0
      %5539 = vmatprep.subr.mxu0 0.0
      %5540 = vmatpush1.msra.mxu0 0.0
      %5541 = vmatprep.subr.mxu0 0.0
      %5542 = vmatpush1.msra.mxu0 0.0
      %5543 = vmatprep.subr.mxu0 0.0
      %5544 = vmatpush1.msra.mxu0 0.0
      %5545 = vmatprep.subr.mxu0 0.0
      %5546 = vmatpush1.msra.mxu0 0.0
      %5547 = vmatprep.subr.mxu0 0.0
      %5548 = vmatpush1.msra.mxu0 0.0
      %5549 = vmatprep.subr.mxu0 0.0
      %5550 = vmatpush1.msra.mxu0 0.0
      %5551 = vmatprep.subr.mxu0 0.0
      %5552 = vmatpush1.msra.mxu0 0.0
      %5553 = vmatprep.subr.mxu0 0.0
      %5554 = vmatpush1.msra.mxu0 0.0
      %5555 = vmatprep.subr.mxu0 0.0
      %5556 = vmatpush1.msra.mxu0 0.0
      %5557 = vmatprep.subr.mxu0 0.0
      %5558 = vmatpush1.msra.mxu0 0.0
      %5559 = vmatprep.subr.mxu0 0.0
      %5560 = vmatpush1.msra.mxu0 0.0
      %5561 = vmatprep.subr.mxu0 0.0
      %5562 = vmatpush1.msra.mxu0 0.0
      %5563 = vmatprep.subr.mxu0 0.0
      %5564 = vmatpush1.msra.mxu0 0.0
      %5565 = vmatprep.subr.mxu0 0.0
      %5566 = vmatpush1.msra.mxu0 0.0
      %5567 = vmatprep.subr.mxu0 0.0
      %5568 = vmatpush1.msra.mxu0 0.0
      %5569 = vmatprep.subr.mxu0 0.0
      %5570 = vmatpush1.msra.mxu0 0.0
      %5571 = vmatprep.subr.mxu0 0.0
      %5572 = vmatpush1.msra.mxu0 0.0
      %5573 = vmatprep.subr.mxu0 0.0
      %5574 = vmatpush1.msra.mxu0 0.0
      %5575 = vmatprep.mubr.f32.mxu0 0.0
      %5576 = vmatmul.mubr.f32.gmra.mrb[0].mxu0 %v5438
      %v5577 = vpop.f32.mrb[0].mxu0
      %v5578 = vadd.f32 0.0, %v5577
      %v5579 = vpop.f32.mrb[0].mxu0
      %5580 = vdwg.mxu0
      %v5581 = vadd.f32 %v5432, %v5507
      %v5582 = vadd.f32 %v5433, %v5509
      %v5583 = vadd.f32 %v5434, %v5578
      %s5584 = scalar_lea.vmem %s1, 256
      %v5585 = vld [vmem:[%s5584] sm:$0xff]
      %5586 = vrot.lane.b32.xlu0 %v4784, 127
      %v5587 = vpop.permute.xlu0 %5586
      %5588 = vrot.lane.b32.xlu0 %v4785, 127
      %v5589 = vpop.permute.xlu0 %5588
      %5590 = vrot.lane.b32.xlu0 %v4786, 127
      %v5591 = vpop.permute.xlu0 %5590
      %v5592 = vsel %vm1125, %v5587, %v5589
      %v5593 = vsel %vm1125, %v5589, %v5591
      %v5598 = vsel %vm336, %v5585, 0
      %5600 = vmatprep.subr.mxu0 %v5593
      %5601 = vmatpush1.msra.mxu0 %v5592
      %5602 = vmatprep.subr.mxu0 0.0
      %5603 = vmatpush1.msra.mxu0 0.0
      %5604 = vmatprep.subr.mxu0 0.0
      %5605 = vmatpush1.msra.mxu0 0.0
      %5606 = vmatprep.subr.mxu0 0.0
      %5607 = vmatpush1.msra.mxu0 0.0
      %5608 = vmatprep.subr.mxu0 0.0
      %5609 = vmatpush1.msra.mxu0 0.0
      %5610 = vmatprep.subr.mxu0 0.0
      %5611 = vmatpush1.msra.mxu0 0.0
      %5612 = vmatprep.subr.mxu0 0.0
      %5613 = vmatpush1.msra.mxu0 0.0
      %5614 = vmatprep.subr.mxu0 0.0
      %5615 = vmatpush1.msra.mxu0 0.0
      %5616 = vmatprep.subr.mxu0 0.0
      %5617 = vmatpush1.msra.mxu0 0.0
      %5618 = vmatprep.subr.mxu0 0.0
      %5619 = vmatpush1.msra.mxu0 0.0
      %5620 = vmatprep.subr.mxu0 0.0
      %5621 = vmatpush1.msra.mxu0 0.0
      %5622 = vmatprep.subr.mxu0 0.0
      %5623 = vmatpush1.msra.mxu0 0.0
      %5624 = vmatprep.subr.mxu0 0.0
      %5625 = vmatpush1.msra.mxu0 0.0
      %5626 = vmatprep.subr.mxu0 0.0
      %5627 = vmatpush1.msra.mxu0 0.0
      %5628 = vmatprep.subr.mxu0 0.0
      %5629 = vmatpush1.msra.mxu0 0.0
      %5630 = vmatprep.subr.mxu0 0.0
      %5631 = vmatpush1.msra.mxu0 0.0
      %5632 = vmatprep.subr.mxu0 0.0
      %5633 = vmatpush1.msra.mxu0 0.0
      %5634 = vmatprep.subr.mxu0 0.0
      %5635 = vmatpush1.msra.mxu0 0.0
      %5636 = vmatprep.subr.mxu0 0.0
      %5637 = vmatpush1.msra.mxu0 0.0
      %5638 = vmatprep.subr.mxu0 0.0
      %5639 = vmatpush1.msra.mxu0 0.0
      %5640 = vmatprep.subr.mxu0 0.0
      %5641 = vmatpush1.msra.mxu0 0.0
      %5642 = vmatprep.subr.mxu0 0.0
      %5643 = vmatpush1.msra.mxu0 0.0
      %5644 = vmatprep.subr.mxu0 0.0
      %5645 = vmatpush1.msra.mxu0 0.0
      %5646 = vmatprep.subr.mxu0 0.0
      %5647 = vmatpush1.msra.mxu0 0.0
      %5648 = vmatprep.subr.mxu0 0.0
      %5649 = vmatpush1.msra.mxu0 0.0
      %5650 = vmatprep.subr.mxu0 0.0
      %5651 = vmatpush1.msra.mxu0 0.0
      %5652 = vmatprep.subr.mxu0 0.0
      %5653 = vmatpush1.msra.mxu0 0.0
      %5654 = vmatprep.subr.mxu0 0.0
      %5655 = vmatpush1.msra.mxu0 0.0
      %5656 = vmatprep.subr.mxu0 0.0
      %5657 = vmatpush1.msra.mxu0 0.0
      %5658 = vmatprep.subr.mxu0 0.0
      %5659 = vmatpush1.msra.mxu0 0.0
      %5660 = vmatprep.subr.mxu0 0.0
      %5661 = vmatpush1.msra.mxu0 0.0
      %5662 = vmatprep.subr.mxu0 0.0
      %5663 = vmatpush1.msra.mxu0 0.0
      %5664 = vmatprep.mubr.f32.mxu0 0.0
      %5665 = vmatmul.mubr.f32.gmra.mrb[0].mxu0 %v5598
      %v5666 = vpop.f32.mrb[0].mxu0
      %v5667 = vadd.f32 0.0, %v5666
      %v5668 = vpop.f32.mrb[0].mxu0
      %v5669 = vadd.f32 0.0, %v5668
      %5670 = vdwg.mxu0
      %5671 = vmatprep.subr.mxu0 0.0
      %5672 = vmatpush1.msra.mxu0 %v5591
      %5673 = vmatprep.subr.mxu0 0.0
      %5674 = vmatpush1.msra.mxu0 0.0
      %5675 = vmatprep.subr.mxu0 0.0
      %5676 = vmatpush1.msra.mxu0 0.0
      %5677 = vmatprep.subr.mxu0 0.0
      %5678 = vmatpush1.msra.mxu0 0.0
      %5679 = vmatprep.subr.mxu0 0.0
      %5680 = vmatpush1.msra.mxu0 0.0
      %5681 = vmatprep.subr.mxu0 0.0
      %5682 = vmatpush1.msra.mxu0 0.0
      %5683 = vmatprep.subr.mxu0 0.0
      %5684 = vmatpush1.msra.mxu0 0.0
      %5685 = vmatprep.subr.mxu0 0.0
      %5686 = vmatpush1.msra.mxu0 0.0
      %5687 = vmatprep.subr.mxu0 0.0
      %5688 = vmatpush1.msra.mxu0 0.0
      %5689 = vmatprep.subr.mxu0 0.0
      %5690 = vmatpush1.msra.mxu0 0.0
      %5691 = vmatprep.subr.mxu0 0.0
      %5692 = vmatpush1.msra.mxu0 0.0
      %5693 = vmatprep.subr.mxu0 0.0
      %5694 = vmatpush1.msra.mxu0 0.0
      %5695 = vmatprep.subr.mxu0 0.0
      %5696 = vmatpush1.msra.mxu0 0.0
      %5697 = vmatprep.subr.mxu0 0.0
      %5698 = vmatpush1.msra.mxu0 0.0
      %5699 = vmatprep.subr.mxu0 0.0
      %5700 = vmatpush1.msra.mxu0 0.0
      %5701 = vmatprep.subr.mxu0 0.0
      %5702 = vmatpush1.msra.mxu0 0.0
      %5703 = vmatprep.subr.mxu0 0.0
      %5704 = vmatpush1.msra.mxu0 0.0
      %5705 = vmatprep.subr.mxu0 0.0
      %5706 = vmatpush1.msra.mxu0 0.0
      %5707 = vmatprep.subr.mxu0 0.0
      %5708 = vmatpush1.msra.mxu0 0.0
      %5709 = vmatprep.subr.mxu0 0.0
      %5710 = vmatpush1.msra.mxu0 0.0
      %5711 = vmatprep.subr.mxu0 0.0
      %5712 = vmatpush1.msra.mxu0 0.0
      %5713 = vmatprep.subr.mxu0 0.0
      %5714 = vmatpush1.msra.mxu0 0.0
      %5715 = vmatprep.subr.mxu0 0.0
      %5716 = vmatpush1.msra.mxu0 0.0
      %5717 = vmatprep.subr.mxu0 0.0
      %5718 = vmatpush1.msra.mxu0 0.0
      %5719 = vmatprep.subr.mxu0 0.0
      %5720 = vmatpush1.msra.mxu0 0.0
      %5721 = vmatprep.subr.mxu0 0.0
      %5722 = vmatpush1.msra.mxu0 0.0
      %5723 = vmatprep.subr.mxu0 0.0
      %5724 = vmatpush1.msra.mxu0 0.0
      %5725 = vmatprep.subr.mxu0 0.0
      %5726 = vmatpush1.msra.mxu0 0.0
      %5727 = vmatprep.subr.mxu0 0.0
      %5728 = vmatpush1.msra.mxu0 0.0
      %5729 = vmatprep.subr.mxu0 0.0
      %5730 = vmatpush1.msra.mxu0 0.0
      %5731 = vmatprep.subr.mxu0 0.0
      %5732 = vmatpush1.msra.mxu0 0.0
      %5733 = vmatprep.subr.mxu0 0.0
      %5734 = vmatpush1.msra.mxu0 0.0
      %5735 = vmatprep.mubr.f32.mxu0 0.0
      %5736 = vmatmul.mubr.f32.gmra.mrb[0].mxu0 %v5598
      %v5737 = vpop.f32.mrb[0].mxu0
      %v5738 = vadd.f32 0.0, %v5737
      %v5739 = vpop.f32.mrb[0].mxu0
      %5740 = vdwg.mxu0
      %v5741 = vadd.f32 %v5581, %v5667
      %v5742 = vadd.f32 %v5582, %v5669
      %v5743 = vadd.f32 %v5583, %v5738
      %s5744 = scalar_lea.vmem %s1, 264
      %v5745 = vld [vmem:[%s5744] sm:$0xff]
      %5746 = vrot.lane.b32.xlu0 %v4784, 111
      %v5747 = vpop.permute.xlu0 %5746
      %5748 = vrot.lane.b32.xlu0 %v4785, 111
      %v5749 = vpop.permute.xlu0 %5748
      %5750 = vrot.lane.b32.xlu0 %v4786, 111
      %v5751 = vpop.permute.xlu0 %5750
      %v5752 = vsel %vm1286, %v5747, %v5749
      %v5753 = vsel %vm1286, %v5749, %v5751
      %v5758 = vsel %vm336, %v5745, 0
      %5760 = vmatprep.subr.mxu0 %v5753
      %5761 = vmatpush1.msra.mxu0 %v5752
      %5762 = vmatprep.subr.mxu0 0.0
      %5763 = vmatpush1.msra.mxu0 0.0
      %5764 = vmatprep.subr.mxu0 0.0
      %5765 = vmatpush1.msra.mxu0 0.0
      %5766 = vmatprep.subr.mxu0 0.0
      %5767 = vmatpush1.msra.mxu0 0.0
      %5768 = vmatprep.subr.mxu0 0.0
      %5769 = vmatpush1.msra.mxu0 0.0
      %5770 = vmatprep.subr.mxu0 0.0
      %5771 = vmatpush1.msra.mxu0 0.0
      %5772 = vmatprep.subr.mxu0 0.0
      %5773 = vmatpush1.msra.mxu0 0.0
      %5774 = vmatprep.subr.mxu0 0.0
      %5775 = vmatpush1.msra.mxu0 0.0
      %5776 = vmatprep.subr.mxu0 0.0
      %5777 = vmatpush1.msra.mxu0 0.0
      %5778 = vmatprep.subr.mxu0 0.0
      %5779 = vmatpush1.msra.mxu0 0.0
      %5780 = vmatprep.subr.mxu0 0.0
      %5781 = vmatpush1.msra.mxu0 0.0
      %5782 = vmatprep.subr.mxu0 0.0
      %5783 = vmatpush1.msra.mxu0 0.0
      %5784 = vmatprep.subr.mxu0 0.0
      %5785 = vmatpush1.msra.mxu0 0.0
      %5786 = vmatprep.subr.mxu0 0.0
      %5787 = vmatpush1.msra.mxu0 0.0
      %5788 = vmatprep.subr.mxu0 0.0
      %5789 = vmatpush1.msra.mxu0 0.0
      %5790 = vmatprep.subr.mxu0 0.0
      %5791 = vmatpush1.msra.mxu0 0.0
      %5792 = vmatprep.subr.mxu0 0.0
      %5793 = vmatpush1.msra.mxu0 0.0
      %5794 = vmatprep.subr.mxu0 0.0
      %5795 = vmatpush1.msra.mxu0 0.0
      %5796 = vmatprep.subr.mxu0 0.0
      %5797 = vmatpush1.msra.mxu0 0.0
      %5798 = vmatprep.subr.mxu0 0.0
      %5799 = vmatpush1.msra.mxu0 0.0
      %5800 = vmatprep.subr.mxu0 0.0
      %5801 = vmatpush1.msra.mxu0 0.0
      %5802 = vmatprep.subr.mxu0 0.0
      %5803 = vmatpush1.msra.mxu0 0.0
      %5804 = vmatprep.subr.mxu0 0.0
      %5805 = vmatpush1.msra.mxu0 0.0
      %5806 = vmatprep.subr.mxu0 0.0
      %5807 = vmatpush1.msra.mxu0 0.0
      %5808 = vmatprep.subr.mxu0 0.0
      %5809 = vmatpush1.msra.mxu0 0.0
      %5810 = vmatprep.subr.mxu0 0.0
      %5811 = vmatpush1.msra.mxu0 0.0
      %5812 = vmatprep.subr.mxu0 0.0
      %5813 = vmatpush1.msra.mxu0 0.0
      %5814 = vmatprep.subr.mxu0 0.0
      %5815 = vmatpush1.msra.mxu0 0.0
      %5816 = vmatprep.subr.mxu0 0.0
      %5817 = vmatpush1.msra.mxu0 0.0
      %5818 = vmatprep.subr.mxu0 0.0
      %5819 = vmatpush1.msra.mxu0 0.0
      %5820 = vmatprep.subr.mxu0 0.0
      %5821 = vmatpush1.msra.mxu0 0.0
      %5822 = vmatprep.subr.mxu0 0.0
      %5823 = vmatpush1.msra.mxu0 0.0
      %5824 = vmatprep.mubr.f32.mxu0 0.0
      %5825 = vmatmul.mubr.f32.gmra.mrb[0].mxu0 %v5758
      %v5826 = vpop.f32.mrb[0].mxu0
      %v5827 = vadd.f32 0.0, %v5826
      %v5828 = vpop.f32.mrb[0].mxu0
      %v5829 = vadd.f32 0.0, %v5828
      %5830 = vdwg.mxu0
      %5831 = vmatprep.subr.mxu0 0.0
      %5832 = vmatpush1.msra.mxu0 %v5751
      %5833 = vmatprep.subr.mxu0 0.0
      %5834 = vmatpush1.msra.mxu0 0.0
      %5835 = vmatprep.subr.mxu0 0.0
      %5836 = vmatpush1.msra.mxu0 0.0
      %5837 = vmatprep.subr.mxu0 0.0
      %5838 = vmatpush1.msra.mxu0 0.0
      %5839 = vmatprep.subr.mxu0 0.0
      %5840 = vmatpush1.msra.mxu0 0.0
      %5841 = vmatprep.subr.mxu0 0.0
      %5842 = vmatpush1.msra.mxu0 0.0
      %5843 = vmatprep.subr.mxu0 0.0
      %5844 = vmatpush1.msra.mxu0 0.0
      %5845 = vmatprep.subr.mxu0 0.0
      %5846 = vmatpush1.msra.mxu0 0.0
      %5847 = vmatprep.subr.mxu0 0.0
      %5848 = vmatpush1.msra.mxu0 0.0
      %5849 = vmatprep.subr.mxu0 0.0
      %5850 = vmatpush1.msra.mxu0 0.0
      %5851 = vmatprep.subr.mxu0 0.0
      %5852 = vmatpush1.msra.mxu0 0.0
      %5853 = vmatprep.subr.mxu0 0.0
      %5854 = vmatpush1.msra.mxu0 0.0
      %5855 = vmatprep.subr.mxu0 0.0
      %5856 = vmatpush1.msra.mxu0 0.0
      %5857 = vmatprep.subr.mxu0 0.0
      %5858 = vmatpush1.msra.mxu0 0.0
      %5859 = vmatprep.subr.mxu0 0.0
      %5860 = vmatpush1.msra.mxu0 0.0
      %5861 = vmatprep.subr.mxu0 0.0
      %5862 = vmatpush1.msra.mxu0 0.0
      %5863 = vmatprep.subr.mxu0 0.0
      %5864 = vmatpush1.msra.mxu0 0.0
      %5865 = vmatprep.subr.mxu0 0.0
      %5866 = vmatpush1.msra.mxu0 0.0
      %5867 = vmatprep.subr.mxu0 0.0
      %5868 = vmatpush1.msra.mxu0 0.0
      %5869 = vmatprep.subr.mxu0 0.0
      %5870 = vmatpush1.msra.mxu0 0.0
      %5871 = vmatprep.subr.mxu0 0.0
      %5872 = vmatpush1.msra.mxu0 0.0
      %5873 = vmatprep.subr.mxu0 0.0
      %5874 = vmatpush1.msra.mxu0 0.0
      %5875 = vmatprep.subr.mxu0 0.0
      %5876 = vmatpush1.msra.mxu0 0.0
      %5877 = vmatprep.subr.mxu0 0.0
      %5878 = vmatpush1.msra.mxu0 0.0
      %5879 = vmatprep.subr.mxu0 0.0
      %5880 = vmatpush1.msra.mxu0 0.0
      %5881 = vmatprep.subr.mxu0 0.0
      %5882 = vmatpush1.msra.mxu0 0.0
      %5883 = vmatprep.subr.mxu0 0.0
      %5884 = vmatpush1.msra.mxu0 0.0
      %5885 = vmatprep.subr.mxu0 0.0
      %5886 = vmatpush1.msra.mxu0 0.0
      %5887 = vmatprep.subr.mxu0 0.0
      %5888 = vmatpush1.msra.mxu0 0.0
      %5889 = vmatprep.subr.mxu0 0.0
      %5890 = vmatpush1.msra.mxu0 0.0
      %5891 = vmatprep.subr.mxu0 0.0
      %5892 = vmatpush1.msra.mxu0 0.0
      %5893 = vmatprep.subr.mxu0 0.0
      %5894 = vmatpush1.msra.mxu0 0.0
      %5895 = vmatprep.mubr.f32.mxu0 0.0
      %5896 = vmatmul.mubr.f32.gmra.mrb[0].mxu0 %v5758
      %v5897 = vpop.f32.mrb[0].mxu0
      %v5898 = vadd.f32 0.0, %v5897
      %v5899 = vpop.f32.mrb[0].mxu0
      %5900 = vdwg.mxu0
      %v5901 = vadd.f32 %v5741, %v5827
      %v5902 = vadd.f32 %v5742, %v5829
      %v5903 = vadd.f32 %v5743, %v5898
      %s5904 = scalar_lea.vmem %s1, 272
      %v5905 = vld [vmem:[%s5904] sm:$0xff]
      %5906 = vrot.lane.b32.xlu0 %v4784, 110
      %v5907 = vpop.permute.xlu0 %5906
      %5908 = vrot.lane.b32.xlu0 %v4785, 110
      %v5909 = vpop.permute.xlu0 %5908
      %5910 = vrot.lane.b32.xlu0 %v4786, 110
      %v5911 = vpop.permute.xlu0 %5910
      %v5912 = vsel %vm1447, %v5907, %v5909
      %v5913 = vsel %vm1447, %v5909, %v5911
      %v5918 = vsel %vm336, %v5905, 0
      %5920 = vmatprep.subr.mxu0 %v5913
      %5921 = vmatpush1.msra.mxu0 %v5912
      %5922 = vmatprep.subr.mxu0 0.0
      %5923 = vmatpush1.msra.mxu0 0.0
      %5924 = vmatprep.subr.mxu0 0.0
      %5925 = vmatpush1.msra.mxu0 0.0
      %5926 = vmatprep.subr.mxu0 0.0
      %5927 = vmatpush1.msra.mxu0 0.0
      %5928 = vmatprep.subr.mxu0 0.0
      %5929 = vmatpush1.msra.mxu0 0.0
      %5930 = vmatprep.subr.mxu0 0.0
      %5931 = vmatpush1.msra.mxu0 0.0
      %5932 = vmatprep.subr.mxu0 0.0
      %5933 = vmatpush1.msra.mxu0 0.0
      %5934 = vmatprep.subr.mxu0 0.0
      %5935 = vmatpush1.msra.mxu0 0.0
      %5936 = vmatprep.subr.mxu0 0.0
      %5937 = vmatpush1.msra.mxu0 0.0
      %5938 = vmatprep.subr.mxu0 0.0
      %5939 = vmatpush1.msra.mxu0 0.0
      %5940 = vmatprep.subr.mxu0 0.0
      %5941 = vmatpush1.msra.mxu0 0.0
      %5942 = vmatprep.subr.mxu0 0.0
      %5943 = vmatpush1.msra.mxu0 0.0
      %5944 = vmatprep.subr.mxu0 0.0
      %5945 = vmatpush1.msra.mxu0 0.0
      %5946 = vmatprep.subr.mxu0 0.0
      %5947 = vmatpush1.msra.mxu0 0.0
      %5948 = vmatprep.subr.mxu0 0.0
      %5949 = vmatpush1.msra.mxu0 0.0
      %5950 = vmatprep.subr.mxu0 0.0
      %5951 = vmatpush1.msra.mxu0 0.0
      %5952 = vmatprep.subr.mxu0 0.0
      %5953 = vmatpush1.msra.mxu0 0.0
      %5954 = vmatprep.subr.mxu0 0.0
      %5955 = vmatpush1.msra.mxu0 0.0
      %5956 = vmatprep.subr.mxu0 0.0
      %5957 = vmatpush1.msra.mxu0 0.0
      %5958 = vmatprep.subr.mxu0 0.0
      %5959 = vmatpush1.msra.mxu0 0.0
      %5960 = vmatprep.subr.mxu0 0.0
      %5961 = vmatpush1.msra.mxu0 0.0
      %5962 = vmatprep.subr.mxu0 0.0
      %5963 = vmatpush1.msra.mxu0 0.0
      %5964 = vmatprep.subr.mxu0 0.0
      %5965 = vmatpush1.msra.mxu0 0.0
      %5966 = vmatprep.subr.mxu0 0.0
      %5967 = vmatpush1.msra.mxu0 0.0
      %5968 = vmatprep.subr.mxu0 0.0
      %5969 = vmatpush1.msra.mxu0 0.0
      %5970 = vmatprep.subr.mxu0 0.0
      %5971 = vmatpush1.msra.mxu0 0.0
      %5972 = vmatprep.subr.mxu0 0.0
      %5973 = vmatpush1.msra.mxu0 0.0
      %5974 = vmatprep.subr.mxu0 0.0
      %5975 = vmatpush1.msra.mxu0 0.0
      %5976 = vmatprep.subr.mxu0 0.0
      %5977 = vmatpush1.msra.mxu0 0.0
      %5978 = vmatprep.subr.mxu0 0.0
      %5979 = vmatpush1.msra.mxu0 0.0
      %5980 = vmatprep.subr.mxu0 0.0
      %5981 = vmatpush1.msra.mxu0 0.0
      %5982 = vmatprep.subr.mxu0 0.0
      %5983 = vmatpush1.msra.mxu0 0.0
      %5984 = vmatprep.mubr.f32.mxu0 0.0
      %5985 = vmatmul.mubr.f32.gmra.mrb[0].mxu0 %v5918
      %v5986 = vpop.f32.mrb[0].mxu0
      %v5987 = vadd.f32 0.0, %v5986
      %v5988 = vpop.f32.mrb[0].mxu0
      %v5989 = vadd.f32 0.0, %v5988
      %5990 = vdwg.mxu0
      %5991 = vmatprep.subr.mxu0 0.0
      %5992 = vmatpush1.msra.mxu0 %v5911
      %5993 = vmatprep.subr.mxu0 0.0
      %5994 = vmatpush1.msra.mxu0 0.0
      %5995 = vmatprep.subr.mxu0 0.0
      %5996 = vmatpush1.msra.mxu0 0.0
      %5997 = vmatprep.subr.mxu0 0.0
      %5998 = vmatpush1.msra.mxu0 0.0
      %5999 = vmatprep.subr.mxu0 0.0
      %6000 = vmatpush1.msra.mxu0 0.0
      %6001 = vmatprep.subr.mxu0 0.0
      %6002 = vmatpush1.msra.mxu0 0.0
      %6003 = vmatprep.subr.mxu0 0.0
      %6004 = vmatpush1.msra.mxu0 0.0
      %6005 = vmatprep.subr.mxu0 0.0
      %6006 = vmatpush1.msra.mxu0 0.0
      %6007 = vmatprep.subr.mxu0 0.0
      %6008 = vmatpush1.msra.mxu0 0.0
      %6009 = vmatprep.subr.mxu0 0.0
      %6010 = vmatpush1.msra.mxu0 0.0
      %6011 = vmatprep.subr.mxu0 0.0
      %6012 = vmatpush1.msra.mxu0 0.0
      %6013 = vmatprep.subr.mxu0 0.0
      %6014 = vmatpush1.msra.mxu0 0.0
      %6015 = vmatprep.subr.mxu0 0.0
      %6016 = vmatpush1.msra.mxu0 0.0
      %6017 = vmatprep.subr.mxu0 0.0
      %6018 = vmatpush1.msra.mxu0 0.0
      %6019 = vmatprep.subr.mxu0 0.0
      %6020 = vmatpush1.msra.mxu0 0.0
      %6021 = vmatprep.subr.mxu0 0.0
      %6022 = vmatpush1.msra.mxu0 0.0
      %6023 = vmatprep.subr.mxu0 0.0
      %6024 = vmatpush1.msra.mxu0 0.0
      %6025 = vmatprep.subr.mxu0 0.0
      %6026 = vmatpush1.msra.mxu0 0.0
      %6027 = vmatprep.subr.mxu0 0.0
      %6028 = vmatpush1.msra.mxu0 0.0
      %6029 = vmatprep.subr.mxu0 0.0
      %6030 = vmatpush1.msra.mxu0 0.0
      %6031 = vmatprep.subr.mxu0 0.0
      %6032 = vmatpush1.msra.mxu0 0.0
      %6033 = vmatprep.subr.mxu0 0.0
      %6034 = vmatpush1.msra.mxu0 0.0
      %6035 = vmatprep.subr.mxu0 0.0
      %6036 = vmatpush1.msra.mxu0 0.0
      %6037 = vmatprep.subr.mxu0 0.0
      %6038 = vmatpush1.msra.mxu0 0.0
      %6039 = vmatprep.subr.mxu0 0.0
      %6040 = vmatpush1.msra.mxu0 0.0
      %6041 = vmatprep.subr.mxu0 0.0
      %6042 = vmatpush1.msra.mxu0 0.0
      %6043 = vmatprep.subr.mxu0 0.0
      %6044 = vmatpush1.msra.mxu0 0.0
      %6045 = vmatprep.subr.mxu0 0.0
      %6046 = vmatpush1.msra.mxu0 0.0
      %6047 = vmatprep.subr.mxu0 0.0
      %6048 = vmatpush1.msra.mxu0 0.0
      %6049 = vmatprep.subr.mxu0 0.0
      %6050 = vmatpush1.msra.mxu0 0.0
      %6051 = vmatprep.subr.mxu0 0.0
      %6052 = vmatpush1.msra.mxu0 0.0
      %6053 = vmatprep.subr.mxu0 0.0
      %6054 = vmatpush1.msra.mxu0 0.0
      %6055 = vmatprep.mubr.f32.mxu0 0.0
      %6056 = vmatmul.mubr.f32.gmra.mrb[0].mxu0 %v5918
      %v6057 = vpop.f32.mrb[0].mxu0
      %v6058 = vadd.f32 0.0, %v6057
      %v6059 = vpop.f32.mrb[0].mxu0
      %6060 = vdwg.mxu0
      %v6061 = vadd.f32 %v5901, %v5987
      %v6062 = vadd.f32 %v5902, %v5989
      %v6063 = vadd.f32 %v5903, %v6058
      %s6064 = scalar_lea.vmem %s1, 280
      %v6065 = vld [vmem:[%s6064] sm:$0xff]
      %6066 = vrot.lane.b32.xlu0 %v4784, 109
      %v6067 = vpop.permute.xlu0 %6066
      %6068 = vrot.lane.b32.xlu0 %v4785, 109
      %v6069 = vpop.permute.xlu0 %6068
      %6070 = vrot.lane.b32.xlu0 %v4786, 109
      %v6071 = vpop.permute.xlu0 %6070
      %v6072 = vsel %vm1608, %v6067, %v6069
      %v6073 = vsel %vm1608, %v6069, %v6071
      %v6078 = vsel %vm336, %v6065, 0
      %6080 = vmatprep.subr.mxu0 %v6073
      %6081 = vmatpush1.msra.mxu0 %v6072
      %6082 = vmatprep.subr.mxu0 0.0
      %6083 = vmatpush1.msra.mxu0 0.0
      %6084 = vmatprep.subr.mxu0 0.0
      %6085 = vmatpush1.msra.mxu0 0.0
      %6086 = vmatprep.subr.mxu0 0.0
      %6087 = vmatpush1.msra.mxu0 0.0
      %6088 = vmatprep.subr.mxu0 0.0
      %6089 = vmatpush1.msra.mxu0 0.0
      %6090 = vmatprep.subr.mxu0 0.0
      %6091 = vmatpush1.msra.mxu0 0.0
      %6092 = vmatprep.subr.mxu0 0.0
      %6093 = vmatpush1.msra.mxu0 0.0
      %6094 = vmatprep.subr.mxu0 0.0
      %6095 = vmatpush1.msra.mxu0 0.0
      %6096 = vmatprep.subr.mxu0 0.0
      %6097 = vmatpush1.msra.mxu0 0.0
      %6098 = vmatprep.subr.mxu0 0.0
      %6099 = vmatpush1.msra.mxu0 0.0
      %6100 = vmatprep.subr.mxu0 0.0
      %6101 = vmatpush1.msra.mxu0 0.0
      %6102 = vmatprep.subr.mxu0 0.0
      %6103 = vmatpush1.msra.mxu0 0.0
      %6104 = vmatprep.subr.mxu0 0.0
      %6105 = vmatpush1.msra.mxu0 0.0
      %6106 = vmatprep.subr.mxu0 0.0
      %6107 = vmatpush1.msra.mxu0 0.0
      %6108 = vmatprep.subr.mxu0 0.0
      %6109 = vmatpush1.msra.mxu0 0.0
      %6110 = vmatprep.subr.mxu0 0.0
      %6111 = vmatpush1.msra.mxu0 0.0
      %6112 = vmatprep.subr.mxu0 0.0
      %6113 = vmatpush1.msra.mxu0 0.0
      %6114 = vmatprep.subr.mxu0 0.0
      %6115 = vmatpush1.msra.mxu0 0.0
      %6116 = vmatprep.subr.mxu0 0.0
      %6117 = vmatpush1.msra.mxu0 0.0
      %6118 = vmatprep.subr.mxu0 0.0
      %6119 = vmatpush1.msra.mxu0 0.0
      %6120 = vmatprep.subr.mxu0 0.0
      %6121 = vmatpush1.msra.mxu0 0.0
      %6122 = vmatprep.subr.mxu0 0.0
      %6123 = vmatpush1.msra.mxu0 0.0
      %6124 = vmatprep.subr.mxu0 0.0
      %6125 = vmatpush1.msra.mxu0 0.0
      %6126 = vmatprep.subr.mxu0 0.0
      %6127 = vmatpush1.msra.mxu0 0.0
      %6128 = vmatprep.subr.mxu0 0.0
      %6129 = vmatpush1.msra.mxu0 0.0
      %6130 = vmatprep.subr.mxu0 0.0
      %6131 = vmatpush1.msra.mxu0 0.0
      %6132 = vmatprep.subr.mxu0 0.0
      %6133 = vmatpush1.msra.mxu0 0.0
      %6134 = vmatprep.subr.mxu0 0.0
      %6135 = vmatpush1.msra.mxu0 0.0
      %6136 = vmatprep.subr.mxu0 0.0
      %6137 = vmatpush1.msra.mxu0 0.0
      %6138 = vmatprep.subr.mxu0 0.0
      %6139 = vmatpush1.msra.mxu0 0.0
      %6140 = vmatprep.subr.mxu0 0.0
      %6141 = vmatpush1.msra.mxu0 0.0
      %6142 = vmatprep.subr.mxu0 0.0
      %6143 = vmatpush1.msra.mxu0 0.0
      %6144 = vmatprep.mubr.f32.mxu0 0.0
      %6145 = vmatmul.mubr.f32.gmra.mrb[0].mxu0 %v6078
      %v6146 = vpop.f32.mrb[0].mxu0
      %v6147 = vadd.f32 0.0, %v6146
      %v6148 = vpop.f32.mrb[0].mxu0
      %v6149 = vadd.f32 0.0, %v6148
      %6150 = vdwg.mxu0
      %6151 = vmatprep.subr.mxu0 0.0
      %6152 = vmatpush1.msra.mxu0 %v6071
      %6153 = vmatprep.subr.mxu0 0.0
      %6154 = vmatpush1.msra.mxu0 0.0
      %6155 = vmatprep.subr.mxu0 0.0
      %6156 = vmatpush1.msra.mxu0 0.0
      %6157 = vmatprep.subr.mxu0 0.0
      %6158 = vmatpush1.msra.mxu0 0.0
      %6159 = vmatprep.subr.mxu0 0.0
      %6160 = vmatpush1.msra.mxu0 0.0
      %6161 = vmatprep.subr.mxu0 0.0
      %6162 = vmatpush1.msra.mxu0 0.0
      %6163 = vmatprep.subr.mxu0 0.0
      %6164 = vmatpush1.msra.mxu0 0.0
      %6165 = vmatprep.subr.mxu0 0.0
      %6166 = vmatpush1.msra.mxu0 0.0
      %6167 = vmatprep.subr.mxu0 0.0
      %6168 = vmatpush1.msra.mxu0 0.0
      %6169 = vmatprep.subr.mxu0 0.0
      %6170 = vmatpush1.msra.mxu0 0.0
      %6171 = vmatprep.subr.mxu0 0.0
      %6172 = vmatpush1.msra.mxu0 0.0
      %6173 = vmatprep.subr.mxu0 0.0
      %6174 = vmatpush1.msra.mxu0 0.0
      %6175 = vmatprep.subr.mxu0 0.0
      %6176 = vmatpush1.msra.mxu0 0.0
      %6177 = vmatprep.subr.mxu0 0.0
      %6178 = vmatpush1.msra.mxu0 0.0
      %6179 = vmatprep.subr.mxu0 0.0
      %6180 = vmatpush1.msra.mxu0 0.0
      %6181 = vmatprep.subr.mxu0 0.0
      %6182 = vmatpush1.msra.mxu0 0.0
      %6183 = vmatprep.subr.mxu0 0.0
      %6184 = vmatpush1.msra.mxu0 0.0
      %6185 = vmatprep.subr.mxu0 0.0
      %6186 = vmatpush1.msra.mxu0 0.0
      %6187 = vmatprep.subr.mxu0 0.0
      %6188 = vmatpush1.msra.mxu0 0.0
      %6189 = vmatprep.subr.mxu0 0.0
      %6190 = vmatpush1.msra.mxu0 0.0
      %6191 = vmatprep.subr.mxu0 0.0
      %6192 = vmatpush1.msra.mxu0 0.0
      %6193 = vmatprep.subr.mxu0 0.0
      %6194 = vmatpush1.msra.mxu0 0.0
      %6195 = vmatprep.subr.mxu0 0.0
      %6196 = vmatpush1.msra.mxu0 0.0
      %6197 = vmatprep.subr.mxu0 0.0
      %6198 = vmatpush1.msra.mxu0 0.0
      %6199 = vmatprep.subr.mxu0 0.0
      %6200 = vmatpush1.msra.mxu0 0.0
      %6201 = vmatprep.subr.mxu0 0.0
      %6202 = vmatpush1.msra.mxu0 0.0
      %6203 = vmatprep.subr.mxu0 0.0
      %6204 = vmatpush1.msra.mxu0 0.0
      %6205 = vmatprep.subr.mxu0 0.0
      %6206 = vmatpush1.msra.mxu0 0.0
      %6207 = vmatprep.subr.mxu0 0.0
      %6208 = vmatpush1.msra.mxu0 0.0
      %6209 = vmatprep.subr.mxu0 0.0
      %6210 = vmatpush1.msra.mxu0 0.0
      %6211 = vmatprep.subr.mxu0 0.0
      %6212 = vmatpush1.msra.mxu0 0.0
      %6213 = vmatprep.subr.mxu0 0.0
      %6214 = vmatpush1.msra.mxu0 0.0
      %6215 = vmatprep.mubr.f32.mxu0 0.0
      %6216 = vmatmul.mubr.f32.gmra.mrb[0].mxu0 %v6078
      %v6217 = vpop.f32.mrb[0].mxu0
      %v6218 = vadd.f32 0.0, %v6217
      %v6219 = vpop.f32.mrb[0].mxu0
      %6220 = vdwg.mxu0
      %v6221 = vadd.f32 %v6061, %v6147
      %v6222 = vadd.f32 %v6062, %v6149
      %v6223 = vadd.f32 %v6063, %v6218
      %s6224 = scalar_lea.vmem %s2, 24
      %v6225 = vld [vmem:[%s6224] sm:$0xff]
      %6227 = vset.pattern.permute.xlu0 0
      %6228 = vperm.xlu0 %6227, %v6225
      %v6229 = vpop.permute.xlu0 %6228
      %v6231 = vadd.f32 %v6221, %v6229
      %v6232 = vadd.f32 %v6222, %v6229
      %v6233 = vadd.f32 %v6223, %v6229
      %s6234 = scalar_lea.vmem %s3, 24
      %v6235 = vld [vmem:[%s6234] sm:$0xff]
      %6237 = vset.pattern.permute.xlu0 0
      %6238 = vperm.xlu0 %6237, %v6235
      %v6239 = vpop.permute.xlu0 %6238
      %v6241 = vmul.f32 %v6231, %v6239
      %v6242 = vmul.f32 %v6232, %v6239
      %v6243 = vmul.f32 %v6233, %v6239
      %s6244 = scalar_lea.vmem %s4, 24
      %v6245 = vld [vmem:[%s6244] sm:$0xff]
      %6247 = vset.pattern.permute.xlu0 0
      %6248 = vperm.xlu0 %6247, %v6245
      %v6249 = vpop.permute.xlu0 %6248
      %v6251 = vadd.f32 %v6241, %v6249
      %v6252 = vadd.f32 %v6242, %v6249
      %v6253 = vadd.f32 %v6243, %v6249
      %v6254 = vmax.f32 %v6251, 0.0
      %v6255 = vmax.f32 %v6252, 0.0
      %v6256 = vmax.f32 %v6253, 0.0
      %v6257 = vmul.f32 %v6254, %v1795
      %v6258 = vmul.f32 %v6255, %v1799
      %v6259 = vmul.f32 %v6256, %v1803
      %6260 = vst [vmem:[#allocation2 + $0x8] sm:$0xff] %v6257
      %6261 = vst [vmem:[#allocation2 + $0x10] sm:$0xff] %v6258
      %6262 = vst.msk [vmem:[#allocation2 + $0x18] sm:$0xff] %vm1812, %v6259
      %s6263 = scalar_lea.vmem %s1, 288
      %v6264 = vld [vmem:[%s6263] sm:$0xff]
      %v6265 = vld [vmem:[#allocation2] sm:$0xff]
      %v6266 = vld [vmem:[#allocation2 + $0x8] sm:$0xff]
      %v6267 = vld [vmem:[#allocation2 + $0x10] sm:$0xff]
      %v6268 = vld [vmem:[#allocation2 + $0x18] sm:$0xff]
      %s6269 = scalar_lea.vmem %s1, 296
      %v6270 = vld [vmem:[%s6269] sm:$0xff]
      %6275 = vrot.lane.b32.xlu0 %v6265, 18
      %v6276 = vpop.permute.xlu0 %6275
      %6277 = vrot.lane.b32.xlu0 %v6266, 18
      %v6278 = vpop.permute.xlu0 %6277
      %6279 = vrot.lane.b32.xlu0 %v6267, 18
      %v6280 = vpop.permute.xlu0 %6279
      %6281 = vrot.lane.b32.xlu0 %v6268, 18
      %v6282 = vpop.permute.xlu0 %6281
      %v6283 = vsel %vm329, %v6276, %v6278
      %v6284 = vsel %vm329, %v6278, %v6280
      %v6285 = vsel %vm329, %v6280, %v6282
      %v6290 = vsel %vm336, %v6270, 0
      %6292 = vmatprep.subr.mxu0 %v6284
      %6293 = vmatpush1.msra.mxu0 %v6283
      %6294 = vmatprep.subr.mxu0 0.0
      %6295 = vmatpush1.msra.mxu0 0.0
      %6296 = vmatprep.subr.mxu0 0.0
      %6297 = vmatpush1.msra.mxu0 0.0
      %6298 = vmatprep.subr.mxu0 0.0
      %6299 = vmatpush1.msra.mxu0 0.0
      %6300 = vmatprep.subr.mxu0 0.0
      %6301 = vmatpush1.msra.mxu0 0.0
      %6302 = vmatprep.subr.mxu0 0.0
      %6303 = vmatpush1.msra.mxu0 0.0
      %6304 = vmatprep.subr.mxu0 0.0
      %6305 = vmatpush1.msra.mxu0 0.0
      %6306 = vmatprep.subr.mxu0 0.0
      %6307 = vmatpush1.msra.mxu0 0.0
      %6308 = vmatprep.subr.mxu0 0.0
      %6309 = vmatpush1.msra.mxu0 0.0
      %6310 = vmatprep.subr.mxu0 0.0
      %6311 = vmatpush1.msra.mxu0 0.0
      %6312 = vmatprep.subr.mxu0 0.0
      %6313 = vmatpush1.msra.mxu0 0.0
      %6314 = vmatprep.subr.mxu0 0.0
      %6315 = vmatpush1.msra.mxu0 0.0
      %6316 = vmatprep.subr.mxu0 0.0
      %6317 = vmatpush1.msra.mxu0 0.0
      %6318 = vmatprep.subr.mxu0 0.0
      %6319 = vmatpush1.msra.mxu0 0.0
      %6320 = vmatprep.subr.mxu0 0.0
      %6321 = vmatpush1.msra.mxu0 0.0
      %6322 = vmatprep.subr.mxu0 0.0
      %6323 = vmatpush1.msra.mxu0 0.0
      %6324 = vmatprep.subr.mxu0 0.0
      %6325 = vmatpush1.msra.mxu0 0.0
      %6326 = vmatprep.subr.mxu0 0.0
      %6327 = vmatpush1.msra.mxu0 0.0
      %6328 = vmatprep.subr.mxu0 0.0
      %6329 = vmatpush1.msra.mxu0 0.0
      %6330 = vmatprep.subr.mxu0 0.0
      %6331 = vmatpush1.msra.mxu0 0.0
      %6332 = vmatprep.subr.mxu0 0.0
      %6333 = vmatpush1.msra.mxu0 0.0
      %6334 = vmatprep.subr.mxu0 0.0
      %6335 = vmatpush1.msra.mxu0 0.0
      %6336 = vmatprep.subr.mxu0 0.0
      %6337 = vmatpush1.msra.mxu0 0.0
      %6338 = vmatprep.subr.mxu0 0.0
      %6339 = vmatpush1.msra.mxu0 0.0
      %6340 = vmatprep.subr.mxu0 0.0
      %6341 = vmatpush1.msra.mxu0 0.0
      %6342 = vmatprep.subr.mxu0 0.0
      %6343 = vmatpush1.msra.mxu0 0.0
      %6344 = vmatprep.subr.mxu0 0.0
      %6345 = vmatpush1.msra.mxu0 0.0
      %6346 = vmatprep.subr.mxu0 0.0
      %6347 = vmatpush1.msra.mxu0 0.0
      %6348 = vmatprep.subr.mxu0 0.0
      %6349 = vmatpush1.msra.mxu0 0.0
      %6350 = vmatprep.subr.mxu0 0.0
      %6351 = vmatpush1.msra.mxu0 0.0
      %6352 = vmatprep.subr.mxu0 0.0
      %6353 = vmatpush1.msra.mxu0 0.0
      %6354 = vmatprep.subr.mxu0 0.0
      %6355 = vmatpush1.msra.mxu0 0.0
      %6356 = vmatprep.mubr.f32.mxu0 0.0
      %6357 = vmatmul.mubr.f32.gmra.mrb[0].mxu0 %v6290
      %v6358 = vpop.f32.mrb[0].mxu0
      %v6359 = vadd.f32 0.0, %v6358
      %v6360 = vpop.f32.mrb[0].mxu0
      %v6361 = vadd.f32 0.0, %v6360
      %6362 = vdwg.mxu0
      %6363 = vmatprep.subr.mxu0 0.0
      %6364 = vmatpush1.msra.mxu0 %v6285
      %6365 = vmatprep.subr.mxu0 0.0
      %6366 = vmatpush1.msra.mxu0 0.0
      %6367 = vmatprep.subr.mxu0 0.0
      %6368 = vmatpush1.msra.mxu0 0.0
      %6369 = vmatprep.subr.mxu0 0.0
      %6370 = vmatpush1.msra.mxu0 0.0
      %6371 = vmatprep.subr.mxu0 0.0
      %6372 = vmatpush1.msra.mxu0 0.0
      %6373 = vmatprep.subr.mxu0 0.0
      %6374 = vmatpush1.msra.mxu0 0.0
      %6375 = vmatprep.subr.mxu0 0.0
      %6376 = vmatpush1.msra.mxu0 0.0
      %6377 = vmatprep.subr.mxu0 0.0
      %6378 = vmatpush1.msra.mxu0 0.0
      %6379 = vmatprep.subr.mxu0 0.0
      %6380 = vmatpush1.msra.mxu0 0.0
      %6381 = vmatprep.subr.mxu0 0.0
      %6382 = vmatpush1.msra.mxu0 0.0
      %6383 = vmatprep.subr.mxu0 0.0
      %6384 = vmatpush1.msra.mxu0 0.0
      %6385 = vmatprep.subr.mxu0 0.0
      %6386 = vmatpush1.msra.mxu0 0.0
      %6387 = vmatprep.subr.mxu0 0.0
      %6388 = vmatpush1.msra.mxu0 0.0
      %6389 = vmatprep.subr.mxu0 0.0
      %6390 = vmatpush1.msra.mxu0 0.0
      %6391 = vmatprep.subr.mxu0 0.0
      %6392 = vmatpush1.msra.mxu0 0.0
      %6393 = vmatprep.subr.mxu0 0.0
      %6394 = vmatpush1.msra.mxu0 0.0
      %6395 = vmatprep.subr.mxu0 0.0
      %6396 = vmatpush1.msra.mxu0 0.0
      %6397 = vmatprep.subr.mxu0 0.0
      %6398 = vmatpush1.msra.mxu0 0.0
      %6399 = vmatprep.subr.mxu0 0.0
      %6400 = vmatpush1.msra.mxu0 0.0
      %6401 = vmatprep.subr.mxu0 0.0
      %6402 = vmatpush1.msra.mxu0 0.0
      %6403 = vmatprep.subr.mxu0 0.0
      %6404 = vmatpush1.msra.mxu0 0.0
      %6405 = vmatprep.subr.mxu0 0.0
      %6406 = vmatpush1.msra.mxu0 0.0
      %6407 = vmatprep.subr.mxu0 0.0
      %6408 = vmatpush1.msra.mxu0 0.0
      %6409 = vmatprep.subr.mxu0 0.0
      %6410 = vmatpush1.msra.mxu0 0.0
      %6411 = vmatprep.subr.mxu0 0.0
      %6412 = vmatpush1.msra.mxu0 0.0
      %6413 = vmatprep.subr.mxu0 0.0
      %6414 = vmatpush1.msra.mxu0 0.0
      %6415 = vmatprep.subr.mxu0 0.0
      %6416 = vmatpush1.msra.mxu0 0.0
      %6417 = vmatprep.subr.mxu0 0.0
      %6418 = vmatpush1.msra.mxu0 0.0
      %6419 = vmatprep.subr.mxu0 0.0
      %6420 = vmatpush1.msra.mxu0 0.0
      %6421 = vmatprep.subr.mxu0 0.0
      %6422 = vmatpush1.msra.mxu0 0.0
      %6423 = vmatprep.subr.mxu0 0.0
      %6424 = vmatpush1.msra.mxu0 0.0
      %6425 = vmatprep.subr.mxu0 0.0
      %6426 = vmatpush1.msra.mxu0 0.0
      %6427 = vmatprep.mubr.f32.mxu0 0.0
      %6428 = vmatmul.mubr.f32.gmra.mrb[0].mxu0 %v6290
      %v6429 = vpop.f32.mrb[0].mxu0
      %v6430 = vadd.f32 0.0, %v6429
      %v6431 = vpop.f32.mrb[0].mxu0
      %6432 = vdwg.mxu0
      %6433 = vrot.lane.b32.xlu0 %v6265, 19
      %v6434 = vpop.permute.xlu0 %6433
      %6435 = vrot.lane.b32.xlu0 %v6266, 19
      %v6436 = vpop.permute.xlu0 %6435
      %6437 = vrot.lane.b32.xlu0 %v6267, 19
      %v6438 = vpop.permute.xlu0 %6437
      %6439 = vrot.lane.b32.xlu0 %v6268, 19
      %v6440 = vpop.permute.xlu0 %6439
      %v6441 = vsel %vm489, %v6434, %v6436
      %v6442 = vsel %vm489, %v6436, %v6438
      %v6443 = vsel %vm489, %v6438, %v6440
      %v6448 = vsel %vm336, %v6264, 0
      %6450 = vmatprep.subr.mxu0 %v6442
      %6451 = vmatpush1.msra.mxu0 %v6441
      %6452 = vmatprep.subr.mxu0 0.0
      %6453 = vmatpush1.msra.mxu0 0.0
      %6454 = vmatprep.subr.mxu0 0.0
      %6455 = vmatpush1.msra.mxu0 0.0
      %6456 = vmatprep.subr.mxu0 0.0
      %6457 = vmatpush1.msra.mxu0 0.0
      %6458 = vmatprep.subr.mxu0 0.0
      %6459 = vmatpush1.msra.mxu0 0.0
      %6460 = vmatprep.subr.mxu0 0.0
      %6461 = vmatpush1.msra.mxu0 0.0
      %6462 = vmatprep.subr.mxu0 0.0
      %6463 = vmatpush1.msra.mxu0 0.0
      %6464 = vmatprep.subr.mxu0 0.0
      %6465 = vmatpush1.msra.mxu0 0.0
      %6466 = vmatprep.subr.mxu0 0.0
      %6467 = vmatpush1.msra.mxu0 0.0
      %6468 = vmatprep.subr.mxu0 0.0
      %6469 = vmatpush1.msra.mxu0 0.0
      %6470 = vmatprep.subr.mxu0 0.0
      %6471 = vmatpush1.msra.mxu0 0.0
      %6472 = vmatprep.subr.mxu0 0.0
      %6473 = vmatpush1.msra.mxu0 0.0
      %6474 = vmatprep.subr.mxu0 0.0
      %6475 = vmatpush1.msra.mxu0 0.0
      %6476 = vmatprep.subr.mxu0 0.0
      %6477 = vmatpush1.msra.mxu0 0.0
      %6478 = vmatprep.subr.mxu0 0.0
      %6479 = vmatpush1.msra.mxu0 0.0
      %6480 = vmatprep.subr.mxu0 0.0
      %6481 = vmatpush1.msra.mxu0 0.0
      %6482 = vmatprep.subr.mxu0 0.0
      %6483 = vmatpush1.msra.mxu0 0.0
      %6484 = vmatprep.subr.mxu0 0.0
      %6485 = vmatpush1.msra.mxu0 0.0
      %6486 = vmatprep.subr.mxu0 0.0
      %6487 = vmatpush1.msra.mxu0 0.0
      %6488 = vmatprep.subr.mxu0 0.0
      %6489 = vmatpush1.msra.mxu0 0.0
      %6490 = vmatprep.subr.mxu0 0.0
      %6491 = vmatpush1.msra.mxu0 0.0
      %6492 = vmatprep.subr.mxu0 0.0
      %6493 = vmatpush1.msra.mxu0 0.0
      %6494 = vmatprep.subr.mxu0 0.0
      %6495 = vmatpush1.msra.mxu0 0.0
      %6496 = vmatprep.subr.mxu0 0.0
      %6497 = vmatpush1.msra.mxu0 0.0
      %6498 = vmatprep.subr.mxu0 0.0
      %6499 = vmatpush1.msra.mxu0 0.0
      %6500 = vmatprep.subr.mxu0 0.0
      %6501 = vmatpush1.msra.mxu0 0.0
      %6502 = vmatprep.subr.mxu0 0.0
      %6503 = vmatpush1.msra.mxu0 0.0
      %6504 = vmatprep.subr.mxu0 0.0
      %6505 = vmatpush1.msra.mxu0 0.0
      %6506 = vmatprep.subr.mxu0 0.0
      %6507 = vmatpush1.msra.mxu0 0.0
      %6508 = vmatprep.subr.mxu0 0.0
      %6509 = vmatpush1.msra.mxu0 0.0
      %6510 = vmatprep.subr.mxu0 0.0
      %6511 = vmatpush1.msra.mxu0 0.0
      %6512 = vmatprep.subr.mxu0 0.0
      %6513 = vmatpush1.msra.mxu0 0.0
      %6514 = vmatprep.mubr.f32.mxu0 0.0
      %6515 = vmatmul.mubr.f32.gmra.mrb[0].mxu0 %v6448
      %v6516 = vpop.f32.mrb[0].mxu0
      %v6517 = vadd.f32 %v6359, %v6516
      %v6518 = vpop.f32.mrb[0].mxu0
      %v6519 = vadd.f32 %v6361, %v6518
      %6520 = vdwg.mxu0
      %6521 = vmatprep.subr.mxu0 0.0
      %6522 = vmatpush1.msra.mxu0 %v6443
      %6523 = vmatprep.subr.mxu0 0.0
      %6524 = vmatpush1.msra.mxu0 0.0
      %6525 = vmatprep.subr.mxu0 0.0
      %6526 = vmatpush1.msra.mxu0 0.0
      %6527 = vmatprep.subr.mxu0 0.0
      %6528 = vmatpush1.msra.mxu0 0.0
      %6529 = vmatprep.subr.mxu0 0.0
      %6530 = vmatpush1.msra.mxu0 0.0
      %6531 = vmatprep.subr.mxu0 0.0
      %6532 = vmatpush1.msra.mxu0 0.0
      %6533 = vmatprep.subr.mxu0 0.0
      %6534 = vmatpush1.msra.mxu0 0.0
      %6535 = vmatprep.subr.mxu0 0.0
      %6536 = vmatpush1.msra.mxu0 0.0
      %6537 = vmatprep.subr.mxu0 0.0
      %6538 = vmatpush1.msra.mxu0 0.0
      %6539 = vmatprep.subr.mxu0 0.0
      %6540 = vmatpush1.msra.mxu0 0.0
      %6541 = vmatprep.subr.mxu0 0.0
      %6542 = vmatpush1.msra.mxu0 0.0
      %6543 = vmatprep.subr.mxu0 0.0
      %6544 = vmatpush1.msra.mxu0 0.0
      %6545 = vmatprep.subr.mxu0 0.0
      %6546 = vmatpush1.msra.mxu0 0.0
      %6547 = vmatprep.subr.mxu0 0.0
      %6548 = vmatpush1.msra.mxu0 0.0
      %6549 = vmatprep.subr.mxu0 0.0
      %6550 = vmatpush1.msra.mxu0 0.0
      %6551 = vmatprep.subr.mxu0 0.0
      %6552 = vmatpush1.msra.mxu0 0.0
      %6553 = vmatprep.subr.mxu0 0.0
      %6554 = vmatpush1.msra.mxu0 0.0
      %6555 = vmatprep.subr.mxu0 0.0
      %6556 = vmatpush1.msra.mxu0 0.0
      %6557 = vmatprep.subr.mxu0 0.0
      %6558 = vmatpush1.msra.mxu0 0.0
      %6559 = vmatprep.subr.mxu0 0.0
      %6560 = vmatpush1.msra.mxu0 0.0
      %6561 = vmatprep.subr.mxu0 0.0
      %6562 = vmatpush1.msra.mxu0 0.0
      %6563 = vmatprep.subr.mxu0 0.0
      %6564 = vmatpush1.msra.mxu0 0.0
      %6565 = vmatprep.subr.mxu0 0.0
      %6566 = vmatpush1.msra.mxu0 0.0
      %6567 = vmatprep.subr.mxu0 0.0
      %6568 = vmatpush1.msra.mxu0 0.0
      %6569 = vmatprep.subr.mxu0 0.0
      %6570 = vmatpush1.msra.mxu0 0.0
      %6571 = vmatprep.subr.mxu0 0.0
      %6572 = vmatpush1.msra.mxu0 0.0
      %6573 = vmatprep.subr.mxu0 0.0
      %6574 = vmatpush1.msra.mxu0 0.0
      %6575 = vmatprep.subr.mxu0 0.0
      %6576 = vmatpush1.msra.mxu0 0.0
      %6577 = vmatprep.subr.mxu0 0.0
      %6578 = vmatpush1.msra.mxu0 0.0
      %6579 = vmatprep.subr.mxu0 0.0
      %6580 = vmatpush1.msra.mxu0 0.0
      %6581 = vmatprep.subr.mxu0 0.0
      %6582 = vmatpush1.msra.mxu0 0.0
      %6583 = vmatprep.subr.mxu0 0.0
      %6584 = vmatpush1.msra.mxu0 0.0
      %6585 = vmatprep.mubr.f32.mxu0 0.0
      %6586 = vmatmul.mubr.f32.gmra.mrb[0].mxu0 %v6448
      %v6587 = vpop.f32.mrb[0].mxu0
      %v6588 = vadd.f32 %v6430, %v6587
      %v6589 = vpop.f32.mrb[0].mxu0
      %6590 = vdwg.mxu0
      %s6591 = scalar_lea.vmem %s1, 304
      %v6592 = vld [vmem:[%s6591] sm:$0xff]
      %6593 = vrot.lane.b32.xlu0 %v6265, 17
      %v6594 = vpop.permute.xlu0 %6593
      %6595 = vrot.lane.b32.xlu0 %v6266, 17
      %v6596 = vpop.permute.xlu0 %6595
      %6597 = vrot.lane.b32.xlu0 %v6267, 17
      %v6598 = vpop.permute.xlu0 %6597
      %6599 = vrot.lane.b32.xlu0 %v6268, 17
      %v6600 = vpop.permute.xlu0 %6599
      %v6601 = vsel %vm650, %v6594, %v6596
      %v6602 = vsel %vm650, %v6596, %v6598
      %v6603 = vsel %vm650, %v6598, %v6600
      %v6608 = vsel %vm336, %v6592, 0
      %6610 = vmatprep.subr.mxu0 %v6602
      %6611 = vmatpush1.msra.mxu0 %v6601
      %6612 = vmatprep.subr.mxu0 0.0
      %6613 = vmatpush1.msra.mxu0 0.0
      %6614 = vmatprep.subr.mxu0 0.0
      %6615 = vmatpush1.msra.mxu0 0.0
      %6616 = vmatprep.subr.mxu0 0.0
      %6617 = vmatpush1.msra.mxu0 0.0
      %6618 = vmatprep.subr.mxu0 0.0
      %6619 = vmatpush1.msra.mxu0 0.0
      %6620 = vmatprep.subr.mxu0 0.0
      %6621 = vmatpush1.msra.mxu0 0.0
      %6622 = vmatprep.subr.mxu0 0.0
      %6623 = vmatpush1.msra.mxu0 0.0
      %6624 = vmatprep.subr.mxu0 0.0
      %6625 = vmatpush1.msra.mxu0 0.0
      %6626 = vmatprep.subr.mxu0 0.0
      %6627 = vmatpush1.msra.mxu0 0.0
      %6628 = vmatprep.subr.mxu0 0.0
      %6629 = vmatpush1.msra.mxu0 0.0
      %6630 = vmatprep.subr.mxu0 0.0
      %6631 = vmatpush1.msra.mxu0 0.0
      %6632 = vmatprep.subr.mxu0 0.0
      %6633 = vmatpush1.msra.mxu0 0.0
      %6634 = vmatprep.subr.mxu0 0.0
      %6635 = vmatpush1.msra.mxu0 0.0
      %6636 = vmatprep.subr.mxu0 0.0
      %6637 = vmatpush1.msra.mxu0 0.0
      %6638 = vmatprep.subr.mxu0 0.0
      %6639 = vmatpush1.msra.mxu0 0.0
      %6640 = vmatprep.subr.mxu0 0.0
      %6641 = vmatpush1.msra.mxu0 0.0
      %6642 = vmatprep.subr.mxu0 0.0
      %6643 = vmatpush1.msra.mxu0 0.0
      %6644 = vmatprep.subr.mxu0 0.0
      %6645 = vmatpush1.msra.mxu0 0.0
      %6646 = vmatprep.subr.mxu0 0.0
      %6647 = vmatpush1.msra.mxu0 0.0
      %6648 = vmatprep.subr.mxu0 0.0
      %6649 = vmatpush1.msra.mxu0 0.0
      %6650 = vmatprep.subr.mxu0 0.0
      %6651 = vmatpush1.msra.mxu0 0.0
      %6652 = vmatprep.subr.mxu0 0.0
      %6653 = vmatpush1.msra.mxu0 0.0
      %6654 = vmatprep.subr.mxu0 0.0
      %6655 = vmatpush1.msra.mxu0 0.0
      %6656 = vmatprep.subr.mxu0 0.0
      %6657 = vmatpush1.msra.mxu0 0.0
      %6658 = vmatprep.subr.mxu0 0.0
      %6659 = vmatpush1.msra.mxu0 0.0
      %6660 = vmatprep.subr.mxu0 0.0
      %6661 = vmatpush1.msra.mxu0 0.0
      %6662 = vmatprep.subr.mxu0 0.0
      %6663 = vmatpush1.msra.mxu0 0.0
      %6664 = vmatprep.subr.mxu0 0.0
      %6665 = vmatpush1.msra.mxu0 0.0
      %6666 = vmatprep.subr.mxu0 0.0
      %6667 = vmatpush1.msra.mxu0 0.0
      %6668 = vmatprep.subr.mxu0 0.0
      %6669 = vmatpush1.msra.mxu0 0.0
      %6670 = vmatprep.subr.mxu0 0.0
      %6671 = vmatpush1.msra.mxu0 0.0
      %6672 = vmatprep.subr.mxu0 0.0
      %6673 = vmatpush1.msra.mxu0 0.0
      %6674 = vmatprep.mubr.f32.mxu0 0.0
      %6675 = vmatmul.mubr.f32.gmra.mrb[0].mxu0 %v6608
      %v6676 = vpop.f32.mrb[0].mxu0
      %v6677 = vadd.f32 0.0, %v6676
      %v6678 = vpop.f32.mrb[0].mxu0
      %v6679 = vadd.f32 0.0, %v6678
      %6680 = vdwg.mxu0
      %6681 = vmatprep.subr.mxu0 0.0
      %6682 = vmatpush1.msra.mxu0 %v6603
      %6683 = vmatprep.subr.mxu0 0.0
      %6684 = vmatpush1.msra.mxu0 0.0
      %6685 = vmatprep.subr.mxu0 0.0
      %6686 = vmatpush1.msra.mxu0 0.0
      %6687 = vmatprep.subr.mxu0 0.0
      %6688 = vmatpush1.msra.mxu0 0.0
      %6689 = vmatprep.subr.mxu0 0.0
      %6690 = vmatpush1.msra.mxu0 0.0
      %6691 = vmatprep.subr.mxu0 0.0
      %6692 = vmatpush1.msra.mxu0 0.0
      %6693 = vmatprep.subr.mxu0 0.0
      %6694 = vmatpush1.msra.mxu0 0.0
      %6695 = vmatprep.subr.mxu0 0.0
      %6696 = vmatpush1.msra.mxu0 0.0
      %6697 = vmatprep.subr.mxu0 0.0
      %6698 = vmatpush1.msra.mxu0 0.0
      %6699 = vmatprep.subr.mxu0 0.0
      %6700 = vmatpush1.msra.mxu0 0.0
      %6701 = vmatprep.subr.mxu0 0.0
      %6702 = vmatpush1.msra.mxu0 0.0
      %6703 = vmatprep.subr.mxu0 0.0
      %6704 = vmatpush1.msra.mxu0 0.0
      %6705 = vmatprep.subr.mxu0 0.0
      %6706 = vmatpush1.msra.mxu0 0.0
      %6707 = vmatprep.subr.mxu0 0.0
      %6708 = vmatpush1.msra.mxu0 0.0
      %6709 = vmatprep.subr.mxu0 0.0
      %6710 = vmatpush1.msra.mxu0 0.0
      %6711 = vmatprep.subr.mxu0 0.0
      %6712 = vmatpush1.msra.mxu0 0.0
      %6713 = vmatprep.subr.mxu0 0.0
      %6714 = vmatpush1.msra.mxu0 0.0
      %6715 = vmatprep.subr.mxu0 0.0
      %6716 = vmatpush1.msra.mxu0 0.0
      %6717 = vmatprep.subr.mxu0 0.0
      %6718 = vmatpush1.msra.mxu0 0.0
      %6719 = vmatprep.subr.mxu0 0.0
      %6720 = vmatpush1.msra.mxu0 0.0
      %6721 = vmatprep.subr.mxu0 0.0
      %6722 = vmatpush1.msra.mxu0 0.0
      %6723 = vmatprep.subr.mxu0 0.0
      %6724 = vmatpush1.msra.mxu0 0.0
      %6725 = vmatprep.subr.mxu0 0.0
      %6726 = vmatpush1.msra.mxu0 0.0
      %6727 = vmatprep.subr.mxu0 0.0
      %6728 = vmatpush1.msra.mxu0 0.0
      %6729 = vmatprep.subr.mxu0 0.0
      %6730 = vmatpush1.msra.mxu0 0.0
      %6731 = vmatprep.subr.mxu0 0.0
      %6732 = vmatpush1.msra.mxu0 0.0
      %6733 = vmatprep.subr.mxu0 0.0
      %6734 = vmatpush1.msra.mxu0 0.0
      %6735 = vmatprep.subr.mxu0 0.0
      %6736 = vmatpush1.msra.mxu0 0.0
      %6737 = vmatprep.subr.mxu0 0.0
      %6738 = vmatpush1.msra.mxu0 0.0
      %6739 = vmatprep.subr.mxu0 0.0
      %6740 = vmatpush1.msra.mxu0 0.0
      %6741 = vmatprep.subr.mxu0 0.0
      %6742 = vmatpush1.msra.mxu0 0.0
      %6743 = vmatprep.subr.mxu0 0.0
      %6744 = vmatpush1.msra.mxu0 0.0
      %6745 = vmatprep.mubr.f32.mxu0 0.0
      %6746 = vmatmul.mubr.f32.gmra.mrb[0].mxu0 %v6608
      %v6747 = vpop.f32.mrb[0].mxu0
      %v6748 = vadd.f32 0.0, %v6747
      %v6749 = vpop.f32.mrb[0].mxu0
      %6750 = vdwg.mxu0
      %v6751 = vadd.f32 %v6517, %v6677
      %v6752 = vadd.f32 %v6519, %v6679
      %v6753 = vadd.f32 %v6588, %v6748
      %s6754 = scalar_lea.vmem %s1, 312
      %v6755 = vld [vmem:[%s6754] sm:$0xff]
      %6756 = vrot.lane.b32.xlu0 %v6265, 1
      %v6757 = vpop.permute.xlu0 %6756
      %6758 = vrot.lane.b32.xlu0 %v6266, 1
      %v6759 = vpop.permute.xlu0 %6758
      %6760 = vrot.lane.b32.xlu0 %v6267, 1
      %v6761 = vpop.permute.xlu0 %6760
      %6762 = vrot.lane.b32.xlu0 %v6268, 1
      %v6763 = vpop.permute.xlu0 %6762
      %v6764 = vsel %vm814, %v6757, %v6759
      %v6765 = vsel %vm814, %v6759, %v6761
      %v6766 = vsel %vm814, %v6761, %v6763
      %v6771 = vsel %vm336, %v6755, 0
      %6773 = vmatprep.subr.mxu0 %v6765
      %6774 = vmatpush1.msra.mxu0 %v6764
      %6775 = vmatprep.subr.mxu0 0.0
      %6776 = vmatpush1.msra.mxu0 0.0
      %6777 = vmatprep.subr.mxu0 0.0
      %6778 = vmatpush1.msra.mxu0 0.0
      %6779 = vmatprep.subr.mxu0 0.0
      %6780 = vmatpush1.msra.mxu0 0.0
      %6781 = vmatprep.subr.mxu0 0.0
      %6782 = vmatpush1.msra.mxu0 0.0
      %6783 = vmatprep.subr.mxu0 0.0
      %6784 = vmatpush1.msra.mxu0 0.0
      %6785 = vmatprep.subr.mxu0 0.0
      %6786 = vmatpush1.msra.mxu0 0.0
      %6787 = vmatprep.subr.mxu0 0.0
      %6788 = vmatpush1.msra.mxu0 0.0
      %6789 = vmatprep.subr.mxu0 0.0
      %6790 = vmatpush1.msra.mxu0 0.0
      %6791 = vmatprep.subr.mxu0 0.0
      %6792 = vmatpush1.msra.mxu0 0.0
      %6793 = vmatprep.subr.mxu0 0.0
      %6794 = vmatpush1.msra.mxu0 0.0
      %6795 = vmatprep.subr.mxu0 0.0
      %6796 = vmatpush1.msra.mxu0 0.0
      %6797 = vmatprep.subr.mxu0 0.0
      %6798 = vmatpush1.msra.mxu0 0.0
      %6799 = vmatprep.subr.mxu0 0.0
      %6800 = vmatpush1.msra.mxu0 0.0
      %6801 = vmatprep.subr.mxu0 0.0
      %6802 = vmatpush1.msra.mxu0 0.0
      %6803 = vmatprep.subr.mxu0 0.0
      %6804 = vmatpush1.msra.mxu0 0.0
      %6805 = vmatprep.subr.mxu0 0.0
      %6806 = vmatpush1.msra.mxu0 0.0
      %6807 = vmatprep.subr.mxu0 0.0
      %6808 = vmatpush1.msra.mxu0 0.0
      %6809 = vmatprep.subr.mxu0 0.0
      %6810 = vmatpush1.msra.mxu0 0.0
      %6811 = vmatprep.subr.mxu0 0.0
      %6812 = vmatpush1.msra.mxu0 0.0
      %6813 = vmatprep.subr.mxu0 0.0
      %6814 = vmatpush1.msra.mxu0 0.0
      %6815 = vmatprep.subr.mxu0 0.0
      %6816 = vmatpush1.msra.mxu0 0.0
      %6817 = vmatprep.subr.mxu0 0.0
      %6818 = vmatpush1.msra.mxu0 0.0
      %6819 = vmatprep.subr.mxu0 0.0
      %6820 = vmatpush1.msra.mxu0 0.0
      %6821 = vmatprep.subr.mxu0 0.0
      %6822 = vmatpush1.msra.mxu0 0.0
      %6823 = vmatprep.subr.mxu0 0.0
      %6824 = vmatpush1.msra.mxu0 0.0
      %6825 = vmatprep.subr.mxu0 0.0
      %6826 = vmatpush1.msra.mxu0 0.0
      %6827 = vmatprep.subr.mxu0 0.0
      %6828 = vmatpush1.msra.mxu0 0.0
      %6829 = vmatprep.subr.mxu0 0.0
      %6830 = vmatpush1.msra.mxu0 0.0
      %6831 = vmatprep.subr.mxu0 0.0
      %6832 = vmatpush1.msra.mxu0 0.0
      %6833 = vmatprep.subr.mxu0 0.0
      %6834 = vmatpush1.msra.mxu0 0.0
      %6835 = vmatprep.subr.mxu0 0.0
      %6836 = vmatpush1.msra.mxu0 0.0
      %6837 = vmatprep.mubr.f32.mxu0 0.0
      %6838 = vmatmul.mubr.f32.gmra.mrb[0].mxu0 %v6771
      %v6839 = vpop.f32.mrb[0].mxu0
      %v6840 = vadd.f32 0.0, %v6839
      %v6841 = vpop.f32.mrb[0].mxu0
      %v6842 = vadd.f32 0.0, %v6841
      %6843 = vdwg.mxu0
      %6844 = vmatprep.subr.mxu0 0.0
      %6845 = vmatpush1.msra.mxu0 %v6766
      %6846 = vmatprep.subr.mxu0 0.0
      %6847 = vmatpush1.msra.mxu0 0.0
      %6848 = vmatprep.subr.mxu0 0.0
      %6849 = vmatpush1.msra.mxu0 0.0
      %6850 = vmatprep.subr.mxu0 0.0
      %6851 = vmatpush1.msra.mxu0 0.0
      %6852 = vmatprep.subr.mxu0 0.0
      %6853 = vmatpush1.msra.mxu0 0.0
      %6854 = vmatprep.subr.mxu0 0.0
      %6855 = vmatpush1.msra.mxu0 0.0
      %6856 = vmatprep.subr.mxu0 0.0
      %6857 = vmatpush1.msra.mxu0 0.0
      %6858 = vmatprep.subr.mxu0 0.0
      %6859 = vmatpush1.msra.mxu0 0.0
      %6860 = vmatprep.subr.mxu0 0.0
      %6861 = vmatpush1.msra.mxu0 0.0
      %6862 = vmatprep.subr.mxu0 0.0
      %6863 = vmatpush1.msra.mxu0 0.0
      %6864 = vmatprep.subr.mxu0 0.0
      %6865 = vmatpush1.msra.mxu0 0.0
      %6866 = vmatprep.subr.mxu0 0.0
      %6867 = vmatpush1.msra.mxu0 0.0
      %6868 = vmatprep.subr.mxu0 0.0
      %6869 = vmatpush1.msra.mxu0 0.0
      %6870 = vmatprep.subr.mxu0 0.0
      %6871 = vmatpush1.msra.mxu0 0.0
      %6872 = vmatprep.subr.mxu0 0.0
      %6873 = vmatpush1.msra.mxu0 0.0
      %6874 = vmatprep.subr.mxu0 0.0
      %6875 = vmatpush1.msra.mxu0 0.0
      %6876 = vmatprep.subr.mxu0 0.0
      %6877 = vmatpush1.msra.mxu0 0.0
      %6878 = vmatprep.subr.mxu0 0.0
      %6879 = vmatpush1.msra.mxu0 0.0
      %6880 = vmatprep.subr.mxu0 0.0
      %6881 = vmatpush1.msra.mxu0 0.0
      %6882 = vmatprep.subr.mxu0 0.0
      %6883 = vmatpush1.msra.mxu0 0.0
      %6884 = vmatprep.subr.mxu0 0.0
      %6885 = vmatpush1.msra.mxu0 0.0
      %6886 = vmatprep.subr.mxu0 0.0
      %6887 = vmatpush1.msra.mxu0 0.0
      %6888 = vmatprep.subr.mxu0 0.0
      %6889 = vmatpush1.msra.mxu0 0.0
      %6890 = vmatprep.subr.mxu0 0.0
      %6891 = vmatpush1.msra.mxu0 0.0
      %6892 = vmatprep.subr.mxu0 0.0
      %6893 = vmatpush1.msra.mxu0 0.0
      %6894 = vmatprep.subr.mxu0 0.0
      %6895 = vmatpush1.msra.mxu0 0.0
      %6896 = vmatprep.subr.mxu0 0.0
      %6897 = vmatpush1.msra.mxu0 0.0
      %6898 = vmatprep.subr.mxu0 0.0
      %6899 = vmatpush1.msra.mxu0 0.0
      %6900 = vmatprep.subr.mxu0 0.0
      %6901 = vmatpush1.msra.mxu0 0.0
      %6902 = vmatprep.subr.mxu0 0.0
      %6903 = vmatpush1.msra.mxu0 0.0
      %6904 = vmatprep.subr.mxu0 0.0
      %6905 = vmatpush1.msra.mxu0 0.0
      %6906 = vmatprep.subr.mxu0 0.0
      %6907 = vmatpush1.msra.mxu0 0.0
      %6908 = vmatprep.mubr.f32.mxu0 0.0
      %6909 = vmatmul.mubr.f32.gmra.mrb[0].mxu0 %v6771
      %v6910 = vpop.f32.mrb[0].mxu0
      %v6911 = vadd.f32 0.0, %v6910
      %v6912 = vpop.f32.mrb[0].mxu0
      %6913 = vdwg.mxu0
      %v6914 = vadd.f32 %v6751, %v6840
      %v6915 = vadd.f32 %v6752, %v6842
      %v6916 = vadd.f32 %v6753, %v6911
      %s6917 = scalar_lea.vmem %s1, 320
      %v6918 = vld [vmem:[%s6917] sm:$0xff]
      %v6920 = vsel %vm336, %v6918, 0
      %6922 = vmatprep.subr.mxu0 %v6267
      %6923 = vmatpush1.msra.mxu0 %v6266
      %6924 = vmatprep.subr.mxu0 0.0
      %6925 = vmatpush1.msra.mxu0 0.0
      %6926 = vmatprep.subr.mxu0 0.0
      %6927 = vmatpush1.msra.mxu0 0.0
      %6928 = vmatprep.subr.mxu0 0.0
      %6929 = vmatpush1.msra.mxu0 0.0
      %6930 = vmatprep.subr.mxu0 0.0
      %6931 = vmatpush1.msra.mxu0 0.0
      %6932 = vmatprep.subr.mxu0 0.0
      %6933 = vmatpush1.msra.mxu0 0.0
      %6934 = vmatprep.subr.mxu0 0.0
      %6935 = vmatpush1.msra.mxu0 0.0
      %6936 = vmatprep.subr.mxu0 0.0
      %6937 = vmatpush1.msra.mxu0 0.0
      %6938 = vmatprep.subr.mxu0 0.0
      %6939 = vmatpush1.msra.mxu0 0.0
      %6940 = vmatprep.subr.mxu0 0.0
      %6941 = vmatpush1.msra.mxu0 0.0
      %6942 = vmatprep.subr.mxu0 0.0
      %6943 = vmatpush1.msra.mxu0 0.0
      %6944 = vmatprep.subr.mxu0 0.0
      %6945 = vmatpush1.msra.mxu0 0.0
      %6946 = vmatprep.subr.mxu0 0.0
      %6947 = vmatpush1.msra.mxu0 0.0
      %6948 = vmatprep.subr.mxu0 0.0
      %6949 = vmatpush1.msra.mxu0 0.0
      %6950 = vmatprep.subr.mxu0 0.0
      %6951 = vmatpush1.msra.mxu0 0.0
      %6952 = vmatprep.subr.mxu0 0.0
      %6953 = vmatpush1.msra.mxu0 0.0
      %6954 = vmatprep.subr.mxu0 0.0
      %6955 = vmatpush1.msra.mxu0 0.0
      %6956 = vmatprep.subr.mxu0 0.0
      %6957 = vmatpush1.msra.mxu0 0.0
      %6958 = vmatprep.subr.mxu0 0.0
      %6959 = vmatpush1.msra.mxu0 0.0
      %6960 = vmatprep.subr.mxu0 0.0
      %6961 = vmatpush1.msra.mxu0 0.0
      %6962 = vmatprep.subr.mxu0 0.0
      %6963 = vmatpush1.msra.mxu0 0.0
      %6964 = vmatprep.subr.mxu0 0.0
      %6965 = vmatpush1.msra.mxu0 0.0
      %6966 = vmatprep.subr.mxu0 0.0
      %6967 = vmatpush1.msra.mxu0 0.0
      %6968 = vmatprep.subr.mxu0 0.0
      %6969 = vmatpush1.msra.mxu0 0.0
      %6970 = vmatprep.subr.mxu0 0.0
      %6971 = vmatpush1.msra.mxu0 0.0
      %6972 = vmatprep.subr.mxu0 0.0
      %6973 = vmatpush1.msra.mxu0 0.0
      %6974 = vmatprep.subr.mxu0 0.0
      %6975 = vmatpush1.msra.mxu0 0.0
      %6976 = vmatprep.subr.mxu0 0.0
      %6977 = vmatpush1.msra.mxu0 0.0
      %6978 = vmatprep.subr.mxu0 0.0
      %6979 = vmatpush1.msra.mxu0 0.0
      %6980 = vmatprep.subr.mxu0 0.0
      %6981 = vmatpush1.msra.mxu0 0.0
      %6982 = vmatprep.subr.mxu0 0.0
      %6983 = vmatpush1.msra.mxu0 0.0
      %6984 = vmatprep.subr.mxu0 0.0
      %6985 = vmatpush1.msra.mxu0 0.0
      %6986 = vmatprep.mubr.f32.mxu0 0.0
      %6987 = vmatmul.mubr.f32.gmra.mrb[0].mxu0 %v6920
      %v6988 = vpop.f32.mrb[0].mxu0
      %v6989 = vadd.f32 0.0, %v6988
      %v6990 = vpop.f32.mrb[0].mxu0
      %v6991 = vadd.f32 0.0, %v6990
      %6992 = vdwg.mxu0
      %6993 = vmatprep.subr.mxu0 0.0
      %6994 = vmatpush1.msra.mxu0 %v6268
      %6995 = vmatprep.subr.mxu0 0.0
      %6996 = vmatpush1.msra.mxu0 0.0
      %6997 = vmatprep.subr.mxu0 0.0
      %6998 = vmatpush1.msra.mxu0 0.0
      %6999 = vmatprep.subr.mxu0 0.0
      %7000 = vmatpush1.msra.mxu0 0.0
      %7001 = vmatprep.subr.mxu0 0.0
      %7002 = vmatpush1.msra.mxu0 0.0
      %7003 = vmatprep.subr.mxu0 0.0
      %7004 = vmatpush1.msra.mxu0 0.0
      %7005 = vmatprep.subr.mxu0 0.0
      %7006 = vmatpush1.msra.mxu0 0.0
      %7007 = vmatprep.subr.mxu0 0.0
      %7008 = vmatpush1.msra.mxu0 0.0
      %7009 = vmatprep.subr.mxu0 0.0
      %7010 = vmatpush1.msra.mxu0 0.0
      %7011 = vmatprep.subr.mxu0 0.0
      %7012 = vmatpush1.msra.mxu0 0.0
      %7013 = vmatprep.subr.mxu0 0.0
      %7014 = vmatpush1.msra.mxu0 0.0
      %7015 = vmatprep.subr.mxu0 0.0
      %7016 = vmatpush1.msra.mxu0 0.0
      %7017 = vmatprep.subr.mxu0 0.0
      %7018 = vmatpush1.msra.mxu0 0.0
      %7019 = vmatprep.subr.mxu0 0.0
      %7020 = vmatpush1.msra.mxu0 0.0
      %7021 = vmatprep.subr.mxu0 0.0
      %7022 = vmatpush1.msra.mxu0 0.0
      %7023 = vmatprep.subr.mxu0 0.0
      %7024 = vmatpush1.msra.mxu0 0.0
      %7025 = vmatprep.subr.mxu0 0.0
      %7026 = vmatpush1.msra.mxu0 0.0
      %7027 = vmatprep.subr.mxu0 0.0
      %7028 = vmatpush1.msra.mxu0 0.0
      %7029 = vmatprep.subr.mxu0 0.0
      %7030 = vmatpush1.msra.mxu0 0.0
      %7031 = vmatprep.subr.mxu0 0.0
      %7032 = vmatpush1.msra.mxu0 0.0
      %7033 = vmatprep.subr.mxu0 0.0
      %7034 = vmatpush1.msra.mxu0 0.0
      %7035 = vmatprep.subr.mxu0 0.0
      %7036 = vmatpush1.msra.mxu0 0.0
      %7037 = vmatprep.subr.mxu0 0.0
      %7038 = vmatpush1.msra.mxu0 0.0
      %7039 = vmatprep.subr.mxu0 0.0
      %7040 = vmatpush1.msra.mxu0 0.0
      %7041 = vmatprep.subr.mxu0 0.0
      %7042 = vmatpush1.msra.mxu0 0.0
      %7043 = vmatprep.subr.mxu0 0.0
      %7044 = vmatpush1.msra.mxu0 0.0
      %7045 = vmatprep.subr.mxu0 0.0
      %7046 = vmatpush1.msra.mxu0 0.0
      %7047 = vmatprep.subr.mxu0 0.0
      %7048 = vmatpush1.msra.mxu0 0.0
      %7049 = vmatprep.subr.mxu0 0.0
      %7050 = vmatpush1.msra.mxu0 0.0
      %7051 = vmatprep.subr.mxu0 0.0
      %7052 = vmatpush1.msra.mxu0 0.0
      %7053 = vmatprep.subr.mxu0 0.0
      %7054 = vmatpush1.msra.mxu0 0.0
      %7055 = vmatprep.subr.mxu0 0.0
      %7056 = vmatpush1.msra.mxu0 0.0
      %7057 = vmatprep.mubr.f32.mxu0 0.0
      %7058 = vmatmul.mubr.f32.gmra.mrb[0].mxu0 %v6920
      %v7059 = vpop.f32.mrb[0].mxu0
      %v7060 = vadd.f32 0.0, %v7059
      %v7061 = vpop.f32.mrb[0].mxu0
      %7062 = vdwg.mxu0
      %v7063 = vadd.f32 %v6914, %v6989
      %v7064 = vadd.f32 %v6915, %v6991
      %v7065 = vadd.f32 %v6916, %v7060
      %s7066 = scalar_lea.vmem %s1, 328
      %v7067 = vld [vmem:[%s7066] sm:$0xff]
      %7068 = vrot.lane.b32.xlu0 %v6266, 127
      %v7069 = vpop.permute.xlu0 %7068
      %7070 = vrot.lane.b32.xlu0 %v6267, 127
      %v7071 = vpop.permute.xlu0 %7070
      %7072 = vrot.lane.b32.xlu0 %v6268, 127
      %v7073 = vpop.permute.xlu0 %7072
      %v7074 = vsel %vm1125, %v7069, %v7071
      %v7075 = vsel %vm1125, %v7071, %v7073
      %v7080 = vsel %vm336, %v7067, 0
      %7082 = vmatprep.subr.mxu0 %v7075
      %7083 = vmatpush1.msra.mxu0 %v7074
      %7084 = vmatprep.subr.mxu0 0.0
      %7085 = vmatpush1.msra.mxu0 0.0
      %7086 = vmatprep.subr.mxu0 0.0
      %7087 = vmatpush1.msra.mxu0 0.0
      %7088 = vmatprep.subr.mxu0 0.0
      %7089 = vmatpush1.msra.mxu0 0.0
      %7090 = vmatprep.subr.mxu0 0.0
      %7091 = vmatpush1.msra.mxu0 0.0
      %7092 = vmatprep.subr.mxu0 0.0
      %7093 = vmatpush1.msra.mxu0 0.0
      %7094 = vmatprep.subr.mxu0 0.0
      %7095 = vmatpush1.msra.mxu0 0.0
      %7096 = vmatprep.subr.mxu0 0.0
      %7097 = vmatpush1.msra.mxu0 0.0
      %7098 = vmatprep.subr.mxu0 0.0
      %7099 = vmatpush1.msra.mxu0 0.0
      %7100 = vmatprep.subr.mxu0 0.0
      %7101 = vmatpush1.msra.mxu0 0.0
      %7102 = vmatprep.subr.mxu0 0.0
      %7103 = vmatpush1.msra.mxu0 0.0
      %7104 = vmatprep.subr.mxu0 0.0
      %7105 = vmatpush1.msra.mxu0 0.0
      %7106 = vmatprep.subr.mxu0 0.0
      %7107 = vmatpush1.msra.mxu0 0.0
      %7108 = vmatprep.subr.mxu0 0.0
      %7109 = vmatpush1.msra.mxu0 0.0
      %7110 = vmatprep.subr.mxu0 0.0
      %7111 = vmatpush1.msra.mxu0 0.0
      %7112 = vmatprep.subr.mxu0 0.0
      %7113 = vmatpush1.msra.mxu0 0.0
      %7114 = vmatprep.subr.mxu0 0.0
      %7115 = vmatpush1.msra.mxu0 0.0
      %7116 = vmatprep.subr.mxu0 0.0
      %7117 = vmatpush1.msra.mxu0 0.0
      %7118 = vmatprep.subr.mxu0 0.0
      %7119 = vmatpush1.msra.mxu0 0.0
      %7120 = vmatprep.subr.mxu0 0.0
      %7121 = vmatpush1.msra.mxu0 0.0
      %7122 = vmatprep.subr.mxu0 0.0
      %7123 = vmatpush1.msra.mxu0 0.0
      %7124 = vmatprep.subr.mxu0 0.0
      %7125 = vmatpush1.msra.mxu0 0.0
      %7126 = vmatprep.subr.mxu0 0.0
      %7127 = vmatpush1.msra.mxu0 0.0
      %7128 = vmatprep.subr.mxu0 0.0
      %7129 = vmatpush1.msra.mxu0 0.0
      %7130 = vmatprep.subr.mxu0 0.0
      %7131 = vmatpush1.msra.mxu0 0.0
      %7132 = vmatprep.subr.mxu0 0.0
      %7133 = vmatpush1.msra.mxu0 0.0
      %7134 = vmatprep.subr.mxu0 0.0
      %7135 = vmatpush1.msra.mxu0 0.0
      %7136 = vmatprep.subr.mxu0 0.0
      %7137 = vmatpush1.msra.mxu0 0.0
      %7138 = vmatprep.subr.mxu0 0.0
      %7139 = vmatpush1.msra.mxu0 0.0
      %7140 = vmatprep.subr.mxu0 0.0
      %7141 = vmatpush1.msra.mxu0 0.0
      %7142 = vmatprep.subr.mxu0 0.0
      %7143 = vmatpush1.msra.mxu0 0.0
      %7144 = vmatprep.subr.mxu0 0.0
      %7145 = vmatpush1.msra.mxu0 0.0
      %7146 = vmatprep.mubr.f32.mxu0 0.0
      %7147 = vmatmul.mubr.f32.gmra.mrb[0].mxu0 %v7080
      %v7148 = vpop.f32.mrb[0].mxu0
      %v7149 = vadd.f32 0.0, %v7148
      %v7150 = vpop.f32.mrb[0].mxu0
      %v7151 = vadd.f32 0.0, %v7150
      %7152 = vdwg.mxu0
      %7153 = vmatprep.subr.mxu0 0.0
      %7154 = vmatpush1.msra.mxu0 %v7073
      %7155 = vmatprep.subr.mxu0 0.0
      %7156 = vmatpush1.msra.mxu0 0.0
      %7157 = vmatprep.subr.mxu0 0.0
      %7158 = vmatpush1.msra.mxu0 0.0
      %7159 = vmatprep.subr.mxu0 0.0
      %7160 = vmatpush1.msra.mxu0 0.0
      %7161 = vmatprep.subr.mxu0 0.0
      %7162 = vmatpush1.msra.mxu0 0.0
      %7163 = vmatprep.subr.mxu0 0.0
      %7164 = vmatpush1.msra.mxu0 0.0
      %7165 = vmatprep.subr.mxu0 0.0
      %7166 = vmatpush1.msra.mxu0 0.0
      %7167 = vmatprep.subr.mxu0 0.0
      %7168 = vmatpush1.msra.mxu0 0.0
      %7169 = vmatprep.subr.mxu0 0.0
      %7170 = vmatpush1.msra.mxu0 0.0
      %7171 = vmatprep.subr.mxu0 0.0
      %7172 = vmatpush1.msra.mxu0 0.0
      %7173 = vmatprep.subr.mxu0 0.0
      %7174 = vmatpush1.msra.mxu0 0.0
      %7175 = vmatprep.subr.mxu0 0.0
      %7176 = vmatpush1.msra.mxu0 0.0
      %7177 = vmatprep.subr.mxu0 0.0
      %7178 = vmatpush1.msra.mxu0 0.0
      %7179 = vmatprep.subr.mxu0 0.0
      %7180 = vmatpush1.msra.mxu0 0.0
      %7181 = vmatprep.subr.mxu0 0.0
      %7182 = vmatpush1.msra.mxu0 0.0
      %7183 = vmatprep.subr.mxu0 0.0
      %7184 = vmatpush1.msra.mxu0 0.0
      %7185 = vmatprep.subr.mxu0 0.0
      %7186 = vmatpush1.msra.mxu0 0.0
      %7187 = vmatprep.subr.mxu0 0.0
      %7188 = vmatpush1.msra.mxu0 0.0
      %7189 = vmatprep.subr.mxu0 0.0
      %7190 = vmatpush1.msra.mxu0 0.0
      %7191 = vmatprep.subr.mxu0 0.0
      %7192 = vmatpush1.msra.mxu0 0.0
      %7193 = vmatprep.subr.mxu0 0.0
      %7194 = vmatpush1.msra.mxu0 0.0
      %7195 = vmatprep.subr.mxu0 0.0
      %7196 = vmatpush1.msra.mxu0 0.0
      %7197 = vmatprep.subr.mxu0 0.0
      %7198 = vmatpush1.msra.mxu0 0.0
      %7199 = vmatprep.subr.mxu0 0.0
      %7200 = vmatpush1.msra.mxu0 0.0
      %7201 = vmatprep.subr.mxu0 0.0
      %7202 = vmatpush1.msra.mxu0 0.0
      %7203 = vmatprep.subr.mxu0 0.0
      %7204 = vmatpush1.msra.mxu0 0.0
      %7205 = vmatprep.subr.mxu0 0.0
      %7206 = vmatpush1.msra.mxu0 0.0
      %7207 = vmatprep.subr.mxu0 0.0
      %7208 = vmatpush1.msra.mxu0 0.0
      %7209 = vmatprep.subr.mxu0 0.0
      %7210 = vmatpush1.msra.mxu0 0.0
      %7211 = vmatprep.subr.mxu0 0.0
      %7212 = vmatpush1.msra.mxu0 0.0
      %7213 = vmatprep.subr.mxu0 0.0
      %7214 = vmatpush1.msra.mxu0 0.0
      %7215 = vmatprep.subr.mxu0 0.0
      %7216 = vmatpush1.msra.mxu0 0.0
      %7217 = vmatprep.mubr.f32.mxu0 0.0
      %7218 = vmatmul.mubr.f32.gmra.mrb[0].mxu0 %v7080
      %v7219 = vpop.f32.mrb[0].mxu0
      %v7220 = vadd.f32 0.0, %v7219
      %v7221 = vpop.f32.mrb[0].mxu0
      %7222 = vdwg.mxu0
      %v7223 = vadd.f32 %v7063, %v7149
      %v7224 = vadd.f32 %v7064, %v7151
      %v7225 = vadd.f32 %v7065, %v7220
      %s7226 = scalar_lea.vmem %s1, 336
      %v7227 = vld [vmem:[%s7226] sm:$0xff]
      %7228 = vrot.lane.b32.xlu0 %v6266, 111
      %v7229 = vpop.permute.xlu0 %7228
      %7230 = vrot.lane.b32.xlu0 %v6267, 111
      %v7231 = vpop.permute.xlu0 %7230
      %7232 = vrot.lane.b32.xlu0 %v6268, 111
      %v7233 = vpop.permute.xlu0 %7232
      %v7234 = vsel %vm1286, %v7229, %v7231
      %v7235 = vsel %vm1286, %v7231, %v7233
      %v7240 = vsel %vm336, %v7227, 0
      %7242 = vmatprep.subr.mxu0 %v7235
      %7243 = vmatpush1.msra.mxu0 %v7234
      %7244 = vmatprep.subr.mxu0 0.0
      %7245 = vmatpush1.msra.mxu0 0.0
      %7246 = vmatprep.subr.mxu0 0.0
      %7247 = vmatpush1.msra.mxu0 0.0
      %7248 = vmatprep.subr.mxu0 0.0
      %7249 = vmatpush1.msra.mxu0 0.0
      %7250 = vmatprep.subr.mxu0 0.0
      %7251 = vmatpush1.msra.mxu0 0.0
      %7252 = vmatprep.subr.mxu0 0.0
      %7253 = vmatpush1.msra.mxu0 0.0
      %7254 = vmatprep.subr.mxu0 0.0
      %7255 = vmatpush1.msra.mxu0 0.0
      %7256 = vmatprep.subr.mxu0 0.0
      %7257 = vmatpush1.msra.mxu0 0.0
      %7258 = vmatprep.subr.mxu0 0.0
      %7259 = vmatpush1.msra.mxu0 0.0
      %7260 = vmatprep.subr.mxu0 0.0
      %7261 = vmatpush1.msra.mxu0 0.0
      %7262 = vmatprep.subr.mxu0 0.0
      %7263 = vmatpush1.msra.mxu0 0.0
      %7264 = vmatprep.subr.mxu0 0.0
      %7265 = vmatpush1.msra.mxu0 0.0
      %7266 = vmatprep.subr.mxu0 0.0
      %7267 = vmatpush1.msra.mxu0 0.0
      %7268 = vmatprep.subr.mxu0 0.0
      %7269 = vmatpush1.msra.mxu0 0.0
      %7270 = vmatprep.subr.mxu0 0.0
      %7271 = vmatpush1.msra.mxu0 0.0
      %7272 = vmatprep.subr.mxu0 0.0
      %7273 = vmatpush1.msra.mxu0 0.0
      %7274 = vmatprep.subr.mxu0 0.0
      %7275 = vmatpush1.msra.mxu0 0.0
      %7276 = vmatprep.subr.mxu0 0.0
      %7277 = vmatpush1.msra.mxu0 0.0
      %7278 = vmatprep.subr.mxu0 0.0
      %7279 = vmatpush1.msra.mxu0 0.0
      %7280 = vmatprep.subr.mxu0 0.0
      %7281 = vmatpush1.msra.mxu0 0.0
      %7282 = vmatprep.subr.mxu0 0.0
      %7283 = vmatpush1.msra.mxu0 0.0
      %7284 = vmatprep.subr.mxu0 0.0
      %7285 = vmatpush1.msra.mxu0 0.0
      %7286 = vmatprep.subr.mxu0 0.0
      %7287 = vmatpush1.msra.mxu0 0.0
      %7288 = vmatprep.subr.mxu0 0.0
      %7289 = vmatpush1.msra.mxu0 0.0
      %7290 = vmatprep.subr.mxu0 0.0
      %7291 = vmatpush1.msra.mxu0 0.0
      %7292 = vmatprep.subr.mxu0 0.0
      %7293 = vmatpush1.msra.mxu0 0.0
      %7294 = vmatprep.subr.mxu0 0.0
      %7295 = vmatpush1.msra.mxu0 0.0
      %7296 = vmatprep.subr.mxu0 0.0
      %7297 = vmatpush1.msra.mxu0 0.0
      %7298 = vmatprep.subr.mxu0 0.0
      %7299 = vmatpush1.msra.mxu0 0.0
      %7300 = vmatprep.subr.mxu0 0.0
      %7301 = vmatpush1.msra.mxu0 0.0
      %7302 = vmatprep.subr.mxu0 0.0
      %7303 = vmatpush1.msra.mxu0 0.0
      %7304 = vmatprep.subr.mxu0 0.0
      %7305 = vmatpush1.msra.mxu0 0.0
      %7306 = vmatprep.mubr.f32.mxu0 0.0
      %7307 = vmatmul.mubr.f32.gmra.mrb[0].mxu0 %v7240
      %v7308 = vpop.f32.mrb[0].mxu0
      %v7309 = vadd.f32 0.0, %v7308
      %v7310 = vpop.f32.mrb[0].mxu0
      %v7311 = vadd.f32 0.0, %v7310
      %7312 = vdwg.mxu0
      %7313 = vmatprep.subr.mxu0 0.0
      %7314 = vmatpush1.msra.mxu0 %v7233
      %7315 = vmatprep.subr.mxu0 0.0
      %7316 = vmatpush1.msra.mxu0 0.0
      %7317 = vmatprep.subr.mxu0 0.0
      %7318 = vmatpush1.msra.mxu0 0.0
      %7319 = vmatprep.subr.mxu0 0.0
      %7320 = vmatpush1.msra.mxu0 0.0
      %7321 = vmatprep.subr.mxu0 0.0
      %7322 = vmatpush1.msra.mxu0 0.0
      %7323 = vmatprep.subr.mxu0 0.0
      %7324 = vmatpush1.msra.mxu0 0.0
      %7325 = vmatprep.subr.mxu0 0.0
      %7326 = vmatpush1.msra.mxu0 0.0
      %7327 = vmatprep.subr.mxu0 0.0
      %7328 = vmatpush1.msra.mxu0 0.0
      %7329 = vmatprep.subr.mxu0 0.0
      %7330 = vmatpush1.msra.mxu0 0.0
      %7331 = vmatprep.subr.mxu0 0.0
      %7332 = vmatpush1.msra.mxu0 0.0
      %7333 = vmatprep.subr.mxu0 0.0
      %7334 = vmatpush1.msra.mxu0 0.0
      %7335 = vmatprep.subr.mxu0 0.0
      %7336 = vmatpush1.msra.mxu0 0.0
      %7337 = vmatprep.subr.mxu0 0.0
      %7338 = vmatpush1.msra.mxu0 0.0
      %7339 = vmatprep.subr.mxu0 0.0
      %7340 = vmatpush1.msra.mxu0 0.0
      %7341 = vmatprep.subr.mxu0 0.0
      %7342 = vmatpush1.msra.mxu0 0.0
      %7343 = vmatprep.subr.mxu0 0.0
      %7344 = vmatpush1.msra.mxu0 0.0
      %7345 = vmatprep.subr.mxu0 0.0
      %7346 = vmatpush1.msra.mxu0 0.0
      %7347 = vmatprep.subr.mxu0 0.0
      %7348 = vmatpush1.msra.mxu0 0.0
      %7349 = vmatprep.subr.mxu0 0.0
      %7350 = vmatpush1.msra.mxu0 0.0
      %7351 = vmatprep.subr.mxu0 0.0
      %7352 = vmatpush1.msra.mxu0 0.0
      %7353 = vmatprep.subr.mxu0 0.0
      %7354 = vmatpush1.msra.mxu0 0.0
      %7355 = vmatprep.subr.mxu0 0.0
      %7356 = vmatpush1.msra.mxu0 0.0
      %7357 = vmatprep.subr.mxu0 0.0
      %7358 = vmatpush1.msra.mxu0 0.0
      %7359 = vmatprep.subr.mxu0 0.0
      %7360 = vmatpush1.msra.mxu0 0.0
      %7361 = vmatprep.subr.mxu0 0.0
      %7362 = vmatpush1.msra.mxu0 0.0
      %7363 = vmatprep.subr.mxu0 0.0
      %7364 = vmatpush1.msra.mxu0 0.0
      %7365 = vmatprep.subr.mxu0 0.0
      %7366 = vmatpush1.msra.mxu0 0.0
      %7367 = vmatprep.subr.mxu0 0.0
      %7368 = vmatpush1.msra.mxu0 0.0
      %7369 = vmatprep.subr.mxu0 0.0
      %7370 = vmatpush1.msra.mxu0 0.0
      %7371 = vmatprep.subr.mxu0 0.0
      %7372 = vmatpush1.msra.mxu0 0.0
      %7373 = vmatprep.subr.mxu0 0.0
      %7374 = vmatpush1.msra.mxu0 0.0
      %7375 = vmatprep.subr.mxu0 0.0
      %7376 = vmatpush1.msra.mxu0 0.0
      %7377 = vmatprep.mubr.f32.mxu0 0.0
      %7378 = vmatmul.mubr.f32.gmra.mrb[0].mxu0 %v7240
      %v7379 = vpop.f32.mrb[0].mxu0
      %v7380 = vadd.f32 0.0, %v7379
      %v7381 = vpop.f32.mrb[0].mxu0
      %7382 = vdwg.mxu0
      %v7383 = vadd.f32 %v7223, %v7309
      %v7384 = vadd.f32 %v7224, %v7311
      %v7385 = vadd.f32 %v7225, %v7380
      %s7386 = scalar_lea.vmem %s1, 344
      %v7387 = vld [vmem:[%s7386] sm:$0xff]
      %7388 = vrot.lane.b32.xlu0 %v6266, 110
      %v7389 = vpop.permute.xlu0 %7388
      %7390 = vrot.lane.b32.xlu0 %v6267, 110
      %v7391 = vpop.permute.xlu0 %7390
      %7392 = vrot.lane.b32.xlu0 %v6268, 110
      %v7393 = vpop.permute.xlu0 %7392
      %v7394 = vsel %vm1447, %v7389, %v7391
      %v7395 = vsel %vm1447, %v7391, %v7393
      %v7400 = vsel %vm336, %v7387, 0
      %7402 = vmatprep.subr.mxu0 %v7395
      %7403 = vmatpush1.msra.mxu0 %v7394
      %7404 = vmatprep.subr.mxu0 0.0
      %7405 = vmatpush1.msra.mxu0 0.0
      %7406 = vmatprep.subr.mxu0 0.0
      %7407 = vmatpush1.msra.mxu0 0.0
      %7408 = vmatprep.subr.mxu0 0.0
      %7409 = vmatpush1.msra.mxu0 0.0
      %7410 = vmatprep.subr.mxu0 0.0
      %7411 = vmatpush1.msra.mxu0 0.0
      %7412 = vmatprep.subr.mxu0 0.0
      %7413 = vmatpush1.msra.mxu0 0.0
      %7414 = vmatprep.subr.mxu0 0.0
      %7415 = vmatpush1.msra.mxu0 0.0
      %7416 = vmatprep.subr.mxu0 0.0
      %7417 = vmatpush1.msra.mxu0 0.0
      %7418 = vmatprep.subr.mxu0 0.0
      %7419 = vmatpush1.msra.mxu0 0.0
      %7420 = vmatprep.subr.mxu0 0.0
      %7421 = vmatpush1.msra.mxu0 0.0
      %7422 = vmatprep.subr.mxu0 0.0
      %7423 = vmatpush1.msra.mxu0 0.0
      %7424 = vmatprep.subr.mxu0 0.0
      %7425 = vmatpush1.msra.mxu0 0.0
      %7426 = vmatprep.subr.mxu0 0.0
      %7427 = vmatpush1.msra.mxu0 0.0
      %7428 = vmatprep.subr.mxu0 0.0
      %7429 = vmatpush1.msra.mxu0 0.0
      %7430 = vmatprep.subr.mxu0 0.0
      %7431 = vmatpush1.msra.mxu0 0.0
      %7432 = vmatprep.subr.mxu0 0.0
      %7433 = vmatpush1.msra.mxu0 0.0
      %7434 = vmatprep.subr.mxu0 0.0
      %7435 = vmatpush1.msra.mxu0 0.0
      %7436 = vmatprep.subr.mxu0 0.0
      %7437 = vmatpush1.msra.mxu0 0.0
      %7438 = vmatprep.subr.mxu0 0.0
      %7439 = vmatpush1.msra.mxu0 0.0
      %7440 = vmatprep.subr.mxu0 0.0
      %7441 = vmatpush1.msra.mxu0 0.0
      %7442 = vmatprep.subr.mxu0 0.0
      %7443 = vmatpush1.msra.mxu0 0.0
      %7444 = vmatprep.subr.mxu0 0.0
      %7445 = vmatpush1.msra.mxu0 0.0
      %7446 = vmatprep.subr.mxu0 0.0
      %7447 = vmatpush1.msra.mxu0 0.0
      %7448 = vmatprep.subr.mxu0 0.0
      %7449 = vmatpush1.msra.mxu0 0.0
      %7450 = vmatprep.subr.mxu0 0.0
      %7451 = vmatpush1.msra.mxu0 0.0
      %7452 = vmatprep.subr.mxu0 0.0
      %7453 = vmatpush1.msra.mxu0 0.0
      %7454 = vmatprep.subr.mxu0 0.0
      %7455 = vmatpush1.msra.mxu0 0.0
      %7456 = vmatprep.subr.mxu0 0.0
      %7457 = vmatpush1.msra.mxu0 0.0
      %7458 = vmatprep.subr.mxu0 0.0
      %7459 = vmatpush1.msra.mxu0 0.0
      %7460 = vmatprep.subr.mxu0 0.0
      %7461 = vmatpush1.msra.mxu0 0.0
      %7462 = vmatprep.subr.mxu0 0.0
      %7463 = vmatpush1.msra.mxu0 0.0
      %7464 = vmatprep.subr.mxu0 0.0
      %7465 = vmatpush1.msra.mxu0 0.0
      %7466 = vmatprep.mubr.f32.mxu0 0.0
      %7467 = vmatmul.mubr.f32.gmra.mrb[0].mxu0 %v7400
      %v7468 = vpop.f32.mrb[0].mxu0
      %v7469 = vadd.f32 0.0, %v7468
      %v7470 = vpop.f32.mrb[0].mxu0
      %v7471 = vadd.f32 0.0, %v7470
      %7472 = vdwg.mxu0
      %7473 = vmatprep.subr.mxu0 0.0
      %7474 = vmatpush1.msra.mxu0 %v7393
      %7475 = vmatprep.subr.mxu0 0.0
      %7476 = vmatpush1.msra.mxu0 0.0
      %7477 = vmatprep.subr.mxu0 0.0
      %7478 = vmatpush1.msra.mxu0 0.0
      %7479 = vmatprep.subr.mxu0 0.0
      %7480 = vmatpush1.msra.mxu0 0.0
      %7481 = vmatprep.subr.mxu0 0.0
      %7482 = vmatpush1.msra.mxu0 0.0
      %7483 = vmatprep.subr.mxu0 0.0
      %7484 = vmatpush1.msra.mxu0 0.0
      %7485 = vmatprep.subr.mxu0 0.0
      %7486 = vmatpush1.msra.mxu0 0.0
      %7487 = vmatprep.subr.mxu0 0.0
      %7488 = vmatpush1.msra.mxu0 0.0
      %7489 = vmatprep.subr.mxu0 0.0
      %7490 = vmatpush1.msra.mxu0 0.0
      %7491 = vmatprep.subr.mxu0 0.0
      %7492 = vmatpush1.msra.mxu0 0.0
      %7493 = vmatprep.subr.mxu0 0.0
      %7494 = vmatpush1.msra.mxu0 0.0
      %7495 = vmatprep.subr.mxu0 0.0
      %7496 = vmatpush1.msra.mxu0 0.0
      %7497 = vmatprep.subr.mxu0 0.0
      %7498 = vmatpush1.msra.mxu0 0.0
      %7499 = vmatprep.subr.mxu0 0.0
      %7500 = vmatpush1.msra.mxu0 0.0
      %7501 = vmatprep.subr.mxu0 0.0
      %7502 = vmatpush1.msra.mxu0 0.0
      %7503 = vmatprep.subr.mxu0 0.0
      %7504 = vmatpush1.msra.mxu0 0.0
      %7505 = vmatprep.subr.mxu0 0.0
      %7506 = vmatpush1.msra.mxu0 0.0
      %7507 = vmatprep.subr.mxu0 0.0
      %7508 = vmatpush1.msra.mxu0 0.0
      %7509 = vmatprep.subr.mxu0 0.0
      %7510 = vmatpush1.msra.mxu0 0.0
      %7511 = vmatprep.subr.mxu0 0.0
      %7512 = vmatpush1.msra.mxu0 0.0
      %7513 = vmatprep.subr.mxu0 0.0
      %7514 = vmatpush1.msra.mxu0 0.0
      %7515 = vmatprep.subr.mxu0 0.0
      %7516 = vmatpush1.msra.mxu0 0.0
      %7517 = vmatprep.subr.mxu0 0.0
      %7518 = vmatpush1.msra.mxu0 0.0
      %7519 = vmatprep.subr.mxu0 0.0
      %7520 = vmatpush1.msra.mxu0 0.0
      %7521 = vmatprep.subr.mxu0 0.0
      %7522 = vmatpush1.msra.mxu0 0.0
      %7523 = vmatprep.subr.mxu0 0.0
      %7524 = vmatpush1.msra.mxu0 0.0
      %7525 = vmatprep.subr.mxu0 0.0
      %7526 = vmatpush1.msra.mxu0 0.0
      %7527 = vmatprep.subr.mxu0 0.0
      %7528 = vmatpush1.msra.mxu0 0.0
      %7529 = vmatprep.subr.mxu0 0.0
      %7530 = vmatpush1.msra.mxu0 0.0
      %7531 = vmatprep.subr.mxu0 0.0
      %7532 = vmatpush1.msra.mxu0 0.0
      %7533 = vmatprep.subr.mxu0 0.0
      %7534 = vmatpush1.msra.mxu0 0.0
      %7535 = vmatprep.subr.mxu0 0.0
      %7536 = vmatpush1.msra.mxu0 0.0
      %7537 = vmatprep.mubr.f32.mxu0 0.0
      %7538 = vmatmul.mubr.f32.gmra.mrb[0].mxu0 %v7400
      %v7539 = vpop.f32.mrb[0].mxu0
      %v7540 = vadd.f32 0.0, %v7539
      %v7541 = vpop.f32.mrb[0].mxu0
      %7542 = vdwg.mxu0
      %v7543 = vadd.f32 %v7383, %v7469
      %v7544 = vadd.f32 %v7384, %v7471
      %v7545 = vadd.f32 %v7385, %v7540
      %s7546 = scalar_lea.vmem %s1, 352
      %v7547 = vld [vmem:[%s7546] sm:$0xff]
      %7548 = vrot.lane.b32.xlu0 %v6266, 109
      %v7549 = vpop.permute.xlu0 %7548
      %7550 = vrot.lane.b32.xlu0 %v6267, 109
      %v7551 = vpop.permute.xlu0 %7550
      %7552 = vrot.lane.b32.xlu0 %v6268, 109
      %v7553 = vpop.permute.xlu0 %7552
      %v7554 = vsel %vm1608, %v7549, %v7551
      %v7555 = vsel %vm1608, %v7551, %v7553
      %v7560 = vsel %vm336, %v7547, 0
      %7562 = vmatprep.subr.mxu0 %v7555
      %7563 = vmatpush1.msra.mxu0 %v7554
      %7564 = vmatprep.subr.mxu0 0.0
      %7565 = vmatpush1.msra.mxu0 0.0
      %7566 = vmatprep.subr.mxu0 0.0
      %7567 = vmatpush1.msra.mxu0 0.0
      %7568 = vmatprep.subr.mxu0 0.0
      %7569 = vmatpush1.msra.mxu0 0.0
      %7570 = vmatprep.subr.mxu0 0.0
      %7571 = vmatpush1.msra.mxu0 0.0
      %7572 = vmatprep.subr.mxu0 0.0
      %7573 = vmatpush1.msra.mxu0 0.0
      %7574 = vmatprep.subr.mxu0 0.0
      %7575 = vmatpush1.msra.mxu0 0.0
      %7576 = vmatprep.subr.mxu0 0.0
      %7577 = vmatpush1.msra.mxu0 0.0
      %7578 = vmatprep.subr.mxu0 0.0
      %7579 = vmatpush1.msra.mxu0 0.0
      %7580 = vmatprep.subr.mxu0 0.0
      %7581 = vmatpush1.msra.mxu0 0.0
      %7582 = vmatprep.subr.mxu0 0.0
      %7583 = vmatpush1.msra.mxu0 0.0
      %7584 = vmatprep.subr.mxu0 0.0
      %7585 = vmatpush1.msra.mxu0 0.0
      %7586 = vmatprep.subr.mxu0 0.0
      %7587 = vmatpush1.msra.mxu0 0.0
      %7588 = vmatprep.subr.mxu0 0.0
      %7589 = vmatpush1.msra.mxu0 0.0
      %7590 = vmatprep.subr.mxu0 0.0
      %7591 = vmatpush1.msra.mxu0 0.0
      %7592 = vmatprep.subr.mxu0 0.0
      %7593 = vmatpush1.msra.mxu0 0.0
      %7594 = vmatprep.subr.mxu0 0.0
      %7595 = vmatpush1.msra.mxu0 0.0
      %7596 = vmatprep.subr.mxu0 0.0
      %7597 = vmatpush1.msra.mxu0 0.0
      %7598 = vmatprep.subr.mxu0 0.0
      %7599 = vmatpush1.msra.mxu0 0.0
      %7600 = vmatprep.subr.mxu0 0.0
      %7601 = vmatpush1.msra.mxu0 0.0
      %7602 = vmatprep.subr.mxu0 0.0
      %7603 = vmatpush1.msra.mxu0 0.0
      %7604 = vmatprep.subr.mxu0 0.0
      %7605 = vmatpush1.msra.mxu0 0.0
      %7606 = vmatprep.subr.mxu0 0.0
      %7607 = vmatpush1.msra.mxu0 0.0
      %7608 = vmatprep.subr.mxu0 0.0
      %7609 = vmatpush1.msra.mxu0 0.0
      %7610 = vmatprep.subr.mxu0 0.0
      %7611 = vmatpush1.msra.mxu0 0.0
      %7612 = vmatprep.subr.mxu0 0.0
      %7613 = vmatpush1.msra.mxu0 0.0
      %7614 = vmatprep.subr.mxu0 0.0
      %7615 = vmatpush1.msra.mxu0 0.0
      %7616 = vmatprep.subr.mxu0 0.0
      %7617 = vmatpush1.msra.mxu0 0.0
      %7618 = vmatprep.subr.mxu0 0.0
      %7619 = vmatpush1.msra.mxu0 0.0
      %7620 = vmatprep.subr.mxu0 0.0
      %7621 = vmatpush1.msra.mxu0 0.0
      %7622 = vmatprep.subr.mxu0 0.0
      %7623 = vmatpush1.msra.mxu0 0.0
      %7624 = vmatprep.subr.mxu0 0.0
      %7625 = vmatpush1.msra.mxu0 0.0
      %7626 = vmatprep.mubr.f32.mxu0 0.0
      %7627 = vmatmul.mubr.f32.gmra.mrb[0].mxu0 %v7560
      %v7628 = vpop.f32.mrb[0].mxu0
      %v7629 = vadd.f32 0.0, %v7628
      %v7630 = vpop.f32.mrb[0].mxu0
      %v7631 = vadd.f32 0.0, %v7630
      %7632 = vdwg.mxu0
      %7633 = vmatprep.subr.mxu0 0.0
      %7634 = vmatpush1.msra.mxu0 %v7553
      %7635 = vmatprep.subr.mxu0 0.0
      %7636 = vmatpush1.msra.mxu0 0.0
      %7637 = vmatprep.subr.mxu0 0.0
      %7638 = vmatpush1.msra.mxu0 0.0
      %7639 = vmatprep.subr.mxu0 0.0
      %7640 = vmatpush1.msra.mxu0 0.0
      %7641 = vmatprep.subr.mxu0 0.0
      %7642 = vmatpush1.msra.mxu0 0.0
      %7643 = vmatprep.subr.mxu0 0.0
      %7644 = vmatpush1.msra.mxu0 0.0
      %7645 = vmatprep.subr.mxu0 0.0
      %7646 = vmatpush1.msra.mxu0 0.0
      %7647 = vmatprep.subr.mxu0 0.0
      %7648 = vmatpush1.msra.mxu0 0.0
      %7649 = vmatprep.subr.mxu0 0.0
      %7650 = vmatpush1.msra.mxu0 0.0
      %7651 = vmatprep.subr.mxu0 0.0
      %7652 = vmatpush1.msra.mxu0 0.0
      %7653 = vmatprep.subr.mxu0 0.0
      %7654 = vmatpush1.msra.mxu0 0.0
      %7655 = vmatprep.subr.mxu0 0.0
      %7656 = vmatpush1.msra.mxu0 0.0
      %7657 = vmatprep.subr.mxu0 0.0
      %7658 = vmatpush1.msra.mxu0 0.0
      %7659 = vmatprep.subr.mxu0 0.0
      %7660 = vmatpush1.msra.mxu0 0.0
      %7661 = vmatprep.subr.mxu0 0.0
      %7662 = vmatpush1.msra.mxu0 0.0
      %7663 = vmatprep.subr.mxu0 0.0
      %7664 = vmatpush1.msra.mxu0 0.0
      %7665 = vmatprep.subr.mxu0 0.0
      %7666 = vmatpush1.msra.mxu0 0.0
      %7667 = vmatprep.subr.mxu0 0.0
      %7668 = vmatpush1.msra.mxu0 0.0
      %7669 = vmatprep.subr.mxu0 0.0
      %7670 = vmatpush1.msra.mxu0 0.0
      %7671 = vmatprep.subr.mxu0 0.0
      %7672 = vmatpush1.msra.mxu0 0.0
      %7673 = vmatprep.subr.mxu0 0.0
      %7674 = vmatpush1.msra.mxu0 0.0
      %7675 = vmatprep.subr.mxu0 0.0
      %7676 = vmatpush1.msra.mxu0 0.0
      %7677 = vmatprep.subr.mxu0 0.0
      %7678 = vmatpush1.msra.mxu0 0.0
      %7679 = vmatprep.subr.mxu0 0.0
      %7680 = vmatpush1.msra.mxu0 0.0
      %7681 = vmatprep.subr.mxu0 0.0
      %7682 = vmatpush1.msra.mxu0 0.0
      %7683 = vmatprep.subr.mxu0 0.0
      %7684 = vmatpush1.msra.mxu0 0.0
      %7685 = vmatprep.subr.mxu0 0.0
      %7686 = vmatpush1.msra.mxu0 0.0
      %7687 = vmatprep.subr.mxu0 0.0
      %7688 = vmatpush1.msra.mxu0 0.0
      %7689 = vmatprep.subr.mxu0 0.0
      %7690 = vmatpush1.msra.mxu0 0.0
      %7691 = vmatprep.subr.mxu0 0.0
      %7692 = vmatpush1.msra.mxu0 0.0
      %7693 = vmatprep.subr.mxu0 0.0
      %7694 = vmatpush1.msra.mxu0 0.0
      %7695 = vmatprep.subr.mxu0 0.0
      %7696 = vmatpush1.msra.mxu0 0.0
      %7697 = vmatprep.mubr.f32.mxu0 0.0
      %7698 = vmatmul.mubr.f32.gmra.mrb[0].mxu0 %v7560
      %v7699 = vpop.f32.mrb[0].mxu0
      %v7700 = vadd.f32 0.0, %v7699
      %v7701 = vpop.f32.mrb[0].mxu0
      %7702 = vdwg.mxu0
      %v7703 = vadd.f32 %v7543, %v7629
      %v7704 = vadd.f32 %v7544, %v7631
      %v7705 = vadd.f32 %v7545, %v7700
      %s7706 = scalar_lea.vmem %s2, 32
      %v7707 = vld [vmem:[%s7706] sm:$0xff]
      %7709 = vset.pattern.permute.xlu0 0
      %7710 = vperm.xlu0 %7709, %v7707
      %v7711 = vpop.permute.xlu0 %7710
      %v7713 = vadd.f32 %v7703, %v7711
      %v7714 = vadd.f32 %v7704, %v7711
      %v7715 = vadd.f32 %v7705, %v7711
      %v7716 = vadd.f32 %v4749, %v7713
      %v7717 = vadd.f32 %v4750, %v7714
      %v7718 = vadd.f32 %v4751, %v7715
      %v7719 = vadd.f32 %v1767, %v7716
      %v7720 = vadd.f32 %v1768, %v7717
      %v7721 = vadd.f32 %v1769, %v7718
      %v7722 = vmul.f32 %v7719, %v1795
      %v7723 = vmul.f32 %v7720, %v1799
      %v7724 = vmul.f32 %v7721, %v1803
      %7725 = vst [vmem:[#allocation2 + $0x8] sm:$0xff] %v7722
      %7726 = vst [vmem:[#allocation2 + $0x10] sm:$0xff] %v7723
      %7727 = vst.msk [vmem:[#allocation2 + $0x18] sm:$0xff] %vm1812, %v7724
      %s7728 = scalar_lea.vmem %s1, 360
      %v7729 = vld [vmem:[%s7728] sm:$0xff]
      %v7730 = vld [vmem:[#allocation2] sm:$0xff]
      %v7731 = vld [vmem:[#allocation2 + $0x8] sm:$0xff]
      %v7732 = vld [vmem:[#allocation2 + $0x10] sm:$0xff]
      %v7733 = vld [vmem:[#allocation2 + $0x18] sm:$0xff]
      %s7734 = scalar_lea.vmem %s1, 368
      %v7735 = vld [vmem:[%s7734] sm:$0xff]
      %7740 = vrot.lane.b32.xlu0 %v7730, 18
      %v7741 = vpop.permute.xlu0 %7740
      %7742 = vrot.lane.b32.xlu0 %v7731, 18
      %v7743 = vpop.permute.xlu0 %7742
      %7744 = vrot.lane.b32.xlu0 %v7732, 18
      %v7745 = vpop.permute.xlu0 %7744
      %7746 = vrot.lane.b32.xlu0 %v7733, 18
      %v7747 = vpop.permute.xlu0 %7746
      %v7748 = vsel %vm329, %v7741, %v7743
      %v7749 = vsel %vm329, %v7743, %v7745
      %v7750 = vsel %vm329, %v7745, %v7747
      %v7755 = vsel %vm336, %v7735, 0
      %7757 = vmatprep.subr.mxu0 %v7749
      %7758 = vmatpush1.msra.mxu0 %v7748
      %7759 = vmatprep.subr.mxu0 0.0
      %7760 = vmatpush1.msra.mxu0 0.0
      %7761 = vmatprep.subr.mxu0 0.0
      %7762 = vmatpush1.msra.mxu0 0.0
      %7763 = vmatprep.subr.mxu0 0.0
      %7764 = vmatpush1.msra.mxu0 0.0
      %7765 = vmatprep.subr.mxu0 0.0
      %7766 = vmatpush1.msra.mxu0 0.0
      %7767 = vmatprep.subr.mxu0 0.0
      %7768 = vmatpush1.msra.mxu0 0.0
      %7769 = vmatprep.subr.mxu0 0.0
      %7770 = vmatpush1.msra.mxu0 0.0
      %7771 = vmatprep.subr.mxu0 0.0
      %7772 = vmatpush1.msra.mxu0 0.0
      %7773 = vmatprep.subr.mxu0 0.0
      %7774 = vmatpush1.msra.mxu0 0.0
      %7775 = vmatprep.subr.mxu0 0.0
      %7776 = vmatpush1.msra.mxu0 0.0
      %7777 = vmatprep.subr.mxu0 0.0
      %7778 = vmatpush1.msra.mxu0 0.0
      %7779 = vmatprep.subr.mxu0 0.0
      %7780 = vmatpush1.msra.mxu0 0.0
      %7781 = vmatprep.subr.mxu0 0.0
      %7782 = vmatpush1.msra.mxu0 0.0
      %7783 = vmatprep.subr.mxu0 0.0
      %7784 = vmatpush1.msra.mxu0 0.0
      %7785 = vmatprep.subr.mxu0 0.0
      %7786 = vmatpush1.msra.mxu0 0.0
      %7787 = vmatprep.subr.mxu0 0.0
      %7788 = vmatpush1.msra.mxu0 0.0
      %7789 = vmatprep.subr.mxu0 0.0
      %7790 = vmatpush1.msra.mxu0 0.0
      %7791 = vmatprep.subr.mxu0 0.0
      %7792 = vmatpush1.msra.mxu0 0.0
      %7793 = vmatprep.subr.mxu0 0.0
      %7794 = vmatpush1.msra.mxu0 0.0
      %7795 = vmatprep.subr.mxu0 0.0
      %7796 = vmatpush1.msra.mxu0 0.0
      %7797 = vmatprep.subr.mxu0 0.0
      %7798 = vmatpush1.msra.mxu0 0.0
      %7799 = vmatprep.subr.mxu0 0.0
      %7800 = vmatpush1.msra.mxu0 0.0
      %7801 = vmatprep.subr.mxu0 0.0
      %7802 = vmatpush1.msra.mxu0 0.0
      %7803 = vmatprep.subr.mxu0 0.0
      %7804 = vmatpush1.msra.mxu0 0.0
      %7805 = vmatprep.subr.mxu0 0.0
      %7806 = vmatpush1.msra.mxu0 0.0
      %7807 = vmatprep.subr.mxu0 0.0
      %7808 = vmatpush1.msra.mxu0 0.0
      %7809 = vmatprep.subr.mxu0 0.0
      %7810 = vmatpush1.msra.mxu0 0.0
      %7811 = vmatprep.subr.mxu0 0.0
      %7812 = vmatpush1.msra.mxu0 0.0
      %7813 = vmatprep.subr.mxu0 0.0
      %7814 = vmatpush1.msra.mxu0 0.0
      %7815 = vmatprep.subr.mxu0 0.0
      %7816 = vmatpush1.msra.mxu0 0.0
      %7817 = vmatprep.subr.mxu0 0.0
      %7818 = vmatpush1.msra.mxu0 0.0
      %7819 = vmatprep.subr.mxu0 0.0
      %7820 = vmatpush1.msra.mxu0 0.0
      %7821 = vmatprep.mubr.f32.mxu0 0.0
      %7822 = vmatmul.mubr.f32.gmra.mrb[0].mxu0 %v7755
      %v7823 = vpop.f32.mrb[0].mxu0
      %v7824 = vadd.f32 0.0, %v7823
      %v7825 = vpop.f32.mrb[0].mxu0
      %v7826 = vadd.f32 0.0, %v7825
      %7827 = vdwg.mxu0
      %7828 = vmatprep.subr.mxu0 0.0
      %7829 = vmatpush1.msra.mxu0 %v7750
      %7830 = vmatprep.subr.mxu0 0.0
      %7831 = vmatpush1.msra.mxu0 0.0
      %7832 = vmatprep.subr.mxu0 0.0
      %7833 = vmatpush1.msra.mxu0 0.0
      %7834 = vmatprep.subr.mxu0 0.0
      %7835 = vmatpush1.msra.mxu0 0.0
      %7836 = vmatprep.subr.mxu0 0.0
      %7837 = vmatpush1.msra.mxu0 0.0
      %7838 = vmatprep.subr.mxu0 0.0
      %7839 = vmatpush1.msra.mxu0 0.0
      %7840 = vmatprep.subr.mxu0 0.0
      %7841 = vmatpush1.msra.mxu0 0.0
      %7842 = vmatprep.subr.mxu0 0.0
      %7843 = vmatpush1.msra.mxu0 0.0
      %7844 = vmatprep.subr.mxu0 0.0
      %7845 = vmatpush1.msra.mxu0 0.0
      %7846 = vmatprep.subr.mxu0 0.0
      %7847 = vmatpush1.msra.mxu0 0.0
      %7848 = vmatprep.subr.mxu0 0.0
      %7849 = vmatpush1.msra.mxu0 0.0
      %7850 = vmatprep.subr.mxu0 0.0
      %7851 = vmatpush1.msra.mxu0 0.0
      %7852 = vmatprep.subr.mxu0 0.0
      %7853 = vmatpush1.msra.mxu0 0.0
      %7854 = vmatprep.subr.mxu0 0.0
      %7855 = vmatpush1.msra.mxu0 0.0
      %7856 = vmatprep.subr.mxu0 0.0
      %7857 = vmatpush1.msra.mxu0 0.0
      %7858 = vmatprep.subr.mxu0 0.0
      %7859 = vmatpush1.msra.mxu0 0.0
      %7860 = vmatprep.subr.mxu0 0.0
      %7861 = vmatpush1.msra.mxu0 0.0
      %7862 = vmatprep.subr.mxu0 0.0
      %7863 = vmatpush1.msra.mxu0 0.0
      %7864 = vmatprep.subr.mxu0 0.0
      %7865 = vmatpush1.msra.mxu0 0.0
      %7866 = vmatprep.subr.mxu0 0.0
      %7867 = vmatpush1.msra.mxu0 0.0
      %7868 = vmatprep.subr.mxu0 0.0
      %7869 = vmatpush1.msra.mxu0 0.0
      %7870 = vmatprep.subr.mxu0 0.0
      %7871 = vmatpush1.msra.mxu0 0.0
      %7872 = vmatprep.subr.mxu0 0.0
      %7873 = vmatpush1.msra.mxu0 0.0
      %7874 = vmatprep.subr.mxu0 0.0
      %7875 = vmatpush1.msra.mxu0 0.0
      %7876 = vmatprep.subr.mxu0 0.0
      %7877 = vmatpush1.msra.mxu0 0.0
      %7878 = vmatprep.subr.mxu0 0.0
      %7879 = vmatpush1.msra.mxu0 0.0
      %7880 = vmatprep.subr.mxu0 0.0
      %7881 = vmatpush1.msra.mxu0 0.0
      %7882 = vmatprep.subr.mxu0 0.0
      %7883 = vmatpush1.msra.mxu0 0.0
      %7884 = vmatprep.subr.mxu0 0.0
      %7885 = vmatpush1.msra.mxu0 0.0
      %7886 = vmatprep.subr.mxu0 0.0
      %7887 = vmatpush1.msra.mxu0 0.0
      %7888 = vmatprep.subr.mxu0 0.0
      %7889 = vmatpush1.msra.mxu0 0.0
      %7890 = vmatprep.subr.mxu0 0.0
      %7891 = vmatpush1.msra.mxu0 0.0
      %7892 = vmatprep.mubr.f32.mxu0 0.0
      %7893 = vmatmul.mubr.f32.gmra.mrb[0].mxu0 %v7755
      %v7894 = vpop.f32.mrb[0].mxu0
      %v7895 = vadd.f32 0.0, %v7894
      %v7896 = vpop.f32.mrb[0].mxu0
      %7897 = vdwg.mxu0
      %7898 = vrot.lane.b32.xlu0 %v7730, 19
      %v7899 = vpop.permute.xlu0 %7898
      %7900 = vrot.lane.b32.xlu0 %v7731, 19
      %v7901 = vpop.permute.xlu0 %7900
      %7902 = vrot.lane.b32.xlu0 %v7732, 19
      %v7903 = vpop.permute.xlu0 %7902
      %7904 = vrot.lane.b32.xlu0 %v7733, 19
      %v7905 = vpop.permute.xlu0 %7904
      %v7906 = vsel %vm489, %v7899, %v7901
      %v7907 = vsel %vm489, %v7901, %v7903
      %v7908 = vsel %vm489, %v7903, %v7905
      %v7913 = vsel %vm336, %v7729, 0
      %7915 = vmatprep.subr.mxu0 %v7907
      %7916 = vmatpush1.msra.mxu0 %v7906
      %7917 = vmatprep.subr.mxu0 0.0
      %7918 = vmatpush1.msra.mxu0 0.0
      %7919 = vmatprep.subr.mxu0 0.0
      %7920 = vmatpush1.msra.mxu0 0.0
      %7921 = vmatprep.subr.mxu0 0.0
      %7922 = vmatpush1.msra.mxu0 0.0
      %7923 = vmatprep.subr.mxu0 0.0
      %7924 = vmatpush1.msra.mxu0 0.0
      %7925 = vmatprep.subr.mxu0 0.0
      %7926 = vmatpush1.msra.mxu0 0.0
      %7927 = vmatprep.subr.mxu0 0.0
      %7928 = vmatpush1.msra.mxu0 0.0
      %7929 = vmatprep.subr.mxu0 0.0
      %7930 = vmatpush1.msra.mxu0 0.0
      %7931 = vmatprep.subr.mxu0 0.0
      %7932 = vmatpush1.msra.mxu0 0.0
      %7933 = vmatprep.subr.mxu0 0.0
      %7934 = vmatpush1.msra.mxu0 0.0
      %7935 = vmatprep.subr.mxu0 0.0
      %7936 = vmatpush1.msra.mxu0 0.0
      %7937 = vmatprep.subr.mxu0 0.0
      %7938 = vmatpush1.msra.mxu0 0.0
      %7939 = vmatprep.subr.mxu0 0.0
      %7940 = vmatpush1.msra.mxu0 0.0
      %7941 = vmatprep.subr.mxu0 0.0
      %7942 = vmatpush1.msra.mxu0 0.0
      %7943 = vmatprep.subr.mxu0 0.0
      %7944 = vmatpush1.msra.mxu0 0.0
      %7945 = vmatprep.subr.mxu0 0.0
      %7946 = vmatpush1.msra.mxu0 0.0
      %7947 = vmatprep.subr.mxu0 0.0
      %7948 = vmatpush1.msra.mxu0 0.0
      %7949 = vmatprep.subr.mxu0 0.0
      %7950 = vmatpush1.msra.mxu0 0.0
      %7951 = vmatprep.subr.mxu0 0.0
      %7952 = vmatpush1.msra.mxu0 0.0
      %7953 = vmatprep.subr.mxu0 0.0
      %7954 = vmatpush1.msra.mxu0 0.0
      %7955 = vmatprep.subr.mxu0 0.0
      %7956 = vmatpush1.msra.mxu0 0.0
      %7957 = vmatprep.subr.mxu0 0.0
      %7958 = vmatpush1.msra.mxu0 0.0
      %7959 = vmatprep.subr.mxu0 0.0
      %7960 = vmatpush1.msra.mxu0 0.0
      %7961 = vmatprep.subr.mxu0 0.0
      %7962 = vmatpush1.msra.mxu0 0.0
      %7963 = vmatprep.subr.mxu0 0.0
      %7964 = vmatpush1.msra.mxu0 0.0
      %7965 = vmatprep.subr.mxu0 0.0
      %7966 = vmatpush1.msra.mxu0 0.0
      %7967 = vmatprep.subr.mxu0 0.0
      %7968 = vmatpush1.msra.mxu0 0.0
      %7969 = vmatprep.subr.mxu0 0.0
      %7970 = vmatpush1.msra.mxu0 0.0
      %7971 = vmatprep.subr.mxu0 0.0
      %7972 = vmatpush1.msra.mxu0 0.0
      %7973 = vmatprep.subr.mxu0 0.0
      %7974 = vmatpush1.msra.mxu0 0.0
      %7975 = vmatprep.subr.mxu0 0.0
      %7976 = vmatpush1.msra.mxu0 0.0
      %7977 = vmatprep.subr.mxu0 0.0
      %7978 = vmatpush1.msra.mxu0 0.0
      %7979 = vmatprep.mubr.f32.mxu0 0.0
      %7980 = vmatmul.mubr.f32.gmra.mrb[0].mxu0 %v7913
      %v7981 = vpop.f32.mrb[0].mxu0
      %v7982 = vadd.f32 %v7824, %v7981
      %v7983 = vpop.f32.mrb[0].mxu0
      %v7984 = vadd.f32 %v7826, %v7983
      %7985 = vdwg.mxu0
      %7986 = vmatprep.subr.mxu0 0.0
      %7987 = vmatpush1.msra.mxu0 %v7908
      %7988 = vmatprep.subr.mxu0 0.0
      %7989 = vmatpush1.msra.mxu0 0.0
      %7990 = vmatprep.subr.mxu0 0.0
      %7991 = vmatpush1.msra.mxu0 0.0
      %7992 = vmatprep.subr.mxu0 0.0
      %7993 = vmatpush1.msra.mxu0 0.0
      %7994 = vmatprep.subr.mxu0 0.0
      %7995 = vmatpush1.msra.mxu0 0.0
      %7996 = vmatprep.subr.mxu0 0.0
      %7997 = vmatpush1.msra.mxu0 0.0
      %7998 = vmatprep.subr.mxu0 0.0
      %7999 = vmatpush1.msra.mxu0 0.0
      %8000 = vmatprep.subr.mxu0 0.0
      %8001 = vmatpush1.msra.mxu0 0.0
      %8002 = vmatprep.subr.mxu0 0.0
      %8003 = vmatpush1.msra.mxu0 0.0
      %8004 = vmatprep.subr.mxu0 0.0
      %8005 = vmatpush1.msra.mxu0 0.0
      %8006 = vmatprep.subr.mxu0 0.0
      %8007 = vmatpush1.msra.mxu0 0.0
      %8008 = vmatprep.subr.mxu0 0.0
      %8009 = vmatpush1.msra.mxu0 0.0
      %8010 = vmatprep.subr.mxu0 0.0
      %8011 = vmatpush1.msra.mxu0 0.0
      %8012 = vmatprep.subr.mxu0 0.0
      %8013 = vmatpush1.msra.mxu0 0.0
      %8014 = vmatprep.subr.mxu0 0.0
      %8015 = vmatpush1.msra.mxu0 0.0
      %8016 = vmatprep.subr.mxu0 0.0
      %8017 = vmatpush1.msra.mxu0 0.0
      %8018 = vmatprep.subr.mxu0 0.0
      %8019 = vmatpush1.msra.mxu0 0.0
      %8020 = vmatprep.subr.mxu0 0.0
      %8021 = vmatpush1.msra.mxu0 0.0
      %8022 = vmatprep.subr.mxu0 0.0
      %8023 = vmatpush1.msra.mxu0 0.0
      %8024 = vmatprep.subr.mxu0 0.0
      %8025 = vmatpush1.msra.mxu0 0.0
      %8026 = vmatprep.subr.mxu0 0.0
      %8027 = vmatpush1.msra.mxu0 0.0
      %8028 = vmatprep.subr.mxu0 0.0
      %8029 = vmatpush1.msra.mxu0 0.0
      %8030 = vmatprep.subr.mxu0 0.0
      %8031 = vmatpush1.msra.mxu0 0.0
      %8032 = vmatprep.subr.mxu0 0.0
      %8033 = vmatpush1.msra.mxu0 0.0
      %8034 = vmatprep.subr.mxu0 0.0
      %8035 = vmatpush1.msra.mxu0 0.0
      %8036 = vmatprep.subr.mxu0 0.0
      %8037 = vmatpush1.msra.mxu0 0.0
      %8038 = vmatprep.subr.mxu0 0.0
      %8039 = vmatpush1.msra.mxu0 0.0
      %8040 = vmatprep.subr.mxu0 0.0
      %8041 = vmatpush1.msra.mxu0 0.0
      %8042 = vmatprep.subr.mxu0 0.0
      %8043 = vmatpush1.msra.mxu0 0.0
      %8044 = vmatprep.subr.mxu0 0.0
      %8045 = vmatpush1.msra.mxu0 0.0
      %8046 = vmatprep.subr.mxu0 0.0
      %8047 = vmatpush1.msra.mxu0 0.0
      %8048 = vmatprep.subr.mxu0 0.0
      %8049 = vmatpush1.msra.mxu0 0.0
      %8050 = vmatprep.mubr.f32.mxu0 0.0
      %8051 = vmatmul.mubr.f32.gmra.mrb[0].mxu0 %v7913
      %v8052 = vpop.f32.mrb[0].mxu0
      %v8053 = vadd.f32 %v7895, %v8052
      %v8054 = vpop.f32.mrb[0].mxu0
      %8055 = vdwg.mxu0
      %s8056 = scalar_lea.vmem %s1, 376
      %v8057 = vld [vmem:[%s8056] sm:$0xff]
      %8058 = vrot.lane.b32.xlu0 %v7730, 17
      %v8059 = vpop.permute.xlu0 %8058
      %8060 = vrot.lane.b32.xlu0 %v7731, 17
      %v8061 = vpop.permute.xlu0 %8060
      %8062 = vrot.lane.b32.xlu0 %v7732, 17
      %v8063 = vpop.permute.xlu0 %8062
      %8064 = vrot.lane.b32.xlu0 %v7733, 17
      %v8065 = vpop.permute.xlu0 %8064
      %v8066 = vsel %vm650, %v8059, %v8061
      %v8067 = vsel %vm650, %v8061, %v8063
      %v8068 = vsel %vm650, %v8063, %v8065
      %v8073 = vsel %vm336, %v8057, 0
      %8075 = vmatprep.subr.mxu0 %v8067
      %8076 = vmatpush1.msra.mxu0 %v8066
      %8077 = vmatprep.subr.mxu0 0.0
      %8078 = vmatpush1.msra.mxu0 0.0
      %8079 = vmatprep.subr.mxu0 0.0
      %8080 = vmatpush1.msra.mxu0 0.0
      %8081 = vmatprep.subr.mxu0 0.0
      %8082 = vmatpush1.msra.mxu0 0.0
      %8083 = vmatprep.subr.mxu0 0.0
      %8084 = vmatpush1.msra.mxu0 0.0
      %8085 = vmatprep.subr.mxu0 0.0
      %8086 = vmatpush1.msra.mxu0 0.0
      %8087 = vmatprep.subr.mxu0 0.0
      %8088 = vmatpush1.msra.mxu0 0.0
      %8089 = vmatprep.subr.mxu0 0.0
      %8090 = vmatpush1.msra.mxu0 0.0
      %8091 = vmatprep.subr.mxu0 0.0
      %8092 = vmatpush1.msra.mxu0 0.0
      %8093 = vmatprep.subr.mxu0 0.0
      %8094 = vmatpush1.msra.mxu0 0.0
      %8095 = vmatprep.subr.mxu0 0.0
      %8096 = vmatpush1.msra.mxu0 0.0
      %8097 = vmatprep.subr.mxu0 0.0
      %8098 = vmatpush1.msra.mxu0 0.0
      %8099 = vmatprep.subr.mxu0 0.0
      %8100 = vmatpush1.msra.mxu0 0.0
      %8101 = vmatprep.subr.mxu0 0.0
      %8102 = vmatpush1.msra.mxu0 0.0
      %8103 = vmatprep.subr.mxu0 0.0
      %8104 = vmatpush1.msra.mxu0 0.0
      %8105 = vmatprep.subr.mxu0 0.0
      %8106 = vmatpush1.msra.mxu0 0.0
      %8107 = vmatprep.subr.mxu0 0.0
      %8108 = vmatpush1.msra.mxu0 0.0
      %8109 = vmatprep.subr.mxu0 0.0
      %8110 = vmatpush1.msra.mxu0 0.0
      %8111 = vmatprep.subr.mxu0 0.0
      %8112 = vmatpush1.msra.mxu0 0.0
      %8113 = vmatprep.subr.mxu0 0.0
      %8114 = vmatpush1.msra.mxu0 0.0
      %8115 = vmatprep.subr.mxu0 0.0
      %8116 = vmatpush1.msra.mxu0 0.0
      %8117 = vmatprep.subr.mxu0 0.0
      %8118 = vmatpush1.msra.mxu0 0.0
      %8119 = vmatprep.subr.mxu0 0.0
      %8120 = vmatpush1.msra.mxu0 0.0
      %8121 = vmatprep.subr.mxu0 0.0
      %8122 = vmatpush1.msra.mxu0 0.0
      %8123 = vmatprep.subr.mxu0 0.0
      %8124 = vmatpush1.msra.mxu0 0.0
      %8125 = vmatprep.subr.mxu0 0.0
      %8126 = vmatpush1.msra.mxu0 0.0
      %8127 = vmatprep.subr.mxu0 0.0
      %8128 = vmatpush1.msra.mxu0 0.0
      %8129 = vmatprep.subr.mxu0 0.0
      %8130 = vmatpush1.msra.mxu0 0.0
      %8131 = vmatprep.subr.mxu0 0.0
      %8132 = vmatpush1.msra.mxu0 0.0
      %8133 = vmatprep.subr.mxu0 0.0
      %8134 = vmatpush1.msra.mxu0 0.0
      %8135 = vmatprep.subr.mxu0 0.0
      %8136 = vmatpush1.msra.mxu0 0.0
      %8137 = vmatprep.subr.mxu0 0.0
      %8138 = vmatpush1.msra.mxu0 0.0
      %8139 = vmatprep.mubr.f32.mxu0 0.0
      %8140 = vmatmul.mubr.f32.gmra.mrb[0].mxu0 %v8073
      %v8141 = vpop.f32.mrb[0].mxu0
      %v8142 = vadd.f32 0.0, %v8141
      %v8143 = vpop.f32.mrb[0].mxu0
      %v8144 = vadd.f32 0.0, %v8143
      %8145 = vdwg.mxu0
      %8146 = vmatprep.subr.mxu0 0.0
      %8147 = vmatpush1.msra.mxu0 %v8068
      %8148 = vmatprep.subr.mxu0 0.0
      %8149 = vmatpush1.msra.mxu0 0.0
      %8150 = vmatprep.subr.mxu0 0.0
      %8151 = vmatpush1.msra.mxu0 0.0
      %8152 = vmatprep.subr.mxu0 0.0
      %8153 = vmatpush1.msra.mxu0 0.0
      %8154 = vmatprep.subr.mxu0 0.0
      %8155 = vmatpush1.msra.mxu0 0.0
      %8156 = vmatprep.subr.mxu0 0.0
      %8157 = vmatpush1.msra.mxu0 0.0
      %8158 = vmatprep.subr.mxu0 0.0
      %8159 = vmatpush1.msra.mxu0 0.0
      %8160 = vmatprep.subr.mxu0 0.0
      %8161 = vmatpush1.msra.mxu0 0.0
      %8162 = vmatprep.subr.mxu0 0.0
      %8163 = vmatpush1.msra.mxu0 0.0
      %8164 = vmatprep.subr.mxu0 0.0
      %8165 = vmatpush1.msra.mxu0 0.0
      %8166 = vmatprep.subr.mxu0 0.0
      %8167 = vmatpush1.msra.mxu0 0.0
      %8168 = vmatprep.subr.mxu0 0.0
      %8169 = vmatpush1.msra.mxu0 0.0
      %8170 = vmatprep.subr.mxu0 0.0
      %8171 = vmatpush1.msra.mxu0 0.0
      %8172 = vmatprep.subr.mxu0 0.0
      %8173 = vmatpush1.msra.mxu0 0.0
      %8174 = vmatprep.subr.mxu0 0.0
      %8175 = vmatpush1.msra.mxu0 0.0
      %8176 = vmatprep.subr.mxu0 0.0
      %8177 = vmatpush1.msra.mxu0 0.0
      %8178 = vmatprep.subr.mxu0 0.0
      %8179 = vmatpush1.msra.mxu0 0.0
      %8180 = vmatprep.subr.mxu0 0.0
      %8181 = vmatpush1.msra.mxu0 0.0
      %8182 = vmatprep.subr.mxu0 0.0
      %8183 = vmatpush1.msra.mxu0 0.0
      %8184 = vmatprep.subr.mxu0 0.0
      %8185 = vmatpush1.msra.mxu0 0.0
      %8186 = vmatprep.subr.mxu0 0.0
      %8187 = vmatpush1.msra.mxu0 0.0
      %8188 = vmatprep.subr.mxu0 0.0
      %8189 = vmatpush1.msra.mxu0 0.0
      %8190 = vmatprep.subr.mxu0 0.0
      %8191 = vmatpush1.msra.mxu0 0.0
      %8192 = vmatprep.subr.mxu0 0.0
      %8193 = vmatpush1.msra.mxu0 0.0
      %8194 = vmatprep.subr.mxu0 0.0
      %8195 = vmatpush1.msra.mxu0 0.0
      %8196 = vmatprep.subr.mxu0 0.0
      %8197 = vmatpush1.msra.mxu0 0.0
      %8198 = vmatprep.subr.mxu0 0.0
      %8199 = vmatpush1.msra.mxu0 0.0
      %8200 = vmatprep.subr.mxu0 0.0
      %8201 = vmatpush1.msra.mxu0 0.0
      %8202 = vmatprep.subr.mxu0 0.0
      %8203 = vmatpush1.msra.mxu0 0.0
      %8204 = vmatprep.subr.mxu0 0.0
      %8205 = vmatpush1.msra.mxu0 0.0
      %8206 = vmatprep.subr.mxu0 0.0
      %8207 = vmatpush1.msra.mxu0 0.0
      %8208 = vmatprep.subr.mxu0 0.0
      %8209 = vmatpush1.msra.mxu0 0.0
      %8210 = vmatprep.mubr.f32.mxu0 0.0
      %8211 = vmatmul.mubr.f32.gmra.mrb[0].mxu0 %v8073
      %v8212 = vpop.f32.mrb[0].mxu0
      %v8213 = vadd.f32 0.0, %v8212
      %v8214 = vpop.f32.mrb[0].mxu0
      %8215 = vdwg.mxu0
      %v8216 = vadd.f32 %v7982, %v8142
      %v8217 = vadd.f32 %v7984, %v8144
      %v8218 = vadd.f32 %v8053, %v8213
      %s8219 = scalar_lea.vmem %s1, 384
      %v8220 = vld [vmem:[%s8219] sm:$0xff]
      %8221 = vrot.lane.b32.xlu0 %v7730, 1
      %v8222 = vpop.permute.xlu0 %8221
      %8223 = vrot.lane.b32.xlu0 %v7731, 1
      %v8224 = vpop.permute.xlu0 %8223
      %8225 = vrot.lane.b32.xlu0 %v7732, 1
      %v8226 = vpop.permute.xlu0 %8225
      %8227 = vrot.lane.b32.xlu0 %v7733, 1
      %v8228 = vpop.permute.xlu0 %8227
      %v8229 = vsel %vm814, %v8222, %v8224
      %v8230 = vsel %vm814, %v8224, %v8226
      %v8231 = vsel %vm814, %v8226, %v8228
      %v8236 = vsel %vm336, %v8220, 0
      %8238 = vmatprep.subr.mxu0 %v8230
      %8239 = vmatpush1.msra.mxu0 %v8229
      %8240 = vmatprep.subr.mxu0 0.0
      %8241 = vmatpush1.msra.mxu0 0.0
      %8242 = vmatprep.subr.mxu0 0.0
      %8243 = vmatpush1.msra.mxu0 0.0
      %8244 = vmatprep.subr.mxu0 0.0
      %8245 = vmatpush1.msra.mxu0 0.0
      %8246 = vmatprep.subr.mxu0 0.0
      %8247 = vmatpush1.msra.mxu0 0.0
      %8248 = vmatprep.subr.mxu0 0.0
      %8249 = vmatpush1.msra.mxu0 0.0
      %8250 = vmatprep.subr.mxu0 0.0
      %8251 = vmatpush1.msra.mxu0 0.0
      %8252 = vmatprep.subr.mxu0 0.0
      %8253 = vmatpush1.msra.mxu0 0.0
      %8254 = vmatprep.subr.mxu0 0.0
      %8255 = vmatpush1.msra.mxu0 0.0
      %8256 = vmatprep.subr.mxu0 0.0
      %8257 = vmatpush1.msra.mxu0 0.0
      %8258 = vmatprep.subr.mxu0 0.0
      %8259 = vmatpush1.msra.mxu0 0.0
      %8260 = vmatprep.subr.mxu0 0.0
      %8261 = vmatpush1.msra.mxu0 0.0
      %8262 = vmatprep.subr.mxu0 0.0
      %8263 = vmatpush1.msra.mxu0 0.0
      %8264 = vmatprep.subr.mxu0 0.0
      %8265 = vmatpush1.msra.mxu0 0.0
      %8266 = vmatprep.subr.mxu0 0.0
      %8267 = vmatpush1.msra.mxu0 0.0
      %8268 = vmatprep.subr.mxu0 0.0
      %8269 = vmatpush1.msra.mxu0 0.0
      %8270 = vmatprep.subr.mxu0 0.0
      %8271 = vmatpush1.msra.mxu0 0.0
      %8272 = vmatprep.subr.mxu0 0.0
      %8273 = vmatpush1.msra.mxu0 0.0
      %8274 = vmatprep.subr.mxu0 0.0
      %8275 = vmatpush1.msra.mxu0 0.0
      %8276 = vmatprep.subr.mxu0 0.0
      %8277 = vmatpush1.msra.mxu0 0.0
      %8278 = vmatprep.subr.mxu0 0.0
      %8279 = vmatpush1.msra.mxu0 0.0
      %8280 = vmatprep.subr.mxu0 0.0
      %8281 = vmatpush1.msra.mxu0 0.0
      %8282 = vmatprep.subr.mxu0 0.0
      %8283 = vmatpush1.msra.mxu0 0.0
      %8284 = vmatprep.subr.mxu0 0.0
      %8285 = vmatpush1.msra.mxu0 0.0
      %8286 = vmatprep.subr.mxu0 0.0
      %8287 = vmatpush1.msra.mxu0 0.0
      %8288 = vmatprep.subr.mxu0 0.0
      %8289 = vmatpush1.msra.mxu0 0.0
      %8290 = vmatprep.subr.mxu0 0.0
      %8291 = vmatpush1.msra.mxu0 0.0
      %8292 = vmatprep.subr.mxu0 0.0
      %8293 = vmatpush1.msra.mxu0 0.0
      %8294 = vmatprep.subr.mxu0 0.0
      %8295 = vmatpush1.msra.mxu0 0.0
      %8296 = vmatprep.subr.mxu0 0.0
      %8297 = vmatpush1.msra.mxu0 0.0
      %8298 = vmatprep.subr.mxu0 0.0
      %8299 = vmatpush1.msra.mxu0 0.0
      %8300 = vmatprep.subr.mxu0 0.0
      %8301 = vmatpush1.msra.mxu0 0.0
      %8302 = vmatprep.mubr.f32.mxu0 0.0
      %8303 = vmatmul.mubr.f32.gmra.mrb[0].mxu0 %v8236
      %v8304 = vpop.f32.mrb[0].mxu0
      %v8305 = vadd.f32 0.0, %v8304
      %v8306 = vpop.f32.mrb[0].mxu0
      %v8307 = vadd.f32 0.0, %v8306
      %8308 = vdwg.mxu0
      %8309 = vmatprep.subr.mxu0 0.0
      %8310 = vmatpush1.msra.mxu0 %v8231
      %8311 = vmatprep.subr.mxu0 0.0
      %8312 = vmatpush1.msra.mxu0 0.0
      %8313 = vmatprep.subr.mxu0 0.0
      %8314 = vmatpush1.msra.mxu0 0.0
      %8315 = vmatprep.subr.mxu0 0.0
      %8316 = vmatpush1.msra.mxu0 0.0
      %8317 = vmatprep.subr.mxu0 0.0
      %8318 = vmatpush1.msra.mxu0 0.0
      %8319 = vmatprep.subr.mxu0 0.0
      %8320 = vmatpush1.msra.mxu0 0.0
      %8321 = vmatprep.subr.mxu0 0.0
      %8322 = vmatpush1.msra.mxu0 0.0
      %8323 = vmatprep.subr.mxu0 0.0
      %8324 = vmatpush1.msra.mxu0 0.0
      %8325 = vmatprep.subr.mxu0 0.0
      %8326 = vmatpush1.msra.mxu0 0.0
      %8327 = vmatprep.subr.mxu0 0.0
      %8328 = vmatpush1.msra.mxu0 0.0
      %8329 = vmatprep.subr.mxu0 0.0
      %8330 = vmatpush1.msra.mxu0 0.0
      %8331 = vmatprep.subr.mxu0 0.0
      %8332 = vmatpush1.msra.mxu0 0.0
      %8333 = vmatprep.subr.mxu0 0.0
      %8334 = vmatpush1.msra.mxu0 0.0
      %8335 = vmatprep.subr.mxu0 0.0
      %8336 = vmatpush1.msra.mxu0 0.0
      %8337 = vmatprep.subr.mxu0 0.0
      %8338 = vmatpush1.msra.mxu0 0.0
      %8339 = vmatprep.subr.mxu0 0.0
      %8340 = vmatpush1.msra.mxu0 0.0
      %8341 = vmatprep.subr.mxu0 0.0
      %8342 = vmatpush1.msra.mxu0 0.0
      %8343 = vmatprep.subr.mxu0 0.0
      %8344 = vmatpush1.msra.mxu0 0.0
      %8345 = vmatprep.subr.mxu0 0.0
      %8346 = vmatpush1.msra.mxu0 0.0
      %8347 = vmatprep.subr.mxu0 0.0
      %8348 = vmatpush1.msra.mxu0 0.0
      %8349 = vmatprep.subr.mxu0 0.0
      %8350 = vmatpush1.msra.mxu0 0.0
      %8351 = vmatprep.subr.mxu0 0.0
      %8352 = vmatpush1.msra.mxu0 0.0
      %8353 = vmatprep.subr.mxu0 0.0
      %8354 = vmatpush1.msra.mxu0 0.0
      %8355 = vmatprep.subr.mxu0 0.0
      %8356 = vmatpush1.msra.mxu0 0.0
      %8357 = vmatprep.subr.mxu0 0.0
      %8358 = vmatpush1.msra.mxu0 0.0
      %8359 = vmatprep.subr.mxu0 0.0
      %8360 = vmatpush1.msra.mxu0 0.0
      %8361 = vmatprep.subr.mxu0 0.0
      %8362 = vmatpush1.msra.mxu0 0.0
      %8363 = vmatprep.subr.mxu0 0.0
      %8364 = vmatpush1.msra.mxu0 0.0
      %8365 = vmatprep.subr.mxu0 0.0
      %8366 = vmatpush1.msra.mxu0 0.0
      %8367 = vmatprep.subr.mxu0 0.0
      %8368 = vmatpush1.msra.mxu0 0.0
      %8369 = vmatprep.subr.mxu0 0.0
      %8370 = vmatpush1.msra.mxu0 0.0
      %8371 = vmatprep.subr.mxu0 0.0
      %8372 = vmatpush1.msra.mxu0 0.0
      %8373 = vmatprep.mubr.f32.mxu0 0.0
      %8374 = vmatmul.mubr.f32.gmra.mrb[0].mxu0 %v8236
      %v8375 = vpop.f32.mrb[0].mxu0
      %v8376 = vadd.f32 0.0, %v8375
      %v8377 = vpop.f32.mrb[0].mxu0
      %8378 = vdwg.mxu0
      %v8379 = vadd.f32 %v8216, %v8305
      %v8380 = vadd.f32 %v8217, %v8307
      %v8381 = vadd.f32 %v8218, %v8376
      %s8382 = scalar_lea.vmem %s1, 392
      %v8383 = vld [vmem:[%s8382] sm:$0xff]
      %v8385 = vsel %vm336, %v8383, 0
      %8387 = vmatprep.subr.mxu0 %v7732
      %8388 = vmatpush1.msra.mxu0 %v7731
      %8389 = vmatprep.subr.mxu0 0.0
      %8390 = vmatpush1.msra.mxu0 0.0
      %8391 = vmatprep.subr.mxu0 0.0
      %8392 = vmatpush1.msra.mxu0 0.0
      %8393 = vmatprep.subr.mxu0 0.0
      %8394 = vmatpush1.msra.mxu0 0.0
      %8395 = vmatprep.subr.mxu0 0.0
      %8396 = vmatpush1.msra.mxu0 0.0
      %8397 = vmatprep.subr.mxu0 0.0
      %8398 = vmatpush1.msra.mxu0 0.0
      %8399 = vmatprep.subr.mxu0 0.0
      %8400 = vmatpush1.msra.mxu0 0.0
      %8401 = vmatprep.subr.mxu0 0.0
      %8402 = vmatpush1.msra.mxu0 0.0
      %8403 = vmatprep.subr.mxu0 0.0
      %8404 = vmatpush1.msra.mxu0 0.0
      %8405 = vmatprep.subr.mxu0 0.0
      %8406 = vmatpush1.msra.mxu0 0.0
      %8407 = vmatprep.subr.mxu0 0.0
      %8408 = vmatpush1.msra.mxu0 0.0
      %8409 = vmatprep.subr.mxu0 0.0
      %8410 = vmatpush1.msra.mxu0 0.0
      %8411 = vmatprep.subr.mxu0 0.0
      %8412 = vmatpush1.msra.mxu0 0.0
      %8413 = vmatprep.subr.mxu0 0.0
      %8414 = vmatpush1.msra.mxu0 0.0
      %8415 = vmatprep.subr.mxu0 0.0
      %8416 = vmatpush1.msra.mxu0 0.0
      %8417 = vmatprep.subr.mxu0 0.0
      %8418 = vmatpush1.msra.mxu0 0.0
      %8419 = vmatprep.subr.mxu0 0.0
      %8420 = vmatpush1.msra.mxu0 0.0
      %8421 = vmatprep.subr.mxu0 0.0
      %8422 = vmatpush1.msra.mxu0 0.0
      %8423 = vmatprep.subr.mxu0 0.0
      %8424 = vmatpush1.msra.mxu0 0.0
      %8425 = vmatprep.subr.mxu0 0.0
      %8426 = vmatpush1.msra.mxu0 0.0
      %8427 = vmatprep.subr.mxu0 0.0
      %8428 = vmatpush1.msra.mxu0 0.0
      %8429 = vmatprep.subr.mxu0 0.0
      %8430 = vmatpush1.msra.mxu0 0.0
      %8431 = vmatprep.subr.mxu0 0.0
      %8432 = vmatpush1.msra.mxu0 0.0
      %8433 = vmatprep.subr.mxu0 0.0
      %8434 = vmatpush1.msra.mxu0 0.0
      %8435 = vmatprep.subr.mxu0 0.0
      %8436 = vmatpush1.msra.mxu0 0.0
      %8437 = vmatprep.subr.mxu0 0.0
      %8438 = vmatpush1.msra.mxu0 0.0
      %8439 = vmatprep.subr.mxu0 0.0
      %8440 = vmatpush1.msra.mxu0 0.0
      %8441 = vmatprep.subr.mxu0 0.0
      %8442 = vmatpush1.msra.mxu0 0.0
      %8443 = vmatprep.subr.mxu0 0.0
      %8444 = vmatpush1.msra.mxu0 0.0
      %8445 = vmatprep.subr.mxu0 0.0
      %8446 = vmatpush1.msra.mxu0 0.0
      %8447 = vmatprep.subr.mxu0 0.0
      %8448 = vmatpush1.msra.mxu0 0.0
      %8449 = vmatprep.subr.mxu0 0.0
      %8450 = vmatpush1.msra.mxu0 0.0
      %8451 = vmatprep.mubr.f32.mxu0 0.0
      %8452 = vmatmul.mubr.f32.gmra.mrb[0].mxu0 %v8385
      %v8453 = vpop.f32.mrb[0].mxu0
      %v8454 = vadd.f32 0.0, %v8453
      %v8455 = vpop.f32.mrb[0].mxu0
      %v8456 = vadd.f32 0.0, %v8455
      %8457 = vdwg.mxu0
      %8458 = vmatprep.subr.mxu0 0.0
      %8459 = vmatpush1.msra.mxu0 %v7733
      %8460 = vmatprep.subr.mxu0 0.0
      %8461 = vmatpush1.msra.mxu0 0.0
      %8462 = vmatprep.subr.mxu0 0.0
      %8463 = vmatpush1.msra.mxu0 0.0
      %8464 = vmatprep.subr.mxu0 0.0
      %8465 = vmatpush1.msra.mxu0 0.0
      %8466 = vmatprep.subr.mxu0 0.0
      %8467 = vmatpush1.msra.mxu0 0.0
      %8468 = vmatprep.subr.mxu0 0.0
      %8469 = vmatpush1.msra.mxu0 0.0
      %8470 = vmatprep.subr.mxu0 0.0
      %8471 = vmatpush1.msra.mxu0 0.0
      %8472 = vmatprep.subr.mxu0 0.0
      %8473 = vmatpush1.msra.mxu0 0.0
      %8474 = vmatprep.subr.mxu0 0.0
      %8475 = vmatpush1.msra.mxu0 0.0
      %8476 = vmatprep.subr.mxu0 0.0
      %8477 = vmatpush1.msra.mxu0 0.0
      %8478 = vmatprep.subr.mxu0 0.0
      %8479 = vmatpush1.msra.mxu0 0.0
      %8480 = vmatprep.subr.mxu0 0.0
      %8481 = vmatpush1.msra.mxu0 0.0
      %8482 = vmatprep.subr.mxu0 0.0
      %8483 = vmatpush1.msra.mxu0 0.0
      %8484 = vmatprep.subr.mxu0 0.0
      %8485 = vmatpush1.msra.mxu0 0.0
      %8486 = vmatprep.subr.mxu0 0.0
      %8487 = vmatpush1.msra.mxu0 0.0
      %8488 = vmatprep.subr.mxu0 0.0
      %8489 = vmatpush1.msra.mxu0 0.0
      %8490 = vmatprep.subr.mxu0 0.0
      %8491 = vmatpush1.msra.mxu0 0.0
      %8492 = vmatprep.subr.mxu0 0.0
      %8493 = vmatpush1.msra.mxu0 0.0
      %8494 = vmatprep.subr.mxu0 0.0
      %8495 = vmatpush1.msra.mxu0 0.0
      %8496 = vmatprep.subr.mxu0 0.0
      %8497 = vmatpush1.msra.mxu0 0.0
      %8498 = vmatprep.subr.mxu0 0.0
      %8499 = vmatpush1.msra.mxu0 0.0
      %8500 = vmatprep.subr.mxu0 0.0
      %8501 = vmatpush1.msra.mxu0 0.0
      %8502 = vmatprep.subr.mxu0 0.0
      %8503 = vmatpush1.msra.mxu0 0.0
      %8504 = vmatprep.subr.mxu0 0.0
      %8505 = vmatpush1.msra.mxu0 0.0
      %8506 = vmatprep.subr.mxu0 0.0
      %8507 = vmatpush1.msra.mxu0 0.0
      %8508 = vmatprep.subr.mxu0 0.0
      %8509 = vmatpush1.msra.mxu0 0.0
      %8510 = vmatprep.subr.mxu0 0.0
      %8511 = vmatpush1.msra.mxu0 0.0
      %8512 = vmatprep.subr.mxu0 0.0
      %8513 = vmatpush1.msra.mxu0 0.0
      %8514 = vmatprep.subr.mxu0 0.0
      %8515 = vmatpush1.msra.mxu0 0.0
      %8516 = vmatprep.subr.mxu0 0.0
      %8517 = vmatpush1.msra.mxu0 0.0
      %8518 = vmatprep.subr.mxu0 0.0
      %8519 = vmatpush1.msra.mxu0 0.0
      %8520 = vmatprep.subr.mxu0 0.0
      %8521 = vmatpush1.msra.mxu0 0.0
      %8522 = vmatprep.mubr.f32.mxu0 0.0
      %8523 = vmatmul.mubr.f32.gmra.mrb[0].mxu0 %v8385
      %v8524 = vpop.f32.mrb[0].mxu0
      %v8525 = vadd.f32 0.0, %v8524
      %v8526 = vpop.f32.mrb[0].mxu0
      %8527 = vdwg.mxu0
      %v8528 = vadd.f32 %v8379, %v8454
      %v8529 = vadd.f32 %v8380, %v8456
      %v8530 = vadd.f32 %v8381, %v8525
      %s8531 = scalar_lea.vmem %s1, 400
      %v8532 = vld [vmem:[%s8531] sm:$0xff]
      %8533 = vrot.lane.b32.xlu0 %v7731, 127
      %v8534 = vpop.permute.xlu0 %8533
      %8535 = vrot.lane.b32.xlu0 %v7732, 127
      %v8536 = vpop.permute.xlu0 %8535
      %8537 = vrot.lane.b32.xlu0 %v7733, 127
      %v8538 = vpop.permute.xlu0 %8537
      %v8539 = vsel %vm1125, %v8534, %v8536
      %v8540 = vsel %vm1125, %v8536, %v8538
      %v8545 = vsel %vm336, %v8532, 0
      %8547 = vmatprep.subr.mxu0 %v8540
      %8548 = vmatpush1.msra.mxu0 %v8539
      %8549 = vmatprep.subr.mxu0 0.0
      %8550 = vmatpush1.msra.mxu0 0.0
      %8551 = vmatprep.subr.mxu0 0.0
      %8552 = vmatpush1.msra.mxu0 0.0
      %8553 = vmatprep.subr.mxu0 0.0
      %8554 = vmatpush1.msra.mxu0 0.0
      %8555 = vmatprep.subr.mxu0 0.0
      %8556 = vmatpush1.msra.mxu0 0.0
      %8557 = vmatprep.subr.mxu0 0.0
      %8558 = vmatpush1.msra.mxu0 0.0
      %8559 = vmatprep.subr.mxu0 0.0
      %8560 = vmatpush1.msra.mxu0 0.0
      %8561 = vmatprep.subr.mxu0 0.0
      %8562 = vmatpush1.msra.mxu0 0.0
      %8563 = vmatprep.subr.mxu0 0.0
      %8564 = vmatpush1.msra.mxu0 0.0
      %8565 = vmatprep.subr.mxu0 0.0
      %8566 = vmatpush1.msra.mxu0 0.0
      %8567 = vmatprep.subr.mxu0 0.0
      %8568 = vmatpush1.msra.mxu0 0.0
      %8569 = vmatprep.subr.mxu0 0.0
      %8570 = vmatpush1.msra.mxu0 0.0
      %8571 = vmatprep.subr.mxu0 0.0
      %8572 = vmatpush1.msra.mxu0 0.0
      %8573 = vmatprep.subr.mxu0 0.0
      %8574 = vmatpush1.msra.mxu0 0.0
      %8575 = vmatprep.subr.mxu0 0.0
      %8576 = vmatpush1.msra.mxu0 0.0
      %8577 = vmatprep.subr.mxu0 0.0
      %8578 = vmatpush1.msra.mxu0 0.0
      %8579 = vmatprep.subr.mxu0 0.0
      %8580 = vmatpush1.msra.mxu0 0.0
      %8581 = vmatprep.subr.mxu0 0.0
      %8582 = vmatpush1.msra.mxu0 0.0
      %8583 = vmatprep.subr.mxu0 0.0
      %8584 = vmatpush1.msra.mxu0 0.0
      %8585 = vmatprep.subr.mxu0 0.0
      %8586 = vmatpush1.msra.mxu0 0.0
      %8587 = vmatprep.subr.mxu0 0.0
      %8588 = vmatpush1.msra.mxu0 0.0
      %8589 = vmatprep.subr.mxu0 0.0
      %8590 = vmatpush1.msra.mxu0 0.0
      %8591 = vmatprep.subr.mxu0 0.0
      %8592 = vmatpush1.msra.mxu0 0.0
      %8593 = vmatprep.subr.mxu0 0.0
      %8594 = vmatpush1.msra.mxu0 0.0
      %8595 = vmatprep.subr.mxu0 0.0
      %8596 = vmatpush1.msra.mxu0 0.0
      %8597 = vmatprep.subr.mxu0 0.0
      %8598 = vmatpush1.msra.mxu0 0.0
      %8599 = vmatprep.subr.mxu0 0.0
      %8600 = vmatpush1.msra.mxu0 0.0
      %8601 = vmatprep.subr.mxu0 0.0
      %8602 = vmatpush1.msra.mxu0 0.0
      %8603 = vmatprep.subr.mxu0 0.0
      %8604 = vmatpush1.msra.mxu0 0.0
      %8605 = vmatprep.subr.mxu0 0.0
      %8606 = vmatpush1.msra.mxu0 0.0
      %8607 = vmatprep.subr.mxu0 0.0
      %8608 = vmatpush1.msra.mxu0 0.0
      %8609 = vmatprep.subr.mxu0 0.0
      %8610 = vmatpush1.msra.mxu0 0.0
      %8611 = vmatprep.mubr.f32.mxu0 0.0
      %8612 = vmatmul.mubr.f32.gmra.mrb[0].mxu0 %v8545
      %v8613 = vpop.f32.mrb[0].mxu0
      %v8614 = vadd.f32 0.0, %v8613
      %v8615 = vpop.f32.mrb[0].mxu0
      %v8616 = vadd.f32 0.0, %v8615
      %8617 = vdwg.mxu0
      %8618 = vmatprep.subr.mxu0 0.0
      %8619 = vmatpush1.msra.mxu0 %v8538
      %8620 = vmatprep.subr.mxu0 0.0
      %8621 = vmatpush1.msra.mxu0 0.0
      %8622 = vmatprep.subr.mxu0 0.0
      %8623 = vmatpush1.msra.mxu0 0.0
      %8624 = vmatprep.subr.mxu0 0.0
      %8625 = vmatpush1.msra.mxu0 0.0
      %8626 = vmatprep.subr.mxu0 0.0
      %8627 = vmatpush1.msra.mxu0 0.0
      %8628 = vmatprep.subr.mxu0 0.0
      %8629 = vmatpush1.msra.mxu0 0.0
      %8630 = vmatprep.subr.mxu0 0.0
      %8631 = vmatpush1.msra.mxu0 0.0
      %8632 = vmatprep.subr.mxu0 0.0
      %8633 = vmatpush1.msra.mxu0 0.0
      %8634 = vmatprep.subr.mxu0 0.0
      %8635 = vmatpush1.msra.mxu0 0.0
      %8636 = vmatprep.subr.mxu0 0.0
      %8637 = vmatpush1.msra.mxu0 0.0
      %8638 = vmatprep.subr.mxu0 0.0
      %8639 = vmatpush1.msra.mxu0 0.0
      %8640 = vmatprep.subr.mxu0 0.0
      %8641 = vmatpush1.msra.mxu0 0.0
      %8642 = vmatprep.subr.mxu0 0.0
      %8643 = vmatpush1.msra.mxu0 0.0
      %8644 = vmatprep.subr.mxu0 0.0
      %8645 = vmatpush1.msra.mxu0 0.0
      %8646 = vmatprep.subr.mxu0 0.0
      %8647 = vmatpush1.msra.mxu0 0.0
      %8648 = vmatprep.subr.mxu0 0.0
      %8649 = vmatpush1.msra.mxu0 0.0
      %8650 = vmatprep.subr.mxu0 0.0
      %8651 = vmatpush1.msra.mxu0 0.0
      %8652 = vmatprep.subr.mxu0 0.0
      %8653 = vmatpush1.msra.mxu0 0.0
      %8654 = vmatprep.subr.mxu0 0.0
      %8655 = vmatpush1.msra.mxu0 0.0
      %8656 = vmatprep.subr.mxu0 0.0
      %8657 = vmatpush1.msra.mxu0 0.0
      %8658 = vmatprep.subr.mxu0 0.0
      %8659 = vmatpush1.msra.mxu0 0.0
      %8660 = vmatprep.subr.mxu0 0.0
      %8661 = vmatpush1.msra.mxu0 0.0
      %8662 = vmatprep.subr.mxu0 0.0
      %8663 = vmatpush1.msra.mxu0 0.0
      %8664 = vmatprep.subr.mxu0 0.0
      %8665 = vmatpush1.msra.mxu0 0.0
      %8666 = vmatprep.subr.mxu0 0.0
      %8667 = vmatpush1.msra.mxu0 0.0
      %8668 = vmatprep.subr.mxu0 0.0
      %8669 = vmatpush1.msra.mxu0 0.0
      %8670 = vmatprep.subr.mxu0 0.0
      %8671 = vmatpush1.msra.mxu0 0.0
      %8672 = vmatprep.subr.mxu0 0.0
      %8673 = vmatpush1.msra.mxu0 0.0
      %8674 = vmatprep.subr.mxu0 0.0
      %8675 = vmatpush1.msra.mxu0 0.0
      %8676 = vmatprep.subr.mxu0 0.0
      %8677 = vmatpush1.msra.mxu0 0.0
      %8678 = vmatprep.subr.mxu0 0.0
      %8679 = vmatpush1.msra.mxu0 0.0
      %8680 = vmatprep.subr.mxu0 0.0
      %8681 = vmatpush1.msra.mxu0 0.0
      %8682 = vmatprep.mubr.f32.mxu0 0.0
      %8683 = vmatmul.mubr.f32.gmra.mrb[0].mxu0 %v8545
      %v8684 = vpop.f32.mrb[0].mxu0
      %v8685 = vadd.f32 0.0, %v8684
      %v8686 = vpop.f32.mrb[0].mxu0
      %8687 = vdwg.mxu0
      %v8688 = vadd.f32 %v8528, %v8614
      %v8689 = vadd.f32 %v8529, %v8616
      %v8690 = vadd.f32 %v8530, %v8685
      %s8691 = scalar_lea.vmem %s1, 408
      %v8692 = vld [vmem:[%s8691] sm:$0xff]
      %8693 = vrot.lane.b32.xlu0 %v7731, 111
      %v8694 = vpop.permute.xlu0 %8693
      %8695 = vrot.lane.b32.xlu0 %v7732, 111
      %v8696 = vpop.permute.xlu0 %8695
      %8697 = vrot.lane.b32.xlu0 %v7733, 111
      %v8698 = vpop.permute.xlu0 %8697
      %v8699 = vsel %vm1286, %v8694, %v8696
      %v8700 = vsel %vm1286, %v8696, %v8698
      %v8705 = vsel %vm336, %v8692, 0
      %8707 = vmatprep.subr.mxu0 %v8700
      %8708 = vmatpush1.msra.mxu0 %v8699
      %8709 = vmatprep.subr.mxu0 0.0
      %8710 = vmatpush1.msra.mxu0 0.0
      %8711 = vmatprep.subr.mxu0 0.0
      %8712 = vmatpush1.msra.mxu0 0.0
      %8713 = vmatprep.subr.mxu0 0.0
      %8714 = vmatpush1.msra.mxu0 0.0
      %8715 = vmatprep.subr.mxu0 0.0
      %8716 = vmatpush1.msra.mxu0 0.0
      %8717 = vmatprep.subr.mxu0 0.0
      %8718 = vmatpush1.msra.mxu0 0.0
      %8719 = vmatprep.subr.mxu0 0.0
      %8720 = vmatpush1.msra.mxu0 0.0
      %8721 = vmatprep.subr.mxu0 0.0
      %8722 = vmatpush1.msra.mxu0 0.0
      %8723 = vmatprep.subr.mxu0 0.0
      %8724 = vmatpush1.msra.mxu0 0.0
      %8725 = vmatprep.subr.mxu0 0.0
      %8726 = vmatpush1.msra.mxu0 0.0
      %8727 = vmatprep.subr.mxu0 0.0
      %8728 = vmatpush1.msra.mxu0 0.0
      %8729 = vmatprep.subr.mxu0 0.0
      %8730 = vmatpush1.msra.mxu0 0.0
      %8731 = vmatprep.subr.mxu0 0.0
      %8732 = vmatpush1.msra.mxu0 0.0
      %8733 = vmatprep.subr.mxu0 0.0
      %8734 = vmatpush1.msra.mxu0 0.0
      %8735 = vmatprep.subr.mxu0 0.0
      %8736 = vmatpush1.msra.mxu0 0.0
      %8737 = vmatprep.subr.mxu0 0.0
      %8738 = vmatpush1.msra.mxu0 0.0
      %8739 = vmatprep.subr.mxu0 0.0
      %8740 = vmatpush1.msra.mxu0 0.0
      %8741 = vmatprep.subr.mxu0 0.0
      %8742 = vmatpush1.msra.mxu0 0.0
      %8743 = vmatprep.subr.mxu0 0.0
      %8744 = vmatpush1.msra.mxu0 0.0
      %8745 = vmatprep.subr.mxu0 0.0
      %8746 = vmatpush1.msra.mxu0 0.0
      %8747 = vmatprep.subr.mxu0 0.0
      %8748 = vmatpush1.msra.mxu0 0.0
      %8749 = vmatprep.subr.mxu0 0.0
      %8750 = vmatpush1.msra.mxu0 0.0
      %8751 = vmatprep.subr.mxu0 0.0
      %8752 = vmatpush1.msra.mxu0 0.0
      %8753 = vmatprep.subr.mxu0 0.0
      %8754 = vmatpush1.msra.mxu0 0.0
      %8755 = vmatprep.subr.mxu0 0.0
      %8756 = vmatpush1.msra.mxu0 0.0
      %8757 = vmatprep.subr.mxu0 0.0
      %8758 = vmatpush1.msra.mxu0 0.0
      %8759 = vmatprep.subr.mxu0 0.0
      %8760 = vmatpush1.msra.mxu0 0.0
      %8761 = vmatprep.subr.mxu0 0.0
      %8762 = vmatpush1.msra.mxu0 0.0
      %8763 = vmatprep.subr.mxu0 0.0
      %8764 = vmatpush1.msra.mxu0 0.0
      %8765 = vmatprep.subr.mxu0 0.0
      %8766 = vmatpush1.msra.mxu0 0.0
      %8767 = vmatprep.subr.mxu0 0.0
      %8768 = vmatpush1.msra.mxu0 0.0
      %8769 = vmatprep.subr.mxu0 0.0
      %8770 = vmatpush1.msra.mxu0 0.0
      %8771 = vmatprep.mubr.f32.mxu0 0.0
      %8772 = vmatmul.mubr.f32.gmra.mrb[0].mxu0 %v8705
      %v8773 = vpop.f32.mrb[0].mxu0
      %v8774 = vadd.f32 0.0, %v8773
      %v8775 = vpop.f32.mrb[0].mxu0
      %v8776 = vadd.f32 0.0, %v8775
      %8777 = vdwg.mxu0
      %8778 = vmatprep.subr.mxu0 0.0
      %8779 = vmatpush1.msra.mxu0 %v8698
      %8780 = vmatprep.subr.mxu0 0.0
      %8781 = vmatpush1.msra.mxu0 0.0
      %8782 = vmatprep.subr.mxu0 0.0
      %8783 = vmatpush1.msra.mxu0 0.0
      %8784 = vmatprep.subr.mxu0 0.0
      %8785 = vmatpush1.msra.mxu0 0.0
      %8786 = vmatprep.subr.mxu0 0.0
      %8787 = vmatpush1.msra.mxu0 0.0
      %8788 = vmatprep.subr.mxu0 0.0
      %8789 = vmatpush1.msra.mxu0 0.0
      %8790 = vmatprep.subr.mxu0 0.0
      %8791 = vmatpush1.msra.mxu0 0.0
      %8792 = vmatprep.subr.mxu0 0.0
      %8793 = vmatpush1.msra.mxu0 0.0
      %8794 = vmatprep.subr.mxu0 0.0
      %8795 = vmatpush1.msra.mxu0 0.0
      %8796 = vmatprep.subr.mxu0 0.0
      %8797 = vmatpush1.msra.mxu0 0.0
      %8798 = vmatprep.subr.mxu0 0.0
      %8799 = vmatpush1.msra.mxu0 0.0
      %8800 = vmatprep.subr.mxu0 0.0
      %8801 = vmatpush1.msra.mxu0 0.0
      %8802 = vmatprep.subr.mxu0 0.0
      %8803 = vmatpush1.msra.mxu0 0.0
      %8804 = vmatprep.subr.mxu0 0.0
      %8805 = vmatpush1.msra.mxu0 0.0
      %8806 = vmatprep.subr.mxu0 0.0
      %8807 = vmatpush1.msra.mxu0 0.0
      %8808 = vmatprep.subr.mxu0 0.0
      %8809 = vmatpush1.msra.mxu0 0.0
      %8810 = vmatprep.subr.mxu0 0.0
      %8811 = vmatpush1.msra.mxu0 0.0
      %8812 = vmatprep.subr.mxu0 0.0
      %8813 = vmatpush1.msra.mxu0 0.0
      %8814 = vmatprep.subr.mxu0 0.0
      %8815 = vmatpush1.msra.mxu0 0.0
      %8816 = vmatprep.subr.mxu0 0.0
      %8817 = vmatpush1.msra.mxu0 0.0
      %8818 = vmatprep.subr.mxu0 0.0
      %8819 = vmatpush1.msra.mxu0 0.0
      %8820 = vmatprep.subr.mxu0 0.0
      %8821 = vmatpush1.msra.mxu0 0.0
      %8822 = vmatprep.subr.mxu0 0.0
      %8823 = vmatpush1.msra.mxu0 0.0
      %8824 = vmatprep.subr.mxu0 0.0
      %8825 = vmatpush1.msra.mxu0 0.0
      %8826 = vmatprep.subr.mxu0 0.0
      %8827 = vmatpush1.msra.mxu0 0.0
      %8828 = vmatprep.subr.mxu0 0.0
      %8829 = vmatpush1.msra.mxu0 0.0
      %8830 = vmatprep.subr.mxu0 0.0
      %8831 = vmatpush1.msra.mxu0 0.0
      %8832 = vmatprep.subr.mxu0 0.0
      %8833 = vmatpush1.msra.mxu0 0.0
      %8834 = vmatprep.subr.mxu0 0.0
      %8835 = vmatpush1.msra.mxu0 0.0
      %8836 = vmatprep.subr.mxu0 0.0
      %8837 = vmatpush1.msra.mxu0 0.0
      %8838 = vmatprep.subr.mxu0 0.0
      %8839 = vmatpush1.msra.mxu0 0.0
      %8840 = vmatprep.subr.mxu0 0.0
      %8841 = vmatpush1.msra.mxu0 0.0
      %8842 = vmatprep.mubr.f32.mxu0 0.0
      %8843 = vmatmul.mubr.f32.gmra.mrb[0].mxu0 %v8705
      %v8844 = vpop.f32.mrb[0].mxu0
      %v8845 = vadd.f32 0.0, %v8844
      %v8846 = vpop.f32.mrb[0].mxu0
      %8847 = vdwg.mxu0
      %v8848 = vadd.f32 %v8688, %v8774
      %v8849 = vadd.f32 %v8689, %v8776
      %v8850 = vadd.f32 %v8690, %v8845
      %s8851 = scalar_lea.vmem %s1, 416
      %v8852 = vld [vmem:[%s8851] sm:$0xff]
      %8853 = vrot.lane.b32.xlu0 %v7731, 110
      %v8854 = vpop.permute.xlu0 %8853
      %8855 = vrot.lane.b32.xlu0 %v7732, 110
      %v8856 = vpop.permute.xlu0 %8855
      %8857 = vrot.lane.b32.xlu0 %v7733, 110
      %v8858 = vpop.permute.xlu0 %8857
      %v8859 = vsel %vm1447, %v8854, %v8856
      %v8860 = vsel %vm1447, %v8856, %v8858
      %v8865 = vsel %vm336, %v8852, 0
      %8867 = vmatprep.subr.mxu0 %v8860
      %8868 = vmatpush1.msra.mxu0 %v8859
      %8869 = vmatprep.subr.mxu0 0.0
      %8870 = vmatpush1.msra.mxu0 0.0
      %8871 = vmatprep.subr.mxu0 0.0
      %8872 = vmatpush1.msra.mxu0 0.0
      %8873 = vmatprep.subr.mxu0 0.0
      %8874 = vmatpush1.msra.mxu0 0.0
      %8875 = vmatprep.subr.mxu0 0.0
      %8876 = vmatpush1.msra.mxu0 0.0
      %8877 = vmatprep.subr.mxu0 0.0
      %8878 = vmatpush1.msra.mxu0 0.0
      %8879 = vmatprep.subr.mxu0 0.0
      %8880 = vmatpush1.msra.mxu0 0.0
      %8881 = vmatprep.subr.mxu0 0.0
      %8882 = vmatpush1.msra.mxu0 0.0
      %8883 = vmatprep.subr.mxu0 0.0
      %8884 = vmatpush1.msra.mxu0 0.0
      %8885 = vmatprep.subr.mxu0 0.0
      %8886 = vmatpush1.msra.mxu0 0.0
      %8887 = vmatprep.subr.mxu0 0.0
      %8888 = vmatpush1.msra.mxu0 0.0
      %8889 = vmatprep.subr.mxu0 0.0
      %8890 = vmatpush1.msra.mxu0 0.0
      %8891 = vmatprep.subr.mxu0 0.0
      %8892 = vmatpush1.msra.mxu0 0.0
      %8893 = vmatprep.subr.mxu0 0.0
      %8894 = vmatpush1.msra.mxu0 0.0
      %8895 = vmatprep.subr.mxu0 0.0
      %8896 = vmatpush1.msra.mxu0 0.0
      %8897 = vmatprep.subr.mxu0 0.0
      %8898 = vmatpush1.msra.mxu0 0.0
      %8899 = vmatprep.subr.mxu0 0.0
      %8900 = vmatpush1.msra.mxu0 0.0
      %8901 = vmatprep.subr.mxu0 0.0
      %8902 = vmatpush1.msra.mxu0 0.0
      %8903 = vmatprep.subr.mxu0 0.0
      %8904 = vmatpush1.msra.mxu0 0.0
      %8905 = vmatprep.subr.mxu0 0.0
      %8906 = vmatpush1.msra.mxu0 0.0
      %8907 = vmatprep.subr.mxu0 0.0
      %8908 = vmatpush1.msra.mxu0 0.0
      %8909 = vmatprep.subr.mxu0 0.0
      %8910 = vmatpush1.msra.mxu0 0.0
      %8911 = vmatprep.subr.mxu0 0.0
      %8912 = vmatpush1.msra.mxu0 0.0
      %8913 = vmatprep.subr.mxu0 0.0
      %8914 = vmatpush1.msra.mxu0 0.0
      %8915 = vmatprep.subr.mxu0 0.0
      %8916 = vmatpush1.msra.mxu0 0.0
      %8917 = vmatprep.subr.mxu0 0.0
      %8918 = vmatpush1.msra.mxu0 0.0
      %8919 = vmatprep.subr.mxu0 0.0
      %8920 = vmatpush1.msra.mxu0 0.0
      %8921 = vmatprep.subr.mxu0 0.0
      %8922 = vmatpush1.msra.mxu0 0.0
      %8923 = vmatprep.subr.mxu0 0.0
      %8924 = vmatpush1.msra.mxu0 0.0
      %8925 = vmatprep.subr.mxu0 0.0
      %8926 = vmatpush1.msra.mxu0 0.0
      %8927 = vmatprep.subr.mxu0 0.0
      %8928 = vmatpush1.msra.mxu0 0.0
      %8929 = vmatprep.subr.mxu0 0.0
      %8930 = vmatpush1.msra.mxu0 0.0
      %8931 = vmatprep.mubr.f32.mxu0 0.0
      %8932 = vmatmul.mubr.f32.gmra.mrb[0].mxu0 %v8865
      %v8933 = vpop.f32.mrb[0].mxu0
      %v8934 = vadd.f32 0.0, %v8933
      %v8935 = vpop.f32.mrb[0].mxu0
      %v8936 = vadd.f32 0.0, %v8935
      %8937 = vdwg.mxu0
      %8938 = vmatprep.subr.mxu0 0.0
      %8939 = vmatpush1.msra.mxu0 %v8858
      %8940 = vmatprep.subr.mxu0 0.0
      %8941 = vmatpush1.msra.mxu0 0.0
      %8942 = vmatprep.subr.mxu0 0.0
      %8943 = vmatpush1.msra.mxu0 0.0
      %8944 = vmatprep.subr.mxu0 0.0
      %8945 = vmatpush1.msra.mxu0 0.0
      %8946 = vmatprep.subr.mxu0 0.0
      %8947 = vmatpush1.msra.mxu0 0.0
      %8948 = vmatprep.subr.mxu0 0.0
      %8949 = vmatpush1.msra.mxu0 0.0
      %8950 = vmatprep.subr.mxu0 0.0
      %8951 = vmatpush1.msra.mxu0 0.0
      %8952 = vmatprep.subr.mxu0 0.0
      %8953 = vmatpush1.msra.mxu0 0.0
      %8954 = vmatprep.subr.mxu0 0.0
      %8955 = vmatpush1.msra.mxu0 0.0
      %8956 = vmatprep.subr.mxu0 0.0
      %8957 = vmatpush1.msra.mxu0 0.0
      %8958 = vmatprep.subr.mxu0 0.0
      %8959 = vmatpush1.msra.mxu0 0.0
      %8960 = vmatprep.subr.mxu0 0.0
      %8961 = vmatpush1.msra.mxu0 0.0
      %8962 = vmatprep.subr.mxu0 0.0
      %8963 = vmatpush1.msra.mxu0 0.0
      %8964 = vmatprep.subr.mxu0 0.0
      %8965 = vmatpush1.msra.mxu0 0.0
      %8966 = vmatprep.subr.mxu0 0.0
      %8967 = vmatpush1.msra.mxu0 0.0
      %8968 = vmatprep.subr.mxu0 0.0
      %8969 = vmatpush1.msra.mxu0 0.0
      %8970 = vmatprep.subr.mxu0 0.0
      %8971 = vmatpush1.msra.mxu0 0.0
      %8972 = vmatprep.subr.mxu0 0.0
      %8973 = vmatpush1.msra.mxu0 0.0
      %8974 = vmatprep.subr.mxu0 0.0
      %8975 = vmatpush1.msra.mxu0 0.0
      %8976 = vmatprep.subr.mxu0 0.0
      %8977 = vmatpush1.msra.mxu0 0.0
      %8978 = vmatprep.subr.mxu0 0.0
      %8979 = vmatpush1.msra.mxu0 0.0
      %8980 = vmatprep.subr.mxu0 0.0
      %8981 = vmatpush1.msra.mxu0 0.0
      %8982 = vmatprep.subr.mxu0 0.0
      %8983 = vmatpush1.msra.mxu0 0.0
      %8984 = vmatprep.subr.mxu0 0.0
      %8985 = vmatpush1.msra.mxu0 0.0
      %8986 = vmatprep.subr.mxu0 0.0
      %8987 = vmatpush1.msra.mxu0 0.0
      %8988 = vmatprep.subr.mxu0 0.0
      %8989 = vmatpush1.msra.mxu0 0.0
      %8990 = vmatprep.subr.mxu0 0.0
      %8991 = vmatpush1.msra.mxu0 0.0
      %8992 = vmatprep.subr.mxu0 0.0
      %8993 = vmatpush1.msra.mxu0 0.0
      %8994 = vmatprep.subr.mxu0 0.0
      %8995 = vmatpush1.msra.mxu0 0.0
      %8996 = vmatprep.subr.mxu0 0.0
      %8997 = vmatpush1.msra.mxu0 0.0
      %8998 = vmatprep.subr.mxu0 0.0
      %8999 = vmatpush1.msra.mxu0 0.0
      %9000 = vmatprep.subr.mxu0 0.0
      %9001 = vmatpush1.msra.mxu0 0.0
      %9002 = vmatprep.mubr.f32.mxu0 0.0
      %9003 = vmatmul.mubr.f32.gmra.mrb[0].mxu0 %v8865
      %v9004 = vpop.f32.mrb[0].mxu0
      %v9005 = vadd.f32 0.0, %v9004
      %v9006 = vpop.f32.mrb[0].mxu0
      %9007 = vdwg.mxu0
      %v9008 = vadd.f32 %v8848, %v8934
      %v9009 = vadd.f32 %v8849, %v8936
      %v9010 = vadd.f32 %v8850, %v9005
      %s9011 = scalar_lea.vmem %s1, 424
      %v9012 = vld [vmem:[%s9011] sm:$0xff]
      %9013 = vrot.lane.b32.xlu0 %v7731, 109
      %v9014 = vpop.permute.xlu0 %9013
      %9015 = vrot.lane.b32.xlu0 %v7732, 109
      %v9016 = vpop.permute.xlu0 %9015
      %9017 = vrot.lane.b32.xlu0 %v7733, 109
      %v9018 = vpop.permute.xlu0 %9017
      %v9019 = vsel %vm1608, %v9014, %v9016
      %v9020 = vsel %vm1608, %v9016, %v9018
      %v9025 = vsel %vm336, %v9012, 0
      %9027 = vmatprep.subr.mxu0 %v9020
      %9028 = vmatpush1.msra.mxu0 %v9019
      %9029 = vmatprep.subr.mxu0 0.0
      %9030 = vmatpush1.msra.mxu0 0.0
      %9031 = vmatprep.subr.mxu0 0.0
      %9032 = vmatpush1.msra.mxu0 0.0
      %9033 = vmatprep.subr.mxu0 0.0
      %9034 = vmatpush1.msra.mxu0 0.0
      %9035 = vmatprep.subr.mxu0 0.0
      %9036 = vmatpush1.msra.mxu0 0.0
      %9037 = vmatprep.subr.mxu0 0.0
      %9038 = vmatpush1.msra.mxu0 0.0
      %9039 = vmatprep.subr.mxu0 0.0
      %9040 = vmatpush1.msra.mxu0 0.0
      %9041 = vmatprep.subr.mxu0 0.0
      %9042 = vmatpush1.msra.mxu0 0.0
      %9043 = vmatprep.subr.mxu0 0.0
      %9044 = vmatpush1.msra.mxu0 0.0
      %9045 = vmatprep.subr.mxu0 0.0
      %9046 = vmatpush1.msra.mxu0 0.0
      %9047 = vmatprep.subr.mxu0 0.0
      %9048 = vmatpush1.msra.mxu0 0.0
      %9049 = vmatprep.subr.mxu0 0.0
      %9050 = vmatpush1.msra.mxu0 0.0
      %9051 = vmatprep.subr.mxu0 0.0
      %9052 = vmatpush1.msra.mxu0 0.0
      %9053 = vmatprep.subr.mxu0 0.0
      %9054 = vmatpush1.msra.mxu0 0.0
      %9055 = vmatprep.subr.mxu0 0.0
      %9056 = vmatpush1.msra.mxu0 0.0
      %9057 = vmatprep.subr.mxu0 0.0
      %9058 = vmatpush1.msra.mxu0 0.0
      %9059 = vmatprep.subr.mxu0 0.0
      %9060 = vmatpush1.msra.mxu0 0.0
      %9061 = vmatprep.subr.mxu0 0.0
      %9062 = vmatpush1.msra.mxu0 0.0
      %9063 = vmatprep.subr.mxu0 0.0
      %9064 = vmatpush1.msra.mxu0 0.0
      %9065 = vmatprep.subr.mxu0 0.0
      %9066 = vmatpush1.msra.mxu0 0.0
      %9067 = vmatprep.subr.mxu0 0.0
      %9068 = vmatpush1.msra.mxu0 0.0
      %9069 = vmatprep.subr.mxu0 0.0
      %9070 = vmatpush1.msra.mxu0 0.0
      %9071 = vmatprep.subr.mxu0 0.0
      %9072 = vmatpush1.msra.mxu0 0.0
      %9073 = vmatprep.subr.mxu0 0.0
      %9074 = vmatpush1.msra.mxu0 0.0
      %9075 = vmatprep.subr.mxu0 0.0
      %9076 = vmatpush1.msra.mxu0 0.0
      %9077 = vmatprep.subr.mxu0 0.0
      %9078 = vmatpush1.msra.mxu0 0.0
      %9079 = vmatprep.subr.mxu0 0.0
      %9080 = vmatpush1.msra.mxu0 0.0
      %9081 = vmatprep.subr.mxu0 0.0
      %9082 = vmatpush1.msra.mxu0 0.0
      %9083 = vmatprep.subr.mxu0 0.0
      %9084 = vmatpush1.msra.mxu0 0.0
      %9085 = vmatprep.subr.mxu0 0.0
      %9086 = vmatpush1.msra.mxu0 0.0
      %9087 = vmatprep.subr.mxu0 0.0
      %9088 = vmatpush1.msra.mxu0 0.0
      %9089 = vmatprep.subr.mxu0 0.0
      %9090 = vmatpush1.msra.mxu0 0.0
      %9091 = vmatprep.mubr.f32.mxu0 0.0
      %9092 = vmatmul.mubr.f32.gmra.mrb[0].mxu0 %v9025
      %v9093 = vpop.f32.mrb[0].mxu0
      %v9094 = vadd.f32 0.0, %v9093
      %v9095 = vpop.f32.mrb[0].mxu0
      %v9096 = vadd.f32 0.0, %v9095
      %9097 = vdwg.mxu0
      %9098 = vmatprep.subr.mxu0 0.0
      %9099 = vmatpush1.msra.mxu0 %v9018
      %9100 = vmatprep.subr.mxu0 0.0
      %9101 = vmatpush1.msra.mxu0 0.0
      %9102 = vmatprep.subr.mxu0 0.0
      %9103 = vmatpush1.msra.mxu0 0.0
      %9104 = vmatprep.subr.mxu0 0.0
      %9105 = vmatpush1.msra.mxu0 0.0
      %9106 = vmatprep.subr.mxu0 0.0
      %9107 = vmatpush1.msra.mxu0 0.0
      %9108 = vmatprep.subr.mxu0 0.0
      %9109 = vmatpush1.msra.mxu0 0.0
      %9110 = vmatprep.subr.mxu0 0.0
      %9111 = vmatpush1.msra.mxu0 0.0
      %9112 = vmatprep.subr.mxu0 0.0
      %9113 = vmatpush1.msra.mxu0 0.0
      %9114 = vmatprep.subr.mxu0 0.0
      %9115 = vmatpush1.msra.mxu0 0.0
      %9116 = vmatprep.subr.mxu0 0.0
      %9117 = vmatpush1.msra.mxu0 0.0
      %9118 = vmatprep.subr.mxu0 0.0
      %9119 = vmatpush1.msra.mxu0 0.0
      %9120 = vmatprep.subr.mxu0 0.0
      %9121 = vmatpush1.msra.mxu0 0.0
      %9122 = vmatprep.subr.mxu0 0.0
      %9123 = vmatpush1.msra.mxu0 0.0
      %9124 = vmatprep.subr.mxu0 0.0
      %9125 = vmatpush1.msra.mxu0 0.0
      %9126 = vmatprep.subr.mxu0 0.0
      %9127 = vmatpush1.msra.mxu0 0.0
      %9128 = vmatprep.subr.mxu0 0.0
      %9129 = vmatpush1.msra.mxu0 0.0
      %9130 = vmatprep.subr.mxu0 0.0
      %9131 = vmatpush1.msra.mxu0 0.0
      %9132 = vmatprep.subr.mxu0 0.0
      %9133 = vmatpush1.msra.mxu0 0.0
      %9134 = vmatprep.subr.mxu0 0.0
      %9135 = vmatpush1.msra.mxu0 0.0
      %9136 = vmatprep.subr.mxu0 0.0
      %9137 = vmatpush1.msra.mxu0 0.0
      %9138 = vmatprep.subr.mxu0 0.0
      %9139 = vmatpush1.msra.mxu0 0.0
      %9140 = vmatprep.subr.mxu0 0.0
      %9141 = vmatpush1.msra.mxu0 0.0
      %9142 = vmatprep.subr.mxu0 0.0
      %9143 = vmatpush1.msra.mxu0 0.0
      %9144 = vmatprep.subr.mxu0 0.0
      %9145 = vmatpush1.msra.mxu0 0.0
      %9146 = vmatprep.subr.mxu0 0.0
      %9147 = vmatpush1.msra.mxu0 0.0
      %9148 = vmatprep.subr.mxu0 0.0
      %9149 = vmatpush1.msra.mxu0 0.0
      %9150 = vmatprep.subr.mxu0 0.0
      %9151 = vmatpush1.msra.mxu0 0.0
      %9152 = vmatprep.subr.mxu0 0.0
      %9153 = vmatpush1.msra.mxu0 0.0
      %9154 = vmatprep.subr.mxu0 0.0
      %9155 = vmatpush1.msra.mxu0 0.0
      %9156 = vmatprep.subr.mxu0 0.0
      %9157 = vmatpush1.msra.mxu0 0.0
      %9158 = vmatprep.subr.mxu0 0.0
      %9159 = vmatpush1.msra.mxu0 0.0
      %9160 = vmatprep.subr.mxu0 0.0
      %9161 = vmatpush1.msra.mxu0 0.0
      %9162 = vmatprep.mubr.f32.mxu0 0.0
      %9163 = vmatmul.mubr.f32.gmra.mrb[0].mxu0 %v9025
      %v9164 = vpop.f32.mrb[0].mxu0
      %v9165 = vadd.f32 0.0, %v9164
      %v9166 = vpop.f32.mrb[0].mxu0
      %9167 = vdwg.mxu0
      %v9168 = vadd.f32 %v9008, %v9094
      %v9169 = vadd.f32 %v9009, %v9096
      %v9170 = vadd.f32 %v9010, %v9165
      %s9171 = scalar_lea.vmem %s2, 40
      %v9172 = vld [vmem:[%s9171] sm:$0xff]
      %9174 = vset.pattern.permute.xlu0 0
      %9175 = vperm.xlu0 %9174, %v9172
      %v9176 = vpop.permute.xlu0 %9175
      %v9178 = vadd.f32 %v9168, %v9176
      %v9179 = vadd.f32 %v9169, %v9176
      %v9180 = vadd.f32 %v9170, %v9176
      %9181 = vst [vmem:[%s286] sm:$0xff] %v7719
      %9182 = vst [vmem:[%s286 + $0x8] sm:$0xff] %v7720
      %9183 = vst.msk [vmem:[%s286 + $0x10] sm:$0xff] %vm1812, %v7721
      %9184 = vst [vmem:[%s291] sm:$0xff] %v9178
      %9185 = vst [vmem:[%s291 + $0x8] sm:$0xff] %v9179
      %9186 = vst.msk [vmem:[%s291 + $0x10] sm:$0xff] %vm1812, %v9180
      %p9187 = scmp.lt.s32.totalorder %s19, 1
      %s9188 = scalar_select %p9187, %s19, 1
      %s9189 = smul.addr %s9188, 3
      %s9190 = smul.addr %s9189, 8
      %s9191 = scalar_lea.vmem %s6, %s9190
      %p9192 = scmp.lt.s32.totalorder %s19, 1
      %s9193 = scalar_select %p9192, %s19, 1
      %s9194 = smul.addr %s9193, 3
      %s9195 = smul.addr %s9194, 8
      %s9196 = scalar_lea.vmem %s7, %s9195
      // Predicated region
      $region45: #{first_block_forward.1} parent=43 // pred_check
        %p9197 = pneg %p168
      $region46: #{first_block_forward.1} parent=43 // pred_check_branch
        %9199 = sbr.rel (%p9197) target = $region48
      $region47: #{first_block_forward.1} parent=43 // pred_region
        _
      $region48: #{first_block_forward.1} parent=43 // pred_fallthru
        _
      // Predicated region
      $region49: #{first_block_forward.1} parent=43 // pred_check
        %p9200 = pneg %p194
      $region50: #{first_block_forward.1} parent=43 // pred_check_branch
        %9202 = sbr.rel (%p9200) target = $region52
      $region51: #{first_block_forward.1} parent=43 // pred_region
        _
      $region52: #{first_block_forward.1} parent=43 // pred_fallthru
        _
    $region44: #{first_block_forward.1} parent=5 // pred_fallthru
      _
    %p9203 = scmp.le.s32.totalorder 2, %s14
    // Predicated region
    $region53: #{first_block_forward.1} parent=5 // pred_check
      %p9204 = pneg %p9203
    $region54: #{first_block_forward.1} parent=5 // pred_check_branch
      %9206 = sbr.rel (%p9204) target = $region56
    $region55: #{first_block_forward.1} parent=5 // pred_region
      %s9207 = ssub.s32 %s14, 2
      // Predicated region
      $region57: #{first_block_forward.1} parent=55 // pred_check
        %p9208 = pneg %p174
      $region58: #{first_block_forward.1} parent=55 // pred_check_branch
        %9210 = sbr.rel (%p9208) target = $region60
      $region59: #{first_block_forward.1} parent=55 // pred_region
        %p9211 = scmp.lt.s32.totalorder %s20, 1
        %s9212 = scalar_select %p9211, %s20, 1
        %s9213 = smul.addr %s9212, 3
        %s9214 = smul.addr %s9213, 8
        %s9215 = scalar_lea.vmem %s6, %s9214
      $region60: #{first_block_forward.1} parent=55 // pred_fallthru
        _
      // Predicated region
      $region61: #{first_block_forward.1} parent=55 // pred_check
        %p9216 = pneg %p200
      $region62: #{first_block_forward.1} parent=55 // pred_check_branch
        %9218 = sbr.rel (%p9216) target = $region64
      $region63: #{first_block_forward.1} parent=55 // pred_region
        %p9219 = scmp.lt.s32.totalorder %s20, 1
        %s9220 = scalar_select %p9219, %s20, 1
        %s9221 = smul.addr %s9220, 3
        %s9222 = smul.addr %s9221, 8
        %s9223 = scalar_lea.vmem %s7, %s9222
      $region64: #{first_block_forward.1} parent=55 // pred_fallthru
        _
    $region56: #{first_block_forward.1} parent=5 // pred_fallthru
      _
  $region6: #{first_block_forward.1} parent=0 // loop_footer
    %s18 = sadd.s32 1, %s14
  $region7: #{first_block_forward.1} parent=0 // loop_footer_branch
    %13 = sbr.rel target = $region3
  $region8: #{first_block_forward.1} parent=0 // loop_exit
    _

</llo_original>
